<compile_context>
chip_gen: v7x
topology: tpu7x:2x2x1
jax: 0.10.0
libtpu: 0.0.40
codegen_flags: <defaults>
</compile_context>

<pallas_src>
import functools

import jax
import jax.numpy as jnp
from jax.experimental import pallas as pl
from jax.experimental.pallas import tpu as pltpu

LN_EPS = 1e-5   # torch.nn.LayerNorm default eps


def _layernorm(y, gamma, beta, eps):
    # one-pass mean/variance (E[x^2]-E[x]^2), rsqrt on the EUP slot
    mu = jnp.mean(y, axis=-1, keepdims=True)
    ms = jnp.mean(y * y, axis=-1, keepdims=True)
    var = ms - mu * mu
    return (y - mu) * jax.lax.rsqrt(var + eps) * gamma + beta


def _s2sgru_kernel(*refs, S, C, H, L, offset, eps):
    o_ref = refs[-1]
    it = iter(refs[:-1])
    nxt = lambda: next(it)

    cate_x = nxt()[0]            # (S, C) int32
    cont_x = nxt()[0]            # (S, Fc) f32
    emb = nxt()[...]             # (offset, E) bf16, row 0 == 0 (padding_idx=0)

    # --- CateEmbeddingProjector: embedding gather as one-hot matmul ----------
    iota = jax.lax.broadcasted_iota(jnp.int32, (S, offset), 1)
    parts = []
    for c in range(C):
        onehot = (iota == cate_x[:, c:c + 1]).astype(jnp.bfloat16)    # (S, offset)
        parts.append(jnp.dot(onehot, emb, preferred_element_type=jnp.float32))
    cate_g = jnp.concatenate(parts, axis=-1)                          # (S, C*E)

    def linear_ln(x, relu_in=False):
        w, b, g, be = nxt()[...], nxt()[...], nxt()[...], nxt()[...]
        if relu_in:                                  # comb_proj_layer starts with ReLU
            x = jnp.maximum(x, 0.0)
        y = jnp.dot(x.astype(jnp.bfloat16), w,
                    preferred_element_type=jnp.float32) + b
        return _layernorm(y, g, be, eps)

    cate_p = linear_ln(cate_g)                       # (S, cate_proj_dim)
    cont_p = linear_ln(cont_x)                       # (S, cont_proj_dim)
    comb = jnp.concatenate([cate_p, cont_p], axis=-1)
    x = linear_ln(comb, relu_in=True)                # (S, H) == comb_proj_x

    # --- fused GRU pass (one direction, one layer) ----------------------------
    def gru_pass(seq, h0, reverse):
        w_ih, w_hh, b_ih, b_hh = nxt()[...], nxt()[...], nxt()[...], nxt()[...]
        # input-to-hidden gates for all timesteps in ONE matmul
        gx = jnp.dot(seq.astype(jnp.bfloat16), w_ih,
                     preferred_element_type=jnp.float32) + b_ih       # (S, 3H)
        outs = [None] * S
        h = h0
        order = range(S - 1, -1, -1) if reverse else range(S)
        for t in order:                              # static unroll, S is small
            gxt = gx[t:t + 1, :]
            gh = jnp.dot(h.astype(jnp.bfloat16), w_hh,
                         preferred_element_type=jnp.float32) + b_hh   # (1, 3H)
            r = jax.nn.sigmoid(gxt[:, :H] + gh[:, :H])
            z = jax.nn.sigmoid(gxt[:, H:2 * H] + gh[:, H:2 * H])
            n = jnp.tanh(gxt[:, 2 * H:] + r * gh[:, 2 * H:])
            h = (1.0 - z) * n + z * h
            outs[t] = h
        return jnp.concatenate(outs, axis=0), h      # (S, H), (1, H)

    # --- GRUEncoder: bidirectional, L layers, h0 = 0 ---------------------------
    zero_h = jnp.zeros((1, H), jnp.float32)
    h_n = []                                         # flat [l0_f, l0_b, l1_f, l1_b, ...]
    inp = x
    for _ in range(L):
        out_f, hf = gru_pass(inp, zero_h, reverse=False)
        out_b, hb = gru_pass(inp, zero_h, reverse=True)
        h_n += [hf, hb]
        inp = jnp.concatenate([out_f, out_b], axis=-1)                # (S, 2H)
    encoder_states = inp                                              # (S, 2H)

    # encoder fc: cat(hidden[0:L], hidden[L:2L], dim=-1) -> Linear -> LayerNorm
    fc_w, fc_b, fc_g, fc_be = nxt()[...], nxt()[...], nxt()[...], nxt()[...]
    dec_h = []
    for j in range(L):
        hcat = jnp.concatenate([h_n[j], h_n[L + j]], axis=-1)         # (1, 2H)
        y = jnp.dot(hcat.astype(jnp.bfloat16), fc_w,
                    preferred_element_type=jnp.float32) + fc_b
        dec_h.append(_layernorm(y, fc_g, fc_be, eps))                 # (1, H)

    # --- GRUDecoder attention: Softmax_dim0(ReLU(Linear_3H->1([h_rep; enc]))) --
    e_w, e_b = nxt()[...], nxt()[...]                # (1, 3H) f32, (1, 1) f32
    h_stack = jnp.concatenate(dec_h, axis=0)                          # (L, H)
    h_rep = jnp.concatenate([h_stack] * (S // L), axis=0)             # (S, H)
    he = jnp.concatenate([h_rep, encoder_states], axis=-1)            # (S, 3H)
    e = jnp.maximum(jnp.sum(he * e_w, axis=-1, keepdims=True) + e_b, 0.0)   # (S, 1)
    e = e - jnp.max(e, axis=0, keepdims=True)
    p = jnp.exp(e)
    attn = p * pl.reciprocal(jnp.sum(p, axis=0, keepdims=True), approx=True)
    ctx = jnp.sum(attn * encoder_states, axis=0, keepdims=True)       # (1, 2H)
    gin = jnp.concatenate([jnp.broadcast_to(ctx, (S, 2 * H)), x], axis=-1)  # (S, 3H)

    # --- decoder GRU: unidirectional, L layers, h0 from encoder fc -------------
    inp = gin
    for l in range(L):
        inp, _ = gru_pass(inp, dec_h[l], reverse=False)               # (S, H)

    # --- final head: Linear -> LayerNorm -> Dropout(id) -> ReLU -> Linear(H,1) -
    w1, b1, g1, be1 = nxt()[...], nxt()[...], nxt()[...], nxt()[...]
    w2, b2 = nxt()[...], nxt()[...]
    y = jnp.dot(inp.astype(jnp.bfloat16), w1,
                preferred_element_type=jnp.float32) + b1
    y = jnp.maximum(_layernorm(y, g1, be1, eps), 0.0)  # Dropout is identity at inference
    o_ref[0] = jnp.sum(y * w2, axis=-1, keepdims=True) + b2           # (S, 1)


# ------------------------------ parameter setup ------------------------------

def init_params(key, args):
    H, L = args["hidden_dim"], args["n_layers"]
    E, C = args["cate_emb_dim"], args["cate_num"]
    P1, P2 = args["cate_proj_dim"], args["cont_proj_dim"]
    Fc, offset = args["cont_num"], args["offset"]

    kit = iter(jax.random.split(key, 256))

    def nrm(shape, scale=0.1, dtype=jnp.bfloat16):
        return (scale * jax.random.normal(next(kit), shape, jnp.float32)).astype(dtype)

    def lin_ln(din, dout):
        return [nrm((din, dout)),                       # W  (bf16, (in, out))
                jnp.zeros((1, dout), jnp.float32),      # b
                jnp.ones((1, dout), jnp.float32),       # LN gamma
                jnp.zeros((1, dout), jnp.float32)]      # LN beta

    def gru_cell(din):
        return [nrm((din, 3 * H)),                      # W_ih  (gate order r,z,n)
                nrm((H, 3 * H)),                        # W_hh
                jnp.zeros((1, 3 * H), jnp.float32),     # b_ih
                jnp.zeros((1, 3 * H), jnp.float32)]     # b_hh

    flat = [nrm((offset, E), 1.0).at[0].set(0.0)]       # embedding, padding_idx=0
    flat += lin_ln(C * E, P1)                           # cate_proj
    flat += lin_ln(Fc, P2)                              # cont_proj
    flat += lin_ln(P1 + P2, H)                          # comb_proj (ReLU in-kernel)
    for l in range(L):                                  # encoder: fwd cell, bwd cell
        din = H if l == 0 else 2 * H
        flat += gru_cell(din) + gru_cell(din)
    flat += lin_ln(2 * H, H)                            # encoder fc
    flat += [nrm((1, 3 * H), 0.1, jnp.float32),         # energy Linear(3H,1) weight
             jnp.zeros((1, 1), jnp.float32)]            # energy bias
    for l in range(L):                                  # decoder GRU
        din = 3 * H if l == 0 else H
        flat += gru_cell(din)
    flat += lin_ln(H, H)                                # final Linear(H,H)+LN
    flat += [nrm((1, H), 0.1, jnp.float32),             # final Linear(H,1) weight
             jnp.zeros((1, 1), jnp.float32)]            # final bias
    return flat


# -------------------------------- forward pass --------------------------------

def s2sgru_forward(flat_params, cate_x, cont_x, mask, targets, args):
    # mask / targets are accepted for parity with the torch forward, but (as in
    # the reference) they never influence the computed output.
    del mask, targets
    B, S, C = cate_x.shape
    Fc = cont_x.shape[-1]
    H, L, offset = args["hidden_dim"], args["n_layers"], args["offset"]
    assert S % L == 0, "decoder h_reshape requires max_seq_len % n_layers == 0"

    all_args = (cate_x, cont_x, *flat_params)
    total_bytes = sum(int(a.size) * a.dtype.itemsize for a in all_args) + B * S * 4
    vmem_limit = int(min(64 * 2**20, max(16 * 2**20, 8 * total_bytes)))

    in_specs = [pl.BlockSpec((1, S, C), lambda i: (i, 0, 0)),
                pl.BlockSpec((1, S, Fc), lambda i: (i, 0, 0))]
    in_specs += [pl.BlockSpec(p.shape, lambda i, nd=p.ndim: (0,) * nd)
                 for p in flat_params]

    out = pl.pallas_call(
        functools.partial(_s2sgru_kernel, S=S, C=C, H=H, L=L,
                          offset=offset, eps=LN_EPS),
        out_shape=jax.ShapeDtypeStruct((B, S, 1), jnp.float32),
        grid=(B,),
        in_specs=in_specs,
        out_specs=pl.BlockSpec((1, S, 1), lambda i: (i, 0, 0)),
        compiler_params=pltpu.CompilerParams(
            dimension_semantics=("parallel",),      # batch across TCs on v7x
            vmem_limit_bytes=vmem_limit),
    )(*all_args)
    return out.reshape(B, S)                        # == torch out.squeeze(-1)


if __name__ == "__main__":
    args = dict(offset=16, cate_num=3, cate_emb_dim=8, cate_proj_dim=16,
                cont_num=4, cont_proj_dim=16, hidden_dim=32, n_layers=2,
                max_seq_len=8, drop_out=0.1)

    key = jax.random.PRNGKey(0)
    pkey, dkey = jax.random.split(key)
    params = init_params(pkey, args)

    B, S = 2, args["max_seq_len"]
    k1, k2, k3 = jax.random.split(dkey, 3)
    cate_x = jax.random.randint(k1, (B, S, args["cate_num"]), 0, args["offset"],
                                dtype=jnp.int32)
    cont_x = jax.random.normal(k2, (B, S, args["cont_num"]), dtype=jnp.float32)
    mask = jnp.ones((B, S), jnp.float32)
    targets = (jax.random.uniform(k3, (B, S)) > 0.5).astype(jnp.float32)

    out = jax.block_until_ready(
        s2sgru_forward(params, cate_x, cont_x, mask, targets, args))
    assert out.shape == (B, S) and out.dtype == jnp.float32
    print("KERNEL_OK")
</pallas_src>

<mosaic_0001>
module attributes {stable_mosaic.version = 11 : i64} {
  func.func @_s2sgru_kernel(%arg0: i32, %arg1: memref<1x8x3xi32, #tpu.memory_space<vmem>>, %arg2: memref<1x8x4xf32, #tpu.memory_space<vmem>>, %arg3: memref<16x8xbf16, #tpu.memory_space<vmem>>, %arg4: memref<24x16xbf16, #tpu.memory_space<vmem>>, %arg5: memref<1x16xf32, #tpu.memory_space<vmem>>, %arg6: memref<1x16xf32, #tpu.memory_space<vmem>>, %arg7: memref<1x16xf32, #tpu.memory_space<vmem>>, %arg8: memref<4x16xbf16, #tpu.memory_space<vmem>>, %arg9: memref<1x16xf32, #tpu.memory_space<vmem>>, %arg10: memref<1x16xf32, #tpu.memory_space<vmem>>, %arg11: memref<1x16xf32, #tpu.memory_space<vmem>>, %arg12: memref<32x32xbf16, #tpu.memory_space<vmem>>, %arg13: memref<1x32xf32, #tpu.memory_space<vmem>>, %arg14: memref<1x32xf32, #tpu.memory_space<vmem>>, %arg15: memref<1x32xf32, #tpu.memory_space<vmem>>, %arg16: memref<32x96xbf16, #tpu.memory_space<vmem>>, %arg17: memref<32x96xbf16, #tpu.memory_space<vmem>>, %arg18: memref<1x96xf32, #tpu.memory_space<vmem>>, %arg19: memref<1x96xf32, #tpu.memory_space<vmem>>, %arg20: memref<32x96xbf16, #tpu.memory_space<vmem>>, %arg21: memref<32x96xbf16, #tpu.memory_space<vmem>>, %arg22: memref<1x96xf32, #tpu.memory_space<vmem>>, %arg23: memref<1x96xf32, #tpu.memory_space<vmem>>, %arg24: memref<64x96xbf16, #tpu.memory_space<vmem>>, %arg25: memref<32x96xbf16, #tpu.memory_space<vmem>>, %arg26: memref<1x96xf32, #tpu.memory_space<vmem>>, %arg27: memref<1x96xf32, #tpu.memory_space<vmem>>, %arg28: memref<64x96xbf16, #tpu.memory_space<vmem>>, %arg29: memref<32x96xbf16, #tpu.memory_space<vmem>>, %arg30: memref<1x96xf32, #tpu.memory_space<vmem>>, %arg31: memref<1x96xf32, #tpu.memory_space<vmem>>, %arg32: memref<64x32xbf16, #tpu.memory_space<vmem>>, %arg33: memref<1x32xf32, #tpu.memory_space<vmem>>, %arg34: memref<1x32xf32, #tpu.memory_space<vmem>>, %arg35: memref<1x32xf32, #tpu.memory_space<vmem>>, %arg36: memref<1x96xf32, #tpu.memory_space<vmem>>, %arg37: memref<1x1xf32, #tpu.memory_space<vmem>>, %arg38: memref<96x96xbf16, #tpu.memory_space<vmem>>, %arg39: memref<32x96xbf16, #tpu.memory_space<vmem>>, %arg40: memref<1x96xf32, #tpu.memory_space<vmem>>, %arg41: memref<1x96xf32, #tpu.memory_space<vmem>>, %arg42: memref<32x96xbf16, #tpu.memory_space<vmem>>, %arg43: memref<32x96xbf16, #tpu.memory_space<vmem>>, %arg44: memref<1x96xf32, #tpu.memory_space<vmem>>, %arg45: memref<1x96xf32, #tpu.memory_space<vmem>>, %arg46: memref<32x32xbf16, #tpu.memory_space<vmem>>, %arg47: memref<1x32xf32, #tpu.memory_space<vmem>>, %arg48: memref<1x32xf32, #tpu.memory_space<vmem>>, %arg49: memref<1x32xf32, #tpu.memory_space<vmem>>, %arg50: memref<1x32xf32, #tpu.memory_space<vmem>>, %arg51: memref<1x1xf32, #tpu.memory_space<vmem>>, %arg52: memref<1x8x1xf32, #tpu.memory_space<vmem>>) attributes {dimension_semantics = [#tpu.dimension_semantics<parallel>], iteration_bounds = array<i64: 2>, scalar_prefetch = 0 : i64, scratch_operands = 0 : i64, tpu.core_type = #tpu.core_type<tc>, window_params = [{transform_indices = @transform_0, window_bounds = array<i64: 1, 8, 3>}, {transform_indices = @transform_1, window_bounds = array<i64: 1, 8, 4>}, {pipeline_mode = #tpu.pipeline_mode<synchronous>, transform_indices = @transform_2, window_bounds = array<i64: 16, 8>}, {pipeline_mode = #tpu.pipeline_mode<synchronous>, transform_indices = @transform_3, window_bounds = array<i64: 24, 16>}, {pipeline_mode = #tpu.pipeline_mode<synchronous>, transform_indices = @transform_4, window_bounds = array<i64: 1, 16>}, {pipeline_mode = #tpu.pipeline_mode<synchronous>, transform_indices = @transform_5, window_bounds = array<i64: 1, 16>}, {pipeline_mode = #tpu.pipeline_mode<synchronous>, transform_indices = @transform_6, window_bounds = array<i64: 1, 16>}, {pipeline_mode = #tpu.pipeline_mode<synchronous>, transform_indices = @transform_7, window_bounds = array<i64: 4, 16>}, {pipeline_mode = #tpu.pipeline_mode<synchronous>, transform_indices = @transform_8, window_bounds = array<i64: 1, 16>}, {pipeline_mode = #tpu.pipeline_mode<synchronous>, transform_indices = @transform_9, window_bounds = array<i64: 1, 16>}, {pipeline_mode = #tpu.pipeline_mode<synchronous>, transform_indices = @transform_10, window_bounds = array<i64: 1, 16>}, {pipeline_mode = #tpu.pipeline_mode<synchronous>, transform_indices = @transform_11, window_bounds = array<i64: 32, 32>}, {pipeline_mode = #tpu.pipeline_mode<synchronous>, transform_indices = @transform_12, window_bounds = array<i64: 1, 32>}, {pipeline_mode = #tpu.pipeline_mode<synchronous>, transform_indices = @transform_13, window_bounds = array<i64: 1, 32>}, {pipeline_mode = #tpu.pipeline_mode<synchronous>, transform_indices = @transform_14, window_bounds = array<i64: 1, 32>}, {pipeline_mode = #tpu.pipeline_mode<synchronous>, transform_indices = @transform_15, window_bounds = array<i64: 32, 96>}, {pipeline_mode = #tpu.pipeline_mode<synchronous>, transform_indices = @transform_16, window_bounds = array<i64: 32, 96>}, {pipeline_mode = #tpu.pipeline_mode<synchronous>, transform_indices = @transform_17, window_bounds = array<i64: 1, 96>}, {pipeline_mode = #tpu.pipeline_mode<synchronous>, transform_indices = @transform_18, window_bounds = array<i64: 1, 96>}, {pipeline_mode = #tpu.pipeline_mode<synchronous>, transform_indices = @transform_19, window_bounds = array<i64: 32, 96>}, {pipeline_mode = #tpu.pipeline_mode<synchronous>, transform_indices = @transform_20, window_bounds = array<i64: 32, 96>}, {pipeline_mode = #tpu.pipeline_mode<synchronous>, transform_indices = @transform_21, window_bounds = array<i64: 1, 96>}, {pipeline_mode = #tpu.pipeline_mode<synchronous>, transform_indices = @transform_22, window_bounds = array<i64: 1, 96>}, {pipeline_mode = #tpu.pipeline_mode<synchronous>, transform_indices = @transform_23, window_bounds = array<i64: 64, 96>}, {pipeline_mode = #tpu.pipeline_mode<synchronous>, transform_indices = @transform_24, window_bounds = array<i64: 32, 96>}, {pipeline_mode = #tpu.pipeline_mode<synchronous>, transform_indices = @transform_25, window_bounds = array<i64: 1, 96>}, {pipeline_mode = #tpu.pipeline_mode<synchronous>, transform_indices = @transform_26, window_bounds = array<i64: 1, 96>}, {pipeline_mode = #tpu.pipeline_mode<synchronous>, transform_indices = @transform_27, window_bounds = array<i64: 64, 96>}, {pipeline_mode = #tpu.pipeline_mode<synchronous>, transform_indices = @transform_28, window_bounds = array<i64: 32, 96>}, {pipeline_mode = #tpu.pipeline_mode<synchronous>, transform_indices = @transform_29, window_bounds = array<i64: 1, 96>}, {pipeline_mode = #tpu.pipeline_mode<synchronous>, transform_indices = @transform_30, window_bounds = array<i64: 1, 96>}, {pipeline_mode = #tpu.pipeline_mode<synchronous>, transform_indices = @transform_31, window_bounds = array<i64: 64, 32>}, {pipeline_mode = #tpu.pipeline_mode<synchronous>, transform_indices = @transform_32, window_bounds = array<i64: 1, 32>}, {pipeline_mode = #tpu.pipeline_mode<synchronous>, transform_indices = @transform_33, window_bounds = array<i64: 1, 32>}, {pipeline_mode = #tpu.pipeline_mode<synchronous>, transform_indices = @transform_34, window_bounds = array<i64: 1, 32>}, {pipeline_mode = #tpu.pipeline_mode<synchronous>, transform_indices = @transform_35, window_bounds = array<i64: 1, 96>}, {pipeline_mode = #tpu.pipeline_mode<synchronous>, transform_indices = @transform_36, window_bounds = array<i64: 1, 1>}, {pipeline_mode = #tpu.pipeline_mode<synchronous>, transform_indices = @transform_37, window_bounds = array<i64: 96, 96>}, {pipeline_mode = #tpu.pipeline_mode<synchronous>, transform_indices = @transform_38, window_bounds = array<i64: 32, 96>}, {pipeline_mode = #tpu.pipeline_mode<synchronous>, transform_indices = @transform_39, window_bounds = array<i64: 1, 96>}, {pipeline_mode = #tpu.pipeline_mode<synchronous>, transform_indices = @transform_40, window_bounds = array<i64: 1, 96>}, {pipeline_mode = #tpu.pipeline_mode<synchronous>, transform_indices = @transform_41, window_bounds = array<i64: 32, 96>}, {pipeline_mode = #tpu.pipeline_mode<synchronous>, transform_indices = @transform_42, window_bounds = array<i64: 32, 96>}, {pipeline_mode = #tpu.pipeline_mode<synchronous>, transform_indices = @transform_43, window_bounds = array<i64: 1, 96>}, {pipeline_mode = #tpu.pipeline_mode<synchronous>, transform_indices = @transform_44, window_bounds = array<i64: 1, 96>}, {pipeline_mode = #tpu.pipeline_mode<synchronous>, transform_indices = @transform_45, window_bounds = array<i64: 32, 32>}, {pipeline_mode = #tpu.pipeline_mode<synchronous>, transform_indices = @transform_46, window_bounds = array<i64: 1, 32>}, {pipeline_mode = #tpu.pipeline_mode<synchronous>, transform_indices = @transform_47, window_bounds = array<i64: 1, 32>}, {pipeline_mode = #tpu.pipeline_mode<synchronous>, transform_indices = @transform_48, window_bounds = array<i64: 1, 32>}, {pipeline_mode = #tpu.pipeline_mode<synchronous>, transform_indices = @transform_49, window_bounds = array<i64: 1, 32>}, {pipeline_mode = #tpu.pipeline_mode<synchronous>, transform_indices = @transform_50, window_bounds = array<i64: 1, 1>}, {transform_indices = @transform_51, window_bounds = array<i64: 1, 8, 1>}]} {
    %c0 = arith.constant 0 : index
    %c0_0 = arith.constant 0 : index
    %c0_1 = arith.constant 0 : index
    %0 = vector.load %arg1[%c0, %c0_0, %c0_1] : memref<1x8x3xi32, #tpu.memory_space<vmem>>, vector<1x8x3xi32>
    %1 = vector.shape_cast %0 : vector<1x8x3xi32> to vector<8x3xi32>
    %c0_2 = arith.constant 0 : index
    %c0_3 = arith.constant 0 : index
    %c0_4 = arith.constant 0 : index
    %2 = vector.load %arg2[%c0_2, %c0_3, %c0_4] : memref<1x8x4xf32, #tpu.memory_space<vmem>>, vector<1x8x4xf32>
    %3 = vector.shape_cast %2 : vector<1x8x4xf32> to vector<8x4xf32>
    %c0_5 = arith.constant 0 : index
    %c0_6 = arith.constant 0 : index
    %4 = vector.load %arg3[%c0_5, %c0_6] : memref<16x8xbf16, #tpu.memory_space<vmem>>, vector<16x8xbf16>
    %5 = tpu.iota {dimensions = array<i32: 1>} : vector<8x16xi32>
    %6 = vector.extract_strided_slice %1 {offsets = [0, 0], sizes = [8, 1], strides = [1, 1]} : vector<8x3xi32> to vector<8x1xi32>
    %7 = vector.broadcast %6 : vector<8x1xi32> to vector<8x16xi32>
    %8 = arith.cmpi eq, %5, %7 : vector<8x16xi32>
    %9 = arith.extui %8 : vector<8x16xi1> to vector<8x16xi32>
    %10 = arith.sitofp %9 : vector<8x16xi32> to vector<8x16xf32>
    %11 = arith.truncf %10 : vector<8x16xf32> to vector<8x16xbf16>
    %cst = arith.constant dense<0.000000e+00> : vector<8x8xf32>
    %12 = tpu.matmul %11, %4, %cst {dimension_numbers = #tpu.dot_dimension_numbers<[1], [0], [0], [1], [0, 0, 1, 1], [], []>} : vector<8x16xbf16>, vector<16x8xbf16>, vector<8x8xf32> -> vector<8x8xf32>
    %13 = vector.extract_strided_slice %1 {offsets = [0, 1], sizes = [8, 1], strides = [1, 1]} : vector<8x3xi32> to vector<8x1xi32>
    %14 = vector.broadcast %13 : vector<8x1xi32> to vector<8x16xi32>
    %15 = arith.cmpi eq, %5, %14 : vector<8x16xi32>
    %16 = arith.extui %15 : vector<8x16xi1> to vector<8x16xi32>
    %17 = arith.sitofp %16 : vector<8x16xi32> to vector<8x16xf32>
    %18 = arith.truncf %17 : vector<8x16xf32> to vector<8x16xbf16>
    %cst_7 = arith.constant dense<0.000000e+00> : vector<8x8xf32>
    %19 = tpu.matmul %18, %4, %cst_7 {dimension_numbers = #tpu.dot_dimension_numbers<[1], [0], [0], [1], [0, 0, 1, 1], [], []>} : vector<8x16xbf16>, vector<16x8xbf16>, vector<8x8xf32> -> vector<8x8xf32>
    %20 = vector.extract_strided_slice %1 {offsets = [0, 2], sizes = [8, 1], strides = [1, 1]} : vector<8x3xi32> to vector<8x1xi32>
    %21 = vector.broadcast %20 : vector<8x1xi32> to vector<8x16xi32>
    %22 = arith.cmpi eq, %5, %21 : vector<8x16xi32>
    %23 = arith.extui %22 : vector<8x16xi1> to vector<8x16xi32>
    %24 = arith.sitofp %23 : vector<8x16xi32> to vector<8x16xf32>
    %25 = arith.truncf %24 : vector<8x16xf32> to vector<8x16xbf16>
    %cst_8 = arith.constant dense<0.000000e+00> : vector<8x8xf32>
    %26 = tpu.matmul %25, %4, %cst_8 {dimension_numbers = #tpu.dot_dimension_numbers<[1], [0], [0], [1], [0, 0, 1, 1], [], []>} : vector<8x16xbf16>, vector<16x8xbf16>, vector<8x8xf32> -> vector<8x8xf32>
    %27 = tpu.concatenate %12, %19, %26 in 1 : vector<8x8xf32>, vector<8x8xf32>, vector<8x8xf32> -> vector<8x24xf32>
    %c0_9 = arith.constant 0 : index
    %c0_10 = arith.constant 0 : index
    %28 = vector.load %arg4[%c0_9, %c0_10] : memref<24x16xbf16, #tpu.memory_space<vmem>>, vector<24x16xbf16>
    %c0_11 = arith.constant 0 : index
    %c0_12 = arith.constant 0 : index
    %29 = vector.load %arg5[%c0_11, %c0_12] : memref<1x16xf32, #tpu.memory_space<vmem>>, vector<1x16xf32>
    %c0_13 = arith.constant 0 : index
    %c0_14 = arith.constant 0 : index
    %30 = vector.load %arg6[%c0_13, %c0_14] : memref<1x16xf32, #tpu.memory_space<vmem>>, vector<1x16xf32>
    %c0_15 = arith.constant 0 : index
    %c0_16 = arith.constant 0 : index
    %31 = vector.load %arg7[%c0_15, %c0_16] : memref<1x16xf32, #tpu.memory_space<vmem>>, vector<1x16xf32>
    %32 = arith.truncf %27 : vector<8x24xf32> to vector<8x24xbf16>
    %cst_17 = arith.constant dense<0.000000e+00> : vector<8x16xf32>
    %33 = tpu.matmul %32, %28, %cst_17 {dimension_numbers = #tpu.dot_dimension_numbers<[1], [0], [0], [1], [0, 0, 1, 1], [], []>} : vector<8x24xbf16>, vector<24x16xbf16>, vector<8x16xf32> -> vector<8x16xf32>
    %34 = vector.broadcast %29 : vector<1x16xf32> to vector<8x16xf32>
    %35 = arith.addf %33, %34 : vector<8x16xf32>
    %cst_18 = arith.constant dense<0.000000e+00> : vector<8xf32>
    %36 = vector.multi_reduction <add>, %35, %cst_18 [1] : vector<8x16xf32> to vector<8xf32>
    %37 = vector.shape_cast %36 : vector<8xf32> to vector<8x1xf32>
    %cst_19 = arith.constant 1.600000e+01 : f32
    %38 = vector.broadcast %cst_19 : f32 to vector<8x1xf32>
    %39 = arith.divf %37, %38 : vector<8x1xf32>
    %40 = arith.mulf %35, %35 : vector<8x16xf32>
    %cst_20 = arith.constant dense<0.000000e+00> : vector<8xf32>
    %41 = vector.multi_reduction <add>, %40, %cst_20 [1] : vector<8x16xf32> to vector<8xf32>
    %42 = vector.shape_cast %41 : vector<8xf32> to vector<8x1xf32>
    %cst_21 = arith.constant 1.600000e+01 : f32
    %43 = vector.broadcast %cst_21 : f32 to vector<8x1xf32>
    %44 = arith.divf %42, %43 : vector<8x1xf32>
    %45 = arith.mulf %39, %39 : vector<8x1xf32>
    %46 = arith.subf %44, %45 : vector<8x1xf32>
    %47 = vector.broadcast %39 : vector<8x1xf32> to vector<8x16xf32>
    %48 = arith.subf %35, %47 : vector<8x16xf32>
    %cst_22 = arith.constant 9.99999974E-6 : f32
    %49 = vector.broadcast %cst_22 : f32 to vector<8x1xf32>
    %50 = arith.addf %46, %49 : vector<8x1xf32>
    %51 = math.rsqrt %50 : vector<8x1xf32>
    %52 = vector.broadcast %51 : vector<8x1xf32> to vector<8x16xf32>
    %53 = arith.mulf %48, %52 : vector<8x16xf32>
    %54 = vector.broadcast %30 : vector<1x16xf32> to vector<8x16xf32>
    %55 = arith.mulf %53, %54 : vector<8x16xf32>
    %56 = vector.broadcast %31 : vector<1x16xf32> to vector<8x16xf32>
    %57 = arith.addf %55, %56 : vector<8x16xf32>
    %c0_23 = arith.constant 0 : index
    %c0_24 = arith.constant 0 : index
    %58 = vector.load %arg8[%c0_23, %c0_24] : memref<4x16xbf16, #tpu.memory_space<vmem>>, vector<4x16xbf16>
    %c0_25 = arith.constant 0 : index
    %c0_26 = arith.constant 0 : index
    %59 = vector.load %arg9[%c0_25, %c0_26] : memref<1x16xf32, #tpu.memory_space<vmem>>, vector<1x16xf32>
    %c0_27 = arith.constant 0 : index
    %c0_28 = arith.constant 0 : index
    %60 = vector.load %arg10[%c0_27, %c0_28] : memref<1x16xf32, #tpu.memory_space<vmem>>, vector<1x16xf32>
    %c0_29 = arith.constant 0 : index
    %c0_30 = arith.constant 0 : index
    %61 = vector.load %arg11[%c0_29, %c0_30] : memref<1x16xf32, #tpu.memory_space<vmem>>, vector<1x16xf32>
    %62 = arith.truncf %3 : vector<8x4xf32> to vector<8x4xbf16>
    %cst_31 = arith.constant dense<0.000000e+00> : vector<8x16xf32>
    %63 = tpu.matmul %62, %58, %cst_31 {dimension_numbers = #tpu.dot_dimension_numbers<[1], [0], [0], [1], [0, 0, 1, 1], [], []>} : vector<8x4xbf16>, vector<4x16xbf16>, vector<8x16xf32> -> vector<8x16xf32>
    %64 = vector.broadcast %59 : vector<1x16xf32> to vector<8x16xf32>
    %65 = arith.addf %63, %64 : vector<8x16xf32>
    %cst_32 = arith.constant dense<0.000000e+00> : vector<8xf32>
    %66 = vector.multi_reduction <add>, %65, %cst_32 [1] : vector<8x16xf32> to vector<8xf32>
    %67 = vector.shape_cast %66 : vector<8xf32> to vector<8x1xf32>
    %cst_33 = arith.constant 1.600000e+01 : f32
    %68 = vector.broadcast %cst_33 : f32 to vector<8x1xf32>
    %69 = arith.divf %67, %68 : vector<8x1xf32>
    %70 = arith.mulf %65, %65 : vector<8x16xf32>
    %cst_34 = arith.constant dense<0.000000e+00> : vector<8xf32>
    %71 = vector.multi_reduction <add>, %70, %cst_34 [1] : vector<8x16xf32> to vector<8xf32>
    %72 = vector.shape_cast %71 : vector<8xf32> to vector<8x1xf32>
    %cst_35 = arith.constant 1.600000e+01 : f32
    %73 = vector.broadcast %cst_35 : f32 to vector<8x1xf32>
    %74 = arith.divf %72, %73 : vector<8x1xf32>
    %75 = arith.mulf %69, %69 : vector<8x1xf32>
    %76 = arith.subf %74, %75 : vector<8x1xf32>
    %77 = vector.broadcast %69 : vector<8x1xf32> to vector<8x16xf32>
    %78 = arith.subf %65, %77 : vector<8x16xf32>
    %cst_36 = arith.constant 9.99999974E-6 : f32
    %79 = vector.broadcast %cst_36 : f32 to vector<8x1xf32>
    %80 = arith.addf %76, %79 : vector<8x1xf32>
    %81 = math.rsqrt %80 : vector<8x1xf32>
    %82 = vector.broadcast %81 : vector<8x1xf32> to vector<8x16xf32>
    %83 = arith.mulf %78, %82 : vector<8x16xf32>
    %84 = vector.broadcast %60 : vector<1x16xf32> to vector<8x16xf32>
    %85 = arith.mulf %83, %84 : vector<8x16xf32>
    %86 = vector.broadcast %61 : vector<1x16xf32> to vector<8x16xf32>
    %87 = arith.addf %85, %86 : vector<8x16xf32>
    %88 = tpu.concatenate %57, %87 in 1 : vector<8x16xf32>, vector<8x16xf32> -> vector<8x32xf32>
    %c0_37 = arith.constant 0 : index
    %c0_38 = arith.constant 0 : index
    %89 = vector.load %arg12[%c0_37, %c0_38] : memref<32x32xbf16, #tpu.memory_space<vmem>>, vector<32x32xbf16>
    %c0_39 = arith.constant 0 : index
    %c0_40 = arith.constant 0 : index
    %90 = vector.load %arg13[%c0_39, %c0_40] : memref<1x32xf32, #tpu.memory_space<vmem>>, vector<1x32xf32>
    %c0_41 = arith.constant 0 : index
    %c0_42 = arith.constant 0 : index
    %91 = vector.load %arg14[%c0_41, %c0_42] : memref<1x32xf32, #tpu.memory_space<vmem>>, vector<1x32xf32>
    %c0_43 = arith.constant 0 : index
    %c0_44 = arith.constant 0 : index
    %92 = vector.load %arg15[%c0_43, %c0_44] : memref<1x32xf32, #tpu.memory_space<vmem>>, vector<1x32xf32>
    %cst_45 = arith.constant 0.000000e+00 : f32
    %93 = vector.broadcast %cst_45 : f32 to vector<8x32xf32>
    %94 = arith.maximumf %88, %93 : vector<8x32xf32>
    %95 = arith.truncf %94 : vector<8x32xf32> to vector<8x32xbf16>
    %cst_46 = arith.constant dense<0.000000e+00> : vector<8x32xf32>
    %96 = tpu.matmul %95, %89, %cst_46 {dimension_numbers = #tpu.dot_dimension_numbers<[1], [0], [0], [1], [0, 0, 1, 1], [], []>} : vector<8x32xbf16>, vector<32x32xbf16>, vector<8x32xf32> -> vector<8x32xf32>
    %97 = vector.broadcast %90 : vector<1x32xf32> to vector<8x32xf32>
    %98 = arith.addf %96, %97 : vector<8x32xf32>
    %cst_47 = arith.constant dense<0.000000e+00> : vector<8xf32>
    %99 = vector.multi_reduction <add>, %98, %cst_47 [1] : vector<8x32xf32> to vector<8xf32>
    %100 = vector.shape_cast %99 : vector<8xf32> to vector<8x1xf32>
    %cst_48 = arith.constant 3.200000e+01 : f32
    %101 = vector.broadcast %cst_48 : f32 to vector<8x1xf32>
    %102 = arith.divf %100, %101 : vector<8x1xf32>
    %103 = arith.mulf %98, %98 : vector<8x32xf32>
    %cst_49 = arith.constant dense<0.000000e+00> : vector<8xf32>
    %104 = vector.multi_reduction <add>, %103, %cst_49 [1] : vector<8x32xf32> to vector<8xf32>
    %105 = vector.shape_cast %104 : vector<8xf32> to vector<8x1xf32>
    %cst_50 = arith.constant 3.200000e+01 : f32
    %106 = vector.broadcast %cst_50 : f32 to vector<8x1xf32>
    %107 = arith.divf %105, %106 : vector<8x1xf32>
    %108 = arith.mulf %102, %102 : vector<8x1xf32>
    %109 = arith.subf %107, %108 : vector<8x1xf32>
    %110 = vector.broadcast %102 : vector<8x1xf32> to vector<8x32xf32>
    %111 = arith.subf %98, %110 : vector<8x32xf32>
    %cst_51 = arith.constant 9.99999974E-6 : f32
    %112 = vector.broadcast %cst_51 : f32 to vector<8x1xf32>
    %113 = arith.addf %109, %112 : vector<8x1xf32>
    %114 = math.rsqrt %113 : vector<8x1xf32>
    %115 = vector.broadcast %114 : vector<8x1xf32> to vector<8x32xf32>
    %116 = arith.mulf %111, %115 : vector<8x32xf32>
    %117 = vector.broadcast %91 : vector<1x32xf32> to vector<8x32xf32>
    %118 = arith.mulf %116, %117 : vector<8x32xf32>
    %119 = vector.broadcast %92 : vector<1x32xf32> to vector<8x32xf32>
    %120 = arith.addf %118, %119 : vector<8x32xf32>
    %cst_52 = arith.constant 0.000000e+00 : f32
    %121 = vector.broadcast %cst_52 : f32 to vector<1x32xf32>
    %c0_53 = arith.constant 0 : index
    %c0_54 = arith.constant 0 : index
    %122 = vector.load %arg16[%c0_53, %c0_54] : memref<32x96xbf16, #tpu.memory_space<vmem>>, vector<32x96xbf16>
    %c0_55 = arith.constant 0 : index
    %c0_56 = arith.constant 0 : index
    %123 = vector.load %arg17[%c0_55, %c0_56] : memref<32x96xbf16, #tpu.memory_space<vmem>>, vector<32x96xbf16>
    %c0_57 = arith.constant 0 : index
    %c0_58 = arith.constant 0 : index
    %124 = vector.load %arg18[%c0_57, %c0_58] : memref<1x96xf32, #tpu.memory_space<vmem>>, vector<1x96xf32>
    %c0_59 = arith.constant 0 : index
    %c0_60 = arith.constant 0 : index
    %125 = vector.load %arg19[%c0_59, %c0_60] : memref<1x96xf32, #tpu.memory_space<vmem>>, vector<1x96xf32>
    %126 = arith.truncf %120 : vector<8x32xf32> to vector<8x32xbf16>
    %cst_61 = arith.constant dense<0.000000e+00> : vector<8x96xf32>
    %127 = tpu.matmul %126, %122, %cst_61 {dimension_numbers = #tpu.dot_dimension_numbers<[1], [0], [0], [1], [0, 0, 1, 1], [], []>} : vector<8x32xbf16>, vector<32x96xbf16>, vector<8x96xf32> -> vector<8x96xf32>
    %128 = vector.broadcast %124 : vector<1x96xf32> to vector<8x96xf32>
    %129 = arith.addf %127, %128 : vector<8x96xf32>
    %130 = vector.extract_strided_slice %129 {offsets = [0, 0], sizes = [1, 96], strides = [1, 1]} : vector<8x96xf32> to vector<1x96xf32>
    %131 = arith.truncf %121 : vector<1x32xf32> to vector<1x32xbf16>
    %cst_62 = arith.constant dense<0.000000e+00> : vector<1x96xf32>
    %132 = tpu.matmul %131, %123, %cst_62 {dimension_numbers = #tpu.dot_dimension_numbers<[1], [0], [0], [1], [0, 0, 1, 1], [], []>} : vector<1x32xbf16>, vector<32x96xbf16>, vector<1x96xf32> -> vector<1x96xf32>
    %133 = arith.addf %132, %125 : vector<1x96xf32>
    %134 = vector.extract_strided_slice %130 {offsets = [0, 0], sizes = [1, 32], strides = [1, 1]} : vector<1x96xf32> to vector<1x32xf32>
    %135 = vector.extract_strided_slice %133 {offsets = [0, 0], sizes = [1, 32], strides = [1, 1]} : vector<1x96xf32> to vector<1x32xf32>
    %136 = arith.addf %134, %135 : vector<1x32xf32>
    %137 = arith.negf %136 : vector<1x32xf32>
    %138 = math.exp %137 : vector<1x32xf32>
    %cst_63 = arith.constant 1.000000e+00 : f32
    %139 = vector.broadcast %cst_63 : f32 to vector<1x32xf32>
    %140 = arith.addf %139, %138 : vector<1x32xf32>
    %141 = arith.divf %139, %140 : vector<1x32xf32>
    %142 = vector.extract_strided_slice %130 {offsets = [0, 32], sizes = [1, 32], strides = [1, 1]} : vector<1x96xf32> to vector<1x32xf32>
    %143 = vector.extract_strided_slice %133 {offsets = [0, 32], sizes = [1, 32], strides = [1, 1]} : vector<1x96xf32> to vector<1x32xf32>
    %144 = arith.addf %142, %143 : vector<1x32xf32>
    %145 = arith.negf %144 : vector<1x32xf32>
    %146 = math.exp %145 : vector<1x32xf32>
    %cst_64 = arith.constant 1.000000e+00 : f32
    %147 = vector.broadcast %cst_64 : f32 to vector<1x32xf32>
    %148 = arith.addf %147, %146 : vector<1x32xf32>
    %149 = arith.divf %147, %148 : vector<1x32xf32>
    %150 = vector.extract_strided_slice %130 {offsets = [0, 64], sizes = [1, 32], strides = [1, 1]} : vector<1x96xf32> to vector<1x32xf32>
    %151 = vector.extract_strided_slice %133 {offsets = [0, 64], sizes = [1, 32], strides = [1, 1]} : vector<1x96xf32> to vector<1x32xf32>
    %152 = arith.mulf %141, %151 : vector<1x32xf32>
    %153 = arith.addf %150, %152 : vector<1x32xf32>
    %154 = math.tanh %153 : vector<1x32xf32>
    %cst_65 = arith.constant 1.000000e+00 : f32
    %155 = vector.broadcast %cst_65 : f32 to vector<1x32xf32>
    %156 = arith.subf %155, %149 : vector<1x32xf32>
    %157 = arith.mulf %156, %154 : vector<1x32xf32>
    %158 = arith.mulf %149, %121 : vector<1x32xf32>
    %159 = arith.addf %157, %158 : vector<1x32xf32>
    %160 = vector.extract_strided_slice %129 {offsets = [1, 0], sizes = [1, 96], strides = [1, 1]} : vector<8x96xf32> to vector<1x96xf32>
    %161 = arith.truncf %159 : vector<1x32xf32> to vector<1x32xbf16>
    %cst_66 = arith.constant dense<0.000000e+00> : vector<1x96xf32>
    %162 = tpu.matmul %161, %123, %cst_66 {dimension_numbers = #tpu.dot_dimension_numbers<[1], [0], [0], [1], [0, 0, 1, 1], [], []>} : vector<1x32xbf16>, vector<32x96xbf16>, vector<1x96xf32> -> vector<1x96xf32>
    %163 = arith.addf %162, %125 : vector<1x96xf32>
    %164 = vector.extract_strided_slice %160 {offsets = [0, 0], sizes = [1, 32], strides = [1, 1]} : vector<1x96xf32> to vector<1x32xf32>
    %165 = vector.extract_strided_slice %163 {offsets = [0, 0], sizes = [1, 32], strides = [1, 1]} : vector<1x96xf32> to vector<1x32xf32>
    %166 = arith.addf %164, %165 : vector<1x32xf32>
    %167 = arith.negf %166 : vector<1x32xf32>
    %168 = math.exp %167 : vector<1x32xf32>
    %cst_67 = arith.constant 1.000000e+00 : f32
    %169 = vector.broadcast %cst_67 : f32 to vector<1x32xf32>
    %170 = arith.addf %169, %168 : vector<1x32xf32>
    %171 = arith.divf %169, %170 : vector<1x32xf32>
    %172 = vector.extract_strided_slice %160 {offsets = [0, 32], sizes = [1, 32], strides = [1, 1]} : vector<1x96xf32> to vector<1x32xf32>
    %173 = vector.extract_strided_slice %163 {offsets = [0, 32], sizes = [1, 32], strides = [1, 1]} : vector<1x96xf32> to vector<1x32xf32>
    %174 = arith.addf %172, %173 : vector<1x32xf32>
    %175 = arith.negf %174 : vector<1x32xf32>
    %176 = math.exp %175 : vector<1x32xf32>
    %cst_68 = arith.constant 1.000000e+00 : f32
    %177 = vector.broadcast %cst_68 : f32 to vector<1x32xf32>
    %178 = arith.addf %177, %176 : vector<1x32xf32>
    %179 = arith.divf %177, %178 : vector<1x32xf32>
    %180 = vector.extract_strided_slice %160 {offsets = [0, 64], sizes = [1, 32], strides = [1, 1]} : vector<1x96xf32> to vector<1x32xf32>
    %181 = vector.extract_strided_slice %163 {offsets = [0, 64], sizes = [1, 32], strides = [1, 1]} : vector<1x96xf32> to vector<1x32xf32>
    %182 = arith.mulf %171, %181 : vector<1x32xf32>
    %183 = arith.addf %180, %182 : vector<1x32xf32>
    %184 = math.tanh %183 : vector<1x32xf32>
    %cst_69 = arith.constant 1.000000e+00 : f32
    %185 = vector.broadcast %cst_69 : f32 to vector<1x32xf32>
    %186 = arith.subf %185, %179 : vector<1x32xf32>
    %187 = arith.mulf %186, %184 : vector<1x32xf32>
    %188 = arith.mulf %179, %159 : vector<1x32xf32>
    %189 = arith.addf %187, %188 : vector<1x32xf32>
    %190 = vector.extract_strided_slice %129 {offsets = [2, 0], sizes = [1, 96], strides = [1, 1]} : vector<8x96xf32> to vector<1x96xf32>
    %191 = arith.truncf %189 : vector<1x32xf32> to vector<1x32xbf16>
    %cst_70 = arith.constant dense<0.000000e+00> : vector<1x96xf32>
    %192 = tpu.matmul %191, %123, %cst_70 {dimension_numbers = #tpu.dot_dimension_numbers<[1], [0], [0], [1], [0, 0, 1, 1], [], []>} : vector<1x32xbf16>, vector<32x96xbf16>, vector<1x96xf32> -> vector<1x96xf32>
    %193 = arith.addf %192, %125 : vector<1x96xf32>
    %194 = vector.extract_strided_slice %190 {offsets = [0, 0], sizes = [1, 32], strides = [1, 1]} : vector<1x96xf32> to vector<1x32xf32>
    %195 = vector.extract_strided_slice %193 {offsets = [0, 0], sizes = [1, 32], strides = [1, 1]} : vector<1x96xf32> to vector<1x32xf32>
    %196 = arith.addf %194, %195 : vector<1x32xf32>
    %197 = arith.negf %196 : vector<1x32xf32>
    %198 = math.exp %197 : vector<1x32xf32>
    %cst_71 = arith.constant 1.000000e+00 : f32
    %199 = vector.broadcast %cst_71 : f32 to vector<1x32xf32>
    %200 = arith.addf %199, %198 : vector<1x32xf32>
    %201 = arith.divf %199, %200 : vector<1x32xf32>
    %202 = vector.extract_strided_slice %190 {offsets = [0, 32], sizes = [1, 32], strides = [1, 1]} : vector<1x96xf32> to vector<1x32xf32>
    %203 = vector.extract_strided_slice %193 {offsets = [0, 32], sizes = [1, 32], strides = [1, 1]} : vector<1x96xf32> to vector<1x32xf32>
    %204 = arith.addf %202, %203 : vector<1x32xf32>
    %205 = arith.negf %204 : vector<1x32xf32>
    %206 = math.exp %205 : vector<1x32xf32>
    %cst_72 = arith.constant 1.000000e+00 : f32
    %207 = vector.broadcast %cst_72 : f32 to vector<1x32xf32>
    %208 = arith.addf %207, %206 : vector<1x32xf32>
    %209 = arith.divf %207, %208 : vector<1x32xf32>
    %210 = vector.extract_strided_slice %190 {offsets = [0, 64], sizes = [1, 32], strides = [1, 1]} : vector<1x96xf32> to vector<1x32xf32>
    %211 = vector.extract_strided_slice %193 {offsets = [0, 64], sizes = [1, 32], strides = [1, 1]} : vector<1x96xf32> to vector<1x32xf32>
    %212 = arith.mulf %201, %211 : vector<1x32xf32>
    %213 = arith.addf %210, %212 : vector<1x32xf32>
    %214 = math.tanh %213 : vector<1x32xf32>
    %cst_73 = arith.constant 1.000000e+00 : f32
    %215 = vector.broadcast %cst_73 : f32 to vector<1x32xf32>
    %216 = arith.subf %215, %209 : vector<1x32xf32>
    %217 = arith.mulf %216, %214 : vector<1x32xf32>
    %218 = arith.mulf %209, %189 : vector<1x32xf32>
    %219 = arith.addf %217, %218 : vector<1x32xf32>
    %220 = vector.extract_strided_slice %129 {offsets = [3, 0], sizes = [1, 96], strides = [1, 1]} : vector<8x96xf32> to vector<1x96xf32>
    %221 = arith.truncf %219 : vector<1x32xf32> to vector<1x32xbf16>
    %cst_74 = arith.constant dense<0.000000e+00> : vector<1x96xf32>
    %222 = tpu.matmul %221, %123, %cst_74 {dimension_numbers = #tpu.dot_dimension_numbers<[1], [0], [0], [1], [0, 0, 1, 1], [], []>} : vector<1x32xbf16>, vector<32x96xbf16>, vector<1x96xf32> -> vector<1x96xf32>
    %223 = arith.addf %222, %125 : vector<1x96xf32>
    %224 = vector.extract_strided_slice %220 {offsets = [0, 0], sizes = [1, 32], strides = [1, 1]} : vector<1x96xf32> to vector<1x32xf32>
    %225 = vector.extract_strided_slice %223 {offsets = [0, 0], sizes = [1, 32], strides = [1, 1]} : vector<1x96xf32> to vector<1x32xf32>
    %226 = arith.addf %224, %225 : vector<1x32xf32>
    %227 = arith.negf %226 : vector<1x32xf32>
    %228 = math.exp %227 : vector<1x32xf32>
    %cst_75 = arith.constant 1.000000e+00 : f32
    %229 = vector.broadcast %cst_75 : f32 to vector<1x32xf32>
    %230 = arith.addf %229, %228 : vector<1x32xf32>
    %231 = arith.divf %229, %230 : vector<1x32xf32>
    %232 = vector.extract_strided_slice %220 {offsets = [0, 32], sizes = [1, 32], strides = [1, 1]} : vector<1x96xf32> to vector<1x32xf32>
    %233 = vector.extract_strided_slice %223 {offsets = [0, 32], sizes = [1, 32], strides = [1, 1]} : vector<1x96xf32> to vector<1x32xf32>
    %234 = arith.addf %232, %233 : vector<1x32xf32>
    %235 = arith.negf %234 : vector<1x32xf32>
    %236 = math.exp %235 : vector<1x32xf32>
    %cst_76 = arith.constant 1.000000e+00 : f32
    %237 = vector.broadcast %cst_76 : f32 to vector<1x32xf32>
    %238 = arith.addf %237, %236 : vector<1x32xf32>
    %239 = arith.divf %237, %238 : vector<1x32xf32>
    %240 = vector.extract_strided_slice %220 {offsets = [0, 64], sizes = [1, 32], strides = [1, 1]} : vector<1x96xf32> to vector<1x32xf32>
    %241 = vector.extract_strided_slice %223 {offsets = [0, 64], sizes = [1, 32], strides = [1, 1]} : vector<1x96xf32> to vector<1x32xf32>
    %242 = arith.mulf %231, %241 : vector<1x32xf32>
    %243 = arith.addf %240, %242 : vector<1x32xf32>
    %244 = math.tanh %243 : vector<1x32xf32>
    %cst_77 = arith.constant 1.000000e+00 : f32
    %245 = vector.broadcast %cst_77 : f32 to vector<1x32xf32>
    %246 = arith.subf %245, %239 : vector<1x32xf32>
    %247 = arith.mulf %246, %244 : vector<1x32xf32>
    %248 = arith.mulf %239, %219 : vector<1x32xf32>
    %249 = arith.addf %247, %248 : vector<1x32xf32>
    %250 = vector.extract_strided_slice %129 {offsets = [4, 0], sizes = [1, 96], strides = [1, 1]} : vector<8x96xf32> to vector<1x96xf32>
    %251 = arith.truncf %249 : vector<1x32xf32> to vector<1x32xbf16>
    %cst_78 = arith.constant dense<0.000000e+00> : vector<1x96xf32>
    %252 = tpu.matmul %251, %123, %cst_78 {dimension_numbers = #tpu.dot_dimension_numbers<[1], [0], [0], [1], [0, 0, 1, 1], [], []>} : vector<1x32xbf16>, vector<32x96xbf16>, vector<1x96xf32> -> vector<1x96xf32>
    %253 = arith.addf %252, %125 : vector<1x96xf32>
    %254 = vector.extract_strided_slice %250 {offsets = [0, 0], sizes = [1, 32], strides = [1, 1]} : vector<1x96xf32> to vector<1x32xf32>
    %255 = vector.extract_strided_slice %253 {offsets = [0, 0], sizes = [1, 32], strides = [1, 1]} : vector<1x96xf32> to vector<1x32xf32>
    %256 = arith.addf %254, %255 : vector<1x32xf32>
    %257 = arith.negf %256 : vector<1x32xf32>
    %258 = math.exp %257 : vector<1x32xf32>
    %cst_79 = arith.constant 1.000000e+00 : f32
    %259 = vector.broadcast %cst_79 : f32 to vector<1x32xf32>
    %260 = arith.addf %259, %258 : vector<1x32xf32>
    %261 = arith.divf %259, %260 : vector<1x32xf32>
    %262 = vector.extract_strided_slice %250 {offsets = [0, 32], sizes = [1, 32], strides = [1, 1]} : vector<1x96xf32> to vector<1x32xf32>
    %263 = vector.extract_strided_slice %253 {offsets = [0, 32], sizes = [1, 32], strides = [1, 1]} : vector<1x96xf32> to vector<1x32xf32>
    %264 = arith.addf %262, %263 : vector<1x32xf32>
    %265 = arith.negf %264 : vector<1x32xf32>
    %266 = math.exp %265 : vector<1x32xf32>
    %cst_80 = arith.constant 1.000000e+00 : f32
    %267 = vector.broadcast %cst_80 : f32 to vector<1x32xf32>
    %268 = arith.addf %267, %266 : vector<1x32xf32>
    %269 = arith.divf %267, %268 : vector<1x32xf32>
    %270 = vector.extract_strided_slice %250 {offsets = [0, 64], sizes = [1, 32], strides = [1, 1]} : vector<1x96xf32> to vector<1x32xf32>
    %271 = vector.extract_strided_slice %253 {offsets = [0, 64], sizes = [1, 32], strides = [1, 1]} : vector<1x96xf32> to vector<1x32xf32>
    %272 = arith.mulf %261, %271 : vector<1x32xf32>
    %273 = arith.addf %270, %272 : vector<1x32xf32>
    %274 = math.tanh %273 : vector<1x32xf32>
    %cst_81 = arith.constant 1.000000e+00 : f32
    %275 = vector.broadcast %cst_81 : f32 to vector<1x32xf32>
    %276 = arith.subf %275, %269 : vector<1x32xf32>
    %277 = arith.mulf %276, %274 : vector<1x32xf32>
    %278 = arith.mulf %269, %249 : vector<1x32xf32>
    %279 = arith.addf %277, %278 : vector<1x32xf32>
    %280 = vector.extract_strided_slice %129 {offsets = [5, 0], sizes = [1, 96], strides = [1, 1]} : vector<8x96xf32> to vector<1x96xf32>
    %281 = arith.truncf %279 : vector<1x32xf32> to vector<1x32xbf16>
    %cst_82 = arith.constant dense<0.000000e+00> : vector<1x96xf32>
    %282 = tpu.matmul %281, %123, %cst_82 {dimension_numbers = #tpu.dot_dimension_numbers<[1], [0], [0], [1], [0, 0, 1, 1], [], []>} : vector<1x32xbf16>, vector<32x96xbf16>, vector<1x96xf32> -> vector<1x96xf32>
    %283 = arith.addf %282, %125 : vector<1x96xf32>
    %284 = vector.extract_strided_slice %280 {offsets = [0, 0], sizes = [1, 32], strides = [1, 1]} : vector<1x96xf32> to vector<1x32xf32>
    %285 = vector.extract_strided_slice %283 {offsets = [0, 0], sizes = [1, 32], strides = [1, 1]} : vector<1x96xf32> to vector<1x32xf32>
    %286 = arith.addf %284, %285 : vector<1x32xf32>
    %287 = arith.negf %286 : vector<1x32xf32>
    %288 = math.exp %287 : vector<1x32xf32>
    %cst_83 = arith.constant 1.000000e+00 : f32
    %289 = vector.broadcast %cst_83 : f32 to vector<1x32xf32>
    %290 = arith.addf %289, %288 : vector<1x32xf32>
    %291 = arith.divf %289, %290 : vector<1x32xf32>
    %292 = vector.extract_strided_slice %280 {offsets = [0, 32], sizes = [1, 32], strides = [1, 1]} : vector<1x96xf32> to vector<1x32xf32>
    %293 = vector.extract_strided_slice %283 {offsets = [0, 32], sizes = [1, 32], strides = [1, 1]} : vector<1x96xf32> to vector<1x32xf32>
    %294 = arith.addf %292, %293 : vector<1x32xf32>
    %295 = arith.negf %294 : vector<1x32xf32>
    %296 = math.exp %295 : vector<1x32xf32>
    %cst_84 = arith.constant 1.000000e+00 : f32
    %297 = vector.broadcast %cst_84 : f32 to vector<1x32xf32>
    %298 = arith.addf %297, %296 : vector<1x32xf32>
    %299 = arith.divf %297, %298 : vector<1x32xf32>
    %300 = vector.extract_strided_slice %280 {offsets = [0, 64], sizes = [1, 32], strides = [1, 1]} : vector<1x96xf32> to vector<1x32xf32>
    %301 = vector.extract_strided_slice %283 {offsets = [0, 64], sizes = [1, 32], strides = [1, 1]} : vector<1x96xf32> to vector<1x32xf32>
    %302 = arith.mulf %291, %301 : vector<1x32xf32>
    %303 = arith.addf %300, %302 : vector<1x32xf32>
    %304 = math.tanh %303 : vector<1x32xf32>
    %cst_85 = arith.constant 1.000000e+00 : f32
    %305 = vector.broadcast %cst_85 : f32 to vector<1x32xf32>
    %306 = arith.subf %305, %299 : vector<1x32xf32>
    %307 = arith.mulf %306, %304 : vector<1x32xf32>
    %308 = arith.mulf %299, %279 : vector<1x32xf32>
    %309 = arith.addf %307, %308 : vector<1x32xf32>
    %310 = vector.extract_strided_slice %129 {offsets = [6, 0], sizes = [1, 96], strides = [1, 1]} : vector<8x96xf32> to vector<1x96xf32>
    %311 = arith.truncf %309 : vector<1x32xf32> to vector<1x32xbf16>
    %cst_86 = arith.constant dense<0.000000e+00> : vector<1x96xf32>
    %312 = tpu.matmul %311, %123, %cst_86 {dimension_numbers = #tpu.dot_dimension_numbers<[1], [0], [0], [1], [0, 0, 1, 1], [], []>} : vector<1x32xbf16>, vector<32x96xbf16>, vector<1x96xf32> -> vector<1x96xf32>
    %313 = arith.addf %312, %125 : vector<1x96xf32>
    %314 = vector.extract_strided_slice %310 {offsets = [0, 0], sizes = [1, 32], strides = [1, 1]} : vector<1x96xf32> to vector<1x32xf32>
    %315 = vector.extract_strided_slice %313 {offsets = [0, 0], sizes = [1, 32], strides = [1, 1]} : vector<1x96xf32> to vector<1x32xf32>
    %316 = arith.addf %314, %315 : vector<1x32xf32>
    %317 = arith.negf %316 : vector<1x32xf32>
    %318 = math.exp %317 : vector<1x32xf32>
    %cst_87 = arith.constant 1.000000e+00 : f32
    %319 = vector.broadcast %cst_87 : f32 to vector<1x32xf32>
    %320 = arith.addf %319, %318 : vector<1x32xf32>
    %321 = arith.divf %319, %320 : vector<1x32xf32>
    %322 = vector.extract_strided_slice %310 {offsets = [0, 32], sizes = [1, 32], strides = [1, 1]} : vector<1x96xf32> to vector<1x32xf32>
    %323 = vector.extract_strided_slice %313 {offsets = [0, 32], sizes = [1, 32], strides = [1, 1]} : vector<1x96xf32> to vector<1x32xf32>
    %324 = arith.addf %322, %323 : vector<1x32xf32>
    %325 = arith.negf %324 : vector<1x32xf32>
    %326 = math.exp %325 : vector<1x32xf32>
    %cst_88 = arith.constant 1.000000e+00 : f32
    %327 = vector.broadcast %cst_88 : f32 to vector<1x32xf32>
    %328 = arith.addf %327, %326 : vector<1x32xf32>
    %329 = arith.divf %327, %328 : vector<1x32xf32>
    %330 = vector.extract_strided_slice %310 {offsets = [0, 64], sizes = [1, 32], strides = [1, 1]} : vector<1x96xf32> to vector<1x32xf32>
    %331 = vector.extract_strided_slice %313 {offsets = [0, 64], sizes = [1, 32], strides = [1, 1]} : vector<1x96xf32> to vector<1x32xf32>
    %332 = arith.mulf %321, %331 : vector<1x32xf32>
    %333 = arith.addf %330, %332 : vector<1x32xf32>
    %334 = math.tanh %333 : vector<1x32xf32>
    %cst_89 = arith.constant 1.000000e+00 : f32
    %335 = vector.broadcast %cst_89 : f32 to vector<1x32xf32>
    %336 = arith.subf %335, %329 : vector<1x32xf32>
    %337 = arith.mulf %336, %334 : vector<1x32xf32>
    %338 = arith.mulf %329, %309 : vector<1x32xf32>
    %339 = arith.addf %337, %338 : vector<1x32xf32>
    %340 = vector.extract_strided_slice %129 {offsets = [7, 0], sizes = [1, 96], strides = [1, 1]} : vector<8x96xf32> to vector<1x96xf32>
    %341 = arith.truncf %339 : vector<1x32xf32> to vector<1x32xbf16>
    %cst_90 = arith.constant dense<0.000000e+00> : vector<1x96xf32>
    %342 = tpu.matmul %341, %123, %cst_90 {dimension_numbers = #tpu.dot_dimension_numbers<[1], [0], [0], [1], [0, 0, 1, 1], [], []>} : vector<1x32xbf16>, vector<32x96xbf16>, vector<1x96xf32> -> vector<1x96xf32>
    %343 = arith.addf %342, %125 : vector<1x96xf32>
    %344 = vector.extract_strided_slice %340 {offsets = [0, 0], sizes = [1, 32], strides = [1, 1]} : vector<1x96xf32> to vector<1x32xf32>
    %345 = vector.extract_strided_slice %343 {offsets = [0, 0], sizes = [1, 32], strides = [1, 1]} : vector<1x96xf32> to vector<1x32xf32>
    %346 = arith.addf %344, %345 : vector<1x32xf32>
    %347 = arith.negf %346 : vector<1x32xf32>
    %348 = math.exp %347 : vector<1x32xf32>
    %cst_91 = arith.constant 1.000000e+00 : f32
    %349 = vector.broadcast %cst_91 : f32 to vector<1x32xf32>
    %350 = arith.addf %349, %348 : vector<1x32xf32>
    %351 = arith.divf %349, %350 : vector<1x32xf32>
    %352 = vector.extract_strided_slice %340 {offsets = [0, 32], sizes = [1, 32], strides = [1, 1]} : vector<1x96xf32> to vector<1x32xf32>
    %353 = vector.extract_strided_slice %343 {offsets = [0, 32], sizes = [1, 32], strides = [1, 1]} : vector<1x96xf32> to vector<1x32xf32>
    %354 = arith.addf %352, %353 : vector<1x32xf32>
    %355 = arith.negf %354 : vector<1x32xf32>
    %356 = math.exp %355 : vector<1x32xf32>
    %cst_92 = arith.constant 1.000000e+00 : f32
    %357 = vector.broadcast %cst_92 : f32 to vector<1x32xf32>
    %358 = arith.addf %357, %356 : vector<1x32xf32>
    %359 = arith.divf %357, %358 : vector<1x32xf32>
    %360 = vector.extract_strided_slice %340 {offsets = [0, 64], sizes = [1, 32], strides = [1, 1]} : vector<1x96xf32> to vector<1x32xf32>
    %361 = vector.extract_strided_slice %343 {offsets = [0, 64], sizes = [1, 32], strides = [1, 1]} : vector<1x96xf32> to vector<1x32xf32>
    %362 = arith.mulf %351, %361 : vector<1x32xf32>
    %363 = arith.addf %360, %362 : vector<1x32xf32>
    %364 = math.tanh %363 : vector<1x32xf32>
    %cst_93 = arith.constant 1.000000e+00 : f32
    %365 = vector.broadcast %cst_93 : f32 to vector<1x32xf32>
    %366 = arith.subf %365, %359 : vector<1x32xf32>
    %367 = arith.mulf %366, %364 : vector<1x32xf32>
    %368 = arith.mulf %359, %339 : vector<1x32xf32>
    %369 = arith.addf %367, %368 : vector<1x32xf32>
    %370 = tpu.concatenate %159, %189, %219, %249, %279, %309, %339, %369 in 0 : vector<1x32xf32>, vector<1x32xf32>, vector<1x32xf32>, vector<1x32xf32>, vector<1x32xf32>, vector<1x32xf32>, vector<1x32xf32>, vector<1x32xf32> -> vector<8x32xf32>
    %c0_94 = arith.constant 0 : index
    %c0_95 = arith.constant 0 : index
    %371 = vector.load %arg20[%c0_94, %c0_95] : memref<32x96xbf16, #tpu.memory_space<vmem>>, vector<32x96xbf16>
    %c0_96 = arith.constant 0 : index
    %c0_97 = arith.constant 0 : index
    %372 = vector.load %arg21[%c0_96, %c0_97] : memref<32x96xbf16, #tpu.memory_space<vmem>>, vector<32x96xbf16>
    %c0_98 = arith.constant 0 : index
    %c0_99 = arith.constant 0 : index
    %373 = vector.load %arg22[%c0_98, %c0_99] : memref<1x96xf32, #tpu.memory_space<vmem>>, vector<1x96xf32>
    %c0_100 = arith.constant 0 : index
    %c0_101 = arith.constant 0 : index
    %374 = vector.load %arg23[%c0_100, %c0_101] : memref<1x96xf32, #tpu.memory_space<vmem>>, vector<1x96xf32>
    %375 = arith.truncf %120 : vector<8x32xf32> to vector<8x32xbf16>
    %cst_102 = arith.constant dense<0.000000e+00> : vector<8x96xf32>
    %376 = tpu.matmul %375, %371, %cst_102 {dimension_numbers = #tpu.dot_dimension_numbers<[1], [0], [0], [1], [0, 0, 1, 1], [], []>} : vector<8x32xbf16>, vector<32x96xbf16>, vector<8x96xf32> -> vector<8x96xf32>
    %377 = vector.broadcast %373 : vector<1x96xf32> to vector<8x96xf32>
    %378 = arith.addf %376, %377 : vector<8x96xf32>
    %379 = vector.extract_strided_slice %378 {offsets = [7, 0], sizes = [1, 96], strides = [1, 1]} : vector<8x96xf32> to vector<1x96xf32>
    %380 = arith.truncf %121 : vector<1x32xf32> to vector<1x32xbf16>
    %cst_103 = arith.constant dense<0.000000e+00> : vector<1x96xf32>
    %381 = tpu.matmul %380, %372, %cst_103 {dimension_numbers = #tpu.dot_dimension_numbers<[1], [0], [0], [1], [0, 0, 1, 1], [], []>} : vector<1x32xbf16>, vector<32x96xbf16>, vector<1x96xf32> -> vector<1x96xf32>
    %382 = arith.addf %381, %374 : vector<1x96xf32>
    %383 = vector.extract_strided_slice %379 {offsets = [0, 0], sizes = [1, 32], strides = [1, 1]} : vector<1x96xf32> to vector<1x32xf32>
    %384 = vector.extract_strided_slice %382 {offsets = [0, 0], sizes = [1, 32], strides = [1, 1]} : vector<1x96xf32> to vector<1x32xf32>
    %385 = arith.addf %383, %384 : vector<1x32xf32>
    %386 = arith.negf %385 : vector<1x32xf32>
    %387 = math.exp %386 : vector<1x32xf32>
    %cst_104 = arith.constant 1.000000e+00 : f32
    %388 = vector.broadcast %cst_104 : f32 to vector<1x32xf32>
    %389 = arith.addf %388, %387 : vector<1x32xf32>
    %390 = arith.divf %388, %389 : vector<1x32xf32>
    %391 = vector.extract_strided_slice %379 {offsets = [0, 32], sizes = [1, 32], strides = [1, 1]} : vector<1x96xf32> to vector<1x32xf32>
    %392 = vector.extract_strided_slice %382 {offsets = [0, 32], sizes = [1, 32], strides = [1, 1]} : vector<1x96xf32> to vector<1x32xf32>
    %393 = arith.addf %391, %392 : vector<1x32xf32>
    %394 = arith.negf %393 : vector<1x32xf32>
    %395 = math.exp %394 : vector<1x32xf32>
    %cst_105 = arith.constant 1.000000e+00 : f32
    %396 = vector.broadcast %cst_105 : f32 to vector<1x32xf32>
    %397 = arith.addf %396, %395 : vector<1x32xf32>
    %398 = arith.divf %396, %397 : vector<1x32xf32>
    %399 = vector.extract_strided_slice %379 {offsets = [0, 64], sizes = [1, 32], strides = [1, 1]} : vector<1x96xf32> to vector<1x32xf32>
    %400 = vector.extract_strided_slice %382 {offsets = [0, 64], sizes = [1, 32], strides = [1, 1]} : vector<1x96xf32> to vector<1x32xf32>
    %401 = arith.mulf %390, %400 : vector<1x32xf32>
    %402 = arith.addf %399, %401 : vector<1x32xf32>
    %403 = math.tanh %402 : vector<1x32xf32>
    %cst_106 = arith.constant 1.000000e+00 : f32
    %404 = vector.broadcast %cst_106 : f32 to vector<1x32xf32>
    %405 = arith.subf %404, %398 : vector<1x32xf32>
    %406 = arith.mulf %405, %403 : vector<1x32xf32>
    %407 = arith.mulf %398, %121 : vector<1x32xf32>
    %408 = arith.addf %406, %407 : vector<1x32xf32>
    %409 = vector.extract_strided_slice %378 {offsets = [6, 0], sizes = [1, 96], strides = [1, 1]} : vector<8x96xf32> to vector<1x96xf32>
    %410 = arith.truncf %408 : vector<1x32xf32> to vector<1x32xbf16>
    %cst_107 = arith.constant dense<0.000000e+00> : vector<1x96xf32>
    %411 = tpu.matmul %410, %372, %cst_107 {dimension_numbers = #tpu.dot_dimension_numbers<[1], [0], [0], [1], [0, 0, 1, 1], [], []>} : vector<1x32xbf16>, vector<32x96xbf16>, vector<1x96xf32> -> vector<1x96xf32>
    %412 = arith.addf %411, %374 : vector<1x96xf32>
    %413 = vector.extract_strided_slice %409 {offsets = [0, 0], sizes = [1, 32], strides = [1, 1]} : vector<1x96xf32> to vector<1x32xf32>
    %414 = vector.extract_strided_slice %412 {offsets = [0, 0], sizes = [1, 32], strides = [1, 1]} : vector<1x96xf32> to vector<1x32xf32>
    %415 = arith.addf %413, %414 : vector<1x32xf32>
    %416 = arith.negf %415 : vector<1x32xf32>
    %417 = math.exp %416 : vector<1x32xf32>
    %cst_108 = arith.constant 1.000000e+00 : f32
    %418 = vector.broadcast %cst_108 : f32 to vector<1x32xf32>
    %419 = arith.addf %418, %417 : vector<1x32xf32>
    %420 = arith.divf %418, %419 : vector<1x32xf32>
    %421 = vector.extract_strided_slice %409 {offsets = [0, 32], sizes = [1, 32], strides = [1, 1]} : vector<1x96xf32> to vector<1x32xf32>
    %422 = vector.extract_strided_slice %412 {offsets = [0, 32], sizes = [1, 32], strides = [1, 1]} : vector<1x96xf32> to vector<1x32xf32>
    %423 = arith.addf %421, %422 : vector<1x32xf32>
    %424 = arith.negf %423 : vector<1x32xf32>
    %425 = math.exp %424 : vector<1x32xf32>
    %cst_109 = arith.constant 1.000000e+00 : f32
    %426 = vector.broadcast %cst_109 : f32 to vector<1x32xf32>
    %427 = arith.addf %426, %425 : vector<1x32xf32>
    %428 = arith.divf %426, %427 : vector<1x32xf32>
    %429 = vector.extract_strided_slice %409 {offsets = [0, 64], sizes = [1, 32], strides = [1, 1]} : vector<1x96xf32> to vector<1x32xf32>
    %430 = vector.extract_strided_slice %412 {offsets = [0, 64], sizes = [1, 32], strides = [1, 1]} : vector<1x96xf32> to vector<1x32xf32>
    %431 = arith.mulf %420, %430 : vector<1x32xf32>
    %432 = arith.addf %429, %431 : vector<1x32xf32>
    %433 = math.tanh %432 : vector<1x32xf32>
    %cst_110 = arith.constant 1.000000e+00 : f32
    %434 = vector.broadcast %cst_110 : f32 to vector<1x32xf32>
    %435 = arith.subf %434, %428 : vector<1x32xf32>
    %436 = arith.mulf %435, %433 : vector<1x32xf32>
    %437 = arith.mulf %428, %408 : vector<1x32xf32>
    %438 = arith.addf %436, %437 : vector<1x32xf32>
    %439 = vector.extract_strided_slice %378 {offsets = [5, 0], sizes = [1, 96], strides = [1, 1]} : vector<8x96xf32> to vector<1x96xf32>
    %440 = arith.truncf %438 : vector<1x32xf32> to vector<1x32xbf16>
    %cst_111 = arith.constant dense<0.000000e+00> : vector<1x96xf32>
    %441 = tpu.matmul %440, %372, %cst_111 {dimension_numbers = #tpu.dot_dimension_numbers<[1], [0], [0], [1], [0, 0, 1, 1], [], []>} : vector<1x32xbf16>, vector<32x96xbf16>, vector<1x96xf32> -> vector<1x96xf32>
    %442 = arith.addf %441, %374 : vector<1x96xf32>
    %443 = vector.extract_strided_slice %439 {offsets = [0, 0], sizes = [1, 32], strides = [1, 1]} : vector<1x96xf32> to vector<1x32xf32>
    %444 = vector.extract_strided_slice %442 {offsets = [0, 0], sizes = [1, 32], strides = [1, 1]} : vector<1x96xf32> to vector<1x32xf32>
    %445 = arith.addf %443, %444 : vector<1x32xf32>
    %446 = arith.negf %445 : vector<1x32xf32>
    %447 = math.exp %446 : vector<1x32xf32>
    %cst_112 = arith.constant 1.000000e+00 : f32
    %448 = vector.broadcast %cst_112 : f32 to vector<1x32xf32>
    %449 = arith.addf %448, %447 : vector<1x32xf32>
    %450 = arith.divf %448, %449 : vector<1x32xf32>
    %451 = vector.extract_strided_slice %439 {offsets = [0, 32], sizes = [1, 32], strides = [1, 1]} : vector<1x96xf32> to vector<1x32xf32>
    %452 = vector.extract_strided_slice %442 {offsets = [0, 32], sizes = [1, 32], strides = [1, 1]} : vector<1x96xf32> to vector<1x32xf32>
    %453 = arith.addf %451, %452 : vector<1x32xf32>
    %454 = arith.negf %453 : vector<1x32xf32>
    %455 = math.exp %454 : vector<1x32xf32>
    %cst_113 = arith.constant 1.000000e+00 : f32
    %456 = vector.broadcast %cst_113 : f32 to vector<1x32xf32>
    %457 = arith.addf %456, %455 : vector<1x32xf32>
    %458 = arith.divf %456, %457 : vector<1x32xf32>
    %459 = vector.extract_strided_slice %439 {offsets = [0, 64], sizes = [1, 32], strides = [1, 1]} : vector<1x96xf32> to vector<1x32xf32>
    %460 = vector.extract_strided_slice %442 {offsets = [0, 64], sizes = [1, 32], strides = [1, 1]} : vector<1x96xf32> to vector<1x32xf32>
    %461 = arith.mulf %450, %460 : vector<1x32xf32>
    %462 = arith.addf %459, %461 : vector<1x32xf32>
    %463 = math.tanh %462 : vector<1x32xf32>
    %cst_114 = arith.constant 1.000000e+00 : f32
    %464 = vector.broadcast %cst_114 : f32 to vector<1x32xf32>
    %465 = arith.subf %464, %458 : vector<1x32xf32>
    %466 = arith.mulf %465, %463 : vector<1x32xf32>
    %467 = arith.mulf %458, %438 : vector<1x32xf32>
    %468 = arith.addf %466, %467 : vector<1x32xf32>
    %469 = vector.extract_strided_slice %378 {offsets = [4, 0], sizes = [1, 96], strides = [1, 1]} : vector<8x96xf32> to vector<1x96xf32>
    %470 = arith.truncf %468 : vector<1x32xf32> to vector<1x32xbf16>
    %cst_115 = arith.constant dense<0.000000e+00> : vector<1x96xf32>
    %471 = tpu.matmul %470, %372, %cst_115 {dimension_numbers = #tpu.dot_dimension_numbers<[1], [0], [0], [1], [0, 0, 1, 1], [], []>} : vector<1x32xbf16>, vector<32x96xbf16>, vector<1x96xf32> -> vector<1x96xf32>
    %472 = arith.addf %471, %374 : vector<1x96xf32>
    %473 = vector.extract_strided_slice %469 {offsets = [0, 0], sizes = [1, 32], strides = [1, 1]} : vector<1x96xf32> to vector<1x32xf32>
    %474 = vector.extract_strided_slice %472 {offsets = [0, 0], sizes = [1, 32], strides = [1, 1]} : vector<1x96xf32> to vector<1x32xf32>
    %475 = arith.addf %473, %474 : vector<1x32xf32>
    %476 = arith.negf %475 : vector<1x32xf32>
    %477 = math.exp %476 : vector<1x32xf32>
    %cst_116 = arith.constant 1.000000e+00 : f32
    %478 = vector.broadcast %cst_116 : f32 to vector<1x32xf32>
    %479 = arith.addf %478, %477 : vector<1x32xf32>
    %480 = arith.divf %478, %479 : vector<1x32xf32>
    %481 = vector.extract_strided_slice %469 {offsets = [0, 32], sizes = [1, 32], strides = [1, 1]} : vector<1x96xf32> to vector<1x32xf32>
    %482 = vector.extract_strided_slice %472 {offsets = [0, 32], sizes = [1, 32], strides = [1, 1]} : vector<1x96xf32> to vector<1x32xf32>
    %483 = arith.addf %481, %482 : vector<1x32xf32>
    %484 = arith.negf %483 : vector<1x32xf32>
    %485 = math.exp %484 : vector<1x32xf32>
    %cst_117 = arith.constant 1.000000e+00 : f32
    %486 = vector.broadcast %cst_117 : f32 to vector<1x32xf32>
    %487 = arith.addf %486, %485 : vector<1x32xf32>
    %488 = arith.divf %486, %487 : vector<1x32xf32>
    %489 = vector.extract_strided_slice %469 {offsets = [0, 64], sizes = [1, 32], strides = [1, 1]} : vector<1x96xf32> to vector<1x32xf32>
    %490 = vector.extract_strided_slice %472 {offsets = [0, 64], sizes = [1, 32], strides = [1, 1]} : vector<1x96xf32> to vector<1x32xf32>
    %491 = arith.mulf %480, %490 : vector<1x32xf32>
    %492 = arith.addf %489, %491 : vector<1x32xf32>
    %493 = math.tanh %492 : vector<1x32xf32>
    %cst_118 = arith.constant 1.000000e+00 : f32
    %494 = vector.broadcast %cst_118 : f32 to vector<1x32xf32>
    %495 = arith.subf %494, %488 : vector<1x32xf32>
    %496 = arith.mulf %495, %493 : vector<1x32xf32>
    %497 = arith.mulf %488, %468 : vector<1x32xf32>
    %498 = arith.addf %496, %497 : vector<1x32xf32>
    %499 = vector.extract_strided_slice %378 {offsets = [3, 0], sizes = [1, 96], strides = [1, 1]} : vector<8x96xf32> to vector<1x96xf32>
    %500 = arith.truncf %498 : vector<1x32xf32> to vector<1x32xbf16>
    %cst_119 = arith.constant dense<0.000000e+00> : vector<1x96xf32>
    %501 = tpu.matmul %500, %372, %cst_119 {dimension_numbers = #tpu.dot_dimension_numbers<[1], [0], [0], [1], [0, 0, 1, 1], [], []>} : vector<1x32xbf16>, vector<32x96xbf16>, vector<1x96xf32> -> vector<1x96xf32>
    %502 = arith.addf %501, %374 : vector<1x96xf32>
    %503 = vector.extract_strided_slice %499 {offsets = [0, 0], sizes = [1, 32], strides = [1, 1]} : vector<1x96xf32> to vector<1x32xf32>
    %504 = vector.extract_strided_slice %502 {offsets = [0, 0], sizes = [1, 32], strides = [1, 1]} : vector<1x96xf32> to vector<1x32xf32>
    %505 = arith.addf %503, %504 : vector<1x32xf32>
    %506 = arith.negf %505 : vector<1x32xf32>
    %507 = math.exp %506 : vector<1x32xf32>
    %cst_120 = arith.constant 1.000000e+00 : f32
    %508 = vector.broadcast %cst_120 : f32 to vector<1x32xf32>
    %509 = arith.addf %508, %507 : vector<1x32xf32>
    %510 = arith.divf %508, %509 : vector<1x32xf32>
    %511 = vector.extract_strided_slice %499 {offsets = [0, 32], sizes = [1, 32], strides = [1, 1]} : vector<1x96xf32> to vector<1x32xf32>
    %512 = vector.extract_strided_slice %502 {offsets = [0, 32], sizes = [1, 32], strides = [1, 1]} : vector<1x96xf32> to vector<1x32xf32>
    %513 = arith.addf %511, %512 : vector<1x32xf32>
    %514 = arith.negf %513 : vector<1x32xf32>
    %515 = math.exp %514 : vector<1x32xf32>
    %cst_121 = arith.constant 1.000000e+00 : f32
    %516 = vector.broadcast %cst_121 : f32 to vector<1x32xf32>
    %517 = arith.addf %516, %515 : vector<1x32xf32>
    %518 = arith.divf %516, %517 : vector<1x32xf32>
    %519 = vector.extract_strided_slice %499 {offsets = [0, 64], sizes = [1, 32], strides = [1, 1]} : vector<1x96xf32> to vector<1x32xf32>
    %520 = vector.extract_strided_slice %502 {offsets = [0, 64], sizes = [1, 32], strides = [1, 1]} : vector<1x96xf32> to vector<1x32xf32>
    %521 = arith.mulf %510, %520 : vector<1x32xf32>
    %522 = arith.addf %519, %521 : vector<1x32xf32>
    %523 = math.tanh %522 : vector<1x32xf32>
    %cst_122 = arith.constant 1.000000e+00 : f32
    %524 = vector.broadcast %cst_122 : f32 to vector<1x32xf32>
    %525 = arith.subf %524, %518 : vector<1x32xf32>
    %526 = arith.mulf %525, %523 : vector<1x32xf32>
    %527 = arith.mulf %518, %498 : vector<1x32xf32>
    %528 = arith.addf %526, %527 : vector<1x32xf32>
    %529 = vector.extract_strided_slice %378 {offsets = [2, 0], sizes = [1, 96], strides = [1, 1]} : vector<8x96xf32> to vector<1x96xf32>
    %530 = arith.truncf %528 : vector<1x32xf32> to vector<1x32xbf16>
    %cst_123 = arith.constant dense<0.000000e+00> : vector<1x96xf32>
    %531 = tpu.matmul %530, %372, %cst_123 {dimension_numbers = #tpu.dot_dimension_numbers<[1], [0], [0], [1], [0, 0, 1, 1], [], []>} : vector<1x32xbf16>, vector<32x96xbf16>, vector<1x96xf32> -> vector<1x96xf32>
    %532 = arith.addf %531, %374 : vector<1x96xf32>
    %533 = vector.extract_strided_slice %529 {offsets = [0, 0], sizes = [1, 32], strides = [1, 1]} : vector<1x96xf32> to vector<1x32xf32>
    %534 = vector.extract_strided_slice %532 {offsets = [0, 0], sizes = [1, 32], strides = [1, 1]} : vector<1x96xf32> to vector<1x32xf32>
    %535 = arith.addf %533, %534 : vector<1x32xf32>
    %536 = arith.negf %535 : vector<1x32xf32>
    %537 = math.exp %536 : vector<1x32xf32>
    %cst_124 = arith.constant 1.000000e+00 : f32
    %538 = vector.broadcast %cst_124 : f32 to vector<1x32xf32>
    %539 = arith.addf %538, %537 : vector<1x32xf32>
    %540 = arith.divf %538, %539 : vector<1x32xf32>
    %541 = vector.extract_strided_slice %529 {offsets = [0, 32], sizes = [1, 32], strides = [1, 1]} : vector<1x96xf32> to vector<1x32xf32>
    %542 = vector.extract_strided_slice %532 {offsets = [0, 32], sizes = [1, 32], strides = [1, 1]} : vector<1x96xf32> to vector<1x32xf32>
    %543 = arith.addf %541, %542 : vector<1x32xf32>
    %544 = arith.negf %543 : vector<1x32xf32>
    %545 = math.exp %544 : vector<1x32xf32>
    %cst_125 = arith.constant 1.000000e+00 : f32
    %546 = vector.broadcast %cst_125 : f32 to vector<1x32xf32>
    %547 = arith.addf %546, %545 : vector<1x32xf32>
    %548 = arith.divf %546, %547 : vector<1x32xf32>
    %549 = vector.extract_strided_slice %529 {offsets = [0, 64], sizes = [1, 32], strides = [1, 1]} : vector<1x96xf32> to vector<1x32xf32>
    %550 = vector.extract_strided_slice %532 {offsets = [0, 64], sizes = [1, 32], strides = [1, 1]} : vector<1x96xf32> to vector<1x32xf32>
    %551 = arith.mulf %540, %550 : vector<1x32xf32>
    %552 = arith.addf %549, %551 : vector<1x32xf32>
    %553 = math.tanh %552 : vector<1x32xf32>
    %cst_126 = arith.constant 1.000000e+00 : f32
    %554 = vector.broadcast %cst_126 : f32 to vector<1x32xf32>
    %555 = arith.subf %554, %548 : vector<1x32xf32>
    %556 = arith.mulf %555, %553 : vector<1x32xf32>
    %557 = arith.mulf %548, %528 : vector<1x32xf32>
    %558 = arith.addf %556, %557 : vector<1x32xf32>
    %559 = vector.extract_strided_slice %378 {offsets = [1, 0], sizes = [1, 96], strides = [1, 1]} : vector<8x96xf32> to vector<1x96xf32>
    %560 = arith.truncf %558 : vector<1x32xf32> to vector<1x32xbf16>
    %cst_127 = arith.constant dense<0.000000e+00> : vector<1x96xf32>
    %561 = tpu.matmul %560, %372, %cst_127 {dimension_numbers = #tpu.dot_dimension_numbers<[1], [0], [0], [1], [0, 0, 1, 1], [], []>} : vector<1x32xbf16>, vector<32x96xbf16>, vector<1x96xf32> -> vector<1x96xf32>
    %562 = arith.addf %561, %374 : vector<1x96xf32>
    %563 = vector.extract_strided_slice %559 {offsets = [0, 0], sizes = [1, 32], strides = [1, 1]} : vector<1x96xf32> to vector<1x32xf32>
    %564 = vector.extract_strided_slice %562 {offsets = [0, 0], sizes = [1, 32], strides = [1, 1]} : vector<1x96xf32> to vector<1x32xf32>
    %565 = arith.addf %563, %564 : vector<1x32xf32>
    %566 = arith.negf %565 : vector<1x32xf32>
    %567 = math.exp %566 : vector<1x32xf32>
    %cst_128 = arith.constant 1.000000e+00 : f32
    %568 = vector.broadcast %cst_128 : f32 to vector<1x32xf32>
    %569 = arith.addf %568, %567 : vector<1x32xf32>
    %570 = arith.divf %568, %569 : vector<1x32xf32>
    %571 = vector.extract_strided_slice %559 {offsets = [0, 32], sizes = [1, 32], strides = [1, 1]} : vector<1x96xf32> to vector<1x32xf32>
    %572 = vector.extract_strided_slice %562 {offsets = [0, 32], sizes = [1, 32], strides = [1, 1]} : vector<1x96xf32> to vector<1x32xf32>
    %573 = arith.addf %571, %572 : vector<1x32xf32>
    %574 = arith.negf %573 : vector<1x32xf32>
    %575 = math.exp %574 : vector<1x32xf32>
    %cst_129 = arith.constant 1.000000e+00 : f32
    %576 = vector.broadcast %cst_129 : f32 to vector<1x32xf32>
    %577 = arith.addf %576, %575 : vector<1x32xf32>
    %578 = arith.divf %576, %577 : vector<1x32xf32>
    %579 = vector.extract_strided_slice %559 {offsets = [0, 64], sizes = [1, 32], strides = [1, 1]} : vector<1x96xf32> to vector<1x32xf32>
    %580 = vector.extract_strided_slice %562 {offsets = [0, 64], sizes = [1, 32], strides = [1, 1]} : vector<1x96xf32> to vector<1x32xf32>
    %581 = arith.mulf %570, %580 : vector<1x32xf32>
    %582 = arith.addf %579, %581 : vector<1x32xf32>
    %583 = math.tanh %582 : vector<1x32xf32>
    %cst_130 = arith.constant 1.000000e+00 : f32
    %584 = vector.broadcast %cst_130 : f32 to vector<1x32xf32>
    %585 = arith.subf %584, %578 : vector<1x32xf32>
    %586 = arith.mulf %585, %583 : vector<1x32xf32>
    %587 = arith.mulf %578, %558 : vector<1x32xf32>
    %588 = arith.addf %586, %587 : vector<1x32xf32>
    %589 = vector.extract_strided_slice %378 {offsets = [0, 0], sizes = [1, 96], strides = [1, 1]} : vector<8x96xf32> to vector<1x96xf32>
    %590 = arith.truncf %588 : vector<1x32xf32> to vector<1x32xbf16>
    %cst_131 = arith.constant dense<0.000000e+00> : vector<1x96xf32>
    %591 = tpu.matmul %590, %372, %cst_131 {dimension_numbers = #tpu.dot_dimension_numbers<[1], [0], [0], [1], [0, 0, 1, 1], [], []>} : vector<1x32xbf16>, vector<32x96xbf16>, vector<1x96xf32> -> vector<1x96xf32>
    %592 = arith.addf %591, %374 : vector<1x96xf32>
    %593 = vector.extract_strided_slice %589 {offsets = [0, 0], sizes = [1, 32], strides = [1, 1]} : vector<1x96xf32> to vector<1x32xf32>
    %594 = vector.extract_strided_slice %592 {offsets = [0, 0], sizes = [1, 32], strides = [1, 1]} : vector<1x96xf32> to vector<1x32xf32>
    %595 = arith.addf %593, %594 : vector<1x32xf32>
    %596 = arith.negf %595 : vector<1x32xf32>
    %597 = math.exp %596 : vector<1x32xf32>
    %cst_132 = arith.constant 1.000000e+00 : f32
    %598 = vector.broadcast %cst_132 : f32 to vector<1x32xf32>
    %599 = arith.addf %598, %597 : vector<1x32xf32>
    %600 = arith.divf %598, %599 : vector<1x32xf32>
    %601 = vector.extract_strided_slice %589 {offsets = [0, 32], sizes = [1, 32], strides = [1, 1]} : vector<1x96xf32> to vector<1x32xf32>
    %602 = vector.extract_strided_slice %592 {offsets = [0, 32], sizes = [1, 32], strides = [1, 1]} : vector<1x96xf32> to vector<1x32xf32>
    %603 = arith.addf %601, %602 : vector<1x32xf32>
    %604 = arith.negf %603 : vector<1x32xf32>
    %605 = math.exp %604 : vector<1x32xf32>
    %cst_133 = arith.constant 1.000000e+00 : f32
    %606 = vector.broadcast %cst_133 : f32 to vector<1x32xf32>
    %607 = arith.addf %606, %605 : vector<1x32xf32>
    %608 = arith.divf %606, %607 : vector<1x32xf32>
    %609 = vector.extract_strided_slice %589 {offsets = [0, 64], sizes = [1, 32], strides = [1, 1]} : vector<1x96xf32> to vector<1x32xf32>
    %610 = vector.extract_strided_slice %592 {offsets = [0, 64], sizes = [1, 32], strides = [1, 1]} : vector<1x96xf32> to vector<1x32xf32>
    %611 = arith.mulf %600, %610 : vector<1x32xf32>
    %612 = arith.addf %609, %611 : vector<1x32xf32>
    %613 = math.tanh %612 : vector<1x32xf32>
    %cst_134 = arith.constant 1.000000e+00 : f32
    %614 = vector.broadcast %cst_134 : f32 to vector<1x32xf32>
    %615 = arith.subf %614, %608 : vector<1x32xf32>
    %616 = arith.mulf %615, %613 : vector<1x32xf32>
    %617 = arith.mulf %608, %588 : vector<1x32xf32>
    %618 = arith.addf %616, %617 : vector<1x32xf32>
    %619 = tpu.concatenate %618, %588, %558, %528, %498, %468, %438, %408 in 0 : vector<1x32xf32>, vector<1x32xf32>, vector<1x32xf32>, vector<1x32xf32>, vector<1x32xf32>, vector<1x32xf32>, vector<1x32xf32>, vector<1x32xf32> -> vector<8x32xf32>
    %620 = tpu.concatenate %370, %619 in 1 : vector<8x32xf32>, vector<8x32xf32> -> vector<8x64xf32>
    %c0_135 = arith.constant 0 : index
    %c0_136 = arith.constant 0 : index
    %621 = vector.load %arg24[%c0_135, %c0_136] : memref<64x96xbf16, #tpu.memory_space<vmem>>, vector<64x96xbf16>
    %c0_137 = arith.constant 0 : index
    %c0_138 = arith.constant 0 : index
    %622 = vector.load %arg25[%c0_137, %c0_138] : memref<32x96xbf16, #tpu.memory_space<vmem>>, vector<32x96xbf16>
    %c0_139 = arith.constant 0 : index
    %c0_140 = arith.constant 0 : index
    %623 = vector.load %arg26[%c0_139, %c0_140] : memref<1x96xf32, #tpu.memory_space<vmem>>, vector<1x96xf32>
    %c0_141 = arith.constant 0 : index
    %c0_142 = arith.constant 0 : index
    %624 = vector.load %arg27[%c0_141, %c0_142] : memref<1x96xf32, #tpu.memory_space<vmem>>, vector<1x96xf32>
    %625 = arith.truncf %620 : vector<8x64xf32> to vector<8x64xbf16>
    %cst_143 = arith.constant dense<0.000000e+00> : vector<8x96xf32>
    %626 = tpu.matmul %625, %621, %cst_143 {dimension_numbers = #tpu.dot_dimension_numbers<[1], [0], [0], [1], [0, 0, 1, 1], [], []>} : vector<8x64xbf16>, vector<64x96xbf16>, vector<8x96xf32> -> vector<8x96xf32>
    %627 = vector.broadcast %623 : vector<1x96xf32> to vector<8x96xf32>
    %628 = arith.addf %626, %627 : vector<8x96xf32>
    %629 = vector.extract_strided_slice %628 {offsets = [0, 0], sizes = [1, 96], strides = [1, 1]} : vector<8x96xf32> to vector<1x96xf32>
    %630 = arith.truncf %121 : vector<1x32xf32> to vector<1x32xbf16>
    %cst_144 = arith.constant dense<0.000000e+00> : vector<1x96xf32>
    %631 = tpu.matmul %630, %622, %cst_144 {dimension_numbers = #tpu.dot_dimension_numbers<[1], [0], [0], [1], [0, 0, 1, 1], [], []>} : vector<1x32xbf16>, vector<32x96xbf16>, vector<1x96xf32> -> vector<1x96xf32>
    %632 = arith.addf %631, %624 : vector<1x96xf32>
    %633 = vector.extract_strided_slice %629 {offsets = [0, 0], sizes = [1, 32], strides = [1, 1]} : vector<1x96xf32> to vector<1x32xf32>
    %634 = vector.extract_strided_slice %632 {offsets = [0, 0], sizes = [1, 32], strides = [1, 1]} : vector<1x96xf32> to vector<1x32xf32>
    %635 = arith.addf %633, %634 : vector<1x32xf32>
    %636 = arith.negf %635 : vector<1x32xf32>
    %637 = math.exp %636 : vector<1x32xf32>
    %cst_145 = arith.constant 1.000000e+00 : f32
    %638 = vector.broadcast %cst_145 : f32 to vector<1x32xf32>
    %639 = arith.addf %638, %637 : vector<1x32xf32>
    %640 = arith.divf %638, %639 : vector<1x32xf32>
    %641 = vector.extract_strided_slice %629 {offsets = [0, 32], sizes = [1, 32], strides = [1, 1]} : vector<1x96xf32> to vector<1x32xf32>
    %642 = vector.extract_strided_slice %632 {offsets = [0, 32], sizes = [1, 32], strides = [1, 1]} : vector<1x96xf32> to vector<1x32xf32>
    %643 = arith.addf %641, %642 : vector<1x32xf32>
    %644 = arith.negf %643 : vector<1x32xf32>
    %645 = math.exp %644 : vector<1x32xf32>
    %cst_146 = arith.constant 1.000000e+00 : f32
    %646 = vector.broadcast %cst_146 : f32 to vector<1x32xf32>
    %647 = arith.addf %646, %645 : vector<1x32xf32>
    %648 = arith.divf %646, %647 : vector<1x32xf32>
    %649 = vector.extract_strided_slice %629 {offsets = [0, 64], sizes = [1, 32], strides = [1, 1]} : vector<1x96xf32> to vector<1x32xf32>
    %650 = vector.extract_strided_slice %632 {offsets = [0, 64], sizes = [1, 32], strides = [1, 1]} : vector<1x96xf32> to vector<1x32xf32>
    %651 = arith.mulf %640, %650 : vector<1x32xf32>
    %652 = arith.addf %649, %651 : vector<1x32xf32>
    %653 = math.tanh %652 : vector<1x32xf32>
    %cst_147 = arith.constant 1.000000e+00 : f32
    %654 = vector.broadcast %cst_147 : f32 to vector<1x32xf32>
    %655 = arith.subf %654, %648 : vector<1x32xf32>
    %656 = arith.mulf %655, %653 : vector<1x32xf32>
    %657 = arith.mulf %648, %121 : vector<1x32xf32>
    %658 = arith.addf %656, %657 : vector<1x32xf32>
    %659 = vector.extract_strided_slice %628 {offsets = [1, 0], sizes = [1, 96], strides = [1, 1]} : vector<8x96xf32> to vector<1x96xf32>
    %660 = arith.truncf %658 : vector<1x32xf32> to vector<1x32xbf16>
    %cst_148 = arith.constant dense<0.000000e+00> : vector<1x96xf32>
    %661 = tpu.matmul %660, %622, %cst_148 {dimension_numbers = #tpu.dot_dimension_numbers<[1], [0], [0], [1], [0, 0, 1, 1], [], []>} : vector<1x32xbf16>, vector<32x96xbf16>, vector<1x96xf32> -> vector<1x96xf32>
    %662 = arith.addf %661, %624 : vector<1x96xf32>
    %663 = vector.extract_strided_slice %659 {offsets = [0, 0], sizes = [1, 32], strides = [1, 1]} : vector<1x96xf32> to vector<1x32xf32>
    %664 = vector.extract_strided_slice %662 {offsets = [0, 0], sizes = [1, 32], strides = [1, 1]} : vector<1x96xf32> to vector<1x32xf32>
    %665 = arith.addf %663, %664 : vector<1x32xf32>
    %666 = arith.negf %665 : vector<1x32xf32>
    %667 = math.exp %666 : vector<1x32xf32>
    %cst_149 = arith.constant 1.000000e+00 : f32
    %668 = vector.broadcast %cst_149 : f32 to vector<1x32xf32>
    %669 = arith.addf %668, %667 : vector<1x32xf32>
    %670 = arith.divf %668, %669 : vector<1x32xf32>
    %671 = vector.extract_strided_slice %659 {offsets = [0, 32], sizes = [1, 32], strides = [1, 1]} : vector<1x96xf32> to vector<1x32xf32>
    %672 = vector.extract_strided_slice %662 {offsets = [0, 32], sizes = [1, 32], strides = [1, 1]} : vector<1x96xf32> to vector<1x32xf32>
    %673 = arith.addf %671, %672 : vector<1x32xf32>
    %674 = arith.negf %673 : vector<1x32xf32>
    %675 = math.exp %674 : vector<1x32xf32>
    %cst_150 = arith.constant 1.000000e+00 : f32
    %676 = vector.broadcast %cst_150 : f32 to vector<1x32xf32>
    %677 = arith.addf %676, %675 : vector<1x32xf32>
    %678 = arith.divf %676, %677 : vector<1x32xf32>
    %679 = vector.extract_strided_slice %659 {offsets = [0, 64], sizes = [1, 32], strides = [1, 1]} : vector<1x96xf32> to vector<1x32xf32>
    %680 = vector.extract_strided_slice %662 {offsets = [0, 64], sizes = [1, 32], strides = [1, 1]} : vector<1x96xf32> to vector<1x32xf32>
    %681 = arith.mulf %670, %680 : vector<1x32xf32>
    %682 = arith.addf %679, %681 : vector<1x32xf32>
    %683 = math.tanh %682 : vector<1x32xf32>
    %cst_151 = arith.constant 1.000000e+00 : f32
    %684 = vector.broadcast %cst_151 : f32 to vector<1x32xf32>
    %685 = arith.subf %684, %678 : vector<1x32xf32>
    %686 = arith.mulf %685, %683 : vector<1x32xf32>
    %687 = arith.mulf %678, %658 : vector<1x32xf32>
    %688 = arith.addf %686, %687 : vector<1x32xf32>
    %689 = vector.extract_strided_slice %628 {offsets = [2, 0], sizes = [1, 96], strides = [1, 1]} : vector<8x96xf32> to vector<1x96xf32>
    %690 = arith.truncf %688 : vector<1x32xf32> to vector<1x32xbf16>
    %cst_152 = arith.constant dense<0.000000e+00> : vector<1x96xf32>
    %691 = tpu.matmul %690, %622, %cst_152 {dimension_numbers = #tpu.dot_dimension_numbers<[1], [0], [0], [1], [0, 0, 1, 1], [], []>} : vector<1x32xbf16>, vector<32x96xbf16>, vector<1x96xf32> -> vector<1x96xf32>
    %692 = arith.addf %691, %624 : vector<1x96xf32>
    %693 = vector.extract_strided_slice %689 {offsets = [0, 0], sizes = [1, 32], strides = [1, 1]} : vector<1x96xf32> to vector<1x32xf32>
    %694 = vector.extract_strided_slice %692 {offsets = [0, 0], sizes = [1, 32], strides = [1, 1]} : vector<1x96xf32> to vector<1x32xf32>
    %695 = arith.addf %693, %694 : vector<1x32xf32>
    %696 = arith.negf %695 : vector<1x32xf32>
    %697 = math.exp %696 : vector<1x32xf32>
    %cst_153 = arith.constant 1.000000e+00 : f32
    %698 = vector.broadcast %cst_153 : f32 to vector<1x32xf32>
    %699 = arith.addf %698, %697 : vector<1x32xf32>
    %700 = arith.divf %698, %699 : vector<1x32xf32>
    %701 = vector.extract_strided_slice %689 {offsets = [0, 32], sizes = [1, 32], strides = [1, 1]} : vector<1x96xf32> to vector<1x32xf32>
    %702 = vector.extract_strided_slice %692 {offsets = [0, 32], sizes = [1, 32], strides = [1, 1]} : vector<1x96xf32> to vector<1x32xf32>
    %703 = arith.addf %701, %702 : vector<1x32xf32>
    %704 = arith.negf %703 : vector<1x32xf32>
    %705 = math.exp %704 : vector<1x32xf32>
    %cst_154 = arith.constant 1.000000e+00 : f32
    %706 = vector.broadcast %cst_154 : f32 to vector<1x32xf32>
    %707 = arith.addf %706, %705 : vector<1x32xf32>
    %708 = arith.divf %706, %707 : vector<1x32xf32>
    %709 = vector.extract_strided_slice %689 {offsets = [0, 64], sizes = [1, 32], strides = [1, 1]} : vector<1x96xf32> to vector<1x32xf32>
    %710 = vector.extract_strided_slice %692 {offsets = [0, 64], sizes = [1, 32], strides = [1, 1]} : vector<1x96xf32> to vector<1x32xf32>
    %711 = arith.mulf %700, %710 : vector<1x32xf32>
    %712 = arith.addf %709, %711 : vector<1x32xf32>
    %713 = math.tanh %712 : vector<1x32xf32>
    %cst_155 = arith.constant 1.000000e+00 : f32
    %714 = vector.broadcast %cst_155 : f32 to vector<1x32xf32>
    %715 = arith.subf %714, %708 : vector<1x32xf32>
    %716 = arith.mulf %715, %713 : vector<1x32xf32>
    %717 = arith.mulf %708, %688 : vector<1x32xf32>
    %718 = arith.addf %716, %717 : vector<1x32xf32>
    %719 = vector.extract_strided_slice %628 {offsets = [3, 0], sizes = [1, 96], strides = [1, 1]} : vector<8x96xf32> to vector<1x96xf32>
    %720 = arith.truncf %718 : vector<1x32xf32> to vector<1x32xbf16>
    %cst_156 = arith.constant dense<0.000000e+00> : vector<1x96xf32>
    %721 = tpu.matmul %720, %622, %cst_156 {dimension_numbers = #tpu.dot_dimension_numbers<[1], [0], [0], [1], [0, 0, 1, 1], [], []>} : vector<1x32xbf16>, vector<32x96xbf16>, vector<1x96xf32> -> vector<1x96xf32>
    %722 = arith.addf %721, %624 : vector<1x96xf32>
    %723 = vector.extract_strided_slice %719 {offsets = [0, 0], sizes = [1, 32], strides = [1, 1]} : vector<1x96xf32> to vector<1x32xf32>
    %724 = vector.extract_strided_slice %722 {offsets = [0, 0], sizes = [1, 32], strides = [1, 1]} : vector<1x96xf32> to vector<1x32xf32>
    %725 = arith.addf %723, %724 : vector<1x32xf32>
    %726 = arith.negf %725 : vector<1x32xf32>
    %727 = math.exp %726 : vector<1x32xf32>
    %cst_157 = arith.constant 1.000000e+00 : f32
    %728 = vector.broadcast %cst_157 : f32 to vector<1x32xf32>
    %729 = arith.addf %728, %727 : vector<1x32xf32>
    %730 = arith.divf %728, %729 : vector<1x32xf32>
    %731 = vector.extract_strided_slice %719 {offsets = [0, 32], sizes = [1, 32], strides = [1, 1]} : vector<1x96xf32> to vector<1x32xf32>
    %732 = vector.extract_strided_slice %722 {offsets = [0, 32], sizes = [1, 32], strides = [1, 1]} : vector<1x96xf32> to vector<1x32xf32>
    %733 = arith.addf %731, %732 : vector<1x32xf32>
    %734 = arith.negf %733 : vector<1x32xf32>
    %735 = math.exp %734 : vector<1x32xf32>
    %cst_158 = arith.constant 1.000000e+00 : f32
    %736 = vector.broadcast %cst_158 : f32 to vector<1x32xf32>
    %737 = arith.addf %736, %735 : vector<1x32xf32>
    %738 = arith.divf %736, %737 : vector<1x32xf32>
    %739 = vector.extract_strided_slice %719 {offsets = [0, 64], sizes = [1, 32], strides = [1, 1]} : vector<1x96xf32> to vector<1x32xf32>
    %740 = vector.extract_strided_slice %722 {offsets = [0, 64], sizes = [1, 32], strides = [1, 1]} : vector<1x96xf32> to vector<1x32xf32>
    %741 = arith.mulf %730, %740 : vector<1x32xf32>
    %742 = arith.addf %739, %741 : vector<1x32xf32>
    %743 = math.tanh %742 : vector<1x32xf32>
    %cst_159 = arith.constant 1.000000e+00 : f32
    %744 = vector.broadcast %cst_159 : f32 to vector<1x32xf32>
    %745 = arith.subf %744, %738 : vector<1x32xf32>
    %746 = arith.mulf %745, %743 : vector<1x32xf32>
    %747 = arith.mulf %738, %718 : vector<1x32xf32>
    %748 = arith.addf %746, %747 : vector<1x32xf32>
    %749 = vector.extract_strided_slice %628 {offsets = [4, 0], sizes = [1, 96], strides = [1, 1]} : vector<8x96xf32> to vector<1x96xf32>
    %750 = arith.truncf %748 : vector<1x32xf32> to vector<1x32xbf16>
    %cst_160 = arith.constant dense<0.000000e+00> : vector<1x96xf32>
    %751 = tpu.matmul %750, %622, %cst_160 {dimension_numbers = #tpu.dot_dimension_numbers<[1], [0], [0], [1], [0, 0, 1, 1], [], []>} : vector<1x32xbf16>, vector<32x96xbf16>, vector<1x96xf32> -> vector<1x96xf32>
    %752 = arith.addf %751, %624 : vector<1x96xf32>
    %753 = vector.extract_strided_slice %749 {offsets = [0, 0], sizes = [1, 32], strides = [1, 1]} : vector<1x96xf32> to vector<1x32xf32>
    %754 = vector.extract_strided_slice %752 {offsets = [0, 0], sizes = [1, 32], strides = [1, 1]} : vector<1x96xf32> to vector<1x32xf32>
    %755 = arith.addf %753, %754 : vector<1x32xf32>
    %756 = arith.negf %755 : vector<1x32xf32>
    %757 = math.exp %756 : vector<1x32xf32>
    %cst_161 = arith.constant 1.000000e+00 : f32
    %758 = vector.broadcast %cst_161 : f32 to vector<1x32xf32>
    %759 = arith.addf %758, %757 : vector<1x32xf32>
    %760 = arith.divf %758, %759 : vector<1x32xf32>
    %761 = vector.extract_strided_slice %749 {offsets = [0, 32], sizes = [1, 32], strides = [1, 1]} : vector<1x96xf32> to vector<1x32xf32>
    %762 = vector.extract_strided_slice %752 {offsets = [0, 32], sizes = [1, 32], strides = [1, 1]} : vector<1x96xf32> to vector<1x32xf32>
    %763 = arith.addf %761, %762 : vector<1x32xf32>
    %764 = arith.negf %763 : vector<1x32xf32>
    %765 = math.exp %764 : vector<1x32xf32>
    %cst_162 = arith.constant 1.000000e+00 : f32
    %766 = vector.broadcast %cst_162 : f32 to vector<1x32xf32>
    %767 = arith.addf %766, %765 : vector<1x32xf32>
    %768 = arith.divf %766, %767 : vector<1x32xf32>
    %769 = vector.extract_strided_slice %749 {offsets = [0, 64], sizes = [1, 32], strides = [1, 1]} : vector<1x96xf32> to vector<1x32xf32>
    %770 = vector.extract_strided_slice %752 {offsets = [0, 64], sizes = [1, 32], strides = [1, 1]} : vector<1x96xf32> to vector<1x32xf32>
    %771 = arith.mulf %760, %770 : vector<1x32xf32>
    %772 = arith.addf %769, %771 : vector<1x32xf32>
    %773 = math.tanh %772 : vector<1x32xf32>
    %cst_163 = arith.constant 1.000000e+00 : f32
    %774 = vector.broadcast %cst_163 : f32 to vector<1x32xf32>
    %775 = arith.subf %774, %768 : vector<1x32xf32>
    %776 = arith.mulf %775, %773 : vector<1x32xf32>
    %777 = arith.mulf %768, %748 : vector<1x32xf32>
    %778 = arith.addf %776, %777 : vector<1x32xf32>
    %779 = vector.extract_strided_slice %628 {offsets = [5, 0], sizes = [1, 96], strides = [1, 1]} : vector<8x96xf32> to vector<1x96xf32>
    %780 = arith.truncf %778 : vector<1x32xf32> to vector<1x32xbf16>
    %cst_164 = arith.constant dense<0.000000e+00> : vector<1x96xf32>
    %781 = tpu.matmul %780, %622, %cst_164 {dimension_numbers = #tpu.dot_dimension_numbers<[1], [0], [0], [1], [0, 0, 1, 1], [], []>} : vector<1x32xbf16>, vector<32x96xbf16>, vector<1x96xf32> -> vector<1x96xf32>
    %782 = arith.addf %781, %624 : vector<1x96xf32>
    %783 = vector.extract_strided_slice %779 {offsets = [0, 0], sizes = [1, 32], strides = [1, 1]} : vector<1x96xf32> to vector<1x32xf32>
    %784 = vector.extract_strided_slice %782 {offsets = [0, 0], sizes = [1, 32], strides = [1, 1]} : vector<1x96xf32> to vector<1x32xf32>
    %785 = arith.addf %783, %784 : vector<1x32xf32>
    %786 = arith.negf %785 : vector<1x32xf32>
    %787 = math.exp %786 : vector<1x32xf32>
    %cst_165 = arith.constant 1.000000e+00 : f32
    %788 = vector.broadcast %cst_165 : f32 to vector<1x32xf32>
    %789 = arith.addf %788, %787 : vector<1x32xf32>
    %790 = arith.divf %788, %789 : vector<1x32xf32>
    %791 = vector.extract_strided_slice %779 {offsets = [0, 32], sizes = [1, 32], strides = [1, 1]} : vector<1x96xf32> to vector<1x32xf32>
    %792 = vector.extract_strided_slice %782 {offsets = [0, 32], sizes = [1, 32], strides = [1, 1]} : vector<1x96xf32> to vector<1x32xf32>
    %793 = arith.addf %791, %792 : vector<1x32xf32>
    %794 = arith.negf %793 : vector<1x32xf32>
    %795 = math.exp %794 : vector<1x32xf32>
    %cst_166 = arith.constant 1.000000e+00 : f32
    %796 = vector.broadcast %cst_166 : f32 to vector<1x32xf32>
    %797 = arith.addf %796, %795 : vector<1x32xf32>
    %798 = arith.divf %796, %797 : vector<1x32xf32>
    %799 = vector.extract_strided_slice %779 {offsets = [0, 64], sizes = [1, 32], strides = [1, 1]} : vector<1x96xf32> to vector<1x32xf32>
    %800 = vector.extract_strided_slice %782 {offsets = [0, 64], sizes = [1, 32], strides = [1, 1]} : vector<1x96xf32> to vector<1x32xf32>
    %801 = arith.mulf %790, %800 : vector<1x32xf32>
    %802 = arith.addf %799, %801 : vector<1x32xf32>
    %803 = math.tanh %802 : vector<1x32xf32>
    %cst_167 = arith.constant 1.000000e+00 : f32
    %804 = vector.broadcast %cst_167 : f32 to vector<1x32xf32>
    %805 = arith.subf %804, %798 : vector<1x32xf32>
    %806 = arith.mulf %805, %803 : vector<1x32xf32>
    %807 = arith.mulf %798, %778 : vector<1x32xf32>
    %808 = arith.addf %806, %807 : vector<1x32xf32>
    %809 = vector.extract_strided_slice %628 {offsets = [6, 0], sizes = [1, 96], strides = [1, 1]} : vector<8x96xf32> to vector<1x96xf32>
    %810 = arith.truncf %808 : vector<1x32xf32> to vector<1x32xbf16>
    %cst_168 = arith.constant dense<0.000000e+00> : vector<1x96xf32>
    %811 = tpu.matmul %810, %622, %cst_168 {dimension_numbers = #tpu.dot_dimension_numbers<[1], [0], [0], [1], [0, 0, 1, 1], [], []>} : vector<1x32xbf16>, vector<32x96xbf16>, vector<1x96xf32> -> vector<1x96xf32>
    %812 = arith.addf %811, %624 : vector<1x96xf32>
    %813 = vector.extract_strided_slice %809 {offsets = [0, 0], sizes = [1, 32], strides = [1, 1]} : vector<1x96xf32> to vector<1x32xf32>
    %814 = vector.extract_strided_slice %812 {offsets = [0, 0], sizes = [1, 32], strides = [1, 1]} : vector<1x96xf32> to vector<1x32xf32>
    %815 = arith.addf %813, %814 : vector<1x32xf32>
    %816 = arith.negf %815 : vector<1x32xf32>
    %817 = math.exp %816 : vector<1x32xf32>
    %cst_169 = arith.constant 1.000000e+00 : f32
    %818 = vector.broadcast %cst_169 : f32 to vector<1x32xf32>
    %819 = arith.addf %818, %817 : vector<1x32xf32>
    %820 = arith.divf %818, %819 : vector<1x32xf32>
    %821 = vector.extract_strided_slice %809 {offsets = [0, 32], sizes = [1, 32], strides = [1, 1]} : vector<1x96xf32> to vector<1x32xf32>
    %822 = vector.extract_strided_slice %812 {offsets = [0, 32], sizes = [1, 32], strides = [1, 1]} : vector<1x96xf32> to vector<1x32xf32>
    %823 = arith.addf %821, %822 : vector<1x32xf32>
    %824 = arith.negf %823 : vector<1x32xf32>
    %825 = math.exp %824 : vector<1x32xf32>
    %cst_170 = arith.constant 1.000000e+00 : f32
    %826 = vector.broadcast %cst_170 : f32 to vector<1x32xf32>
    %827 = arith.addf %826, %825 : vector<1x32xf32>
    %828 = arith.divf %826, %827 : vector<1x32xf32>
    %829 = vector.extract_strided_slice %809 {offsets = [0, 64], sizes = [1, 32], strides = [1, 1]} : vector<1x96xf32> to vector<1x32xf32>
    %830 = vector.extract_strided_slice %812 {offsets = [0, 64], sizes = [1, 32], strides = [1, 1]} : vector<1x96xf32> to vector<1x32xf32>
    %831 = arith.mulf %820, %830 : vector<1x32xf32>
    %832 = arith.addf %829, %831 : vector<1x32xf32>
    %833 = math.tanh %832 : vector<1x32xf32>
    %cst_171 = arith.constant 1.000000e+00 : f32
    %834 = vector.broadcast %cst_171 : f32 to vector<1x32xf32>
    %835 = arith.subf %834, %828 : vector<1x32xf32>
    %836 = arith.mulf %835, %833 : vector<1x32xf32>
    %837 = arith.mulf %828, %808 : vector<1x32xf32>
    %838 = arith.addf %836, %837 : vector<1x32xf32>
    %839 = vector.extract_strided_slice %628 {offsets = [7, 0], sizes = [1, 96], strides = [1, 1]} : vector<8x96xf32> to vector<1x96xf32>
    %840 = arith.truncf %838 : vector<1x32xf32> to vector<1x32xbf16>
    %cst_172 = arith.constant dense<0.000000e+00> : vector<1x96xf32>
    %841 = tpu.matmul %840, %622, %cst_172 {dimension_numbers = #tpu.dot_dimension_numbers<[1], [0], [0], [1], [0, 0, 1, 1], [], []>} : vector<1x32xbf16>, vector<32x96xbf16>, vector<1x96xf32> -> vector<1x96xf32>
    %842 = arith.addf %841, %624 : vector<1x96xf32>
    %843 = vector.extract_strided_slice %839 {offsets = [0, 0], sizes = [1, 32], strides = [1, 1]} : vector<1x96xf32> to vector<1x32xf32>
    %844 = vector.extract_strided_slice %842 {offsets = [0, 0], sizes = [1, 32], strides = [1, 1]} : vector<1x96xf32> to vector<1x32xf32>
    %845 = arith.addf %843, %844 : vector<1x32xf32>
    %846 = arith.negf %845 : vector<1x32xf32>
    %847 = math.exp %846 : vector<1x32xf32>
    %cst_173 = arith.constant 1.000000e+00 : f32
    %848 = vector.broadcast %cst_173 : f32 to vector<1x32xf32>
    %849 = arith.addf %848, %847 : vector<1x32xf32>
    %850 = arith.divf %848, %849 : vector<1x32xf32>
    %851 = vector.extract_strided_slice %839 {offsets = [0, 32], sizes = [1, 32], strides = [1, 1]} : vector<1x96xf32> to vector<1x32xf32>
    %852 = vector.extract_strided_slice %842 {offsets = [0, 32], sizes = [1, 32], strides = [1, 1]} : vector<1x96xf32> to vector<1x32xf32>
    %853 = arith.addf %851, %852 : vector<1x32xf32>
    %854 = arith.negf %853 : vector<1x32xf32>
    %855 = math.exp %854 : vector<1x32xf32>
    %cst_174 = arith.constant 1.000000e+00 : f32
    %856 = vector.broadcast %cst_174 : f32 to vector<1x32xf32>
    %857 = arith.addf %856, %855 : vector<1x32xf32>
    %858 = arith.divf %856, %857 : vector<1x32xf32>
    %859 = vector.extract_strided_slice %839 {offsets = [0, 64], sizes = [1, 32], strides = [1, 1]} : vector<1x96xf32> to vector<1x32xf32>
    %860 = vector.extract_strided_slice %842 {offsets = [0, 64], sizes = [1, 32], strides = [1, 1]} : vector<1x96xf32> to vector<1x32xf32>
    %861 = arith.mulf %850, %860 : vector<1x32xf32>
    %862 = arith.addf %859, %861 : vector<1x32xf32>
    %863 = math.tanh %862 : vector<1x32xf32>
    %cst_175 = arith.constant 1.000000e+00 : f32
    %864 = vector.broadcast %cst_175 : f32 to vector<1x32xf32>
    %865 = arith.subf %864, %858 : vector<1x32xf32>
    %866 = arith.mulf %865, %863 : vector<1x32xf32>
    %867 = arith.mulf %858, %838 : vector<1x32xf32>
    %868 = arith.addf %866, %867 : vector<1x32xf32>
    %869 = tpu.concatenate %658, %688, %718, %748, %778, %808, %838, %868 in 0 : vector<1x32xf32>, vector<1x32xf32>, vector<1x32xf32>, vector<1x32xf32>, vector<1x32xf32>, vector<1x32xf32>, vector<1x32xf32>, vector<1x32xf32> -> vector<8x32xf32>
    %c0_176 = arith.constant 0 : index
    %c0_177 = arith.constant 0 : index
    %870 = vector.load %arg28[%c0_176, %c0_177] : memref<64x96xbf16, #tpu.memory_space<vmem>>, vector<64x96xbf16>
    %c0_178 = arith.constant 0 : index
    %c0_179 = arith.constant 0 : index
    %871 = vector.load %arg29[%c0_178, %c0_179] : memref<32x96xbf16, #tpu.memory_space<vmem>>, vector<32x96xbf16>
    %c0_180 = arith.constant 0 : index
    %c0_181 = arith.constant 0 : index
    %872 = vector.load %arg30[%c0_180, %c0_181] : memref<1x96xf32, #tpu.memory_space<vmem>>, vector<1x96xf32>
    %c0_182 = arith.constant 0 : index
    %c0_183 = arith.constant 0 : index
    %873 = vector.load %arg31[%c0_182, %c0_183] : memref<1x96xf32, #tpu.memory_space<vmem>>, vector<1x96xf32>
    %874 = arith.truncf %620 : vector<8x64xf32> to vector<8x64xbf16>
    %cst_184 = arith.constant dense<0.000000e+00> : vector<8x96xf32>
    %875 = tpu.matmul %874, %870, %cst_184 {dimension_numbers = #tpu.dot_dimension_numbers<[1], [0], [0], [1], [0, 0, 1, 1], [], []>} : vector<8x64xbf16>, vector<64x96xbf16>, vector<8x96xf32> -> vector<8x96xf32>
    %876 = vector.broadcast %872 : vector<1x96xf32> to vector<8x96xf32>
    %877 = arith.addf %875, %876 : vector<8x96xf32>
    %878 = vector.extract_strided_slice %877 {offsets = [7, 0], sizes = [1, 96], strides = [1, 1]} : vector<8x96xf32> to vector<1x96xf32>
    %879 = arith.truncf %121 : vector<1x32xf32> to vector<1x32xbf16>
    %cst_185 = arith.constant dense<0.000000e+00> : vector<1x96xf32>
    %880 = tpu.matmul %879, %871, %cst_185 {dimension_numbers = #tpu.dot_dimension_numbers<[1], [0], [0], [1], [0, 0, 1, 1], [], []>} : vector<1x32xbf16>, vector<32x96xbf16>, vector<1x96xf32> -> vector<1x96xf32>
    %881 = arith.addf %880, %873 : vector<1x96xf32>
    %882 = vector.extract_strided_slice %878 {offsets = [0, 0], sizes = [1, 32], strides = [1, 1]} : vector<1x96xf32> to vector<1x32xf32>
    %883 = vector.extract_strided_slice %881 {offsets = [0, 0], sizes = [1, 32], strides = [1, 1]} : vector<1x96xf32> to vector<1x32xf32>
    %884 = arith.addf %882, %883 : vector<1x32xf32>
    %885 = arith.negf %884 : vector<1x32xf32>
    %886 = math.exp %885 : vector<1x32xf32>
    %cst_186 = arith.constant 1.000000e+00 : f32
    %887 = vector.broadcast %cst_186 : f32 to vector<1x32xf32>
    %888 = arith.addf %887, %886 : vector<1x32xf32>
    %889 = arith.divf %887, %888 : vector<1x32xf32>
    %890 = vector.extract_strided_slice %878 {offsets = [0, 32], sizes = [1, 32], strides = [1, 1]} : vector<1x96xf32> to vector<1x32xf32>
    %891 = vector.extract_strided_slice %881 {offsets = [0, 32], sizes = [1, 32], strides = [1, 1]} : vector<1x96xf32> to vector<1x32xf32>
    %892 = arith.addf %890, %891 : vector<1x32xf32>
    %893 = arith.negf %892 : vector<1x32xf32>
    %894 = math.exp %893 : vector<1x32xf32>
    %cst_187 = arith.constant 1.000000e+00 : f32
    %895 = vector.broadcast %cst_187 : f32 to vector<1x32xf32>
    %896 = arith.addf %895, %894 : vector<1x32xf32>
    %897 = arith.divf %895, %896 : vector<1x32xf32>
    %898 = vector.extract_strided_slice %878 {offsets = [0, 64], sizes = [1, 32], strides = [1, 1]} : vector<1x96xf32> to vector<1x32xf32>
    %899 = vector.extract_strided_slice %881 {offsets = [0, 64], sizes = [1, 32], strides = [1, 1]} : vector<1x96xf32> to vector<1x32xf32>
    %900 = arith.mulf %889, %899 : vector<1x32xf32>
    %901 = arith.addf %898, %900 : vector<1x32xf32>
    %902 = math.tanh %901 : vector<1x32xf32>
    %cst_188 = arith.constant 1.000000e+00 : f32
    %903 = vector.broadcast %cst_188 : f32 to vector<1x32xf32>
    %904 = arith.subf %903, %897 : vector<1x32xf32>
    %905 = arith.mulf %904, %902 : vector<1x32xf32>
    %906 = arith.mulf %897, %121 : vector<1x32xf32>
    %907 = arith.addf %905, %906 : vector<1x32xf32>
    %908 = vector.extract_strided_slice %877 {offsets = [6, 0], sizes = [1, 96], strides = [1, 1]} : vector<8x96xf32> to vector<1x96xf32>
    %909 = arith.truncf %907 : vector<1x32xf32> to vector<1x32xbf16>
    %cst_189 = arith.constant dense<0.000000e+00> : vector<1x96xf32>
    %910 = tpu.matmul %909, %871, %cst_189 {dimension_numbers = #tpu.dot_dimension_numbers<[1], [0], [0], [1], [0, 0, 1, 1], [], []>} : vector<1x32xbf16>, vector<32x96xbf16>, vector<1x96xf32> -> vector<1x96xf32>
    %911 = arith.addf %910, %873 : vector<1x96xf32>
    %912 = vector.extract_strided_slice %908 {offsets = [0, 0], sizes = [1, 32], strides = [1, 1]} : vector<1x96xf32> to vector<1x32xf32>
    %913 = vector.extract_strided_slice %911 {offsets = [0, 0], sizes = [1, 32], strides = [1, 1]} : vector<1x96xf32> to vector<1x32xf32>
    %914 = arith.addf %912, %913 : vector<1x32xf32>
    %915 = arith.negf %914 : vector<1x32xf32>
    %916 = math.exp %915 : vector<1x32xf32>
    %cst_190 = arith.constant 1.000000e+00 : f32
    %917 = vector.broadcast %cst_190 : f32 to vector<1x32xf32>
    %918 = arith.addf %917, %916 : vector<1x32xf32>
    %919 = arith.divf %917, %918 : vector<1x32xf32>
    %920 = vector.extract_strided_slice %908 {offsets = [0, 32], sizes = [1, 32], strides = [1, 1]} : vector<1x96xf32> to vector<1x32xf32>
    %921 = vector.extract_strided_slice %911 {offsets = [0, 32], sizes = [1, 32], strides = [1, 1]} : vector<1x96xf32> to vector<1x32xf32>
    %922 = arith.addf %920, %921 : vector<1x32xf32>
    %923 = arith.negf %922 : vector<1x32xf32>
    %924 = math.exp %923 : vector<1x32xf32>
    %cst_191 = arith.constant 1.000000e+00 : f32
    %925 = vector.broadcast %cst_191 : f32 to vector<1x32xf32>
    %926 = arith.addf %925, %924 : vector<1x32xf32>
    %927 = arith.divf %925, %926 : vector<1x32xf32>
    %928 = vector.extract_strided_slice %908 {offsets = [0, 64], sizes = [1, 32], strides = [1, 1]} : vector<1x96xf32> to vector<1x32xf32>
    %929 = vector.extract_strided_slice %911 {offsets = [0, 64], sizes = [1, 32], strides = [1, 1]} : vector<1x96xf32> to vector<1x32xf32>
    %930 = arith.mulf %919, %929 : vector<1x32xf32>
    %931 = arith.addf %928, %930 : vector<1x32xf32>
    %932 = math.tanh %931 : vector<1x32xf32>
    %cst_192 = arith.constant 1.000000e+00 : f32
    %933 = vector.broadcast %cst_192 : f32 to vector<1x32xf32>
    %934 = arith.subf %933, %927 : vector<1x32xf32>
    %935 = arith.mulf %934, %932 : vector<1x32xf32>
    %936 = arith.mulf %927, %907 : vector<1x32xf32>
    %937 = arith.addf %935, %936 : vector<1x32xf32>
    %938 = vector.extract_strided_slice %877 {offsets = [5, 0], sizes = [1, 96], strides = [1, 1]} : vector<8x96xf32> to vector<1x96xf32>
    %939 = arith.truncf %937 : vector<1x32xf32> to vector<1x32xbf16>
    %cst_193 = arith.constant dense<0.000000e+00> : vector<1x96xf32>
    %940 = tpu.matmul %939, %871, %cst_193 {dimension_numbers = #tpu.dot_dimension_numbers<[1], [0], [0], [1], [0, 0, 1, 1], [], []>} : vector<1x32xbf16>, vector<32x96xbf16>, vector<1x96xf32> -> vector<1x96xf32>
    %941 = arith.addf %940, %873 : vector<1x96xf32>
    %942 = vector.extract_strided_slice %938 {offsets = [0, 0], sizes = [1, 32], strides = [1, 1]} : vector<1x96xf32> to vector<1x32xf32>
    %943 = vector.extract_strided_slice %941 {offsets = [0, 0], sizes = [1, 32], strides = [1, 1]} : vector<1x96xf32> to vector<1x32xf32>
    %944 = arith.addf %942, %943 : vector<1x32xf32>
    %945 = arith.negf %944 : vector<1x32xf32>
    %946 = math.exp %945 : vector<1x32xf32>
    %cst_194 = arith.constant 1.000000e+00 : f32
    %947 = vector.broadcast %cst_194 : f32 to vector<1x32xf32>
    %948 = arith.addf %947, %946 : vector<1x32xf32>
    %949 = arith.divf %947, %948 : vector<1x32xf32>
    %950 = vector.extract_strided_slice %938 {offsets = [0, 32], sizes = [1, 32], strides = [1, 1]} : vector<1x96xf32> to vector<1x32xf32>
    %951 = vector.extract_strided_slice %941 {offsets = [0, 32], sizes = [1, 32], strides = [1, 1]} : vector<1x96xf32> to vector<1x32xf32>
    %952 = arith.addf %950, %951 : vector<1x32xf32>
    %953 = arith.negf %952 : vector<1x32xf32>
    %954 = math.exp %953 : vector<1x32xf32>
    %cst_195 = arith.constant 1.000000e+00 : f32
    %955 = vector.broadcast %cst_195 : f32 to vector<1x32xf32>
    %956 = arith.addf %955, %954 : vector<1x32xf32>
    %957 = arith.divf %955, %956 : vector<1x32xf32>
    %958 = vector.extract_strided_slice %938 {offsets = [0, 64], sizes = [1, 32], strides = [1, 1]} : vector<1x96xf32> to vector<1x32xf32>
    %959 = vector.extract_strided_slice %941 {offsets = [0, 64], sizes = [1, 32], strides = [1, 1]} : vector<1x96xf32> to vector<1x32xf32>
    %960 = arith.mulf %949, %959 : vector<1x32xf32>
    %961 = arith.addf %958, %960 : vector<1x32xf32>
    %962 = math.tanh %961 : vector<1x32xf32>
    %cst_196 = arith.constant 1.000000e+00 : f32
    %963 = vector.broadcast %cst_196 : f32 to vector<1x32xf32>
    %964 = arith.subf %963, %957 : vector<1x32xf32>
    %965 = arith.mulf %964, %962 : vector<1x32xf32>
    %966 = arith.mulf %957, %937 : vector<1x32xf32>
    %967 = arith.addf %965, %966 : vector<1x32xf32>
    %968 = vector.extract_strided_slice %877 {offsets = [4, 0], sizes = [1, 96], strides = [1, 1]} : vector<8x96xf32> to vector<1x96xf32>
    %969 = arith.truncf %967 : vector<1x32xf32> to vector<1x32xbf16>
    %cst_197 = arith.constant dense<0.000000e+00> : vector<1x96xf32>
    %970 = tpu.matmul %969, %871, %cst_197 {dimension_numbers = #tpu.dot_dimension_numbers<[1], [0], [0], [1], [0, 0, 1, 1], [], []>} : vector<1x32xbf16>, vector<32x96xbf16>, vector<1x96xf32> -> vector<1x96xf32>
    %971 = arith.addf %970, %873 : vector<1x96xf32>
    %972 = vector.extract_strided_slice %968 {offsets = [0, 0], sizes = [1, 32], strides = [1, 1]} : vector<1x96xf32> to vector<1x32xf32>
    %973 = vector.extract_strided_slice %971 {offsets = [0, 0], sizes = [1, 32], strides = [1, 1]} : vector<1x96xf32> to vector<1x32xf32>
    %974 = arith.addf %972, %973 : vector<1x32xf32>
    %975 = arith.negf %974 : vector<1x32xf32>
    %976 = math.exp %975 : vector<1x32xf32>
    %cst_198 = arith.constant 1.000000e+00 : f32
    %977 = vector.broadcast %cst_198 : f32 to vector<1x32xf32>
    %978 = arith.addf %977, %976 : vector<1x32xf32>
    %979 = arith.divf %977, %978 : vector<1x32xf32>
    %980 = vector.extract_strided_slice %968 {offsets = [0, 32], sizes = [1, 32], strides = [1, 1]} : vector<1x96xf32> to vector<1x32xf32>
    %981 = vector.extract_strided_slice %971 {offsets = [0, 32], sizes = [1, 32], strides = [1, 1]} : vector<1x96xf32> to vector<1x32xf32>
    %982 = arith.addf %980, %981 : vector<1x32xf32>
    %983 = arith.negf %982 : vector<1x32xf32>
    %984 = math.exp %983 : vector<1x32xf32>
    %cst_199 = arith.constant 1.000000e+00 : f32
    %985 = vector.broadcast %cst_199 : f32 to vector<1x32xf32>
    %986 = arith.addf %985, %984 : vector<1x32xf32>
    %987 = arith.divf %985, %986 : vector<1x32xf32>
    %988 = vector.extract_strided_slice %968 {offsets = [0, 64], sizes = [1, 32], strides = [1, 1]} : vector<1x96xf32> to vector<1x32xf32>
    %989 = vector.extract_strided_slice %971 {offsets = [0, 64], sizes = [1, 32], strides = [1, 1]} : vector<1x96xf32> to vector<1x32xf32>
    %990 = arith.mulf %979, %989 : vector<1x32xf32>
    %991 = arith.addf %988, %990 : vector<1x32xf32>
    %992 = math.tanh %991 : vector<1x32xf32>
    %cst_200 = arith.constant 1.000000e+00 : f32
    %993 = vector.broadcast %cst_200 : f32 to vector<1x32xf32>
    %994 = arith.subf %993, %987 : vector<1x32xf32>
    %995 = arith.mulf %994, %992 : vector<1x32xf32>
    %996 = arith.mulf %987, %967 : vector<1x32xf32>
    %997 = arith.addf %995, %996 : vector<1x32xf32>
    %998 = vector.extract_strided_slice %877 {offsets = [3, 0], sizes = [1, 96], strides = [1, 1]} : vector<8x96xf32> to vector<1x96xf32>
    %999 = arith.truncf %997 : vector<1x32xf32> to vector<1x32xbf16>
    %cst_201 = arith.constant dense<0.000000e+00> : vector<1x96xf32>
    %1000 = tpu.matmul %999, %871, %cst_201 {dimension_numbers = #tpu.dot_dimension_numbers<[1], [0], [0], [1], [0, 0, 1, 1], [], []>} : vector<1x32xbf16>, vector<32x96xbf16>, vector<1x96xf32> -> vector<1x96xf32>
    %1001 = arith.addf %1000, %873 : vector<1x96xf32>
    %1002 = vector.extract_strided_slice %998 {offsets = [0, 0], sizes = [1, 32], strides = [1, 1]} : vector<1x96xf32> to vector<1x32xf32>
    %1003 = vector.extract_strided_slice %1001 {offsets = [0, 0], sizes = [1, 32], strides = [1, 1]} : vector<1x96xf32> to vector<1x32xf32>
    %1004 = arith.addf %1002, %1003 : vector<1x32xf32>
    %1005 = arith.negf %1004 : vector<1x32xf32>
    %1006 = math.exp %1005 : vector<1x32xf32>
    %cst_202 = arith.constant 1.000000e+00 : f32
    %1007 = vector.broadcast %cst_202 : f32 to vector<1x32xf32>
    %1008 = arith.addf %1007, %1006 : vector<1x32xf32>
    %1009 = arith.divf %1007, %1008 : vector<1x32xf32>
    %1010 = vector.extract_strided_slice %998 {offsets = [0, 32], sizes = [1, 32], strides = [1, 1]} : vector<1x96xf32> to vector<1x32xf32>
    %1011 = vector.extract_strided_slice %1001 {offsets = [0, 32], sizes = [1, 32], strides = [1, 1]} : vector<1x96xf32> to vector<1x32xf32>
    %1012 = arith.addf %1010, %1011 : vector<1x32xf32>
    %1013 = arith.negf %1012 : vector<1x32xf32>
    %1014 = math.exp %1013 : vector<1x32xf32>
    %cst_203 = arith.constant 1.000000e+00 : f32
    %1015 = vector.broadcast %cst_203 : f32 to vector<1x32xf32>
    %1016 = arith.addf %1015, %1014 : vector<1x32xf32>
    %1017 = arith.divf %1015, %1016 : vector<1x32xf32>
    %1018 = vector.extract_strided_slice %998 {offsets = [0, 64], sizes = [1, 32], strides = [1, 1]} : vector<1x96xf32> to vector<1x32xf32>
    %1019 = vector.extract_strided_slice %1001 {offsets = [0, 64], sizes = [1, 32], strides = [1, 1]} : vector<1x96xf32> to vector<1x32xf32>
    %1020 = arith.mulf %1009, %1019 : vector<1x32xf32>
    %1021 = arith.addf %1018, %1020 : vector<1x32xf32>
    %1022 = math.tanh %1021 : vector<1x32xf32>
    %cst_204 = arith.constant 1.000000e+00 : f32
    %1023 = vector.broadcast %cst_204 : f32 to vector<1x32xf32>
    %1024 = arith.subf %1023, %1017 : vector<1x32xf32>
    %1025 = arith.mulf %1024, %1022 : vector<1x32xf32>
    %1026 = arith.mulf %1017, %997 : vector<1x32xf32>
    %1027 = arith.addf %1025, %1026 : vector<1x32xf32>
    %1028 = vector.extract_strided_slice %877 {offsets = [2, 0], sizes = [1, 96], strides = [1, 1]} : vector<8x96xf32> to vector<1x96xf32>
    %1029 = arith.truncf %1027 : vector<1x32xf32> to vector<1x32xbf16>
    %cst_205 = arith.constant dense<0.000000e+00> : vector<1x96xf32>
    %1030 = tpu.matmul %1029, %871, %cst_205 {dimension_numbers = #tpu.dot_dimension_numbers<[1], [0], [0], [1], [0, 0, 1, 1], [], []>} : vector<1x32xbf16>, vector<32x96xbf16>, vector<1x96xf32> -> vector<1x96xf32>
    %1031 = arith.addf %1030, %873 : vector<1x96xf32>
    %1032 = vector.extract_strided_slice %1028 {offsets = [0, 0], sizes = [1, 32], strides = [1, 1]} : vector<1x96xf32> to vector<1x32xf32>
    %1033 = vector.extract_strided_slice %1031 {offsets = [0, 0], sizes = [1, 32], strides = [1, 1]} : vector<1x96xf32> to vector<1x32xf32>
    %1034 = arith.addf %1032, %1033 : vector<1x32xf32>
    %1035 = arith.negf %1034 : vector<1x32xf32>
    %1036 = math.exp %1035 : vector<1x32xf32>
    %cst_206 = arith.constant 1.000000e+00 : f32
    %1037 = vector.broadcast %cst_206 : f32 to vector<1x32xf32>
    %1038 = arith.addf %1037, %1036 : vector<1x32xf32>
    %1039 = arith.divf %1037, %1038 : vector<1x32xf32>
    %1040 = vector.extract_strided_slice %1028 {offsets = [0, 32], sizes = [1, 32], strides = [1, 1]} : vector<1x96xf32> to vector<1x32xf32>
    %1041 = vector.extract_strided_slice %1031 {offsets = [0, 32], sizes = [1, 32], strides = [1, 1]} : vector<1x96xf32> to vector<1x32xf32>
    %1042 = arith.addf %1040, %1041 : vector<1x32xf32>
    %1043 = arith.negf %1042 : vector<1x32xf32>
    %1044 = math.exp %1043 : vector<1x32xf32>
    %cst_207 = arith.constant 1.000000e+00 : f32
    %1045 = vector.broadcast %cst_207 : f32 to vector<1x32xf32>
    %1046 = arith.addf %1045, %1044 : vector<1x32xf32>
    %1047 = arith.divf %1045, %1046 : vector<1x32xf32>
    %1048 = vector.extract_strided_slice %1028 {offsets = [0, 64], sizes = [1, 32], strides = [1, 1]} : vector<1x96xf32> to vector<1x32xf32>
    %1049 = vector.extract_strided_slice %1031 {offsets = [0, 64], sizes = [1, 32], strides = [1, 1]} : vector<1x96xf32> to vector<1x32xf32>
    %1050 = arith.mulf %1039, %1049 : vector<1x32xf32>
    %1051 = arith.addf %1048, %1050 : vector<1x32xf32>
    %1052 = math.tanh %1051 : vector<1x32xf32>
    %cst_208 = arith.constant 1.000000e+00 : f32
    %1053 = vector.broadcast %cst_208 : f32 to vector<1x32xf32>
    %1054 = arith.subf %1053, %1047 : vector<1x32xf32>
    %1055 = arith.mulf %1054, %1052 : vector<1x32xf32>
    %1056 = arith.mulf %1047, %1027 : vector<1x32xf32>
    %1057 = arith.addf %1055, %1056 : vector<1x32xf32>
    %1058 = vector.extract_strided_slice %877 {offsets = [1, 0], sizes = [1, 96], strides = [1, 1]} : vector<8x96xf32> to vector<1x96xf32>
    %1059 = arith.truncf %1057 : vector<1x32xf32> to vector<1x32xbf16>
    %cst_209 = arith.constant dense<0.000000e+00> : vector<1x96xf32>
    %1060 = tpu.matmul %1059, %871, %cst_209 {dimension_numbers = #tpu.dot_dimension_numbers<[1], [0], [0], [1], [0, 0, 1, 1], [], []>} : vector<1x32xbf16>, vector<32x96xbf16>, vector<1x96xf32> -> vector<1x96xf32>
    %1061 = arith.addf %1060, %873 : vector<1x96xf32>
    %1062 = vector.extract_strided_slice %1058 {offsets = [0, 0], sizes = [1, 32], strides = [1, 1]} : vector<1x96xf32> to vector<1x32xf32>
    %1063 = vector.extract_strided_slice %1061 {offsets = [0, 0], sizes = [1, 32], strides = [1, 1]} : vector<1x96xf32> to vector<1x32xf32>
    %1064 = arith.addf %1062, %1063 : vector<1x32xf32>
    %1065 = arith.negf %1064 : vector<1x32xf32>
    %1066 = math.exp %1065 : vector<1x32xf32>
    %cst_210 = arith.constant 1.000000e+00 : f32
    %1067 = vector.broadcast %cst_210 : f32 to vector<1x32xf32>
    %1068 = arith.addf %1067, %1066 : vector<1x32xf32>
    %1069 = arith.divf %1067, %1068 : vector<1x32xf32>
    %1070 = vector.extract_strided_slice %1058 {offsets = [0, 32], sizes = [1, 32], strides = [1, 1]} : vector<1x96xf32> to vector<1x32xf32>
    %1071 = vector.extract_strided_slice %1061 {offsets = [0, 32], sizes = [1, 32], strides = [1, 1]} : vector<1x96xf32> to vector<1x32xf32>
    %1072 = arith.addf %1070, %1071 : vector<1x32xf32>
    %1073 = arith.negf %1072 : vector<1x32xf32>
    %1074 = math.exp %1073 : vector<1x32xf32>
    %cst_211 = arith.constant 1.000000e+00 : f32
    %1075 = vector.broadcast %cst_211 : f32 to vector<1x32xf32>
    %1076 = arith.addf %1075, %1074 : vector<1x32xf32>
    %1077 = arith.divf %1075, %1076 : vector<1x32xf32>
    %1078 = vector.extract_strided_slice %1058 {offsets = [0, 64], sizes = [1, 32], strides = [1, 1]} : vector<1x96xf32> to vector<1x32xf32>
    %1079 = vector.extract_strided_slice %1061 {offsets = [0, 64], sizes = [1, 32], strides = [1, 1]} : vector<1x96xf32> to vector<1x32xf32>
    %1080 = arith.mulf %1069, %1079 : vector<1x32xf32>
    %1081 = arith.addf %1078, %1080 : vector<1x32xf32>
    %1082 = math.tanh %1081 : vector<1x32xf32>
    %cst_212 = arith.constant 1.000000e+00 : f32
    %1083 = vector.broadcast %cst_212 : f32 to vector<1x32xf32>
    %1084 = arith.subf %1083, %1077 : vector<1x32xf32>
    %1085 = arith.mulf %1084, %1082 : vector<1x32xf32>
    %1086 = arith.mulf %1077, %1057 : vector<1x32xf32>
    %1087 = arith.addf %1085, %1086 : vector<1x32xf32>
    %1088 = vector.extract_strided_slice %877 {offsets = [0, 0], sizes = [1, 96], strides = [1, 1]} : vector<8x96xf32> to vector<1x96xf32>
    %1089 = arith.truncf %1087 : vector<1x32xf32> to vector<1x32xbf16>
    %cst_213 = arith.constant dense<0.000000e+00> : vector<1x96xf32>
    %1090 = tpu.matmul %1089, %871, %cst_213 {dimension_numbers = #tpu.dot_dimension_numbers<[1], [0], [0], [1], [0, 0, 1, 1], [], []>} : vector<1x32xbf16>, vector<32x96xbf16>, vector<1x96xf32> -> vector<1x96xf32>
    %1091 = arith.addf %1090, %873 : vector<1x96xf32>
    %1092 = vector.extract_strided_slice %1088 {offsets = [0, 0], sizes = [1, 32], strides = [1, 1]} : vector<1x96xf32> to vector<1x32xf32>
    %1093 = vector.extract_strided_slice %1091 {offsets = [0, 0], sizes = [1, 32], strides = [1, 1]} : vector<1x96xf32> to vector<1x32xf32>
    %1094 = arith.addf %1092, %1093 : vector<1x32xf32>
    %1095 = arith.negf %1094 : vector<1x32xf32>
    %1096 = math.exp %1095 : vector<1x32xf32>
    %cst_214 = arith.constant 1.000000e+00 : f32
    %1097 = vector.broadcast %cst_214 : f32 to vector<1x32xf32>
    %1098 = arith.addf %1097, %1096 : vector<1x32xf32>
    %1099 = arith.divf %1097, %1098 : vector<1x32xf32>
    %1100 = vector.extract_strided_slice %1088 {offsets = [0, 32], sizes = [1, 32], strides = [1, 1]} : vector<1x96xf32> to vector<1x32xf32>
    %1101 = vector.extract_strided_slice %1091 {offsets = [0, 32], sizes = [1, 32], strides = [1, 1]} : vector<1x96xf32> to vector<1x32xf32>
    %1102 = arith.addf %1100, %1101 : vector<1x32xf32>
    %1103 = arith.negf %1102 : vector<1x32xf32>
    %1104 = math.exp %1103 : vector<1x32xf32>
    %cst_215 = arith.constant 1.000000e+00 : f32
    %1105 = vector.broadcast %cst_215 : f32 to vector<1x32xf32>
    %1106 = arith.addf %1105, %1104 : vector<1x32xf32>
    %1107 = arith.divf %1105, %1106 : vector<1x32xf32>
    %1108 = vector.extract_strided_slice %1088 {offsets = [0, 64], sizes = [1, 32], strides = [1, 1]} : vector<1x96xf32> to vector<1x32xf32>
    %1109 = vector.extract_strided_slice %1091 {offsets = [0, 64], sizes = [1, 32], strides = [1, 1]} : vector<1x96xf32> to vector<1x32xf32>
    %1110 = arith.mulf %1099, %1109 : vector<1x32xf32>
    %1111 = arith.addf %1108, %1110 : vector<1x32xf32>
    %1112 = math.tanh %1111 : vector<1x32xf32>
    %cst_216 = arith.constant 1.000000e+00 : f32
    %1113 = vector.broadcast %cst_216 : f32 to vector<1x32xf32>
    %1114 = arith.subf %1113, %1107 : vector<1x32xf32>
    %1115 = arith.mulf %1114, %1112 : vector<1x32xf32>
    %1116 = arith.mulf %1107, %1087 : vector<1x32xf32>
    %1117 = arith.addf %1115, %1116 : vector<1x32xf32>
    %1118 = tpu.concatenate %1117, %1087, %1057, %1027, %997, %967, %937, %907 in 0 : vector<1x32xf32>, vector<1x32xf32>, vector<1x32xf32>, vector<1x32xf32>, vector<1x32xf32>, vector<1x32xf32>, vector<1x32xf32>, vector<1x32xf32> -> vector<8x32xf32>
    %1119 = tpu.concatenate %869, %1118 in 1 : vector<8x32xf32>, vector<8x32xf32> -> vector<8x64xf32>
    %c0_217 = arith.constant 0 : index
    %c0_218 = arith.constant 0 : index
    %1120 = vector.load %arg32[%c0_217, %c0_218] : memref<64x32xbf16, #tpu.memory_space<vmem>>, vector<64x32xbf16>
    %c0_219 = arith.constant 0 : index
    %c0_220 = arith.constant 0 : index
    %1121 = vector.load %arg33[%c0_219, %c0_220] : memref<1x32xf32, #tpu.memory_space<vmem>>, vector<1x32xf32>
    %c0_221 = arith.constant 0 : index
    %c0_222 = arith.constant 0 : index
    %1122 = vector.load %arg34[%c0_221, %c0_222] : memref<1x32xf32, #tpu.memory_space<vmem>>, vector<1x32xf32>
    %c0_223 = arith.constant 0 : index
    %c0_224 = arith.constant 0 : index
    %1123 = vector.load %arg35[%c0_223, %c0_224] : memref<1x32xf32, #tpu.memory_space<vmem>>, vector<1x32xf32>
    %1124 = tpu.concatenate %369, %868 in 1 : vector<1x32xf32>, vector<1x32xf32> -> vector<1x64xf32>
    %1125 = arith.truncf %1124 : vector<1x64xf32> to vector<1x64xbf16>
    %cst_225 = arith.constant dense<0.000000e+00> : vector<1x32xf32>
    %1126 = tpu.matmul %1125, %1120, %cst_225 {dimension_numbers = #tpu.dot_dimension_numbers<[1], [0], [0], [1], [0, 0, 1, 1], [], []>} : vector<1x64xbf16>, vector<64x32xbf16>, vector<1x32xf32> -> vector<1x32xf32>
    %1127 = arith.addf %1126, %1121 : vector<1x32xf32>
    %cst_226 = arith.constant dense<0.000000e+00> : vector<1xf32>
    %1128 = vector.multi_reduction <add>, %1127, %cst_226 [1] : vector<1x32xf32> to vector<1xf32>
    %1129 = vector.shape_cast %1128 : vector<1xf32> to vector<1x1xf32>
    %cst_227 = arith.constant 3.200000e+01 : f32
    %1130 = vector.broadcast %cst_227 : f32 to vector<1x1xf32>
    %1131 = arith.divf %1129, %1130 : vector<1x1xf32>
    %1132 = arith.mulf %1127, %1127 : vector<1x32xf32>
    %cst_228 = arith.constant dense<0.000000e+00> : vector<1xf32>
    %1133 = vector.multi_reduction <add>, %1132, %cst_228 [1] : vector<1x32xf32> to vector<1xf32>
    %1134 = vector.shape_cast %1133 : vector<1xf32> to vector<1x1xf32>
    %cst_229 = arith.constant 3.200000e+01 : f32
    %1135 = vector.broadcast %cst_229 : f32 to vector<1x1xf32>
    %1136 = arith.divf %1134, %1135 : vector<1x1xf32>
    %1137 = arith.mulf %1131, %1131 : vector<1x1xf32>
    %1138 = arith.subf %1136, %1137 : vector<1x1xf32>
    %1139 = vector.broadcast %1131 : vector<1x1xf32> to vector<1x32xf32>
    %1140 = arith.subf %1127, %1139 : vector<1x32xf32>
    %cst_230 = arith.constant 9.99999974E-6 : f32
    %1141 = vector.broadcast %cst_230 : f32 to vector<1x1xf32>
    %1142 = arith.addf %1138, %1141 : vector<1x1xf32>
    %1143 = math.rsqrt %1142 : vector<1x1xf32>
    %1144 = vector.broadcast %1143 : vector<1x1xf32> to vector<1x32xf32>
    %1145 = arith.mulf %1140, %1144 : vector<1x32xf32>
    %1146 = arith.mulf %1145, %1122 : vector<1x32xf32>
    %1147 = arith.addf %1146, %1123 : vector<1x32xf32>
    %1148 = tpu.concatenate %618, %1117 in 1 : vector<1x32xf32>, vector<1x32xf32> -> vector<1x64xf32>
    %1149 = arith.truncf %1148 : vector<1x64xf32> to vector<1x64xbf16>
    %cst_231 = arith.constant dense<0.000000e+00> : vector<1x32xf32>
    %1150 = tpu.matmul %1149, %1120, %cst_231 {dimension_numbers = #tpu.dot_dimension_numbers<[1], [0], [0], [1], [0, 0, 1, 1], [], []>} : vector<1x64xbf16>, vector<64x32xbf16>, vector<1x32xf32> -> vector<1x32xf32>
    %1151 = arith.addf %1150, %1121 : vector<1x32xf32>
    %cst_232 = arith.constant dense<0.000000e+00> : vector<1xf32>
    %1152 = vector.multi_reduction <add>, %1151, %cst_232 [1] : vector<1x32xf32> to vector<1xf32>
    %1153 = vector.shape_cast %1152 : vector<1xf32> to vector<1x1xf32>
    %cst_233 = arith.constant 3.200000e+01 : f32
    %1154 = vector.broadcast %cst_233 : f32 to vector<1x1xf32>
    %1155 = arith.divf %1153, %1154 : vector<1x1xf32>
    %1156 = arith.mulf %1151, %1151 : vector<1x32xf32>
    %cst_234 = arith.constant dense<0.000000e+00> : vector<1xf32>
    %1157 = vector.multi_reduction <add>, %1156, %cst_234 [1] : vector<1x32xf32> to vector<1xf32>
    %1158 = vector.shape_cast %1157 : vector<1xf32> to vector<1x1xf32>
    %cst_235 = arith.constant 3.200000e+01 : f32
    %1159 = vector.broadcast %cst_235 : f32 to vector<1x1xf32>
    %1160 = arith.divf %1158, %1159 : vector<1x1xf32>
    %1161 = arith.mulf %1155, %1155 : vector<1x1xf32>
    %1162 = arith.subf %1160, %1161 : vector<1x1xf32>
    %1163 = vector.broadcast %1155 : vector<1x1xf32> to vector<1x32xf32>
    %1164 = arith.subf %1151, %1163 : vector<1x32xf32>
    %cst_236 = arith.constant 9.99999974E-6 : f32
    %1165 = vector.broadcast %cst_236 : f32 to vector<1x1xf32>
    %1166 = arith.addf %1162, %1165 : vector<1x1xf32>
    %1167 = math.rsqrt %1166 : vector<1x1xf32>
    %1168 = vector.broadcast %1167 : vector<1x1xf32> to vector<1x32xf32>
    %1169 = arith.mulf %1164, %1168 : vector<1x32xf32>
    %1170 = arith.mulf %1169, %1122 : vector<1x32xf32>
    %1171 = arith.addf %1170, %1123 : vector<1x32xf32>
    %c0_237 = arith.constant 0 : index
    %c0_238 = arith.constant 0 : index
    %1172 = vector.load %arg36[%c0_237, %c0_238] : memref<1x96xf32, #tpu.memory_space<vmem>>, vector<1x96xf32>
    %c0_239 = arith.constant 0 : index
    %c0_240 = arith.constant 0 : index
    %1173 = vector.load %arg37[%c0_239, %c0_240] : memref<1x1xf32, #tpu.memory_space<vmem>>, vector<1x1xf32>
    %1174 = tpu.concatenate %1147, %1171 in 0 : vector<1x32xf32>, vector<1x32xf32> -> vector<2x32xf32>
    %1175 = tpu.concatenate %1174, %1174, %1174, %1174 in 0 : vector<2x32xf32>, vector<2x32xf32>, vector<2x32xf32>, vector<2x32xf32> -> vector<8x32xf32>
    %1176 = tpu.concatenate %1175, %1119 in 1 : vector<8x32xf32>, vector<8x64xf32> -> vector<8x96xf32>
    %1177 = vector.broadcast %1172 : vector<1x96xf32> to vector<8x96xf32>
    %1178 = arith.mulf %1176, %1177 : vector<8x96xf32>
    %cst_241 = arith.constant dense<0.000000e+00> : vector<8xf32>
    %1179 = vector.multi_reduction <add>, %1178, %cst_241 [1] : vector<8x96xf32> to vector<8xf32>
    %1180 = vector.shape_cast %1179 : vector<8xf32> to vector<8x1xf32>
    %1181 = vector.broadcast %1173 : vector<1x1xf32> to vector<8x1xf32>
    %1182 = arith.addf %1180, %1181 : vector<8x1xf32>
    %cst_242 = arith.constant 0.000000e+00 : f32
    %1183 = vector.broadcast %cst_242 : f32 to vector<8x1xf32>
    %1184 = arith.maximumf %1182, %1183 : vector<8x1xf32>
    %cst_243 = arith.constant dense<0xFF800000> : vector<1xf32>
    %1185 = vector.multi_reduction <maximumf>, %1184, %cst_243 [0] : vector<8x1xf32> to vector<1xf32>
    %1186 = vector.shape_cast %1185 : vector<1xf32> to vector<1x1xf32>
    %1187 = vector.broadcast %1186 : vector<1x1xf32> to vector<8x1xf32>
    %1188 = arith.subf %1184, %1187 : vector<8x1xf32>
    %1189 = math.exp %1188 : vector<8x1xf32>
    %cst_244 = arith.constant dense<0.000000e+00> : vector<1xf32>
    %1190 = vector.multi_reduction <add>, %1189, %cst_244 [0] : vector<8x1xf32> to vector<1xf32>
    %1191 = vector.shape_cast %1190 : vector<1xf32> to vector<1x1xf32>
    %1192 = tpu.reciprocal %1191 {approx = true} : vector<1x1xf32> -> vector<1x1xf32>
    %1193 = vector.broadcast %1192 : vector<1x1xf32> to vector<8x1xf32>
    %1194 = arith.mulf %1189, %1193 : vector<8x1xf32>
    %1195 = vector.broadcast %1194 : vector<8x1xf32> to vector<8x64xf32>
    %1196 = arith.mulf %1195, %1119 : vector<8x64xf32>
    %cst_245 = arith.constant dense<0.000000e+00> : vector<64xf32>
    %1197 = vector.multi_reduction <add>, %1196, %cst_245 [0] : vector<8x64xf32> to vector<64xf32>
    %1198 = vector.shape_cast %1197 : vector<64xf32> to vector<1x64xf32>
    %1199 = vector.shape_cast %1198 : vector<1x64xf32> to vector<1x64xf32>
    %1200 = vector.broadcast %1199 : vector<1x64xf32> to vector<8x64xf32>
    %1201 = tpu.concatenate %1200, %120 in 1 : vector<8x64xf32>, vector<8x32xf32> -> vector<8x96xf32>
    %c0_246 = arith.constant 0 : index
    %c0_247 = arith.constant 0 : index
    %1202 = vector.load %arg38[%c0_246, %c0_247] : memref<96x96xbf16, #tpu.memory_space<vmem>>, vector<96x96xbf16>
    %c0_248 = arith.constant 0 : index
    %c0_249 = arith.constant 0 : index
    %1203 = vector.load %arg39[%c0_248, %c0_249] : memref<32x96xbf16, #tpu.memory_space<vmem>>, vector<32x96xbf16>
    %c0_250 = arith.constant 0 : index
    %c0_251 = arith.constant 0 : index
    %1204 = vector.load %arg40[%c0_250, %c0_251] : memref<1x96xf32, #tpu.memory_space<vmem>>, vector<1x96xf32>
    %c0_252 = arith.constant 0 : index
    %c0_253 = arith.constant 0 : index
    %1205 = vector.load %arg41[%c0_252, %c0_253] : memref<1x96xf32, #tpu.memory_space<vmem>>, vector<1x96xf32>
    %1206 = arith.truncf %1201 : vector<8x96xf32> to vector<8x96xbf16>
    %cst_254 = arith.constant dense<0.000000e+00> : vector<8x96xf32>
    %1207 = tpu.matmul %1206, %1202, %cst_254 {dimension_numbers = #tpu.dot_dimension_numbers<[1], [0], [0], [1], [0, 0, 1, 1], [], []>} : vector<8x96xbf16>, vector<96x96xbf16>, vector<8x96xf32> -> vector<8x96xf32>
    %1208 = vector.broadcast %1204 : vector<1x96xf32> to vector<8x96xf32>
    %1209 = arith.addf %1207, %1208 : vector<8x96xf32>
    %1210 = vector.extract_strided_slice %1209 {offsets = [0, 0], sizes = [1, 96], strides = [1, 1]} : vector<8x96xf32> to vector<1x96xf32>
    %1211 = arith.truncf %1147 : vector<1x32xf32> to vector<1x32xbf16>
    %cst_255 = arith.constant dense<0.000000e+00> : vector<1x96xf32>
    %1212 = tpu.matmul %1211, %1203, %cst_255 {dimension_numbers = #tpu.dot_dimension_numbers<[1], [0], [0], [1], [0, 0, 1, 1], [], []>} : vector<1x32xbf16>, vector<32x96xbf16>, vector<1x96xf32> -> vector<1x96xf32>
    %1213 = arith.addf %1212, %1205 : vector<1x96xf32>
    %1214 = vector.extract_strided_slice %1210 {offsets = [0, 0], sizes = [1, 32], strides = [1, 1]} : vector<1x96xf32> to vector<1x32xf32>
    %1215 = vector.extract_strided_slice %1213 {offsets = [0, 0], sizes = [1, 32], strides = [1, 1]} : vector<1x96xf32> to vector<1x32xf32>
    %1216 = arith.addf %1214, %1215 : vector<1x32xf32>
    %1217 = arith.negf %1216 : vector<1x32xf32>
    %1218 = math.exp %1217 : vector<1x32xf32>
    %cst_256 = arith.constant 1.000000e+00 : f32
    %1219 = vector.broadcast %cst_256 : f32 to vector<1x32xf32>
    %1220 = arith.addf %1219, %1218 : vector<1x32xf32>
    %1221 = arith.divf %1219, %1220 : vector<1x32xf32>
    %1222 = vector.extract_strided_slice %1210 {offsets = [0, 32], sizes = [1, 32], strides = [1, 1]} : vector<1x96xf32> to vector<1x32xf32>
    %1223 = vector.extract_strided_slice %1213 {offsets = [0, 32], sizes = [1, 32], strides = [1, 1]} : vector<1x96xf32> to vector<1x32xf32>
    %1224 = arith.addf %1222, %1223 : vector<1x32xf32>
    %1225 = arith.negf %1224 : vector<1x32xf32>
    %1226 = math.exp %1225 : vector<1x32xf32>
    %cst_257 = arith.constant 1.000000e+00 : f32
    %1227 = vector.broadcast %cst_257 : f32 to vector<1x32xf32>
    %1228 = arith.addf %1227, %1226 : vector<1x32xf32>
    %1229 = arith.divf %1227, %1228 : vector<1x32xf32>
    %1230 = vector.extract_strided_slice %1210 {offsets = [0, 64], sizes = [1, 32], strides = [1, 1]} : vector<1x96xf32> to vector<1x32xf32>
    %1231 = vector.extract_strided_slice %1213 {offsets = [0, 64], sizes = [1, 32], strides = [1, 1]} : vector<1x96xf32> to vector<1x32xf32>
    %1232 = arith.mulf %1221, %1231 : vector<1x32xf32>
    %1233 = arith.addf %1230, %1232 : vector<1x32xf32>
    %1234 = math.tanh %1233 : vector<1x32xf32>
    %cst_258 = arith.constant 1.000000e+00 : f32
    %1235 = vector.broadcast %cst_258 : f32 to vector<1x32xf32>
    %1236 = arith.subf %1235, %1229 : vector<1x32xf32>
    %1237 = arith.mulf %1236, %1234 : vector<1x32xf32>
    %1238 = arith.mulf %1229, %1147 : vector<1x32xf32>
    %1239 = arith.addf %1237, %1238 : vector<1x32xf32>
    %1240 = vector.extract_strided_slice %1209 {offsets = [1, 0], sizes = [1, 96], strides = [1, 1]} : vector<8x96xf32> to vector<1x96xf32>
    %1241 = arith.truncf %1239 : vector<1x32xf32> to vector<1x32xbf16>
    %cst_259 = arith.constant dense<0.000000e+00> : vector<1x96xf32>
    %1242 = tpu.matmul %1241, %1203, %cst_259 {dimension_numbers = #tpu.dot_dimension_numbers<[1], [0], [0], [1], [0, 0, 1, 1], [], []>} : vector<1x32xbf16>, vector<32x96xbf16>, vector<1x96xf32> -> vector<1x96xf32>
    %1243 = arith.addf %1242, %1205 : vector<1x96xf32>
    %1244 = vector.extract_strided_slice %1240 {offsets = [0, 0], sizes = [1, 32], strides = [1, 1]} : vector<1x96xf32> to vector<1x32xf32>
    %1245 = vector.extract_strided_slice %1243 {offsets = [0, 0], sizes = [1, 32], strides = [1, 1]} : vector<1x96xf32> to vector<1x32xf32>
    %1246 = arith.addf %1244, %1245 : vector<1x32xf32>
    %1247 = arith.negf %1246 : vector<1x32xf32>
    %1248 = math.exp %1247 : vector<1x32xf32>
    %cst_260 = arith.constant 1.000000e+00 : f32
    %1249 = vector.broadcast %cst_260 : f32 to vector<1x32xf32>
    %1250 = arith.addf %1249, %1248 : vector<1x32xf32>
    %1251 = arith.divf %1249, %1250 : vector<1x32xf32>
    %1252 = vector.extract_strided_slice %1240 {offsets = [0, 32], sizes = [1, 32], strides = [1, 1]} : vector<1x96xf32> to vector<1x32xf32>
    %1253 = vector.extract_strided_slice %1243 {offsets = [0, 32], sizes = [1, 32], strides = [1, 1]} : vector<1x96xf32> to vector<1x32xf32>
    %1254 = arith.addf %1252, %1253 : vector<1x32xf32>
    %1255 = arith.negf %1254 : vector<1x32xf32>
    %1256 = math.exp %1255 : vector<1x32xf32>
    %cst_261 = arith.constant 1.000000e+00 : f32
    %1257 = vector.broadcast %cst_261 : f32 to vector<1x32xf32>
    %1258 = arith.addf %1257, %1256 : vector<1x32xf32>
    %1259 = arith.divf %1257, %1258 : vector<1x32xf32>
    %1260 = vector.extract_strided_slice %1240 {offsets = [0, 64], sizes = [1, 32], strides = [1, 1]} : vector<1x96xf32> to vector<1x32xf32>
    %1261 = vector.extract_strided_slice %1243 {offsets = [0, 64], sizes = [1, 32], strides = [1, 1]} : vector<1x96xf32> to vector<1x32xf32>
    %1262 = arith.mulf %1251, %1261 : vector<1x32xf32>
    %1263 = arith.addf %1260, %1262 : vector<1x32xf32>
    %1264 = math.tanh %1263 : vector<1x32xf32>
    %cst_262 = arith.constant 1.000000e+00 : f32
    %1265 = vector.broadcast %cst_262 : f32 to vector<1x32xf32>
    %1266 = arith.subf %1265, %1259 : vector<1x32xf32>
    %1267 = arith.mulf %1266, %1264 : vector<1x32xf32>
    %1268 = arith.mulf %1259, %1239 : vector<1x32xf32>
    %1269 = arith.addf %1267, %1268 : vector<1x32xf32>
    %1270 = vector.extract_strided_slice %1209 {offsets = [2, 0], sizes = [1, 96], strides = [1, 1]} : vector<8x96xf32> to vector<1x96xf32>
    %1271 = arith.truncf %1269 : vector<1x32xf32> to vector<1x32xbf16>
    %cst_263 = arith.constant dense<0.000000e+00> : vector<1x96xf32>
    %1272 = tpu.matmul %1271, %1203, %cst_263 {dimension_numbers = #tpu.dot_dimension_numbers<[1], [0], [0], [1], [0, 0, 1, 1], [], []>} : vector<1x32xbf16>, vector<32x96xbf16>, vector<1x96xf32> -> vector<1x96xf32>
    %1273 = arith.addf %1272, %1205 : vector<1x96xf32>
    %1274 = vector.extract_strided_slice %1270 {offsets = [0, 0], sizes = [1, 32], strides = [1, 1]} : vector<1x96xf32> to vector<1x32xf32>
    %1275 = vector.extract_strided_slice %1273 {offsets = [0, 0], sizes = [1, 32], strides = [1, 1]} : vector<1x96xf32> to vector<1x32xf32>
    %1276 = arith.addf %1274, %1275 : vector<1x32xf32>
    %1277 = arith.negf %1276 : vector<1x32xf32>
    %1278 = math.exp %1277 : vector<1x32xf32>
    %cst_264 = arith.constant 1.000000e+00 : f32
    %1279 = vector.broadcast %cst_264 : f32 to vector<1x32xf32>
    %1280 = arith.addf %1279, %1278 : vector<1x32xf32>
    %1281 = arith.divf %1279, %1280 : vector<1x32xf32>
    %1282 = vector.extract_strided_slice %1270 {offsets = [0, 32], sizes = [1, 32], strides = [1, 1]} : vector<1x96xf32> to vector<1x32xf32>
    %1283 = vector.extract_strided_slice %1273 {offsets = [0, 32], sizes = [1, 32], strides = [1, 1]} : vector<1x96xf32> to vector<1x32xf32>
    %1284 = arith.addf %1282, %1283 : vector<1x32xf32>
    %1285 = arith.negf %1284 : vector<1x32xf32>
    %1286 = math.exp %1285 : vector<1x32xf32>
    %cst_265 = arith.constant 1.000000e+00 : f32
    %1287 = vector.broadcast %cst_265 : f32 to vector<1x32xf32>
    %1288 = arith.addf %1287, %1286 : vector<1x32xf32>
    %1289 = arith.divf %1287, %1288 : vector<1x32xf32>
    %1290 = vector.extract_strided_slice %1270 {offsets = [0, 64], sizes = [1, 32], strides = [1, 1]} : vector<1x96xf32> to vector<1x32xf32>
    %1291 = vector.extract_strided_slice %1273 {offsets = [0, 64], sizes = [1, 32], strides = [1, 1]} : vector<1x96xf32> to vector<1x32xf32>
    %1292 = arith.mulf %1281, %1291 : vector<1x32xf32>
    %1293 = arith.addf %1290, %1292 : vector<1x32xf32>
    %1294 = math.tanh %1293 : vector<1x32xf32>
    %cst_266 = arith.constant 1.000000e+00 : f32
    %1295 = vector.broadcast %cst_266 : f32 to vector<1x32xf32>
    %1296 = arith.subf %1295, %1289 : vector<1x32xf32>
    %1297 = arith.mulf %1296, %1294 : vector<1x32xf32>
    %1298 = arith.mulf %1289, %1269 : vector<1x32xf32>
    %1299 = arith.addf %1297, %1298 : vector<1x32xf32>
    %1300 = vector.extract_strided_slice %1209 {offsets = [3, 0], sizes = [1, 96], strides = [1, 1]} : vector<8x96xf32> to vector<1x96xf32>
    %1301 = arith.truncf %1299 : vector<1x32xf32> to vector<1x32xbf16>
    %cst_267 = arith.constant dense<0.000000e+00> : vector<1x96xf32>
    %1302 = tpu.matmul %1301, %1203, %cst_267 {dimension_numbers = #tpu.dot_dimension_numbers<[1], [0], [0], [1], [0, 0, 1, 1], [], []>} : vector<1x32xbf16>, vector<32x96xbf16>, vector<1x96xf32> -> vector<1x96xf32>
    %1303 = arith.addf %1302, %1205 : vector<1x96xf32>
    %1304 = vector.extract_strided_slice %1300 {offsets = [0, 0], sizes = [1, 32], strides = [1, 1]} : vector<1x96xf32> to vector<1x32xf32>
    %1305 = vector.extract_strided_slice %1303 {offsets = [0, 0], sizes = [1, 32], strides = [1, 1]} : vector<1x96xf32> to vector<1x32xf32>
    %1306 = arith.addf %1304, %1305 : vector<1x32xf32>
    %1307 = arith.negf %1306 : vector<1x32xf32>
    %1308 = math.exp %1307 : vector<1x32xf32>
    %cst_268 = arith.constant 1.000000e+00 : f32
    %1309 = vector.broadcast %cst_268 : f32 to vector<1x32xf32>
    %1310 = arith.addf %1309, %1308 : vector<1x32xf32>
    %1311 = arith.divf %1309, %1310 : vector<1x32xf32>
    %1312 = vector.extract_strided_slice %1300 {offsets = [0, 32], sizes = [1, 32], strides = [1, 1]} : vector<1x96xf32> to vector<1x32xf32>
    %1313 = vector.extract_strided_slice %1303 {offsets = [0, 32], sizes = [1, 32], strides = [1, 1]} : vector<1x96xf32> to vector<1x32xf32>
    %1314 = arith.addf %1312, %1313 : vector<1x32xf32>
    %1315 = arith.negf %1314 : vector<1x32xf32>
    %1316 = math.exp %1315 : vector<1x32xf32>
    %cst_269 = arith.constant 1.000000e+00 : f32
    %1317 = vector.broadcast %cst_269 : f32 to vector<1x32xf32>
    %1318 = arith.addf %1317, %1316 : vector<1x32xf32>
    %1319 = arith.divf %1317, %1318 : vector<1x32xf32>
    %1320 = vector.extract_strided_slice %1300 {offsets = [0, 64], sizes = [1, 32], strides = [1, 1]} : vector<1x96xf32> to vector<1x32xf32>
    %1321 = vector.extract_strided_slice %1303 {offsets = [0, 64], sizes = [1, 32], strides = [1, 1]} : vector<1x96xf32> to vector<1x32xf32>
    %1322 = arith.mulf %1311, %1321 : vector<1x32xf32>
    %1323 = arith.addf %1320, %1322 : vector<1x32xf32>
    %1324 = math.tanh %1323 : vector<1x32xf32>
    %cst_270 = arith.constant 1.000000e+00 : f32
    %1325 = vector.broadcast %cst_270 : f32 to vector<1x32xf32>
    %1326 = arith.subf %1325, %1319 : vector<1x32xf32>
    %1327 = arith.mulf %1326, %1324 : vector<1x32xf32>
    %1328 = arith.mulf %1319, %1299 : vector<1x32xf32>
    %1329 = arith.addf %1327, %1328 : vector<1x32xf32>
    %1330 = vector.extract_strided_slice %1209 {offsets = [4, 0], sizes = [1, 96], strides = [1, 1]} : vector<8x96xf32> to vector<1x96xf32>
    %1331 = arith.truncf %1329 : vector<1x32xf32> to vector<1x32xbf16>
    %cst_271 = arith.constant dense<0.000000e+00> : vector<1x96xf32>
    %1332 = tpu.matmul %1331, %1203, %cst_271 {dimension_numbers = #tpu.dot_dimension_numbers<[1], [0], [0], [1], [0, 0, 1, 1], [], []>} : vector<1x32xbf16>, vector<32x96xbf16>, vector<1x96xf32> -> vector<1x96xf32>
    %1333 = arith.addf %1332, %1205 : vector<1x96xf32>
    %1334 = vector.extract_strided_slice %1330 {offsets = [0, 0], sizes = [1, 32], strides = [1, 1]} : vector<1x96xf32> to vector<1x32xf32>
    %1335 = vector.extract_strided_slice %1333 {offsets = [0, 0], sizes = [1, 32], strides = [1, 1]} : vector<1x96xf32> to vector<1x32xf32>
    %1336 = arith.addf %1334, %1335 : vector<1x32xf32>
    %1337 = arith.negf %1336 : vector<1x32xf32>
    %1338 = math.exp %1337 : vector<1x32xf32>
    %cst_272 = arith.constant 1.000000e+00 : f32
    %1339 = vector.broadcast %cst_272 : f32 to vector<1x32xf32>
    %1340 = arith.addf %1339, %1338 : vector<1x32xf32>
    %1341 = arith.divf %1339, %1340 : vector<1x32xf32>
    %1342 = vector.extract_strided_slice %1330 {offsets = [0, 32], sizes = [1, 32], strides = [1, 1]} : vector<1x96xf32> to vector<1x32xf32>
    %1343 = vector.extract_strided_slice %1333 {offsets = [0, 32], sizes = [1, 32], strides = [1, 1]} : vector<1x96xf32> to vector<1x32xf32>
    %1344 = arith.addf %1342, %1343 : vector<1x32xf32>
    %1345 = arith.negf %1344 : vector<1x32xf32>
    %1346 = math.exp %1345 : vector<1x32xf32>
    %cst_273 = arith.constant 1.000000e+00 : f32
    %1347 = vector.broadcast %cst_273 : f32 to vector<1x32xf32>
    %1348 = arith.addf %1347, %1346 : vector<1x32xf32>
    %1349 = arith.divf %1347, %1348 : vector<1x32xf32>
    %1350 = vector.extract_strided_slice %1330 {offsets = [0, 64], sizes = [1, 32], strides = [1, 1]} : vector<1x96xf32> to vector<1x32xf32>
    %1351 = vector.extract_strided_slice %1333 {offsets = [0, 64], sizes = [1, 32], strides = [1, 1]} : vector<1x96xf32> to vector<1x32xf32>
    %1352 = arith.mulf %1341, %1351 : vector<1x32xf32>
    %1353 = arith.addf %1350, %1352 : vector<1x32xf32>
    %1354 = math.tanh %1353 : vector<1x32xf32>
    %cst_274 = arith.constant 1.000000e+00 : f32
    %1355 = vector.broadcast %cst_274 : f32 to vector<1x32xf32>
    %1356 = arith.subf %1355, %1349 : vector<1x32xf32>
    %1357 = arith.mulf %1356, %1354 : vector<1x32xf32>
    %1358 = arith.mulf %1349, %1329 : vector<1x32xf32>
    %1359 = arith.addf %1357, %1358 : vector<1x32xf32>
    %1360 = vector.extract_strided_slice %1209 {offsets = [5, 0], sizes = [1, 96], strides = [1, 1]} : vector<8x96xf32> to vector<1x96xf32>
    %1361 = arith.truncf %1359 : vector<1x32xf32> to vector<1x32xbf16>
    %cst_275 = arith.constant dense<0.000000e+00> : vector<1x96xf32>
    %1362 = tpu.matmul %1361, %1203, %cst_275 {dimension_numbers = #tpu.dot_dimension_numbers<[1], [0], [0], [1], [0, 0, 1, 1], [], []>} : vector<1x32xbf16>, vector<32x96xbf16>, vector<1x96xf32> -> vector<1x96xf32>
    %1363 = arith.addf %1362, %1205 : vector<1x96xf32>
    %1364 = vector.extract_strided_slice %1360 {offsets = [0, 0], sizes = [1, 32], strides = [1, 1]} : vector<1x96xf32> to vector<1x32xf32>
    %1365 = vector.extract_strided_slice %1363 {offsets = [0, 0], sizes = [1, 32], strides = [1, 1]} : vector<1x96xf32> to vector<1x32xf32>
    %1366 = arith.addf %1364, %1365 : vector<1x32xf32>
    %1367 = arith.negf %1366 : vector<1x32xf32>
    %1368 = math.exp %1367 : vector<1x32xf32>
    %cst_276 = arith.constant 1.000000e+00 : f32
    %1369 = vector.broadcast %cst_276 : f32 to vector<1x32xf32>
    %1370 = arith.addf %1369, %1368 : vector<1x32xf32>
    %1371 = arith.divf %1369, %1370 : vector<1x32xf32>
    %1372 = vector.extract_strided_slice %1360 {offsets = [0, 32], sizes = [1, 32], strides = [1, 1]} : vector<1x96xf32> to vector<1x32xf32>
    %1373 = vector.extract_strided_slice %1363 {offsets = [0, 32], sizes = [1, 32], strides = [1, 1]} : vector<1x96xf32> to vector<1x32xf32>
    %1374 = arith.addf %1372, %1373 : vector<1x32xf32>
    %1375 = arith.negf %1374 : vector<1x32xf32>
    %1376 = math.exp %1375 : vector<1x32xf32>
    %cst_277 = arith.constant 1.000000e+00 : f32
    %1377 = vector.broadcast %cst_277 : f32 to vector<1x32xf32>
    %1378 = arith.addf %1377, %1376 : vector<1x32xf32>
    %1379 = arith.divf %1377, %1378 : vector<1x32xf32>
    %1380 = vector.extract_strided_slice %1360 {offsets = [0, 64], sizes = [1, 32], strides = [1, 1]} : vector<1x96xf32> to vector<1x32xf32>
    %1381 = vector.extract_strided_slice %1363 {offsets = [0, 64], sizes = [1, 32], strides = [1, 1]} : vector<1x96xf32> to vector<1x32xf32>
    %1382 = arith.mulf %1371, %1381 : vector<1x32xf32>
    %1383 = arith.addf %1380, %1382 : vector<1x32xf32>
    %1384 = math.tanh %1383 : vector<1x32xf32>
    %cst_278 = arith.constant 1.000000e+00 : f32
    %1385 = vector.broadcast %cst_278 : f32 to vector<1x32xf32>
    %1386 = arith.subf %1385, %1379 : vector<1x32xf32>
    %1387 = arith.mulf %1386, %1384 : vector<1x32xf32>
    %1388 = arith.mulf %1379, %1359 : vector<1x32xf32>
    %1389 = arith.addf %1387, %1388 : vector<1x32xf32>
    %1390 = vector.extract_strided_slice %1209 {offsets = [6, 0], sizes = [1, 96], strides = [1, 1]} : vector<8x96xf32> to vector<1x96xf32>
    %1391 = arith.truncf %1389 : vector<1x32xf32> to vector<1x32xbf16>
    %cst_279 = arith.constant dense<0.000000e+00> : vector<1x96xf32>
    %1392 = tpu.matmul %1391, %1203, %cst_279 {dimension_numbers = #tpu.dot_dimension_numbers<[1], [0], [0], [1], [0, 0, 1, 1], [], []>} : vector<1x32xbf16>, vector<32x96xbf16>, vector<1x96xf32> -> vector<1x96xf32>
    %1393 = arith.addf %1392, %1205 : vector<1x96xf32>
    %1394 = vector.extract_strided_slice %1390 {offsets = [0, 0], sizes = [1, 32], strides = [1, 1]} : vector<1x96xf32> to vector<1x32xf32>
    %1395 = vector.extract_strided_slice %1393 {offsets = [0, 0], sizes = [1, 32], strides = [1, 1]} : vector<1x96xf32> to vector<1x32xf32>
    %1396 = arith.addf %1394, %1395 : vector<1x32xf32>
    %1397 = arith.negf %1396 : vector<1x32xf32>
    %1398 = math.exp %1397 : vector<1x32xf32>
    %cst_280 = arith.constant 1.000000e+00 : f32
    %1399 = vector.broadcast %cst_280 : f32 to vector<1x32xf32>
    %1400 = arith.addf %1399, %1398 : vector<1x32xf32>
    %1401 = arith.divf %1399, %1400 : vector<1x32xf32>
    %1402 = vector.extract_strided_slice %1390 {offsets = [0, 32], sizes = [1, 32], strides = [1, 1]} : vector<1x96xf32> to vector<1x32xf32>
    %1403 = vector.extract_strided_slice %1393 {offsets = [0, 32], sizes = [1, 32], strides = [1, 1]} : vector<1x96xf32> to vector<1x32xf32>
    %1404 = arith.addf %1402, %1403 : vector<1x32xf32>
    %1405 = arith.negf %1404 : vector<1x32xf32>
    %1406 = math.exp %1405 : vector<1x32xf32>
    %cst_281 = arith.constant 1.000000e+00 : f32
    %1407 = vector.broadcast %cst_281 : f32 to vector<1x32xf32>
    %1408 = arith.addf %1407, %1406 : vector<1x32xf32>
    %1409 = arith.divf %1407, %1408 : vector<1x32xf32>
    %1410 = vector.extract_strided_slice %1390 {offsets = [0, 64], sizes = [1, 32], strides = [1, 1]} : vector<1x96xf32> to vector<1x32xf32>
    %1411 = vector.extract_strided_slice %1393 {offsets = [0, 64], sizes = [1, 32], strides = [1, 1]} : vector<1x96xf32> to vector<1x32xf32>
    %1412 = arith.mulf %1401, %1411 : vector<1x32xf32>
    %1413 = arith.addf %1410, %1412 : vector<1x32xf32>
    %1414 = math.tanh %1413 : vector<1x32xf32>
    %cst_282 = arith.constant 1.000000e+00 : f32
    %1415 = vector.broadcast %cst_282 : f32 to vector<1x32xf32>
    %1416 = arith.subf %1415, %1409 : vector<1x32xf32>
    %1417 = arith.mulf %1416, %1414 : vector<1x32xf32>
    %1418 = arith.mulf %1409, %1389 : vector<1x32xf32>
    %1419 = arith.addf %1417, %1418 : vector<1x32xf32>
    %1420 = vector.extract_strided_slice %1209 {offsets = [7, 0], sizes = [1, 96], strides = [1, 1]} : vector<8x96xf32> to vector<1x96xf32>
    %1421 = arith.truncf %1419 : vector<1x32xf32> to vector<1x32xbf16>
    %cst_283 = arith.constant dense<0.000000e+00> : vector<1x96xf32>
    %1422 = tpu.matmul %1421, %1203, %cst_283 {dimension_numbers = #tpu.dot_dimension_numbers<[1], [0], [0], [1], [0, 0, 1, 1], [], []>} : vector<1x32xbf16>, vector<32x96xbf16>, vector<1x96xf32> -> vector<1x96xf32>
    %1423 = arith.addf %1422, %1205 : vector<1x96xf32>
    %1424 = vector.extract_strided_slice %1420 {offsets = [0, 0], sizes = [1, 32], strides = [1, 1]} : vector<1x96xf32> to vector<1x32xf32>
    %1425 = vector.extract_strided_slice %1423 {offsets = [0, 0], sizes = [1, 32], strides = [1, 1]} : vector<1x96xf32> to vector<1x32xf32>
    %1426 = arith.addf %1424, %1425 : vector<1x32xf32>
    %1427 = arith.negf %1426 : vector<1x32xf32>
    %1428 = math.exp %1427 : vector<1x32xf32>
    %cst_284 = arith.constant 1.000000e+00 : f32
    %1429 = vector.broadcast %cst_284 : f32 to vector<1x32xf32>
    %1430 = arith.addf %1429, %1428 : vector<1x32xf32>
    %1431 = arith.divf %1429, %1430 : vector<1x32xf32>
    %1432 = vector.extract_strided_slice %1420 {offsets = [0, 32], sizes = [1, 32], strides = [1, 1]} : vector<1x96xf32> to vector<1x32xf32>
    %1433 = vector.extract_strided_slice %1423 {offsets = [0, 32], sizes = [1, 32], strides = [1, 1]} : vector<1x96xf32> to vector<1x32xf32>
    %1434 = arith.addf %1432, %1433 : vector<1x32xf32>
    %1435 = arith.negf %1434 : vector<1x32xf32>
    %1436 = math.exp %1435 : vector<1x32xf32>
    %cst_285 = arith.constant 1.000000e+00 : f32
    %1437 = vector.broadcast %cst_285 : f32 to vector<1x32xf32>
    %1438 = arith.addf %1437, %1436 : vector<1x32xf32>
    %1439 = arith.divf %1437, %1438 : vector<1x32xf32>
    %1440 = vector.extract_strided_slice %1420 {offsets = [0, 64], sizes = [1, 32], strides = [1, 1]} : vector<1x96xf32> to vector<1x32xf32>
    %1441 = vector.extract_strided_slice %1423 {offsets = [0, 64], sizes = [1, 32], strides = [1, 1]} : vector<1x96xf32> to vector<1x32xf32>
    %1442 = arith.mulf %1431, %1441 : vector<1x32xf32>
    %1443 = arith.addf %1440, %1442 : vector<1x32xf32>
    %1444 = math.tanh %1443 : vector<1x32xf32>
    %cst_286 = arith.constant 1.000000e+00 : f32
    %1445 = vector.broadcast %cst_286 : f32 to vector<1x32xf32>
    %1446 = arith.subf %1445, %1439 : vector<1x32xf32>
    %1447 = arith.mulf %1446, %1444 : vector<1x32xf32>
    %1448 = arith.mulf %1439, %1419 : vector<1x32xf32>
    %1449 = arith.addf %1447, %1448 : vector<1x32xf32>
    %1450 = tpu.concatenate %1239, %1269, %1299, %1329, %1359, %1389, %1419, %1449 in 0 : vector<1x32xf32>, vector<1x32xf32>, vector<1x32xf32>, vector<1x32xf32>, vector<1x32xf32>, vector<1x32xf32>, vector<1x32xf32>, vector<1x32xf32> -> vector<8x32xf32>
    %c0_287 = arith.constant 0 : index
    %c0_288 = arith.constant 0 : index
    %1451 = vector.load %arg42[%c0_287, %c0_288] : memref<32x96xbf16, #tpu.memory_space<vmem>>, vector<32x96xbf16>
    %c0_289 = arith.constant 0 : index
    %c0_290 = arith.constant 0 : index
    %1452 = vector.load %arg43[%c0_289, %c0_290] : memref<32x96xbf16, #tpu.memory_space<vmem>>, vector<32x96xbf16>
    %c0_291 = arith.constant 0 : index
    %c0_292 = arith.constant 0 : index
    %1453 = vector.load %arg44[%c0_291, %c0_292] : memref<1x96xf32, #tpu.memory_space<vmem>>, vector<1x96xf32>
    %c0_293 = arith.constant 0 : index
    %c0_294 = arith.constant 0 : index
    %1454 = vector.load %arg45[%c0_293, %c0_294] : memref<1x96xf32, #tpu.memory_space<vmem>>, vector<1x96xf32>
    %1455 = arith.truncf %1450 : vector<8x32xf32> to vector<8x32xbf16>
    %cst_295 = arith.constant dense<0.000000e+00> : vector<8x96xf32>
    %1456 = tpu.matmul %1455, %1451, %cst_295 {dimension_numbers = #tpu.dot_dimension_numbers<[1], [0], [0], [1], [0, 0, 1, 1], [], []>} : vector<8x32xbf16>, vector<32x96xbf16>, vector<8x96xf32> -> vector<8x96xf32>
    %1457 = vector.broadcast %1453 : vector<1x96xf32> to vector<8x96xf32>
    %1458 = arith.addf %1456, %1457 : vector<8x96xf32>
    %1459 = vector.extract_strided_slice %1458 {offsets = [0, 0], sizes = [1, 96], strides = [1, 1]} : vector<8x96xf32> to vector<1x96xf32>
    %1460 = arith.truncf %1171 : vector<1x32xf32> to vector<1x32xbf16>
    %cst_296 = arith.constant dense<0.000000e+00> : vector<1x96xf32>
    %1461 = tpu.matmul %1460, %1452, %cst_296 {dimension_numbers = #tpu.dot_dimension_numbers<[1], [0], [0], [1], [0, 0, 1, 1], [], []>} : vector<1x32xbf16>, vector<32x96xbf16>, vector<1x96xf32> -> vector<1x96xf32>
    %1462 = arith.addf %1461, %1454 : vector<1x96xf32>
    %1463 = vector.extract_strided_slice %1459 {offsets = [0, 0], sizes = [1, 32], strides = [1, 1]} : vector<1x96xf32> to vector<1x32xf32>
    %1464 = vector.extract_strided_slice %1462 {offsets = [0, 0], sizes = [1, 32], strides = [1, 1]} : vector<1x96xf32> to vector<1x32xf32>
    %1465 = arith.addf %1463, %1464 : vector<1x32xf32>
    %1466 = arith.negf %1465 : vector<1x32xf32>
    %1467 = math.exp %1466 : vector<1x32xf32>
    %cst_297 = arith.constant 1.000000e+00 : f32
    %1468 = vector.broadcast %cst_297 : f32 to vector<1x32xf32>
    %1469 = arith.addf %1468, %1467 : vector<1x32xf32>
    %1470 = arith.divf %1468, %1469 : vector<1x32xf32>
    %1471 = vector.extract_strided_slice %1459 {offsets = [0, 32], sizes = [1, 32], strides = [1, 1]} : vector<1x96xf32> to vector<1x32xf32>
    %1472 = vector.extract_strided_slice %1462 {offsets = [0, 32], sizes = [1, 32], strides = [1, 1]} : vector<1x96xf32> to vector<1x32xf32>
    %1473 = arith.addf %1471, %1472 : vector<1x32xf32>
    %1474 = arith.negf %1473 : vector<1x32xf32>
    %1475 = math.exp %1474 : vector<1x32xf32>
    %cst_298 = arith.constant 1.000000e+00 : f32
    %1476 = vector.broadcast %cst_298 : f32 to vector<1x32xf32>
    %1477 = arith.addf %1476, %1475 : vector<1x32xf32>
    %1478 = arith.divf %1476, %1477 : vector<1x32xf32>
    %1479 = vector.extract_strided_slice %1459 {offsets = [0, 64], sizes = [1, 32], strides = [1, 1]} : vector<1x96xf32> to vector<1x32xf32>
    %1480 = vector.extract_strided_slice %1462 {offsets = [0, 64], sizes = [1, 32], strides = [1, 1]} : vector<1x96xf32> to vector<1x32xf32>
    %1481 = arith.mulf %1470, %1480 : vector<1x32xf32>
    %1482 = arith.addf %1479, %1481 : vector<1x32xf32>
    %1483 = math.tanh %1482 : vector<1x32xf32>
    %cst_299 = arith.constant 1.000000e+00 : f32
    %1484 = vector.broadcast %cst_299 : f32 to vector<1x32xf32>
    %1485 = arith.subf %1484, %1478 : vector<1x32xf32>
    %1486 = arith.mulf %1485, %1483 : vector<1x32xf32>
    %1487 = arith.mulf %1478, %1171 : vector<1x32xf32>
    %1488 = arith.addf %1486, %1487 : vector<1x32xf32>
    %1489 = vector.extract_strided_slice %1458 {offsets = [1, 0], sizes = [1, 96], strides = [1, 1]} : vector<8x96xf32> to vector<1x96xf32>
    %1490 = arith.truncf %1488 : vector<1x32xf32> to vector<1x32xbf16>
    %cst_300 = arith.constant dense<0.000000e+00> : vector<1x96xf32>
    %1491 = tpu.matmul %1490, %1452, %cst_300 {dimension_numbers = #tpu.dot_dimension_numbers<[1], [0], [0], [1], [0, 0, 1, 1], [], []>} : vector<1x32xbf16>, vector<32x96xbf16>, vector<1x96xf32> -> vector<1x96xf32>
    %1492 = arith.addf %1491, %1454 : vector<1x96xf32>
    %1493 = vector.extract_strided_slice %1489 {offsets = [0, 0], sizes = [1, 32], strides = [1, 1]} : vector<1x96xf32> to vector<1x32xf32>
    %1494 = vector.extract_strided_slice %1492 {offsets = [0, 0], sizes = [1, 32], strides = [1, 1]} : vector<1x96xf32> to vector<1x32xf32>
    %1495 = arith.addf %1493, %1494 : vector<1x32xf32>
    %1496 = arith.negf %1495 : vector<1x32xf32>
    %1497 = math.exp %1496 : vector<1x32xf32>
    %cst_301 = arith.constant 1.000000e+00 : f32
    %1498 = vector.broadcast %cst_301 : f32 to vector<1x32xf32>
    %1499 = arith.addf %1498, %1497 : vector<1x32xf32>
    %1500 = arith.divf %1498, %1499 : vector<1x32xf32>
    %1501 = vector.extract_strided_slice %1489 {offsets = [0, 32], sizes = [1, 32], strides = [1, 1]} : vector<1x96xf32> to vector<1x32xf32>
    %1502 = vector.extract_strided_slice %1492 {offsets = [0, 32], sizes = [1, 32], strides = [1, 1]} : vector<1x96xf32> to vector<1x32xf32>
    %1503 = arith.addf %1501, %1502 : vector<1x32xf32>
    %1504 = arith.negf %1503 : vector<1x32xf32>
    %1505 = math.exp %1504 : vector<1x32xf32>
    %cst_302 = arith.constant 1.000000e+00 : f32
    %1506 = vector.broadcast %cst_302 : f32 to vector<1x32xf32>
    %1507 = arith.addf %1506, %1505 : vector<1x32xf32>
    %1508 = arith.divf %1506, %1507 : vector<1x32xf32>
    %1509 = vector.extract_strided_slice %1489 {offsets = [0, 64], sizes = [1, 32], strides = [1, 1]} : vector<1x96xf32> to vector<1x32xf32>
    %1510 = vector.extract_strided_slice %1492 {offsets = [0, 64], sizes = [1, 32], strides = [1, 1]} : vector<1x96xf32> to vector<1x32xf32>
    %1511 = arith.mulf %1500, %1510 : vector<1x32xf32>
    %1512 = arith.addf %1509, %1511 : vector<1x32xf32>
    %1513 = math.tanh %1512 : vector<1x32xf32>
    %cst_303 = arith.constant 1.000000e+00 : f32
    %1514 = vector.broadcast %cst_303 : f32 to vector<1x32xf32>
    %1515 = arith.subf %1514, %1508 : vector<1x32xf32>
    %1516 = arith.mulf %1515, %1513 : vector<1x32xf32>
    %1517 = arith.mulf %1508, %1488 : vector<1x32xf32>
    %1518 = arith.addf %1516, %1517 : vector<1x32xf32>
    %1519 = vector.extract_strided_slice %1458 {offsets = [2, 0], sizes = [1, 96], strides = [1, 1]} : vector<8x96xf32> to vector<1x96xf32>
    %1520 = arith.truncf %1518 : vector<1x32xf32> to vector<1x32xbf16>
    %cst_304 = arith.constant dense<0.000000e+00> : vector<1x96xf32>
    %1521 = tpu.matmul %1520, %1452, %cst_304 {dimension_numbers = #tpu.dot_dimension_numbers<[1], [0], [0], [1], [0, 0, 1, 1], [], []>} : vector<1x32xbf16>, vector<32x96xbf16>, vector<1x96xf32> -> vector<1x96xf32>
    %1522 = arith.addf %1521, %1454 : vector<1x96xf32>
    %1523 = vector.extract_strided_slice %1519 {offsets = [0, 0], sizes = [1, 32], strides = [1, 1]} : vector<1x96xf32> to vector<1x32xf32>
    %1524 = vector.extract_strided_slice %1522 {offsets = [0, 0], sizes = [1, 32], strides = [1, 1]} : vector<1x96xf32> to vector<1x32xf32>
    %1525 = arith.addf %1523, %1524 : vector<1x32xf32>
    %1526 = arith.negf %1525 : vector<1x32xf32>
    %1527 = math.exp %1526 : vector<1x32xf32>
    %cst_305 = arith.constant 1.000000e+00 : f32
    %1528 = vector.broadcast %cst_305 : f32 to vector<1x32xf32>
    %1529 = arith.addf %1528, %1527 : vector<1x32xf32>
    %1530 = arith.divf %1528, %1529 : vector<1x32xf32>
    %1531 = vector.extract_strided_slice %1519 {offsets = [0, 32], sizes = [1, 32], strides = [1, 1]} : vector<1x96xf32> to vector<1x32xf32>
    %1532 = vector.extract_strided_slice %1522 {offsets = [0, 32], sizes = [1, 32], strides = [1, 1]} : vector<1x96xf32> to vector<1x32xf32>
    %1533 = arith.addf %1531, %1532 : vector<1x32xf32>
    %1534 = arith.negf %1533 : vector<1x32xf32>
    %1535 = math.exp %1534 : vector<1x32xf32>
    %cst_306 = arith.constant 1.000000e+00 : f32
    %1536 = vector.broadcast %cst_306 : f32 to vector<1x32xf32>
    %1537 = arith.addf %1536, %1535 : vector<1x32xf32>
    %1538 = arith.divf %1536, %1537 : vector<1x32xf32>
    %1539 = vector.extract_strided_slice %1519 {offsets = [0, 64], sizes = [1, 32], strides = [1, 1]} : vector<1x96xf32> to vector<1x32xf32>
    %1540 = vector.extract_strided_slice %1522 {offsets = [0, 64], sizes = [1, 32], strides = [1, 1]} : vector<1x96xf32> to vector<1x32xf32>
    %1541 = arith.mulf %1530, %1540 : vector<1x32xf32>
    %1542 = arith.addf %1539, %1541 : vector<1x32xf32>
    %1543 = math.tanh %1542 : vector<1x32xf32>
    %cst_307 = arith.constant 1.000000e+00 : f32
    %1544 = vector.broadcast %cst_307 : f32 to vector<1x32xf32>
    %1545 = arith.subf %1544, %1538 : vector<1x32xf32>
    %1546 = arith.mulf %1545, %1543 : vector<1x32xf32>
    %1547 = arith.mulf %1538, %1518 : vector<1x32xf32>
    %1548 = arith.addf %1546, %1547 : vector<1x32xf32>
    %1549 = vector.extract_strided_slice %1458 {offsets = [3, 0], sizes = [1, 96], strides = [1, 1]} : vector<8x96xf32> to vector<1x96xf32>
    %1550 = arith.truncf %1548 : vector<1x32xf32> to vector<1x32xbf16>
    %cst_308 = arith.constant dense<0.000000e+00> : vector<1x96xf32>
    %1551 = tpu.matmul %1550, %1452, %cst_308 {dimension_numbers = #tpu.dot_dimension_numbers<[1], [0], [0], [1], [0, 0, 1, 1], [], []>} : vector<1x32xbf16>, vector<32x96xbf16>, vector<1x96xf32> -> vector<1x96xf32>
    %1552 = arith.addf %1551, %1454 : vector<1x96xf32>
    %1553 = vector.extract_strided_slice %1549 {offsets = [0, 0], sizes = [1, 32], strides = [1, 1]} : vector<1x96xf32> to vector<1x32xf32>
    %1554 = vector.extract_strided_slice %1552 {offsets = [0, 0], sizes = [1, 32], strides = [1, 1]} : vector<1x96xf32> to vector<1x32xf32>
    %1555 = arith.addf %1553, %1554 : vector<1x32xf32>
    %1556 = arith.negf %1555 : vector<1x32xf32>
    %1557 = math.exp %1556 : vector<1x32xf32>
    %cst_309 = arith.constant 1.000000e+00 : f32
    %1558 = vector.broadcast %cst_309 : f32 to vector<1x32xf32>
    %1559 = arith.addf %1558, %1557 : vector<1x32xf32>
    %1560 = arith.divf %1558, %1559 : vector<1x32xf32>
    %1561 = vector.extract_strided_slice %1549 {offsets = [0, 32], sizes = [1, 32], strides = [1, 1]} : vector<1x96xf32> to vector<1x32xf32>
    %1562 = vector.extract_strided_slice %1552 {offsets = [0, 32], sizes = [1, 32], strides = [1, 1]} : vector<1x96xf32> to vector<1x32xf32>
    %1563 = arith.addf %1561, %1562 : vector<1x32xf32>
    %1564 = arith.negf %1563 : vector<1x32xf32>
    %1565 = math.exp %1564 : vector<1x32xf32>
    %cst_310 = arith.constant 1.000000e+00 : f32
    %1566 = vector.broadcast %cst_310 : f32 to vector<1x32xf32>
    %1567 = arith.addf %1566, %1565 : vector<1x32xf32>
    %1568 = arith.divf %1566, %1567 : vector<1x32xf32>
    %1569 = vector.extract_strided_slice %1549 {offsets = [0, 64], sizes = [1, 32], strides = [1, 1]} : vector<1x96xf32> to vector<1x32xf32>
    %1570 = vector.extract_strided_slice %1552 {offsets = [0, 64], sizes = [1, 32], strides = [1, 1]} : vector<1x96xf32> to vector<1x32xf32>
    %1571 = arith.mulf %1560, %1570 : vector<1x32xf32>
    %1572 = arith.addf %1569, %1571 : vector<1x32xf32>
    %1573 = math.tanh %1572 : vector<1x32xf32>
    %cst_311 = arith.constant 1.000000e+00 : f32
    %1574 = vector.broadcast %cst_311 : f32 to vector<1x32xf32>
    %1575 = arith.subf %1574, %1568 : vector<1x32xf32>
    %1576 = arith.mulf %1575, %1573 : vector<1x32xf32>
    %1577 = arith.mulf %1568, %1548 : vector<1x32xf32>
    %1578 = arith.addf %1576, %1577 : vector<1x32xf32>
    %1579 = vector.extract_strided_slice %1458 {offsets = [4, 0], sizes = [1, 96], strides = [1, 1]} : vector<8x96xf32> to vector<1x96xf32>
    %1580 = arith.truncf %1578 : vector<1x32xf32> to vector<1x32xbf16>
    %cst_312 = arith.constant dense<0.000000e+00> : vector<1x96xf32>
    %1581 = tpu.matmul %1580, %1452, %cst_312 {dimension_numbers = #tpu.dot_dimension_numbers<[1], [0], [0], [1], [0, 0, 1, 1], [], []>} : vector<1x32xbf16>, vector<32x96xbf16>, vector<1x96xf32> -> vector<1x96xf32>
    %1582 = arith.addf %1581, %1454 : vector<1x96xf32>
    %1583 = vector.extract_strided_slice %1579 {offsets = [0, 0], sizes = [1, 32], strides = [1, 1]} : vector<1x96xf32> to vector<1x32xf32>
    %1584 = vector.extract_strided_slice %1582 {offsets = [0, 0], sizes = [1, 32], strides = [1, 1]} : vector<1x96xf32> to vector<1x32xf32>
    %1585 = arith.addf %1583, %1584 : vector<1x32xf32>
    %1586 = arith.negf %1585 : vector<1x32xf32>
    %1587 = math.exp %1586 : vector<1x32xf32>
    %cst_313 = arith.constant 1.000000e+00 : f32
    %1588 = vector.broadcast %cst_313 : f32 to vector<1x32xf32>
    %1589 = arith.addf %1588, %1587 : vector<1x32xf32>
    %1590 = arith.divf %1588, %1589 : vector<1x32xf32>
    %1591 = vector.extract_strided_slice %1579 {offsets = [0, 32], sizes = [1, 32], strides = [1, 1]} : vector<1x96xf32> to vector<1x32xf32>
    %1592 = vector.extract_strided_slice %1582 {offsets = [0, 32], sizes = [1, 32], strides = [1, 1]} : vector<1x96xf32> to vector<1x32xf32>
    %1593 = arith.addf %1591, %1592 : vector<1x32xf32>
    %1594 = arith.negf %1593 : vector<1x32xf32>
    %1595 = math.exp %1594 : vector<1x32xf32>
    %cst_314 = arith.constant 1.000000e+00 : f32
    %1596 = vector.broadcast %cst_314 : f32 to vector<1x32xf32>
    %1597 = arith.addf %1596, %1595 : vector<1x32xf32>
    %1598 = arith.divf %1596, %1597 : vector<1x32xf32>
    %1599 = vector.extract_strided_slice %1579 {offsets = [0, 64], sizes = [1, 32], strides = [1, 1]} : vector<1x96xf32> to vector<1x32xf32>
    %1600 = vector.extract_strided_slice %1582 {offsets = [0, 64], sizes = [1, 32], strides = [1, 1]} : vector<1x96xf32> to vector<1x32xf32>
    %1601 = arith.mulf %1590, %1600 : vector<1x32xf32>
    %1602 = arith.addf %1599, %1601 : vector<1x32xf32>
    %1603 = math.tanh %1602 : vector<1x32xf32>
    %cst_315 = arith.constant 1.000000e+00 : f32
    %1604 = vector.broadcast %cst_315 : f32 to vector<1x32xf32>
    %1605 = arith.subf %1604, %1598 : vector<1x32xf32>
    %1606 = arith.mulf %1605, %1603 : vector<1x32xf32>
    %1607 = arith.mulf %1598, %1578 : vector<1x32xf32>
    %1608 = arith.addf %1606, %1607 : vector<1x32xf32>
    %1609 = vector.extract_strided_slice %1458 {offsets = [5, 0], sizes = [1, 96], strides = [1, 1]} : vector<8x96xf32> to vector<1x96xf32>
    %1610 = arith.truncf %1608 : vector<1x32xf32> to vector<1x32xbf16>
    %cst_316 = arith.constant dense<0.000000e+00> : vector<1x96xf32>
    %1611 = tpu.matmul %1610, %1452, %cst_316 {dimension_numbers = #tpu.dot_dimension_numbers<[1], [0], [0], [1], [0, 0, 1, 1], [], []>} : vector<1x32xbf16>, vector<32x96xbf16>, vector<1x96xf32> -> vector<1x96xf32>
    %1612 = arith.addf %1611, %1454 : vector<1x96xf32>
    %1613 = vector.extract_strided_slice %1609 {offsets = [0, 0], sizes = [1, 32], strides = [1, 1]} : vector<1x96xf32> to vector<1x32xf32>
    %1614 = vector.extract_strided_slice %1612 {offsets = [0, 0], sizes = [1, 32], strides = [1, 1]} : vector<1x96xf32> to vector<1x32xf32>
    %1615 = arith.addf %1613, %1614 : vector<1x32xf32>
    %1616 = arith.negf %1615 : vector<1x32xf32>
    %1617 = math.exp %1616 : vector<1x32xf32>
    %cst_317 = arith.constant 1.000000e+00 : f32
    %1618 = vector.broadcast %cst_317 : f32 to vector<1x32xf32>
    %1619 = arith.addf %1618, %1617 : vector<1x32xf32>
    %1620 = arith.divf %1618, %1619 : vector<1x32xf32>
    %1621 = vector.extract_strided_slice %1609 {offsets = [0, 32], sizes = [1, 32], strides = [1, 1]} : vector<1x96xf32> to vector<1x32xf32>
    %1622 = vector.extract_strided_slice %1612 {offsets = [0, 32], sizes = [1, 32], strides = [1, 1]} : vector<1x96xf32> to vector<1x32xf32>
    %1623 = arith.addf %1621, %1622 : vector<1x32xf32>
    %1624 = arith.negf %1623 : vector<1x32xf32>
    %1625 = math.exp %1624 : vector<1x32xf32>
    %cst_318 = arith.constant 1.000000e+00 : f32
    %1626 = vector.broadcast %cst_318 : f32 to vector<1x32xf32>
    %1627 = arith.addf %1626, %1625 : vector<1x32xf32>
    %1628 = arith.divf %1626, %1627 : vector<1x32xf32>
    %1629 = vector.extract_strided_slice %1609 {offsets = [0, 64], sizes = [1, 32], strides = [1, 1]} : vector<1x96xf32> to vector<1x32xf32>
    %1630 = vector.extract_strided_slice %1612 {offsets = [0, 64], sizes = [1, 32], strides = [1, 1]} : vector<1x96xf32> to vector<1x32xf32>
    %1631 = arith.mulf %1620, %1630 : vector<1x32xf32>
    %1632 = arith.addf %1629, %1631 : vector<1x32xf32>
    %1633 = math.tanh %1632 : vector<1x32xf32>
    %cst_319 = arith.constant 1.000000e+00 : f32
    %1634 = vector.broadcast %cst_319 : f32 to vector<1x32xf32>
    %1635 = arith.subf %1634, %1628 : vector<1x32xf32>
    %1636 = arith.mulf %1635, %1633 : vector<1x32xf32>
    %1637 = arith.mulf %1628, %1608 : vector<1x32xf32>
    %1638 = arith.addf %1636, %1637 : vector<1x32xf32>
    %1639 = vector.extract_strided_slice %1458 {offsets = [6, 0], sizes = [1, 96], strides = [1, 1]} : vector<8x96xf32> to vector<1x96xf32>
    %1640 = arith.truncf %1638 : vector<1x32xf32> to vector<1x32xbf16>
    %cst_320 = arith.constant dense<0.000000e+00> : vector<1x96xf32>
    %1641 = tpu.matmul %1640, %1452, %cst_320 {dimension_numbers = #tpu.dot_dimension_numbers<[1], [0], [0], [1], [0, 0, 1, 1], [], []>} : vector<1x32xbf16>, vector<32x96xbf16>, vector<1x96xf32> -> vector<1x96xf32>
    %1642 = arith.addf %1641, %1454 : vector<1x96xf32>
    %1643 = vector.extract_strided_slice %1639 {offsets = [0, 0], sizes = [1, 32], strides = [1, 1]} : vector<1x96xf32> to vector<1x32xf32>
    %1644 = vector.extract_strided_slice %1642 {offsets = [0, 0], sizes = [1, 32], strides = [1, 1]} : vector<1x96xf32> to vector<1x32xf32>
    %1645 = arith.addf %1643, %1644 : vector<1x32xf32>
    %1646 = arith.negf %1645 : vector<1x32xf32>
    %1647 = math.exp %1646 : vector<1x32xf32>
    %cst_321 = arith.constant 1.000000e+00 : f32
    %1648 = vector.broadcast %cst_321 : f32 to vector<1x32xf32>
    %1649 = arith.addf %1648, %1647 : vector<1x32xf32>
    %1650 = arith.divf %1648, %1649 : vector<1x32xf32>
    %1651 = vector.extract_strided_slice %1639 {offsets = [0, 32], sizes = [1, 32], strides = [1, 1]} : vector<1x96xf32> to vector<1x32xf32>
    %1652 = vector.extract_strided_slice %1642 {offsets = [0, 32], sizes = [1, 32], strides = [1, 1]} : vector<1x96xf32> to vector<1x32xf32>
    %1653 = arith.addf %1651, %1652 : vector<1x32xf32>
    %1654 = arith.negf %1653 : vector<1x32xf32>
    %1655 = math.exp %1654 : vector<1x32xf32>
    %cst_322 = arith.constant 1.000000e+00 : f32
    %1656 = vector.broadcast %cst_322 : f32 to vector<1x32xf32>
    %1657 = arith.addf %1656, %1655 : vector<1x32xf32>
    %1658 = arith.divf %1656, %1657 : vector<1x32xf32>
    %1659 = vector.extract_strided_slice %1639 {offsets = [0, 64], sizes = [1, 32], strides = [1, 1]} : vector<1x96xf32> to vector<1x32xf32>
    %1660 = vector.extract_strided_slice %1642 {offsets = [0, 64], sizes = [1, 32], strides = [1, 1]} : vector<1x96xf32> to vector<1x32xf32>
    %1661 = arith.mulf %1650, %1660 : vector<1x32xf32>
    %1662 = arith.addf %1659, %1661 : vector<1x32xf32>
    %1663 = math.tanh %1662 : vector<1x32xf32>
    %cst_323 = arith.constant 1.000000e+00 : f32
    %1664 = vector.broadcast %cst_323 : f32 to vector<1x32xf32>
    %1665 = arith.subf %1664, %1658 : vector<1x32xf32>
    %1666 = arith.mulf %1665, %1663 : vector<1x32xf32>
    %1667 = arith.mulf %1658, %1638 : vector<1x32xf32>
    %1668 = arith.addf %1666, %1667 : vector<1x32xf32>
    %1669 = vector.extract_strided_slice %1458 {offsets = [7, 0], sizes = [1, 96], strides = [1, 1]} : vector<8x96xf32> to vector<1x96xf32>
    %1670 = arith.truncf %1668 : vector<1x32xf32> to vector<1x32xbf16>
    %cst_324 = arith.constant dense<0.000000e+00> : vector<1x96xf32>
    %1671 = tpu.matmul %1670, %1452, %cst_324 {dimension_numbers = #tpu.dot_dimension_numbers<[1], [0], [0], [1], [0, 0, 1, 1], [], []>} : vector<1x32xbf16>, vector<32x96xbf16>, vector<1x96xf32> -> vector<1x96xf32>
    %1672 = arith.addf %1671, %1454 : vector<1x96xf32>
    %1673 = vector.extract_strided_slice %1669 {offsets = [0, 0], sizes = [1, 32], strides = [1, 1]} : vector<1x96xf32> to vector<1x32xf32>
    %1674 = vector.extract_strided_slice %1672 {offsets = [0, 0], sizes = [1, 32], strides = [1, 1]} : vector<1x96xf32> to vector<1x32xf32>
    %1675 = arith.addf %1673, %1674 : vector<1x32xf32>
    %1676 = arith.negf %1675 : vector<1x32xf32>
    %1677 = math.exp %1676 : vector<1x32xf32>
    %cst_325 = arith.constant 1.000000e+00 : f32
    %1678 = vector.broadcast %cst_325 : f32 to vector<1x32xf32>
    %1679 = arith.addf %1678, %1677 : vector<1x32xf32>
    %1680 = arith.divf %1678, %1679 : vector<1x32xf32>
    %1681 = vector.extract_strided_slice %1669 {offsets = [0, 32], sizes = [1, 32], strides = [1, 1]} : vector<1x96xf32> to vector<1x32xf32>
    %1682 = vector.extract_strided_slice %1672 {offsets = [0, 32], sizes = [1, 32], strides = [1, 1]} : vector<1x96xf32> to vector<1x32xf32>
    %1683 = arith.addf %1681, %1682 : vector<1x32xf32>
    %1684 = arith.negf %1683 : vector<1x32xf32>
    %1685 = math.exp %1684 : vector<1x32xf32>
    %cst_326 = arith.constant 1.000000e+00 : f32
    %1686 = vector.broadcast %cst_326 : f32 to vector<1x32xf32>
    %1687 = arith.addf %1686, %1685 : vector<1x32xf32>
    %1688 = arith.divf %1686, %1687 : vector<1x32xf32>
    %1689 = vector.extract_strided_slice %1669 {offsets = [0, 64], sizes = [1, 32], strides = [1, 1]} : vector<1x96xf32> to vector<1x32xf32>
    %1690 = vector.extract_strided_slice %1672 {offsets = [0, 64], sizes = [1, 32], strides = [1, 1]} : vector<1x96xf32> to vector<1x32xf32>
    %1691 = arith.mulf %1680, %1690 : vector<1x32xf32>
    %1692 = arith.addf %1689, %1691 : vector<1x32xf32>
    %1693 = math.tanh %1692 : vector<1x32xf32>
    %cst_327 = arith.constant 1.000000e+00 : f32
    %1694 = vector.broadcast %cst_327 : f32 to vector<1x32xf32>
    %1695 = arith.subf %1694, %1688 : vector<1x32xf32>
    %1696 = arith.mulf %1695, %1693 : vector<1x32xf32>
    %1697 = arith.mulf %1688, %1668 : vector<1x32xf32>
    %1698 = arith.addf %1696, %1697 : vector<1x32xf32>
    %1699 = tpu.concatenate %1488, %1518, %1548, %1578, %1608, %1638, %1668, %1698 in 0 : vector<1x32xf32>, vector<1x32xf32>, vector<1x32xf32>, vector<1x32xf32>, vector<1x32xf32>, vector<1x32xf32>, vector<1x32xf32>, vector<1x32xf32> -> vector<8x32xf32>
    %c0_328 = arith.constant 0 : index
    %c0_329 = arith.constant 0 : index
    %1700 = vector.load %arg46[%c0_328, %c0_329] : memref<32x32xbf16, #tpu.memory_space<vmem>>, vector<32x32xbf16>
    %c0_330 = arith.constant 0 : index
    %c0_331 = arith.constant 0 : index
    %1701 = vector.load %arg47[%c0_330, %c0_331] : memref<1x32xf32, #tpu.memory_space<vmem>>, vector<1x32xf32>
    %c0_332 = arith.constant 0 : index
    %c0_333 = arith.constant 0 : index
    %1702 = vector.load %arg48[%c0_332, %c0_333] : memref<1x32xf32, #tpu.memory_space<vmem>>, vector<1x32xf32>
    %c0_334 = arith.constant 0 : index
    %c0_335 = arith.constant 0 : index
    %1703 = vector.load %arg49[%c0_334, %c0_335] : memref<1x32xf32, #tpu.memory_space<vmem>>, vector<1x32xf32>
    %c0_336 = arith.constant 0 : index
    %c0_337 = arith.constant 0 : index
    %1704 = vector.load %arg50[%c0_336, %c0_337] : memref<1x32xf32, #tpu.memory_space<vmem>>, vector<1x32xf32>
    %c0_338 = arith.constant 0 : index
    %c0_339 = arith.constant 0 : index
    %1705 = vector.load %arg51[%c0_338, %c0_339] : memref<1x1xf32, #tpu.memory_space<vmem>>, vector<1x1xf32>
    %1706 = arith.truncf %1699 : vector<8x32xf32> to vector<8x32xbf16>
    %cst_340 = arith.constant dense<0.000000e+00> : vector<8x32xf32>
    %1707 = tpu.matmul %1706, %1700, %cst_340 {dimension_numbers = #tpu.dot_dimension_numbers<[1], [0], [0], [1], [0, 0, 1, 1], [], []>} : vector<8x32xbf16>, vector<32x32xbf16>, vector<8x32xf32> -> vector<8x32xf32>
    %1708 = vector.broadcast %1701 : vector<1x32xf32> to vector<8x32xf32>
    %1709 = arith.addf %1707, %1708 : vector<8x32xf32>
    %cst_341 = arith.constant dense<0.000000e+00> : vector<8xf32>
    %1710 = vector.multi_reduction <add>, %1709, %cst_341 [1] : vector<8x32xf32> to vector<8xf32>
    %1711 = vector.shape_cast %1710 : vector<8xf32> to vector<8x1xf32>
    %cst_342 = arith.constant 3.200000e+01 : f32
    %1712 = vector.broadcast %cst_342 : f32 to vector<8x1xf32>
    %1713 = arith.divf %1711, %1712 : vector<8x1xf32>
    %1714 = arith.mulf %1709, %1709 : vector<8x32xf32>
    %cst_343 = arith.constant dense<0.000000e+00> : vector<8xf32>
    %1715 = vector.multi_reduction <add>, %1714, %cst_343 [1] : vector<8x32xf32> to vector<8xf32>
    %1716 = vector.shape_cast %1715 : vector<8xf32> to vector<8x1xf32>
    %cst_344 = arith.constant 3.200000e+01 : f32
    %1717 = vector.broadcast %cst_344 : f32 to vector<8x1xf32>
    %1718 = arith.divf %1716, %1717 : vector<8x1xf32>
    %1719 = arith.mulf %1713, %1713 : vector<8x1xf32>
    %1720 = arith.subf %1718, %1719 : vector<8x1xf32>
    %1721 = vector.broadcast %1713 : vector<8x1xf32> to vector<8x32xf32>
    %1722 = arith.subf %1709, %1721 : vector<8x32xf32>
    %cst_345 = arith.constant 9.99999974E-6 : f32
    %1723 = vector.broadcast %cst_345 : f32 to vector<8x1xf32>
    %1724 = arith.addf %1720, %1723 : vector<8x1xf32>
    %1725 = math.rsqrt %1724 : vector<8x1xf32>
    %1726 = vector.broadcast %1725 : vector<8x1xf32> to vector<8x32xf32>
    %1727 = arith.mulf %1722, %1726 : vector<8x32xf32>
    %1728 = vector.broadcast %1702 : vector<1x32xf32> to vector<8x32xf32>
    %1729 = arith.mulf %1727, %1728 : vector<8x32xf32>
    %1730 = vector.broadcast %1703 : vector<1x32xf32> to vector<8x32xf32>
    %1731 = arith.addf %1729, %1730 : vector<8x32xf32>
    %cst_346 = arith.constant 0.000000e+00 : f32
    %1732 = vector.broadcast %cst_346 : f32 to vector<8x32xf32>
    %1733 = arith.maximumf %1731, %1732 : vector<8x32xf32>
    %1734 = vector.broadcast %1704 : vector<1x32xf32> to vector<8x32xf32>
    %1735 = arith.mulf %1733, %1734 : vector<8x32xf32>
    %cst_347 = arith.constant dense<0.000000e+00> : vector<8xf32>
    %1736 = vector.multi_reduction <add>, %1735, %cst_347 [1] : vector<8x32xf32> to vector<8xf32>
    %1737 = vector.shape_cast %1736 : vector<8xf32> to vector<8x1xf32>
    %1738 = vector.broadcast %1705 : vector<1x1xf32> to vector<8x1xf32>
    %1739 = arith.addf %1737, %1738 : vector<8x1xf32>
    %c0_348 = arith.constant 0 : index
    %c0_349 = arith.constant 0 : index
    %c0_350 = arith.constant 0 : index
    %1740 = vector.load %arg52[%c0_348, %c0_349, %c0_350] : memref<1x8x1xf32, #tpu.memory_space<vmem>>, vector<1x8x1xf32>
    %1741 = vector.shape_cast %1740 : vector<1x8x1xf32> to vector<8x1xf32>
    %1742 = vector.shape_cast %1739 : vector<8x1xf32> to vector<1x8x1xf32>
    tpu.vector_store %arg52[%c0_348, %c0_349, %c0_350], %1742 {strides = array<i32>} : memref<1x8x1xf32, #tpu.memory_space<vmem>>, vector<1x8x1xf32>,
    return
  }
  func.func @transform_0(%arg0: i32) -> (i32, i32, i32) {
    %c0_i32 = arith.constant 0 : i32
    %c0_i32_0 = arith.constant 0 : i32
    %c0_i32_1 = arith.constant 0 : i32
    return %arg0, %c0_i32, %c0_i32_0 : i32, i32, i32
  }
  func.func @transform_1(%arg0: i32) -> (i32, i32, i32) {
    %c0_i32 = arith.constant 0 : i32
    %c0_i32_0 = arith.constant 0 : i32
    %c0_i32_1 = arith.constant 0 : i32
    return %arg0, %c0_i32, %c0_i32_0 : i32, i32, i32
  }
  func.func @transform_2(%arg0: i32) -> (i32, i32) {
    %c0_i32 = arith.constant 0 : i32
    %c0_i32_0 = arith.constant 0 : i32
    %c0_i32_1 = arith.constant 0 : i32
    return %c0_i32, %c0_i32_0 : i32, i32
  }
  func.func @transform_3(%arg0: i32) -> (i32, i32) {
    %c0_i32 = arith.constant 0 : i32
    %c0_i32_0 = arith.constant 0 : i32
    %c0_i32_1 = arith.constant 0 : i32
    return %c0_i32, %c0_i32_0 : i32, i32
  }
  func.func @transform_4(%arg0: i32) -> (i32, i32) {
    %c0_i32 = arith.constant 0 : i32
    %c0_i32_0 = arith.constant 0 : i32
    %c0_i32_1 = arith.constant 0 : i32
    return %c0_i32, %c0_i32_0 : i32, i32
  }
  func.func @transform_5(%arg0: i32) -> (i32, i32) {
    %c0_i32 = arith.constant 0 : i32
    %c0_i32_0 = arith.constant 0 : i32
    %c0_i32_1 = arith.constant 0 : i32
    return %c0_i32, %c0_i32_0 : i32, i32
  }
  func.func @transform_6(%arg0: i32) -> (i32, i32) {
    %c0_i32 = arith.constant 0 : i32
    %c0_i32_0 = arith.constant 0 : i32
    %c0_i32_1 = arith.constant 0 : i32
    return %c0_i32, %c0_i32_0 : i32, i32
  }
  func.func @transform_7(%arg0: i32) -> (i32, i32) {
    %c0_i32 = arith.constant 0 : i32
    %c0_i32_0 = arith.constant 0 : i32
    %c0_i32_1 = arith.constant 0 : i32
    return %c0_i32, %c0_i32_0 : i32, i32
  }
  func.func @transform_8(%arg0: i32) -> (i32, i32) {
    %c0_i32 = arith.constant 0 : i32
    %c0_i32_0 = arith.constant 0 : i32
    %c0_i32_1 = arith.constant 0 : i32
    return %c0_i32, %c0_i32_0 : i32, i32
  }
  func.func @transform_9(%arg0: i32) -> (i32, i32) {
    %c0_i32 = arith.constant 0 : i32
    %c0_i32_0 = arith.constant 0 : i32
    %c0_i32_1 = arith.constant 0 : i32
    return %c0_i32, %c0_i32_0 : i32, i32
  }
  func.func @transform_10(%arg0: i32) -> (i32, i32) {
    %c0_i32 = arith.constant 0 : i32
    %c0_i32_0 = arith.constant 0 : i32
    %c0_i32_1 = arith.constant 0 : i32
    return %c0_i32, %c0_i32_0 : i32, i32
  }
  func.func @transform_11(%arg0: i32) -> (i32, i32) {
    %c0_i32 = arith.constant 0 : i32
    %c0_i32_0 = arith.constant 0 : i32
    %c0_i32_1 = arith.constant 0 : i32
    return %c0_i32, %c0_i32_0 : i32, i32
  }
  func.func @transform_12(%arg0: i32) -> (i32, i32) {
    %c0_i32 = arith.constant 0 : i32
    %c0_i32_0 = arith.constant 0 : i32
    %c0_i32_1 = arith.constant 0 : i32
    return %c0_i32, %c0_i32_0 : i32, i32
  }
  func.func @transform_13(%arg0: i32) -> (i32, i32) {
    %c0_i32 = arith.constant 0 : i32
    %c0_i32_0 = arith.constant 0 : i32
    %c0_i32_1 = arith.constant 0 : i32
    return %c0_i32, %c0_i32_0 : i32, i32
  }
  func.func @transform_14(%arg0: i32) -> (i32, i32) {
    %c0_i32 = arith.constant 0 : i32
    %c0_i32_0 = arith.constant 0 : i32
    %c0_i32_1 = arith.constant 0 : i32
    return %c0_i32, %c0_i32_0 : i32, i32
  }
  func.func @transform_15(%arg0: i32) -> (i32, i32) {
    %c0_i32 = arith.constant 0 : i32
    %c0_i32_0 = arith.constant 0 : i32
    %c0_i32_1 = arith.constant 0 : i32
    return %c0_i32, %c0_i32_0 : i32, i32
  }
  func.func @transform_16(%arg0: i32) -> (i32, i32) {
    %c0_i32 = arith.constant 0 : i32
    %c0_i32_0 = arith.constant 0 : i32
    %c0_i32_1 = arith.constant 0 : i32
    return %c0_i32, %c0_i32_0 : i32, i32
  }
  func.func @transform_17(%arg0: i32) -> (i32, i32) {
    %c0_i32 = arith.constant 0 : i32
    %c0_i32_0 = arith.constant 0 : i32
    %c0_i32_1 = arith.constant 0 : i32
    return %c0_i32, %c0_i32_0 : i32, i32
  }
  func.func @transform_18(%arg0: i32) -> (i32, i32) {
    %c0_i32 = arith.constant 0 : i32
    %c0_i32_0 = arith.constant 0 : i32
    %c0_i32_1 = arith.constant 0 : i32
    return %c0_i32, %c0_i32_0 : i32, i32
  }
  func.func @transform_19(%arg0: i32) -> (i32, i32) {
    %c0_i32 = arith.constant 0 : i32
    %c0_i32_0 = arith.constant 0 : i32
    %c0_i32_1 = arith.constant 0 : i32
    return %c0_i32, %c0_i32_0 : i32, i32
  }
  func.func @transform_20(%arg0: i32) -> (i32, i32) {
    %c0_i32 = arith.constant 0 : i32
    %c0_i32_0 = arith.constant 0 : i32
    %c0_i32_1 = arith.constant 0 : i32
    return %c0_i32, %c0_i32_0 : i32, i32
  }
  func.func @transform_21(%arg0: i32) -> (i32, i32) {
    %c0_i32 = arith.constant 0 : i32
    %c0_i32_0 = arith.constant 0 : i32
    %c0_i32_1 = arith.constant 0 : i32
    return %c0_i32, %c0_i32_0 : i32, i32
  }
  func.func @transform_22(%arg0: i32) -> (i32, i32) {
    %c0_i32 = arith.constant 0 : i32
    %c0_i32_0 = arith.constant 0 : i32
    %c0_i32_1 = arith.constant 0 : i32
    return %c0_i32, %c0_i32_0 : i32, i32
  }
  func.func @transform_23(%arg0: i32) -> (i32, i32) {
    %c0_i32 = arith.constant 0 : i32
    %c0_i32_0 = arith.constant 0 : i32
    %c0_i32_1 = arith.constant 0 : i32
    return %c0_i32, %c0_i32_0 : i32, i32
  }
  func.func @transform_24(%arg0: i32) -> (i32, i32) {
    %c0_i32 = arith.constant 0 : i32
    %c0_i32_0 = arith.constant 0 : i32
    %c0_i32_1 = arith.constant 0 : i32
    return %c0_i32, %c0_i32_0 : i32, i32
  }
  func.func @transform_25(%arg0: i32) -> (i32, i32) {
    %c0_i32 = arith.constant 0 : i32
    %c0_i32_0 = arith.constant 0 : i32
    %c0_i32_1 = arith.constant 0 : i32
    return %c0_i32, %c0_i32_0 : i32, i32
  }
  func.func @transform_26(%arg0: i32) -> (i32, i32) {
    %c0_i32 = arith.constant 0 : i32
    %c0_i32_0 = arith.constant 0 : i32
    %c0_i32_1 = arith.constant 0 : i32
    return %c0_i32, %c0_i32_0 : i32, i32
  }
  func.func @transform_27(%arg0: i32) -> (i32, i32) {
    %c0_i32 = arith.constant 0 : i32
    %c0_i32_0 = arith.constant 0 : i32
    %c0_i32_1 = arith.constant 0 : i32
    return %c0_i32, %c0_i32_0 : i32, i32
  }
  func.func @transform_28(%arg0: i32) -> (i32, i32) {
    %c0_i32 = arith.constant 0 : i32
    %c0_i32_0 = arith.constant 0 : i32
    %c0_i32_1 = arith.constant 0 : i32
    return %c0_i32, %c0_i32_0 : i32, i32
  }
  func.func @transform_29(%arg0: i32) -> (i32, i32) {
    %c0_i32 = arith.constant 0 : i32
    %c0_i32_0 = arith.constant 0 : i32
    %c0_i32_1 = arith.constant 0 : i32
    return %c0_i32, %c0_i32_0 : i32, i32
  }
  func.func @transform_30(%arg0: i32) -> (i32, i32) {
    %c0_i32 = arith.constant 0 : i32
    %c0_i32_0 = arith.constant 0 : i32
    %c0_i32_1 = arith.constant 0 : i32
    return %c0_i32, %c0_i32_0 : i32, i32
  }
  func.func @transform_31(%arg0: i32) -> (i32, i32) {
    %c0_i32 = arith.constant 0 : i32
    %c0_i32_0 = arith.constant 0 : i32
    %c0_i32_1 = arith.constant 0 : i32
    return %c0_i32, %c0_i32_0 : i32, i32
  }
  func.func @transform_32(%arg0: i32) -> (i32, i32) {
    %c0_i32 = arith.constant 0 : i32
    %c0_i32_0 = arith.constant 0 : i32
    %c0_i32_1 = arith.constant 0 : i32
    return %c0_i32, %c0_i32_0 : i32, i32
  }
  func.func @transform_33(%arg0: i32) -> (i32, i32) {
    %c0_i32 = arith.constant 0 : i32
    %c0_i32_0 = arith.constant 0 : i32
    %c0_i32_1 = arith.constant 0 : i32
    return %c0_i32, %c0_i32_0 : i32, i32
  }
  func.func @transform_34(%arg0: i32) -> (i32, i32) {
    %c0_i32 = arith.constant 0 : i32
    %c0_i32_0 = arith.constant 0 : i32
    %c0_i32_1 = arith.constant 0 : i32
    return %c0_i32, %c0_i32_0 : i32, i32
  }
  func.func @transform_35(%arg0: i32) -> (i32, i32) {
    %c0_i32 = arith.constant 0 : i32
    %c0_i32_0 = arith.constant 0 : i32
    %c0_i32_1 = arith.constant 0 : i32
    return %c0_i32, %c0_i32_0 : i32, i32
  }
  func.func @transform_36(%arg0: i32) -> (i32, i32) {
    %c0_i32 = arith.constant 0 : i32
    %c0_i32_0 = arith.constant 0 : i32
    %c0_i32_1 = arith.constant 0 : i32
    return %c0_i32, %c0_i32_0 : i32, i32
  }
  func.func @transform_37(%arg0: i32) -> (i32, i32) {
    %c0_i32 = arith.constant 0 : i32
    %c0_i32_0 = arith.constant 0 : i32
    %c0_i32_1 = arith.constant 0 : i32
    return %c0_i32, %c0_i32_0 : i32, i32
  }
  func.func @transform_38(%arg0: i32) -> (i32, i32) {
    %c0_i32 = arith.constant 0 : i32
    %c0_i32_0 = arith.constant 0 : i32
    %c0_i32_1 = arith.constant 0 : i32
    return %c0_i32, %c0_i32_0 : i32, i32
  }
  func.func @transform_39(%arg0: i32) -> (i32, i32) {
    %c0_i32 = arith.constant 0 : i32
    %c0_i32_0 = arith.constant 0 : i32
    %c0_i32_1 = arith.constant 0 : i32
    return %c0_i32, %c0_i32_0 : i32, i32
  }
  func.func @transform_40(%arg0: i32) -> (i32, i32) {
    %c0_i32 = arith.constant 0 : i32
    %c0_i32_0 = arith.constant 0 : i32
    %c0_i32_1 = arith.constant 0 : i32
    return %c0_i32, %c0_i32_0 : i32, i32
  }
  func.func @transform_41(%arg0: i32) -> (i32, i32) {
    %c0_i32 = arith.constant 0 : i32
    %c0_i32_0 = arith.constant 0 : i32
    %c0_i32_1 = arith.constant 0 : i32
    return %c0_i32, %c0_i32_0 : i32, i32
  }
  func.func @transform_42(%arg0: i32) -> (i32, i32) {
    %c0_i32 = arith.constant 0 : i32
    %c0_i32_0 = arith.constant 0 : i32
    %c0_i32_1 = arith.constant 0 : i32
    return %c0_i32, %c0_i32_0 : i32, i32
  }
  func.func @transform_43(%arg0: i32) -> (i32, i32) {
    %c0_i32 = arith.constant 0 : i32
    %c0_i32_0 = arith.constant 0 : i32
    %c0_i32_1 = arith.constant 0 : i32
    return %c0_i32, %c0_i32_0 : i32, i32
  }
  func.func @transform_44(%arg0: i32) -> (i32, i32) {
    %c0_i32 = arith.constant 0 : i32
    %c0_i32_0 = arith.constant 0 : i32
    %c0_i32_1 = arith.constant 0 : i32
    return %c0_i32, %c0_i32_0 : i32, i32
  }
  func.func @transform_45(%arg0: i32) -> (i32, i32) {
    %c0_i32 = arith.constant 0 : i32
    %c0_i32_0 = arith.constant 0 : i32
    %c0_i32_1 = arith.constant 0 : i32
    return %c0_i32, %c0_i32_0 : i32, i32
  }
  func.func @transform_46(%arg0: i32) -> (i32, i32) {
    %c0_i32 = arith.constant 0 : i32
    %c0_i32_0 = arith.constant 0 : i32
    %c0_i32_1 = arith.constant 0 : i32
    return %c0_i32, %c0_i32_0 : i32, i32
  }
  func.func @transform_47(%arg0: i32) -> (i32, i32) {
    %c0_i32 = arith.constant 0 : i32
    %c0_i32_0 = arith.constant 0 : i32
    %c0_i32_1 = arith.constant 0 : i32
    return %c0_i32, %c0_i32_0 : i32, i32
  }
  func.func @transform_48(%arg0: i32) -> (i32, i32) {
    %c0_i32 = arith.constant 0 : i32
    %c0_i32_0 = arith.constant 0 : i32
    %c0_i32_1 = arith.constant 0 : i32
    return %c0_i32, %c0_i32_0 : i32, i32
  }
  func.func @transform_49(%arg0: i32) -> (i32, i32) {
    %c0_i32 = arith.constant 0 : i32
    %c0_i32_0 = arith.constant 0 : i32
    %c0_i32_1 = arith.constant 0 : i32
    return %c0_i32, %c0_i32_0 : i32, i32
  }
  func.func @transform_50(%arg0: i32) -> (i32, i32) {
    %c0_i32 = arith.constant 0 : i32
    %c0_i32_0 = arith.constant 0 : i32
    %c0_i32_1 = arith.constant 0 : i32
    return %c0_i32, %c0_i32_0 : i32, i32
  }
  func.func @transform_51(%arg0: i32) -> (i32, i32, i32) {
    %c0_i32 = arith.constant 0 : i32
    %c0_i32_0 = arith.constant 0 : i32
    %c0_i32_1 = arith.constant 0 : i32
    return %arg0, %c0_i32, %c0_i32_0 : i32, i32, i32
  }
}

</mosaic_0001>

<llo_original>
// kernel: tpu_custom_call.1
$region0: #{tpu_custom_call.1}
  #allocation0 [shape = 'u32[]', space=smem, size = 0x4, offset = 0x4, fixed_abs, tag = 'smem constant byte address 0x4 - core index']
  #allocation1 [shape = 'u32[144,128]{1,0:T(1,128)}', space=vmem, size = 0x12000, scoped, tag = 'internal scratch']
  #allocation2 [shape = 'f32[1,1]{1,0:T(1,128)S(1)}', space=vmem, size = 0x200, scoped, tag = 'scoped memory for tpu_custom_call.1']
  #allocation3 [shape = 'f32[1,1]{1,0:T(1,128)S(1)}', space=vmem, size = 0x200, scoped, tag = 'scoped memory for tpu_custom_call.1']
  %s0 = inlined_call_operand.smem [shape: u32[52], index: -1, kind: input, shape index: {}]
  %s1 = sld [smem:[%s0]]
  %s2 = scalar_lea.smem %s0, 1
  %s3 = sld [smem:[%s2]]
  %s4 = scalar_lea.smem %s0, 2
  %s5 = sld [smem:[%s4]]
  %s6 = scalar_lea.smem %s0, 3
  %s7 = sld [smem:[%s6]]
  %s8 = scalar_lea.smem %s0, 4
  %s9 = sld [smem:[%s8]]
  %s10 = scalar_lea.smem %s0, 5
  %s11 = sld [smem:[%s10]]
  %s12 = scalar_lea.smem %s0, 6
  %s13 = sld [smem:[%s12]]
  %s14 = scalar_lea.smem %s0, 7
  %s15 = sld [smem:[%s14]]
  %s16 = scalar_lea.smem %s0, 8
  %s17 = sld [smem:[%s16]]
  %s18 = scalar_lea.smem %s0, 9
  %s19 = sld [smem:[%s18]]
  %s20 = scalar_lea.smem %s0, 10
  %s21 = sld [smem:[%s20]]
  %s22 = scalar_lea.smem %s0, 11
  %s23 = sld [smem:[%s22]]
  %s24 = scalar_lea.smem %s0, 12
  %s25 = sld [smem:[%s24]]
  %s26 = scalar_lea.smem %s0, 13
  %s27 = sld [smem:[%s26]]
  %s28 = scalar_lea.smem %s0, 14
  %s29 = sld [smem:[%s28]]
  %s30 = scalar_lea.smem %s0, 15
  %s31 = sld [smem:[%s30]]
  %s32 = scalar_lea.smem %s0, 16
  %s33 = sld [smem:[%s32]]
  %s34 = scalar_lea.smem %s0, 17
  %s35 = sld [smem:[%s34]]
  %s36 = scalar_lea.smem %s0, 18
  %s37 = sld [smem:[%s36]]
  %s38 = scalar_lea.smem %s0, 19
  %s39 = sld [smem:[%s38]]
  %s40 = scalar_lea.smem %s0, 20
  %s41 = sld [smem:[%s40]]
  %s42 = scalar_lea.smem %s0, 21
  %s43 = sld [smem:[%s42]]
  %s44 = scalar_lea.smem %s0, 22
  %s45 = sld [smem:[%s44]]
  %s46 = scalar_lea.smem %s0, 23
  %s47 = sld [smem:[%s46]]
  %s48 = scalar_lea.smem %s0, 24
  %s49 = sld [smem:[%s48]]
  %s50 = scalar_lea.smem %s0, 25
  %s51 = sld [smem:[%s50]]
  %s52 = scalar_lea.smem %s0, 26
  %s53 = sld [smem:[%s52]]
  %s54 = scalar_lea.smem %s0, 27
  %s55 = sld [smem:[%s54]]
  %s56 = scalar_lea.smem %s0, 28
  %s57 = sld [smem:[%s56]]
  %s58 = scalar_lea.smem %s0, 29
  %s59 = sld [smem:[%s58]]
  %s60 = scalar_lea.smem %s0, 30
  %s61 = sld [smem:[%s60]]
  %s62 = scalar_lea.smem %s0, 31
  %s63 = sld [smem:[%s62]]
  %s64 = scalar_lea.smem %s0, 32
  %s65 = sld [smem:[%s64]]
  %s66 = scalar_lea.smem %s0, 33
  %s67 = sld [smem:[%s66]]
  %s68 = scalar_lea.smem %s0, 34
  %s69 = sld [smem:[%s68]]
  %s70 = scalar_lea.smem %s0, 35
  %s71 = sld [smem:[%s70]]
  %s72 = scalar_lea.smem %s0, 36
  %s73 = sld [smem:[%s72]]
  %s74 = scalar_lea.smem %s0, 37
  %s75 = sld [smem:[%s74]]
  %s76 = scalar_lea.smem %s0, 38
  %s77 = sld [smem:[%s76]]
  %s78 = scalar_lea.smem %s0, 39
  %s79 = sld [smem:[%s78]]
  %s80 = scalar_lea.smem %s0, 40
  %s81 = sld [smem:[%s80]]
  %s82 = scalar_lea.smem %s0, 41
  %s83 = sld [smem:[%s82]]
  %s84 = scalar_lea.smem %s0, 42
  %s85 = sld [smem:[%s84]]
  %s86 = scalar_lea.smem %s0, 43
  %s87 = sld [smem:[%s86]]
  %s88 = scalar_lea.smem %s0, 44
  %s89 = sld [smem:[%s88]]
  %s90 = scalar_lea.smem %s0, 45
  %s91 = sld [smem:[%s90]]
  %s92 = scalar_lea.smem %s0, 46
  %s93 = sld [smem:[%s92]]
  %s94 = scalar_lea.smem %s0, 47
  %s95 = sld [smem:[%s94]]
  %s96 = scalar_lea.smem %s0, 48
  %s97 = sld [smem:[%s96]]
  %s98 = scalar_lea.smem %s0, 49
  %s99 = sld [smem:[%s98]]
  %s100 = scalar_lea.smem %s0, 50
  %s101 = sld [smem:[%s100]]
  %s102 = scalar_lea.smem %s0, 51
  %s103 = sld [smem:[%s102]]
  %s104 = sld [smem:[#allocation0]]
  $region337: #{tpu_custom_call.1} parent=0
    _
  %s106 = ssub.s32 1, %s104
  %s107 = scalar_select 0, %s106, %s104
  %v108 = vstv %s73
  %109 = vst [vmem:[#allocation2] sm:$0x1] %v108
  %v110 = vstv %s101
  %111 = vst [vmem:[#allocation3] sm:$0x1] %v110
  $region1: #{tpu_custom_call.1} parent=0
    #allocation4 [shape = 'u8[512]{0}', space=vmem, size = 0x400, scoped, tag = 'input window, operand 4, single buffered']
    #allocation5 [shape = 's32[2]{0}', space=sflag, size = 0x8, scoped, tag = 'scoped memory for tpu_custom_call.1']
    #allocation6 [shape = 'u8[512]{0}', space=vmem, size = 0x400, scoped, tag = 'input window, operand 5, single buffered']
    #allocation7 [shape = 's32[1]{0}', space=sflag, size = 0x4, scoped, tag = 'scoped memory for tpu_custom_call.1']
    #allocation8 [shape = 'u8[512]{0}', space=vmem, size = 0x400, scoped, tag = 'input window, operand 6, single buffered']
    #allocation9 [shape = 'u8[1024]{0}', space=vmem, size = 0x400, scoped, tag = 'input window, operand 7, single buffered']
    #allocation10 [shape = 's32[1]{0}', space=sflag, size = 0x4, scoped, tag = 'scoped memory for tpu_custom_call.1']
    #allocation11 [shape = 'u8[512]{0}', space=vmem, size = 0x400, scoped, tag = 'input window, operand 8, single buffered']
    #allocation12 [shape = 'u8[512]{0}', space=vmem, size = 0x400, scoped, tag = 'input window, operand 9, single buffered']
    #allocation13 [shape = 's32[1]{0}', space=sflag, size = 0x4, scoped, tag = 'scoped memory for tpu_custom_call.1']
    #allocation14 [shape = 'u8[512]{0}', space=vmem, size = 0x400, scoped, tag = 'input window, operand 10, single buffered']
    #allocation15 [shape = 'u8[512]{0}', space=vmem, size = 0x400, scoped, tag = 'input window, operand 12, single buffered']
    #allocation16 [shape = 's32[1]{0}', space=sflag, size = 0x4, scoped, tag = 'scoped memory for tpu_custom_call.1']
    #allocation17 [shape = 'u8[512]{0}', space=vmem, size = 0x400, scoped, tag = 'input window, operand 13, single buffered']
    #allocation18 [shape = 'u8[512]{0}', space=vmem, size = 0x400, scoped, tag = 'input window, operand 14, single buffered']
    #allocation19 [shape = 's32[1]{0}', space=sflag, size = 0x4, scoped, tag = 'scoped memory for tpu_custom_call.1']
    #allocation20 [shape = 'u8[512]{0}', space=vmem, size = 0x400, scoped, tag = 'input window, operand 17, single buffered']
    #allocation21 [shape = 'u8[512]{0}', space=vmem, size = 0x400, scoped, tag = 'input window, operand 18, single buffered']
    #allocation22 [shape = 's32[1]{0}', space=sflag, size = 0x4, scoped, tag = 'scoped memory for tpu_custom_call.1']
    #allocation23 [shape = 'u8[512]{0}', space=vmem, size = 0x400, scoped, tag = 'input window, operand 21, single buffered']
    #allocation24 [shape = 'u8[512]{0}', space=vmem, size = 0x400, scoped, tag = 'input window, operand 22, single buffered']
    #allocation25 [shape = 's32[1]{0}', space=sflag, size = 0x4, scoped, tag = 'scoped memory for tpu_custom_call.1']
    #allocation26 [shape = 'u8[512]{0}', space=vmem, size = 0x400, scoped, tag = 'input window, operand 25, single buffered']
    #allocation27 [shape = 'u8[512]{0}', space=vmem, size = 0x400, scoped, tag = 'input window, operand 26, single buffered']
    #allocation28 [shape = 's32[1]{0}', space=sflag, size = 0x4, scoped, tag = 'scoped memory for tpu_custom_call.1']
    #allocation29 [shape = 'u8[8192]{0}', space=vmem, size = 0x2000, scoped, tag = 'input window, operand 28, single buffered']
    #allocation30 [shape = 'u8[512]{0}', space=vmem, size = 0x400, scoped, tag = 'input window, operand 29, single buffered']
    #allocation31 [shape = 's32[1]{0}', space=sflag, size = 0x4, scoped, tag = 'scoped memory for tpu_custom_call.1']
    #allocation32 [shape = 'u8[512]{0}', space=vmem, size = 0x400, scoped, tag = 'input window, operand 30, single buffered']
    #allocation33 [shape = 'u8[512]{0}', space=vmem, size = 0x400, scoped, tag = 'input window, operand 32, single buffered']
    #allocation34 [shape = 's32[1]{0}', space=sflag, size = 0x4, scoped, tag = 'scoped memory for tpu_custom_call.1']
    #allocation35 [shape = 'u8[512]{0}', space=vmem, size = 0x400, scoped, tag = 'input window, operand 33, single buffered']
    #allocation36 [shape = 'u8[512]{0}', space=vmem, size = 0x400, scoped, tag = 'input window, operand 34, single buffered']
    #allocation37 [shape = 's32[1]{0}', space=sflag, size = 0x4, scoped, tag = 'scoped memory for tpu_custom_call.1']
    #allocation38 [shape = 'u8[512]{0}', space=vmem, size = 0x400, scoped, tag = 'input window, operand 35, single buffered']
    #allocation39 [shape = 'u8[512]{0}', space=vmem, size = 0x400, scoped, tag = 'input window, operand 39, single buffered']
    #allocation40 [shape = 's32[1]{0}', space=sflag, size = 0x4, scoped, tag = 'scoped memory for tpu_custom_call.1']
    #allocation41 [shape = 'u8[512]{0}', space=vmem, size = 0x400, scoped, tag = 'input window, operand 40, single buffered']
    %112 = vsyncpa [#allocation5], 0
    %113 = vsyncpa [#allocation7], 0
    %114 = vsyncpa [#allocation10], 0
    %115 = vsyncpa [#allocation13], 0
    %116 = vsyncpa [#allocation16], 0
    %117 = vsyncpa [#allocation19], 0
    %118 = vsyncpa [#allocation22], 0
    %119 = vsyncpa [#allocation25], 0
    %120 = vsyncpa [#allocation28], 0
    %121 = vsyncpa [#allocation31], 0
    %122 = vsyncpa [#allocation34], 0
    %123 = vsyncpa [#allocation37], 0
    %124 = vsyncpa [#allocation40], 0
    loop: start=0, step=1, limit=4
    $region2: #{tpu_custom_call.1} parent=1 // loop_pre_header
      _
    $region3: #{tpu_custom_call.1} parent=1 // loop_header
      %s126 = sphi 0, %s130
      %p127 = scmp.ge.s32.totalorder %s126, 4
      %s136 = sphi 0, %s138
      %s139 = sphi 0, %s136
      %s140 = sphi 0, %s139
      %s156 = sphi 0, %s140
      %s162 = sphi 0, %s164
      %s165 = sphi 0, %s162
      %s166 = sphi 0, %s165
      %s182 = sphi 0, %s166
      %s186 = sphi 0, %s186
      %s188 = sphi 0, %s186
      %s189 = sphi 0, %s188
      %s203 = sphi 0, %s189
      %s207 = sphi 0, %s207
      %s209 = sphi 0, %s207
      %s210 = sphi 0, %s209
      %s224 = sphi 0, %s210
      %s228 = sphi 0, %s228
      %s230 = sphi 0, %s228
      %s231 = sphi 0, %s230
      %s245 = sphi 0, %s231
      %s249 = sphi 0, %s249
      %s251 = sphi 0, %s249
      %s252 = sphi 0, %s251
      %s266 = sphi 0, %s252
      %s270 = sphi 0, %s270
      %s272 = sphi 0, %s270
      %s273 = sphi 0, %s272
      %s287 = sphi 0, %s273
      %s291 = sphi 0, %s291
      %s293 = sphi 0, %s291
      %s294 = sphi 0, %s293
      %s308 = sphi 0, %s294
      %s312 = sphi 0, %s312
      %s314 = sphi 0, %s312
      %s315 = sphi 0, %s314
      %s329 = sphi 0, %s315
      %s333 = sphi 0, %s333
      %s335 = sphi 0, %s333
      %s336 = sphi 0, %s335
      %s350 = sphi 0, %s336
      %s354 = sphi 0, %s354
      %s356 = sphi 0, %s354
      %s357 = sphi 0, %s356
      %s371 = sphi 0, %s357
      %s375 = sphi 0, %s375
      %s377 = sphi 0, %s375
      %s378 = sphi 0, %s377
      %s392 = sphi 0, %s378
      %s396 = sphi 0, %s396
      %s398 = sphi 0, %s396
      %s399 = sphi 0, %s398
      %s413 = sphi 0, %s399
      %s417 = sphi 0, %s417
      %s419 = sphi 0, %s417
      %s420 = sphi 0, %s419
      %s434 = sphi 0, %s420
      %s438 = sphi 0, %s438
      %s440 = sphi 0, %s438
      %s441 = sphi 0, %s440
      %s455 = sphi 0, %s441
      %s459 = sphi 0, %s459
      %s461 = sphi 0, %s459
      %s462 = sphi 0, %s461
      %s476 = sphi 0, %s462
      %s480 = sphi 0, %s480
      %s482 = sphi 0, %s480
      %s483 = sphi 0, %s482
      %s497 = sphi 0, %s483
      %s501 = sphi 0, %s501
      %s503 = sphi 0, %s501
      %s504 = sphi 0, %s503
      %s518 = sphi 0, %s504
      %s522 = sphi 0, %s522
      %s524 = sphi 0, %s522
      %s525 = sphi 0, %s524
      %s539 = sphi 0, %s525
      %s543 = sphi 0, %s543
      %s545 = sphi 0, %s543
      %s546 = sphi 0, %s545
      %s560 = sphi 0, %s546
      %s564 = sphi 0, %s564
      %s566 = sphi 0, %s564
      %s567 = sphi 0, %s566
      %s581 = sphi 0, %s567
      %s585 = sphi 0, %s585
      %s587 = sphi 0, %s585
      %s588 = sphi 0, %s587
      %s602 = sphi 0, %s588
      %s606 = sphi 0, %s606
      %s608 = sphi 0, %s606
      %s609 = sphi 0, %s608
      %s623 = sphi 0, %s609
      %s627 = sphi 0, %s627
      %s629 = sphi 0, %s627
      %s630 = sphi 0, %s629
      %s644 = sphi 0, %s630
      %s648 = sphi 0, %s648
      %s650 = sphi 0, %s648
      %s651 = sphi 0, %s650
      %s665 = sphi 0, %s651
      %s669 = sphi 0, %s669
      %s671 = sphi 0, %s669
      %s672 = sphi 0, %s671
      %s686 = sphi 0, %s672
      %s690 = sphi 0, %s690
      %s692 = sphi 0, %s690
      %s693 = sphi 0, %s692
      %s707 = sphi 0, %s693
      %s711 = sphi 0, %s711
      %s713 = sphi 0, %s711
      %s714 = sphi 0, %s713
      %s728 = sphi 0, %s714
      %s732 = sphi 0, %s732
      %s734 = sphi 0, %s732
      %s735 = sphi 0, %s734
      %s749 = sphi 0, %s735
      %s753 = sphi 0, %s753
      %s755 = sphi 0, %s753
      %s756 = sphi 0, %s755
      %s770 = sphi 0, %s756
      %s774 = sphi 0, %s774
      %s776 = sphi 0, %s774
      %s777 = sphi 0, %s776
      %s791 = sphi 0, %s777
      %s795 = sphi 0, %s795
      %s797 = sphi 0, %s795
      %s798 = sphi 0, %s797
      %s812 = sphi 0, %s798
      %s816 = sphi 0, %s816
      %s818 = sphi 0, %s816
      %s819 = sphi 0, %s818
      %s833 = sphi 0, %s819
      %s837 = sphi 0, %s837
      %s839 = sphi 0, %s837
      %s840 = sphi 0, %s839
      %s854 = sphi 0, %s840
      %s858 = sphi 0, %s858
      %s860 = sphi 0, %s858
      %s861 = sphi 0, %s860
      %s875 = sphi 0, %s861
      %s879 = sphi 0, %s879
      %s881 = sphi 0, %s879
      %s882 = sphi 0, %s881
      %s896 = sphi 0, %s882
      %s900 = sphi 0, %s900
      %s902 = sphi 0, %s900
      %s903 = sphi 0, %s902
      %s917 = sphi 0, %s903
      %s921 = sphi 0, %s921
      %s923 = sphi 0, %s921
      %s924 = sphi 0, %s923
      %s938 = sphi 0, %s924
      %s942 = sphi 0, %s942
      %s944 = sphi 0, %s942
      %s945 = sphi 0, %s944
      %s959 = sphi 0, %s945
      %s963 = sphi 0, %s963
      %s965 = sphi 0, %s963
      %s966 = sphi 0, %s965
      %s980 = sphi 0, %s966
      %s984 = sphi 0, %s984
      %s986 = sphi 0, %s984
      %s987 = sphi 0, %s986
      %s1001 = sphi 0, %s987
      %s1005 = sphi 0, %s1005
      %s1007 = sphi 0, %s1005
      %s1008 = sphi 0, %s1007
      %s1022 = sphi 0, %s1008
      %s1026 = sphi 0, %s1026
      %s1028 = sphi 0, %s1026
      %s1029 = sphi 0, %s1028
      %s1043 = sphi 0, %s1029
      %s1047 = sphi 0, %s1047
      %s1049 = sphi 0, %s1047
      %s1050 = sphi 0, %s1049
      %s1064 = sphi 0, %s1050
      %s1068 = sphi 0, %s1068
      %s1070 = sphi 0, %s1068
      %s1071 = sphi 0, %s1070
      %s1085 = sphi 0, %s1071
      %s1089 = sphi 0, %s1089
      %s1091 = sphi 0, %s1089
      %s1092 = sphi 0, %s1091
      %s1106 = sphi 0, %s1092
      %s1110 = sphi 0, %s1110
      %s1112 = sphi 0, %s1110
      %s1113 = sphi 0, %s1112
      %s1127 = sphi 0, %s1113
      %s1131 = sphi 0, %s1131
      %s1133 = sphi 0, %s1131
      %s1134 = sphi 0, %s1133
      %s1148 = sphi 0, %s1134
      %s1152 = sphi 0, %s1152
      %s1154 = sphi 0, %s1152
      %s1155 = sphi 0, %s1154
      %s1169 = sphi 0, %s1155
      %s1173 = sphi 0, %s1173
      %s1175 = sphi 0, %s1173
      %s1176 = sphi 0, %s1175
      %s1190 = sphi 0, %s1176
      %s1194 = sphi 0, %s1194
      %s1196 = sphi 0, %s1194
      %s1197 = sphi 0, %s1196
      %s1211 = sphi 0, %s1197
      %s1217 = sphi 0, %s1219
      %s1220 = sphi 0, %s1217
      %s1221 = sphi 0, %s1220
      %s1237 = sphi 0, %s1221
    $region4: #{tpu_custom_call.1} parent=1 // loop_header_branch
      %129 = sbr.rel (%p127) target = $region8
    $region5: #{tpu_custom_call.1} parent=1 // loop_body
      %s131 = ssub.s32 %s126, 1
      %s132 = ssub.s32 %s126, 2
      %s133 = sadd.s32 %s126, 1
      %s134 = ssub.s32 %s126, %s133
      %p135 = scmp.eq.s32.totalorder %s134, 0
      %s137 = sadd.s32 %s136, 1
      %s138 = scalar_select %p135, %s136, %s137
      %p141 = pneg %p135
      %p142 = scmp.eq.s32.totalorder %s126, 1
      %p143 = por %p141, %p142
      %p144 = scmp.ne.s32.totalorder %s136, %s139
      %p145 = scmp.eq.s32.totalorder %s126, 0
      %p146 = por %p144, %p145
      %p147 = scmp.ne.s32.totalorder %s136, %s139
      %p148 = scmp.eq.s32.totalorder %s131, 1
      %p149 = por %p147, %p148
      %p150 = scmp.ne.s32.totalorder %s139, %s140
      %p151 = scmp.eq.s32.totalorder %s131, 0
      %p152 = por %p150, %p151
      %p153 = scmp.ne.s32.totalorder %s139, %s140
      %p154 = scmp.eq.s32.totalorder %s132, 1
      %p155 = por %p153, %p154
      %p157 = scmp.ne.s32.totalorder %s140, %s156
      %p158 = scmp.eq.s32.totalorder %s132, 0
      %p159 = por %p157, %p158
      %s160 = ssub.s32 %s126, %s133
      %p161 = scmp.eq.s32.totalorder %s160, 0
      %s163 = sadd.s32 %s162, 1
      %s164 = scalar_select %p161, %s162, %s163
      %p167 = pneg %p161
      %p168 = scmp.eq.s32.totalorder %s126, 1
      %p169 = por %p167, %p168
      %p170 = scmp.ne.s32.totalorder %s162, %s165
      %p171 = scmp.eq.s32.totalorder %s126, 0
      %p172 = por %p170, %p171
      %p173 = scmp.ne.s32.totalorder %s162, %s165
      %p174 = scmp.eq.s32.totalorder %s131, 1
      %p175 = por %p173, %p174
      %p176 = scmp.ne.s32.totalorder %s165, %s166
      %p177 = scmp.eq.s32.totalorder %s131, 0
      %p178 = por %p176, %p177
      %p179 = scmp.ne.s32.totalorder %s165, %s166
      %p180 = scmp.eq.s32.totalorder %s132, 1
      %p181 = por %p179, %p180
      %p183 = scmp.ne.s32.totalorder %s166, %s182
      %p184 = scmp.eq.s32.totalorder %s132, 0
      %p185 = por %p183, %p184
      %s187 = sadd.s32 %s186, 1
      %p190 = scmp.eq.s32.totalorder %s126, 1
      %p191 = scmp.ne.s32.totalorder %s186, %s188
      %p192 = scmp.eq.s32.totalorder %s126, 0
      %p193 = por %p191, %p192
      %p194 = scmp.ne.s32.totalorder %s186, %s188
      %p195 = scmp.eq.s32.totalorder %s131, 1
      %p196 = por %p194, %p195
      %p197 = scmp.ne.s32.totalorder %s188, %s189
      %p198 = scmp.eq.s32.totalorder %s131, 0
      %p199 = por %p197, %p198
      %p200 = scmp.ne.s32.totalorder %s188, %s189
      %p201 = scmp.eq.s32.totalorder %s132, 1
      %p202 = por %p200, %p201
      %p204 = scmp.ne.s32.totalorder %s189, %s203
      %p205 = scmp.eq.s32.totalorder %s132, 0
      %p206 = por %p204, %p205
      %s208 = sadd.s32 %s207, 1
      %p211 = scmp.eq.s32.totalorder %s126, 1
      %p212 = scmp.ne.s32.totalorder %s207, %s209
      %p213 = scmp.eq.s32.totalorder %s126, 0
      %p214 = por %p212, %p213
      %p215 = scmp.ne.s32.totalorder %s207, %s209
      %p216 = scmp.eq.s32.totalorder %s131, 1
      %p217 = por %p215, %p216
      %p218 = scmp.ne.s32.totalorder %s209, %s210
      %p219 = scmp.eq.s32.totalorder %s131, 0
      %p220 = por %p218, %p219
      %p221 = scmp.ne.s32.totalorder %s209, %s210
      %p222 = scmp.eq.s32.totalorder %s132, 1
      %p223 = por %p221, %p222
      %p225 = scmp.ne.s32.totalorder %s210, %s224
      %p226 = scmp.eq.s32.totalorder %s132, 0
      %p227 = por %p225, %p226
      %s229 = sadd.s32 %s228, 1
      %p232 = scmp.eq.s32.totalorder %s126, 1
      %p233 = scmp.ne.s32.totalorder %s228, %s230
      %p234 = scmp.eq.s32.totalorder %s126, 0
      %p235 = por %p233, %p234
      %p236 = scmp.ne.s32.totalorder %s228, %s230
      %p237 = scmp.eq.s32.totalorder %s131, 1
      %p238 = por %p236, %p237
      %p239 = scmp.ne.s32.totalorder %s230, %s231
      %p240 = scmp.eq.s32.totalorder %s131, 0
      %p241 = por %p239, %p240
      %p242 = scmp.ne.s32.totalorder %s230, %s231
      %p243 = scmp.eq.s32.totalorder %s132, 1
      %p244 = por %p242, %p243
      %p246 = scmp.ne.s32.totalorder %s231, %s245
      %p247 = scmp.eq.s32.totalorder %s132, 0
      %p248 = por %p246, %p247
      %s250 = sadd.s32 %s249, 1
      %p253 = scmp.eq.s32.totalorder %s126, 1
      %p254 = scmp.ne.s32.totalorder %s249, %s251
      %p255 = scmp.eq.s32.totalorder %s126, 0
      %p256 = por %p254, %p255
      %p257 = scmp.ne.s32.totalorder %s249, %s251
      %p258 = scmp.eq.s32.totalorder %s131, 1
      %p259 = por %p257, %p258
      %p260 = scmp.ne.s32.totalorder %s251, %s252
      %p261 = scmp.eq.s32.totalorder %s131, 0
      %p262 = por %p260, %p261
      %p263 = scmp.ne.s32.totalorder %s251, %s252
      %p264 = scmp.eq.s32.totalorder %s132, 1
      %p265 = por %p263, %p264
      %p267 = scmp.ne.s32.totalorder %s252, %s266
      %p268 = scmp.eq.s32.totalorder %s132, 0
      %p269 = por %p267, %p268
      %s271 = sadd.s32 %s270, 1
      %p274 = scmp.eq.s32.totalorder %s126, 1
      %p275 = scmp.ne.s32.totalorder %s270, %s272
      %p276 = scmp.eq.s32.totalorder %s126, 0
      %p277 = por %p275, %p276
      %p278 = scmp.ne.s32.totalorder %s270, %s272
      %p279 = scmp.eq.s32.totalorder %s131, 1
      %p280 = por %p278, %p279
      %p281 = scmp.ne.s32.totalorder %s272, %s273
      %p282 = scmp.eq.s32.totalorder %s131, 0
      %p283 = por %p281, %p282
      %p284 = scmp.ne.s32.totalorder %s272, %s273
      %p285 = scmp.eq.s32.totalorder %s132, 1
      %p286 = por %p284, %p285
      %p288 = scmp.ne.s32.totalorder %s273, %s287
      %p289 = scmp.eq.s32.totalorder %s132, 0
      %p290 = por %p288, %p289
      %s292 = sadd.s32 %s291, 1
      %p295 = scmp.eq.s32.totalorder %s126, 1
      %p296 = scmp.ne.s32.totalorder %s291, %s293
      %p297 = scmp.eq.s32.totalorder %s126, 0
      %p298 = por %p296, %p297
      %p299 = scmp.ne.s32.totalorder %s291, %s293
      %p300 = scmp.eq.s32.totalorder %s131, 1
      %p301 = por %p299, %p300
      %p302 = scmp.ne.s32.totalorder %s293, %s294
      %p303 = scmp.eq.s32.totalorder %s131, 0
      %p304 = por %p302, %p303
      %p305 = scmp.ne.s32.totalorder %s293, %s294
      %p306 = scmp.eq.s32.totalorder %s132, 1
      %p307 = por %p305, %p306
      %p309 = scmp.ne.s32.totalorder %s294, %s308
      %p310 = scmp.eq.s32.totalorder %s132, 0
      %p311 = por %p309, %p310
      %s313 = sadd.s32 %s312, 1
      %p316 = scmp.eq.s32.totalorder %s126, 1
      %p317 = scmp.ne.s32.totalorder %s312, %s314
      %p318 = scmp.eq.s32.totalorder %s126, 0
      %p319 = por %p317, %p318
      %p320 = scmp.ne.s32.totalorder %s312, %s314
      %p321 = scmp.eq.s32.totalorder %s131, 1
      %p322 = por %p320, %p321
      %p323 = scmp.ne.s32.totalorder %s314, %s315
      %p324 = scmp.eq.s32.totalorder %s131, 0
      %p325 = por %p323, %p324
      %p326 = scmp.ne.s32.totalorder %s314, %s315
      %p327 = scmp.eq.s32.totalorder %s132, 1
      %p328 = por %p326, %p327
      %p330 = scmp.ne.s32.totalorder %s315, %s329
      %p331 = scmp.eq.s32.totalorder %s132, 0
      %p332 = por %p330, %p331
      %s334 = sadd.s32 %s333, 1
      %p337 = scmp.eq.s32.totalorder %s126, 1
      %p338 = scmp.ne.s32.totalorder %s333, %s335
      %p339 = scmp.eq.s32.totalorder %s126, 0
      %p340 = por %p338, %p339
      %p341 = scmp.ne.s32.totalorder %s333, %s335
      %p342 = scmp.eq.s32.totalorder %s131, 1
      %p343 = por %p341, %p342
      %p344 = scmp.ne.s32.totalorder %s335, %s336
      %p345 = scmp.eq.s32.totalorder %s131, 0
      %p346 = por %p344, %p345
      %p347 = scmp.ne.s32.totalorder %s335, %s336
      %p348 = scmp.eq.s32.totalorder %s132, 1
      %p349 = por %p347, %p348
      %p351 = scmp.ne.s32.totalorder %s336, %s350
      %p352 = scmp.eq.s32.totalorder %s132, 0
      %p353 = por %p351, %p352
      %s355 = sadd.s32 %s354, 1
      %p358 = scmp.eq.s32.totalorder %s126, 1
      %p359 = scmp.ne.s32.totalorder %s354, %s356
      %p360 = scmp.eq.s32.totalorder %s126, 0
      %p361 = por %p359, %p360
      %p362 = scmp.ne.s32.totalorder %s354, %s356
      %p363 = scmp.eq.s32.totalorder %s131, 1
      %p364 = por %p362, %p363
      %p365 = scmp.ne.s32.totalorder %s356, %s357
      %p366 = scmp.eq.s32.totalorder %s131, 0
      %p367 = por %p365, %p366
      %p368 = scmp.ne.s32.totalorder %s356, %s357
      %p369 = scmp.eq.s32.totalorder %s132, 1
      %p370 = por %p368, %p369
      %p372 = scmp.ne.s32.totalorder %s357, %s371
      %p373 = scmp.eq.s32.totalorder %s132, 0
      %p374 = por %p372, %p373
      %s376 = sadd.s32 %s375, 1
      %p379 = scmp.eq.s32.totalorder %s126, 1
      %p380 = scmp.ne.s32.totalorder %s375, %s377
      %p381 = scmp.eq.s32.totalorder %s126, 0
      %p382 = por %p380, %p381
      %p383 = scmp.ne.s32.totalorder %s375, %s377
      %p384 = scmp.eq.s32.totalorder %s131, 1
      %p385 = por %p383, %p384
      %p386 = scmp.ne.s32.totalorder %s377, %s378
      %p387 = scmp.eq.s32.totalorder %s131, 0
      %p388 = por %p386, %p387
      %p389 = scmp.ne.s32.totalorder %s377, %s378
      %p390 = scmp.eq.s32.totalorder %s132, 1
      %p391 = por %p389, %p390
      %p393 = scmp.ne.s32.totalorder %s378, %s392
      %p394 = scmp.eq.s32.totalorder %s132, 0
      %p395 = por %p393, %p394
      %s397 = sadd.s32 %s396, 1
      %p400 = scmp.eq.s32.totalorder %s126, 1
      %p401 = scmp.ne.s32.totalorder %s396, %s398
      %p402 = scmp.eq.s32.totalorder %s126, 0
      %p403 = por %p401, %p402
      %p404 = scmp.ne.s32.totalorder %s396, %s398
      %p405 = scmp.eq.s32.totalorder %s131, 1
      %p406 = por %p404, %p405
      %p407 = scmp.ne.s32.totalorder %s398, %s399
      %p408 = scmp.eq.s32.totalorder %s131, 0
      %p409 = por %p407, %p408
      %p410 = scmp.ne.s32.totalorder %s398, %s399
      %p411 = scmp.eq.s32.totalorder %s132, 1
      %p412 = por %p410, %p411
      %p414 = scmp.ne.s32.totalorder %s399, %s413
      %p415 = scmp.eq.s32.totalorder %s132, 0
      %p416 = por %p414, %p415
      %s418 = sadd.s32 %s417, 1
      %p421 = scmp.eq.s32.totalorder %s126, 1
      %p422 = scmp.ne.s32.totalorder %s417, %s419
      %p423 = scmp.eq.s32.totalorder %s126, 0
      %p424 = por %p422, %p423
      %p425 = scmp.ne.s32.totalorder %s417, %s419
      %p426 = scmp.eq.s32.totalorder %s131, 1
      %p427 = por %p425, %p426
      %p428 = scmp.ne.s32.totalorder %s419, %s420
      %p429 = scmp.eq.s32.totalorder %s131, 0
      %p430 = por %p428, %p429
      %p431 = scmp.ne.s32.totalorder %s419, %s420
      %p432 = scmp.eq.s32.totalorder %s132, 1
      %p433 = por %p431, %p432
      %p435 = scmp.ne.s32.totalorder %s420, %s434
      %p436 = scmp.eq.s32.totalorder %s132, 0
      %p437 = por %p435, %p436
      %s439 = sadd.s32 %s438, 1
      %p442 = scmp.eq.s32.totalorder %s126, 1
      %p443 = scmp.ne.s32.totalorder %s438, %s440
      %p444 = scmp.eq.s32.totalorder %s126, 0
      %p445 = por %p443, %p444
      %p446 = scmp.ne.s32.totalorder %s438, %s440
      %p447 = scmp.eq.s32.totalorder %s131, 1
      %p448 = por %p446, %p447
      %p449 = scmp.ne.s32.totalorder %s440, %s441
      %p450 = scmp.eq.s32.totalorder %s131, 0
      %p451 = por %p449, %p450
      %p452 = scmp.ne.s32.totalorder %s440, %s441
      %p453 = scmp.eq.s32.totalorder %s132, 1
      %p454 = por %p452, %p453
      %p456 = scmp.ne.s32.totalorder %s441, %s455
      %p457 = scmp.eq.s32.totalorder %s132, 0
      %p458 = por %p456, %p457
      %s460 = sadd.s32 %s459, 1
      %p463 = scmp.eq.s32.totalorder %s126, 1
      %p464 = scmp.ne.s32.totalorder %s459, %s461
      %p465 = scmp.eq.s32.totalorder %s126, 0
      %p466 = por %p464, %p465
      %p467 = scmp.ne.s32.totalorder %s459, %s461
      %p468 = scmp.eq.s32.totalorder %s131, 1
      %p469 = por %p467, %p468
      %p470 = scmp.ne.s32.totalorder %s461, %s462
      %p471 = scmp.eq.s32.totalorder %s131, 0
      %p472 = por %p470, %p471
      %p473 = scmp.ne.s32.totalorder %s461, %s462
      %p474 = scmp.eq.s32.totalorder %s132, 1
      %p475 = por %p473, %p474
      %p477 = scmp.ne.s32.totalorder %s462, %s476
      %p478 = scmp.eq.s32.totalorder %s132, 0
      %p479 = por %p477, %p478
      %s481 = sadd.s32 %s480, 1
      %p484 = scmp.eq.s32.totalorder %s126, 1
      %p485 = scmp.ne.s32.totalorder %s480, %s482
      %p486 = scmp.eq.s32.totalorder %s126, 0
      %p487 = por %p485, %p486
      %p488 = scmp.ne.s32.totalorder %s480, %s482
      %p489 = scmp.eq.s32.totalorder %s131, 1
      %p490 = por %p488, %p489
      %p491 = scmp.ne.s32.totalorder %s482, %s483
      %p492 = scmp.eq.s32.totalorder %s131, 0
      %p493 = por %p491, %p492
      %p494 = scmp.ne.s32.totalorder %s482, %s483
      %p495 = scmp.eq.s32.totalorder %s132, 1
      %p496 = por %p494, %p495
      %p498 = scmp.ne.s32.totalorder %s483, %s497
      %p499 = scmp.eq.s32.totalorder %s132, 0
      %p500 = por %p498, %p499
      %s502 = sadd.s32 %s501, 1
      %p505 = scmp.eq.s32.totalorder %s126, 1
      %p506 = scmp.ne.s32.totalorder %s501, %s503
      %p507 = scmp.eq.s32.totalorder %s126, 0
      %p508 = por %p506, %p507
      %p509 = scmp.ne.s32.totalorder %s501, %s503
      %p510 = scmp.eq.s32.totalorder %s131, 1
      %p511 = por %p509, %p510
      %p512 = scmp.ne.s32.totalorder %s503, %s504
      %p513 = scmp.eq.s32.totalorder %s131, 0
      %p514 = por %p512, %p513
      %p515 = scmp.ne.s32.totalorder %s503, %s504
      %p516 = scmp.eq.s32.totalorder %s132, 1
      %p517 = por %p515, %p516
      %p519 = scmp.ne.s32.totalorder %s504, %s518
      %p520 = scmp.eq.s32.totalorder %s132, 0
      %p521 = por %p519, %p520
      %s523 = sadd.s32 %s522, 1
      %p526 = scmp.eq.s32.totalorder %s126, 1
      %p527 = scmp.ne.s32.totalorder %s522, %s524
      %p528 = scmp.eq.s32.totalorder %s126, 0
      %p529 = por %p527, %p528
      %p530 = scmp.ne.s32.totalorder %s522, %s524
      %p531 = scmp.eq.s32.totalorder %s131, 1
      %p532 = por %p530, %p531
      %p533 = scmp.ne.s32.totalorder %s524, %s525
      %p534 = scmp.eq.s32.totalorder %s131, 0
      %p535 = por %p533, %p534
      %p536 = scmp.ne.s32.totalorder %s524, %s525
      %p537 = scmp.eq.s32.totalorder %s132, 1
      %p538 = por %p536, %p537
      %p540 = scmp.ne.s32.totalorder %s525, %s539
      %p541 = scmp.eq.s32.totalorder %s132, 0
      %p542 = por %p540, %p541
      %s544 = sadd.s32 %s543, 1
      %p547 = scmp.eq.s32.totalorder %s126, 1
      %p548 = scmp.ne.s32.totalorder %s543, %s545
      %p549 = scmp.eq.s32.totalorder %s126, 0
      %p550 = por %p548, %p549
      %p551 = scmp.ne.s32.totalorder %s543, %s545
      %p552 = scmp.eq.s32.totalorder %s131, 1
      %p553 = por %p551, %p552
      %p554 = scmp.ne.s32.totalorder %s545, %s546
      %p555 = scmp.eq.s32.totalorder %s131, 0
      %p556 = por %p554, %p555
      %p557 = scmp.ne.s32.totalorder %s545, %s546
      %p558 = scmp.eq.s32.totalorder %s132, 1
      %p559 = por %p557, %p558
      %p561 = scmp.ne.s32.totalorder %s546, %s560
      %p562 = scmp.eq.s32.totalorder %s132, 0
      %p563 = por %p561, %p562
      %s565 = sadd.s32 %s564, 1
      %p568 = scmp.eq.s32.totalorder %s126, 1
      %p569 = scmp.ne.s32.totalorder %s564, %s566
      %p570 = scmp.eq.s32.totalorder %s126, 0
      %p571 = por %p569, %p570
      %p572 = scmp.ne.s32.totalorder %s564, %s566
      %p573 = scmp.eq.s32.totalorder %s131, 1
      %p574 = por %p572, %p573
      %p575 = scmp.ne.s32.totalorder %s566, %s567
      %p576 = scmp.eq.s32.totalorder %s131, 0
      %p577 = por %p575, %p576
      %p578 = scmp.ne.s32.totalorder %s566, %s567
      %p579 = scmp.eq.s32.totalorder %s132, 1
      %p580 = por %p578, %p579
      %p582 = scmp.ne.s32.totalorder %s567, %s581
      %p583 = scmp.eq.s32.totalorder %s132, 0
      %p584 = por %p582, %p583
      %s586 = sadd.s32 %s585, 1
      %p589 = scmp.eq.s32.totalorder %s126, 1
      %p590 = scmp.ne.s32.totalorder %s585, %s587
      %p591 = scmp.eq.s32.totalorder %s126, 0
      %p592 = por %p590, %p591
      %p593 = scmp.ne.s32.totalorder %s585, %s587
      %p594 = scmp.eq.s32.totalorder %s131, 1
      %p595 = por %p593, %p594
      %p596 = scmp.ne.s32.totalorder %s587, %s588
      %p597 = scmp.eq.s32.totalorder %s131, 0
      %p598 = por %p596, %p597
      %p599 = scmp.ne.s32.totalorder %s587, %s588
      %p600 = scmp.eq.s32.totalorder %s132, 1
      %p601 = por %p599, %p600
      %p603 = scmp.ne.s32.totalorder %s588, %s602
      %p604 = scmp.eq.s32.totalorder %s132, 0
      %p605 = por %p603, %p604
      %s607 = sadd.s32 %s606, 1
      %p610 = scmp.eq.s32.totalorder %s126, 1
      %p611 = scmp.ne.s32.totalorder %s606, %s608
      %p612 = scmp.eq.s32.totalorder %s126, 0
      %p613 = por %p611, %p612
      %p614 = scmp.ne.s32.totalorder %s606, %s608
      %p615 = scmp.eq.s32.totalorder %s131, 1
      %p616 = por %p614, %p615
      %p617 = scmp.ne.s32.totalorder %s608, %s609
      %p618 = scmp.eq.s32.totalorder %s131, 0
      %p619 = por %p617, %p618
      %p620 = scmp.ne.s32.totalorder %s608, %s609
      %p621 = scmp.eq.s32.totalorder %s132, 1
      %p622 = por %p620, %p621
      %p624 = scmp.ne.s32.totalorder %s609, %s623
      %p625 = scmp.eq.s32.totalorder %s132, 0
      %p626 = por %p624, %p625
      %s628 = sadd.s32 %s627, 1
      %p631 = scmp.eq.s32.totalorder %s126, 1
      %p632 = scmp.ne.s32.totalorder %s627, %s629
      %p633 = scmp.eq.s32.totalorder %s126, 0
      %p634 = por %p632, %p633
      %p635 = scmp.ne.s32.totalorder %s627, %s629
      %p636 = scmp.eq.s32.totalorder %s131, 1
      %p637 = por %p635, %p636
      %p638 = scmp.ne.s32.totalorder %s629, %s630
      %p639 = scmp.eq.s32.totalorder %s131, 0
      %p640 = por %p638, %p639
      %p641 = scmp.ne.s32.totalorder %s629, %s630
      %p642 = scmp.eq.s32.totalorder %s132, 1
      %p643 = por %p641, %p642
      %p645 = scmp.ne.s32.totalorder %s630, %s644
      %p646 = scmp.eq.s32.totalorder %s132, 0
      %p647 = por %p645, %p646
      %s649 = sadd.s32 %s648, 1
      %p652 = scmp.eq.s32.totalorder %s126, 1
      %p653 = scmp.ne.s32.totalorder %s648, %s650
      %p654 = scmp.eq.s32.totalorder %s126, 0
      %p655 = por %p653, %p654
      %p656 = scmp.ne.s32.totalorder %s648, %s650
      %p657 = scmp.eq.s32.totalorder %s131, 1
      %p658 = por %p656, %p657
      %p659 = scmp.ne.s32.totalorder %s650, %s651
      %p660 = scmp.eq.s32.totalorder %s131, 0
      %p661 = por %p659, %p660
      %p662 = scmp.ne.s32.totalorder %s650, %s651
      %p663 = scmp.eq.s32.totalorder %s132, 1
      %p664 = por %p662, %p663
      %p666 = scmp.ne.s32.totalorder %s651, %s665
      %p667 = scmp.eq.s32.totalorder %s132, 0
      %p668 = por %p666, %p667
      %s670 = sadd.s32 %s669, 1
      %p673 = scmp.eq.s32.totalorder %s126, 1
      %p674 = scmp.ne.s32.totalorder %s669, %s671
      %p675 = scmp.eq.s32.totalorder %s126, 0
      %p676 = por %p674, %p675
      %p677 = scmp.ne.s32.totalorder %s669, %s671
      %p678 = scmp.eq.s32.totalorder %s131, 1
      %p679 = por %p677, %p678
      %p680 = scmp.ne.s32.totalorder %s671, %s672
      %p681 = scmp.eq.s32.totalorder %s131, 0
      %p682 = por %p680, %p681
      %p683 = scmp.ne.s32.totalorder %s671, %s672
      %p684 = scmp.eq.s32.totalorder %s132, 1
      %p685 = por %p683, %p684
      %p687 = scmp.ne.s32.totalorder %s672, %s686
      %p688 = scmp.eq.s32.totalorder %s132, 0
      %p689 = por %p687, %p688
      %s691 = sadd.s32 %s690, 1
      %p694 = scmp.eq.s32.totalorder %s126, 1
      %p695 = scmp.ne.s32.totalorder %s690, %s692
      %p696 = scmp.eq.s32.totalorder %s126, 0
      %p697 = por %p695, %p696
      %p698 = scmp.ne.s32.totalorder %s690, %s692
      %p699 = scmp.eq.s32.totalorder %s131, 1
      %p700 = por %p698, %p699
      %p701 = scmp.ne.s32.totalorder %s692, %s693
      %p702 = scmp.eq.s32.totalorder %s131, 0
      %p703 = por %p701, %p702
      %p704 = scmp.ne.s32.totalorder %s692, %s693
      %p705 = scmp.eq.s32.totalorder %s132, 1
      %p706 = por %p704, %p705
      %p708 = scmp.ne.s32.totalorder %s693, %s707
      %p709 = scmp.eq.s32.totalorder %s132, 0
      %p710 = por %p708, %p709
      %s712 = sadd.s32 %s711, 1
      %p715 = scmp.eq.s32.totalorder %s126, 1
      %p716 = scmp.ne.s32.totalorder %s711, %s713
      %p717 = scmp.eq.s32.totalorder %s126, 0
      %p718 = por %p716, %p717
      %p719 = scmp.ne.s32.totalorder %s711, %s713
      %p720 = scmp.eq.s32.totalorder %s131, 1
      %p721 = por %p719, %p720
      %p722 = scmp.ne.s32.totalorder %s713, %s714
      %p723 = scmp.eq.s32.totalorder %s131, 0
      %p724 = por %p722, %p723
      %p725 = scmp.ne.s32.totalorder %s713, %s714
      %p726 = scmp.eq.s32.totalorder %s132, 1
      %p727 = por %p725, %p726
      %p729 = scmp.ne.s32.totalorder %s714, %s728
      %p730 = scmp.eq.s32.totalorder %s132, 0
      %p731 = por %p729, %p730
      %s733 = sadd.s32 %s732, 1
      %p736 = scmp.eq.s32.totalorder %s126, 1
      %p737 = scmp.ne.s32.totalorder %s732, %s734
      %p738 = scmp.eq.s32.totalorder %s126, 0
      %p739 = por %p737, %p738
      %p740 = scmp.ne.s32.totalorder %s732, %s734
      %p741 = scmp.eq.s32.totalorder %s131, 1
      %p742 = por %p740, %p741
      %p743 = scmp.ne.s32.totalorder %s734, %s735
      %p744 = scmp.eq.s32.totalorder %s131, 0
      %p745 = por %p743, %p744
      %p746 = scmp.ne.s32.totalorder %s734, %s735
      %p747 = scmp.eq.s32.totalorder %s132, 1
      %p748 = por %p746, %p747
      %p750 = scmp.ne.s32.totalorder %s735, %s749
      %p751 = scmp.eq.s32.totalorder %s132, 0
      %p752 = por %p750, %p751
      %s754 = sadd.s32 %s753, 1
      %p757 = scmp.eq.s32.totalorder %s126, 1
      %p758 = scmp.ne.s32.totalorder %s753, %s755
      %p759 = scmp.eq.s32.totalorder %s126, 0
      %p760 = por %p758, %p759
      %p761 = scmp.ne.s32.totalorder %s753, %s755
      %p762 = scmp.eq.s32.totalorder %s131, 1
      %p763 = por %p761, %p762
      %p764 = scmp.ne.s32.totalorder %s755, %s756
      %p765 = scmp.eq.s32.totalorder %s131, 0
      %p766 = por %p764, %p765
      %p767 = scmp.ne.s32.totalorder %s755, %s756
      %p768 = scmp.eq.s32.totalorder %s132, 1
      %p769 = por %p767, %p768
      %p771 = scmp.ne.s32.totalorder %s756, %s770
      %p772 = scmp.eq.s32.totalorder %s132, 0
      %p773 = por %p771, %p772
      %s775 = sadd.s32 %s774, 1
      %p778 = scmp.eq.s32.totalorder %s126, 1
      %p779 = scmp.ne.s32.totalorder %s774, %s776
      %p780 = scmp.eq.s32.totalorder %s126, 0
      %p781 = por %p779, %p780
      %p782 = scmp.ne.s32.totalorder %s774, %s776
      %p783 = scmp.eq.s32.totalorder %s131, 1
      %p784 = por %p782, %p783
      %p785 = scmp.ne.s32.totalorder %s776, %s777
      %p786 = scmp.eq.s32.totalorder %s131, 0
      %p787 = por %p785, %p786
      %p788 = scmp.ne.s32.totalorder %s776, %s777
      %p789 = scmp.eq.s32.totalorder %s132, 1
      %p790 = por %p788, %p789
      %p792 = scmp.ne.s32.totalorder %s777, %s791
      %p793 = scmp.eq.s32.totalorder %s132, 0
      %p794 = por %p792, %p793
      %s796 = sadd.s32 %s795, 1
      %p799 = scmp.eq.s32.totalorder %s126, 1
      %p800 = scmp.ne.s32.totalorder %s795, %s797
      %p801 = scmp.eq.s32.totalorder %s126, 0
      %p802 = por %p800, %p801
      %p803 = scmp.ne.s32.totalorder %s795, %s797
      %p804 = scmp.eq.s32.totalorder %s131, 1
      %p805 = por %p803, %p804
      %p806 = scmp.ne.s32.totalorder %s797, %s798
      %p807 = scmp.eq.s32.totalorder %s131, 0
      %p808 = por %p806, %p807
      %p809 = scmp.ne.s32.totalorder %s797, %s798
      %p810 = scmp.eq.s32.totalorder %s132, 1
      %p811 = por %p809, %p810
      %p813 = scmp.ne.s32.totalorder %s798, %s812
      %p814 = scmp.eq.s32.totalorder %s132, 0
      %p815 = por %p813, %p814
      %s817 = sadd.s32 %s816, 1
      %p820 = scmp.eq.s32.totalorder %s126, 1
      %p821 = scmp.ne.s32.totalorder %s816, %s818
      %p822 = scmp.eq.s32.totalorder %s126, 0
      %p823 = por %p821, %p822
      %p824 = scmp.ne.s32.totalorder %s816, %s818
      %p825 = scmp.eq.s32.totalorder %s131, 1
      %p826 = por %p824, %p825
      %p827 = scmp.ne.s32.totalorder %s818, %s819
      %p828 = scmp.eq.s32.totalorder %s131, 0
      %p829 = por %p827, %p828
      %p830 = scmp.ne.s32.totalorder %s818, %s819
      %p831 = scmp.eq.s32.totalorder %s132, 1
      %p832 = por %p830, %p831
      %p834 = scmp.ne.s32.totalorder %s819, %s833
      %p835 = scmp.eq.s32.totalorder %s132, 0
      %p836 = por %p834, %p835
      %s838 = sadd.s32 %s837, 1
      %p841 = scmp.eq.s32.totalorder %s126, 1
      %p842 = scmp.ne.s32.totalorder %s837, %s839
      %p843 = scmp.eq.s32.totalorder %s126, 0
      %p844 = por %p842, %p843
      %p845 = scmp.ne.s32.totalorder %s837, %s839
      %p846 = scmp.eq.s32.totalorder %s131, 1
      %p847 = por %p845, %p846
      %p848 = scmp.ne.s32.totalorder %s839, %s840
      %p849 = scmp.eq.s32.totalorder %s131, 0
      %p850 = por %p848, %p849
      %p851 = scmp.ne.s32.totalorder %s839, %s840
      %p852 = scmp.eq.s32.totalorder %s132, 1
      %p853 = por %p851, %p852
      %p855 = scmp.ne.s32.totalorder %s840, %s854
      %p856 = scmp.eq.s32.totalorder %s132, 0
      %p857 = por %p855, %p856
      %s859 = sadd.s32 %s858, 1
      %p862 = scmp.eq.s32.totalorder %s126, 1
      %p863 = scmp.ne.s32.totalorder %s858, %s860
      %p864 = scmp.eq.s32.totalorder %s126, 0
      %p865 = por %p863, %p864
      %p866 = scmp.ne.s32.totalorder %s858, %s860
      %p867 = scmp.eq.s32.totalorder %s131, 1
      %p868 = por %p866, %p867
      %p869 = scmp.ne.s32.totalorder %s860, %s861
      %p870 = scmp.eq.s32.totalorder %s131, 0
      %p871 = por %p869, %p870
      %p872 = scmp.ne.s32.totalorder %s860, %s861
      %p873 = scmp.eq.s32.totalorder %s132, 1
      %p874 = por %p872, %p873
      %p876 = scmp.ne.s32.totalorder %s861, %s875
      %p877 = scmp.eq.s32.totalorder %s132, 0
      %p878 = por %p876, %p877
      %s880 = sadd.s32 %s879, 1
      %p883 = scmp.eq.s32.totalorder %s126, 1
      %p884 = scmp.ne.s32.totalorder %s879, %s881
      %p885 = scmp.eq.s32.totalorder %s126, 0
      %p886 = por %p884, %p885
      %p887 = scmp.ne.s32.totalorder %s879, %s881
      %p888 = scmp.eq.s32.totalorder %s131, 1
      %p889 = por %p887, %p888
      %p890 = scmp.ne.s32.totalorder %s881, %s882
      %p891 = scmp.eq.s32.totalorder %s131, 0
      %p892 = por %p890, %p891
      %p893 = scmp.ne.s32.totalorder %s881, %s882
      %p894 = scmp.eq.s32.totalorder %s132, 1
      %p895 = por %p893, %p894
      %p897 = scmp.ne.s32.totalorder %s882, %s896
      %p898 = scmp.eq.s32.totalorder %s132, 0
      %p899 = por %p897, %p898
      %s901 = sadd.s32 %s900, 1
      %p904 = scmp.eq.s32.totalorder %s126, 1
      %p905 = scmp.ne.s32.totalorder %s900, %s902
      %p906 = scmp.eq.s32.totalorder %s126, 0
      %p907 = por %p905, %p906
      %p908 = scmp.ne.s32.totalorder %s900, %s902
      %p909 = scmp.eq.s32.totalorder %s131, 1
      %p910 = por %p908, %p909
      %p911 = scmp.ne.s32.totalorder %s902, %s903
      %p912 = scmp.eq.s32.totalorder %s131, 0
      %p913 = por %p911, %p912
      %p914 = scmp.ne.s32.totalorder %s902, %s903
      %p915 = scmp.eq.s32.totalorder %s132, 1
      %p916 = por %p914, %p915
      %p918 = scmp.ne.s32.totalorder %s903, %s917
      %p919 = scmp.eq.s32.totalorder %s132, 0
      %p920 = por %p918, %p919
      %s922 = sadd.s32 %s921, 1
      %p925 = scmp.eq.s32.totalorder %s126, 1
      %p926 = scmp.ne.s32.totalorder %s921, %s923
      %p927 = scmp.eq.s32.totalorder %s126, 0
      %p928 = por %p926, %p927
      %p929 = scmp.ne.s32.totalorder %s921, %s923
      %p930 = scmp.eq.s32.totalorder %s131, 1
      %p931 = por %p929, %p930
      %p932 = scmp.ne.s32.totalorder %s923, %s924
      %p933 = scmp.eq.s32.totalorder %s131, 0
      %p934 = por %p932, %p933
      %p935 = scmp.ne.s32.totalorder %s923, %s924
      %p936 = scmp.eq.s32.totalorder %s132, 1
      %p937 = por %p935, %p936
      %p939 = scmp.ne.s32.totalorder %s924, %s938
      %p940 = scmp.eq.s32.totalorder %s132, 0
      %p941 = por %p939, %p940
      %s943 = sadd.s32 %s942, 1
      %p946 = scmp.eq.s32.totalorder %s126, 1
      %p947 = scmp.ne.s32.totalorder %s942, %s944
      %p948 = scmp.eq.s32.totalorder %s126, 0
      %p949 = por %p947, %p948
      %p950 = scmp.ne.s32.totalorder %s942, %s944
      %p951 = scmp.eq.s32.totalorder %s131, 1
      %p952 = por %p950, %p951
      %p953 = scmp.ne.s32.totalorder %s944, %s945
      %p954 = scmp.eq.s32.totalorder %s131, 0
      %p955 = por %p953, %p954
      %p956 = scmp.ne.s32.totalorder %s944, %s945
      %p957 = scmp.eq.s32.totalorder %s132, 1
      %p958 = por %p956, %p957
      %p960 = scmp.ne.s32.totalorder %s945, %s959
      %p961 = scmp.eq.s32.totalorder %s132, 0
      %p962 = por %p960, %p961
      %s964 = sadd.s32 %s963, 1
      %p967 = scmp.eq.s32.totalorder %s126, 1
      %p968 = scmp.ne.s32.totalorder %s963, %s965
      %p969 = scmp.eq.s32.totalorder %s126, 0
      %p970 = por %p968, %p969
      %p971 = scmp.ne.s32.totalorder %s963, %s965
      %p972 = scmp.eq.s32.totalorder %s131, 1
      %p973 = por %p971, %p972
      %p974 = scmp.ne.s32.totalorder %s965, %s966
      %p975 = scmp.eq.s32.totalorder %s131, 0
      %p976 = por %p974, %p975
      %p977 = scmp.ne.s32.totalorder %s965, %s966
      %p978 = scmp.eq.s32.totalorder %s132, 1
      %p979 = por %p977, %p978
      %p981 = scmp.ne.s32.totalorder %s966, %s980
      %p982 = scmp.eq.s32.totalorder %s132, 0
      %p983 = por %p981, %p982
      %s985 = sadd.s32 %s984, 1
      %p988 = scmp.eq.s32.totalorder %s126, 1
      %p989 = scmp.ne.s32.totalorder %s984, %s986
      %p990 = scmp.eq.s32.totalorder %s126, 0
      %p991 = por %p989, %p990
      %p992 = scmp.ne.s32.totalorder %s984, %s986
      %p993 = scmp.eq.s32.totalorder %s131, 1
      %p994 = por %p992, %p993
      %p995 = scmp.ne.s32.totalorder %s986, %s987
      %p996 = scmp.eq.s32.totalorder %s131, 0
      %p997 = por %p995, %p996
      %p998 = scmp.ne.s32.totalorder %s986, %s987
      %p999 = scmp.eq.s32.totalorder %s132, 1
      %p1000 = por %p998, %p999
      %p1002 = scmp.ne.s32.totalorder %s987, %s1001
      %p1003 = scmp.eq.s32.totalorder %s132, 0
      %p1004 = por %p1002, %p1003
      %s1006 = sadd.s32 %s1005, 1
      %p1009 = scmp.eq.s32.totalorder %s126, 1
      %p1010 = scmp.ne.s32.totalorder %s1005, %s1007
      %p1011 = scmp.eq.s32.totalorder %s126, 0
      %p1012 = por %p1010, %p1011
      %p1013 = scmp.ne.s32.totalorder %s1005, %s1007
      %p1014 = scmp.eq.s32.totalorder %s131, 1
      %p1015 = por %p1013, %p1014
      %p1016 = scmp.ne.s32.totalorder %s1007, %s1008
      %p1017 = scmp.eq.s32.totalorder %s131, 0
      %p1018 = por %p1016, %p1017
      %p1019 = scmp.ne.s32.totalorder %s1007, %s1008
      %p1020 = scmp.eq.s32.totalorder %s132, 1
      %p1021 = por %p1019, %p1020
      %p1023 = scmp.ne.s32.totalorder %s1008, %s1022
      %p1024 = scmp.eq.s32.totalorder %s132, 0
      %p1025 = por %p1023, %p1024
      %s1027 = sadd.s32 %s1026, 1
      %p1030 = scmp.eq.s32.totalorder %s126, 1
      %p1031 = scmp.ne.s32.totalorder %s1026, %s1028
      %p1032 = scmp.eq.s32.totalorder %s126, 0
      %p1033 = por %p1031, %p1032
      %p1034 = scmp.ne.s32.totalorder %s1026, %s1028
      %p1035 = scmp.eq.s32.totalorder %s131, 1
      %p1036 = por %p1034, %p1035
      %p1037 = scmp.ne.s32.totalorder %s1028, %s1029
      %p1038 = scmp.eq.s32.totalorder %s131, 0
      %p1039 = por %p1037, %p1038
      %p1040 = scmp.ne.s32.totalorder %s1028, %s1029
      %p1041 = scmp.eq.s32.totalorder %s132, 1
      %p1042 = por %p1040, %p1041
      %p1044 = scmp.ne.s32.totalorder %s1029, %s1043
      %p1045 = scmp.eq.s32.totalorder %s132, 0
      %p1046 = por %p1044, %p1045
      %s1048 = sadd.s32 %s1047, 1
      %p1051 = scmp.eq.s32.totalorder %s126, 1
      %p1052 = scmp.ne.s32.totalorder %s1047, %s1049
      %p1053 = scmp.eq.s32.totalorder %s126, 0
      %p1054 = por %p1052, %p1053
      %p1055 = scmp.ne.s32.totalorder %s1047, %s1049
      %p1056 = scmp.eq.s32.totalorder %s131, 1
      %p1057 = por %p1055, %p1056
      %p1058 = scmp.ne.s32.totalorder %s1049, %s1050
      %p1059 = scmp.eq.s32.totalorder %s131, 0
      %p1060 = por %p1058, %p1059
      %p1061 = scmp.ne.s32.totalorder %s1049, %s1050
      %p1062 = scmp.eq.s32.totalorder %s132, 1
      %p1063 = por %p1061, %p1062
      %p1065 = scmp.ne.s32.totalorder %s1050, %s1064
      %p1066 = scmp.eq.s32.totalorder %s132, 0
      %p1067 = por %p1065, %p1066
      %s1069 = sadd.s32 %s1068, 1
      %p1072 = scmp.eq.s32.totalorder %s126, 1
      %p1073 = scmp.ne.s32.totalorder %s1068, %s1070
      %p1074 = scmp.eq.s32.totalorder %s126, 0
      %p1075 = por %p1073, %p1074
      %p1076 = scmp.ne.s32.totalorder %s1068, %s1070
      %p1077 = scmp.eq.s32.totalorder %s131, 1
      %p1078 = por %p1076, %p1077
      %p1079 = scmp.ne.s32.totalorder %s1070, %s1071
      %p1080 = scmp.eq.s32.totalorder %s131, 0
      %p1081 = por %p1079, %p1080
      %p1082 = scmp.ne.s32.totalorder %s1070, %s1071
      %p1083 = scmp.eq.s32.totalorder %s132, 1
      %p1084 = por %p1082, %p1083
      %p1086 = scmp.ne.s32.totalorder %s1071, %s1085
      %p1087 = scmp.eq.s32.totalorder %s132, 0
      %p1088 = por %p1086, %p1087
      %s1090 = sadd.s32 %s1089, 1
      %p1093 = scmp.eq.s32.totalorder %s126, 1
      %p1094 = scmp.ne.s32.totalorder %s1089, %s1091
      %p1095 = scmp.eq.s32.totalorder %s126, 0
      %p1096 = por %p1094, %p1095
      %p1097 = scmp.ne.s32.totalorder %s1089, %s1091
      %p1098 = scmp.eq.s32.totalorder %s131, 1
      %p1099 = por %p1097, %p1098
      %p1100 = scmp.ne.s32.totalorder %s1091, %s1092
      %p1101 = scmp.eq.s32.totalorder %s131, 0
      %p1102 = por %p1100, %p1101
      %p1103 = scmp.ne.s32.totalorder %s1091, %s1092
      %p1104 = scmp.eq.s32.totalorder %s132, 1
      %p1105 = por %p1103, %p1104
      %p1107 = scmp.ne.s32.totalorder %s1092, %s1106
      %p1108 = scmp.eq.s32.totalorder %s132, 0
      %p1109 = por %p1107, %p1108
      %s1111 = sadd.s32 %s1110, 1
      %p1114 = scmp.eq.s32.totalorder %s126, 1
      %p1115 = scmp.ne.s32.totalorder %s1110, %s1112
      %p1116 = scmp.eq.s32.totalorder %s126, 0
      %p1117 = por %p1115, %p1116
      %p1118 = scmp.ne.s32.totalorder %s1110, %s1112
      %p1119 = scmp.eq.s32.totalorder %s131, 1
      %p1120 = por %p1118, %p1119
      %p1121 = scmp.ne.s32.totalorder %s1112, %s1113
      %p1122 = scmp.eq.s32.totalorder %s131, 0
      %p1123 = por %p1121, %p1122
      %p1124 = scmp.ne.s32.totalorder %s1112, %s1113
      %p1125 = scmp.eq.s32.totalorder %s132, 1
      %p1126 = por %p1124, %p1125
      %p1128 = scmp.ne.s32.totalorder %s1113, %s1127
      %p1129 = scmp.eq.s32.totalorder %s132, 0
      %p1130 = por %p1128, %p1129
      %s1132 = sadd.s32 %s1131, 1
      %p1135 = scmp.eq.s32.totalorder %s126, 1
      %p1136 = scmp.ne.s32.totalorder %s1131, %s1133
      %p1137 = scmp.eq.s32.totalorder %s126, 0
      %p1138 = por %p1136, %p1137
      %p1139 = scmp.ne.s32.totalorder %s1131, %s1133
      %p1140 = scmp.eq.s32.totalorder %s131, 1
      %p1141 = por %p1139, %p1140
      %p1142 = scmp.ne.s32.totalorder %s1133, %s1134
      %p1143 = scmp.eq.s32.totalorder %s131, 0
      %p1144 = por %p1142, %p1143
      %p1145 = scmp.ne.s32.totalorder %s1133, %s1134
      %p1146 = scmp.eq.s32.totalorder %s132, 1
      %p1147 = por %p1145, %p1146
      %p1149 = scmp.ne.s32.totalorder %s1134, %s1148
      %p1150 = scmp.eq.s32.totalorder %s132, 0
      %p1151 = por %p1149, %p1150
      %s1153 = sadd.s32 %s1152, 1
      %p1156 = scmp.eq.s32.totalorder %s126, 1
      %p1157 = scmp.ne.s32.totalorder %s1152, %s1154
      %p1158 = scmp.eq.s32.totalorder %s126, 0
      %p1159 = por %p1157, %p1158
      %p1160 = scmp.ne.s32.totalorder %s1152, %s1154
      %p1161 = scmp.eq.s32.totalorder %s131, 1
      %p1162 = por %p1160, %p1161
      %p1163 = scmp.ne.s32.totalorder %s1154, %s1155
      %p1164 = scmp.eq.s32.totalorder %s131, 0
      %p1165 = por %p1163, %p1164
      %p1166 = scmp.ne.s32.totalorder %s1154, %s1155
      %p1167 = scmp.eq.s32.totalorder %s132, 1
      %p1168 = por %p1166, %p1167
      %p1170 = scmp.ne.s32.totalorder %s1155, %s1169
      %p1171 = scmp.eq.s32.totalorder %s132, 0
      %p1172 = por %p1170, %p1171
      %s1174 = sadd.s32 %s1173, 1
      %p1177 = scmp.eq.s32.totalorder %s126, 1
      %p1178 = scmp.ne.s32.totalorder %s1173, %s1175
      %p1179 = scmp.eq.s32.totalorder %s126, 0
      %p1180 = por %p1178, %p1179
      %p1181 = scmp.ne.s32.totalorder %s1173, %s1175
      %p1182 = scmp.eq.s32.totalorder %s131, 1
      %p1183 = por %p1181, %p1182
      %p1184 = scmp.ne.s32.totalorder %s1175, %s1176
      %p1185 = scmp.eq.s32.totalorder %s131, 0
      %p1186 = por %p1184, %p1185
      %p1187 = scmp.ne.s32.totalorder %s1175, %s1176
      %p1188 = scmp.eq.s32.totalorder %s132, 1
      %p1189 = por %p1187, %p1188
      %p1191 = scmp.ne.s32.totalorder %s1176, %s1190
      %p1192 = scmp.eq.s32.totalorder %s132, 0
      %p1193 = por %p1191, %p1192
      %s1195 = sadd.s32 %s1194, 1
      %p1198 = scmp.eq.s32.totalorder %s126, 1
      %p1199 = scmp.ne.s32.totalorder %s1194, %s1196
      %p1200 = scmp.eq.s32.totalorder %s126, 0
      %p1201 = por %p1199, %p1200
      %p1202 = scmp.ne.s32.totalorder %s1194, %s1196
      %p1203 = scmp.eq.s32.totalorder %s131, 1
      %p1204 = por %p1202, %p1203
      %p1205 = scmp.ne.s32.totalorder %s1196, %s1197
      %p1206 = scmp.eq.s32.totalorder %s131, 0
      %p1207 = por %p1205, %p1206
      %p1208 = scmp.ne.s32.totalorder %s1196, %s1197
      %p1209 = scmp.eq.s32.totalorder %s132, 1
      %p1210 = por %p1208, %p1209
      %p1212 = scmp.ne.s32.totalorder %s1197, %s1211
      %p1213 = scmp.eq.s32.totalorder %s132, 0
      %p1214 = por %p1212, %p1213
      %s1215 = ssub.s32 %s126, %s133
      %p1216 = scmp.eq.s32.totalorder %s1215, 0
      %s1218 = sadd.s32 %s1217, 1
      %s1219 = scalar_select %p1216, %s1217, %s1218
      %p1222 = pneg %p1216
      %p1223 = scmp.eq.s32.totalorder %s126, 1
      %p1224 = por %p1222, %p1223
      %p1225 = scmp.ne.s32.totalorder %s1217, %s1220
      %p1226 = scmp.eq.s32.totalorder %s126, 0
      %p1227 = por %p1225, %p1226
      %p1228 = scmp.ne.s32.totalorder %s1217, %s1220
      %p1229 = scmp.eq.s32.totalorder %s131, 1
      %p1230 = por %p1228, %p1229
      %p1231 = scmp.ne.s32.totalorder %s1220, %s1221
      %p1232 = scmp.eq.s32.totalorder %s131, 0
      %p1233 = por %p1231, %p1232
      %p1234 = scmp.ne.s32.totalorder %s1220, %s1221
      %p1235 = scmp.eq.s32.totalorder %s132, 1
      %p1236 = por %p1234, %p1235
      %p1238 = scmp.ne.s32.totalorder %s1221, %s1237
      %p1239 = scmp.eq.s32.totalorder %s132, 0
      %p1240 = por %p1238, %p1239
      %p1241 = scmp.le.s32.totalorder 1, %s126
      %p1242 = scmp.lt.s32.totalorder %s126, 3
      %p1243 = pnand %p1241, %p1242
      %p1244 = pneg %p1243
      // Predicated region
      $region9: #{tpu_custom_call.1} parent=5 // pred_check
        _
      $region10: #{tpu_custom_call.1} parent=5 // pred_check_branch
        %1246 = sbr.rel (%p1243) target = $region12
      $region11: #{tpu_custom_call.1} parent=5 // pred_region
        %s1247 = ssub.s32 %s126, 1
        // Predicated region
        $region13: #{tpu_custom_call.1} parent=11 // pred_check
          %p1248 = pneg %p199
        $region14: #{tpu_custom_call.1} parent=11 // pred_check_branch
          %1250 = sbr.rel (%p1248) target = $region16
        $region15: #{tpu_custom_call.1} parent=11 // pred_region
          _
        $region16: #{tpu_custom_call.1} parent=11 // pred_fallthru
          _
        // Predicated region
        $region17: #{tpu_custom_call.1} parent=11 // pred_check
          %p1251 = pneg %p220
        $region18: #{tpu_custom_call.1} parent=11 // pred_check_branch
          %1253 = sbr.rel (%p1251) target = $region20
        $region19: #{tpu_custom_call.1} parent=11 // pred_region
          _
        $region20: #{tpu_custom_call.1} parent=11 // pred_fallthru
          _
        // Predicated region
        $region21: #{tpu_custom_call.1} parent=11 // pred_check
          %p1254 = pneg %p241
        $region22: #{tpu_custom_call.1} parent=11 // pred_check_branch
          %1256 = sbr.rel (%p1254) target = $region24
        $region23: #{tpu_custom_call.1} parent=11 // pred_region
          %s1258 = ssub.s32 16, 16
          %1259 = vsyncadd [#allocation5], %s1258
          %s1261 = sshll.u32 [#allocation4], 4
          %s1262 = int_to_ptr.vmem [resolvable:$true] %s1261
          %1264 = dma.hbm_to_vmem [thread:$0]  %s9, 16, %s1262, [#allocation5]
        $region24: #{tpu_custom_call.1} parent=11 // pred_fallthru
          _
        // Predicated region
        $region25: #{tpu_custom_call.1} parent=11 // pred_check
          %p1265 = pneg %p262
        $region26: #{tpu_custom_call.1} parent=11 // pred_check_branch
          %1267 = sbr.rel (%p1265) target = $region28
        $region27: #{tpu_custom_call.1} parent=11 // pred_region
          %s1269 = ssub.s32 16, 16
          %1270 = vsyncadd [#allocation7], %s1269
          %s1272 = sshll.u32 [#allocation6], 4
          %s1273 = int_to_ptr.vmem [resolvable:$true] %s1272
          %1275 = dma.hbm_to_vmem [thread:$0]  %s11, 16, %s1273, [#allocation7]
        $region28: #{tpu_custom_call.1} parent=11 // pred_fallthru
          _
        // Predicated region
        $region29: #{tpu_custom_call.1} parent=11 // pred_check
          %p1276 = pneg %p283
        $region30: #{tpu_custom_call.1} parent=11 // pred_check_branch
          %1278 = sbr.rel (%p1276) target = $region32
        $region31: #{tpu_custom_call.1} parent=11 // pred_region
          %s1280 = ssub.s32 16, 16
          %1281 = vsyncadd [#allocation7], %s1280
          %s1283 = sshll.u32 [#allocation8], 4
          %s1284 = int_to_ptr.vmem [resolvable:$true] %s1283
          %1286 = dma.hbm_to_vmem [thread:$0]  %s13, 16, %s1284, [#allocation7]
        $region32: #{tpu_custom_call.1} parent=11 // pred_fallthru
          _
        // Predicated region
        $region33: #{tpu_custom_call.1} parent=11 // pred_check
          %p1287 = pneg %p304
        $region34: #{tpu_custom_call.1} parent=11 // pred_check_branch
          %1289 = sbr.rel (%p1287) target = $region36
        $region35: #{tpu_custom_call.1} parent=11 // pred_region
          %s1291 = ssub.s32 32, 32
          %1292 = vsyncadd [#allocation10], %s1291
          %s1294 = sshll.u32 [#allocation9], 4
          %s1295 = int_to_ptr.vmem [resolvable:$true] %s1294
          %1297 = dma.hbm_to_vmem [thread:$0]  %s15, 32, %s1295, [#allocation10]
        $region36: #{tpu_custom_call.1} parent=11 // pred_fallthru
          _
        // Predicated region
        $region37: #{tpu_custom_call.1} parent=11 // pred_check
          %p1298 = pneg %p325
        $region38: #{tpu_custom_call.1} parent=11 // pred_check_branch
          %1300 = sbr.rel (%p1298) target = $region40
        $region39: #{tpu_custom_call.1} parent=11 // pred_region
          %s1302 = ssub.s32 16, 16
          %1303 = vsyncadd [#allocation10], %s1302
          %s1305 = sshll.u32 [#allocation11], 4
          %s1306 = int_to_ptr.vmem [resolvable:$true] %s1305
          %1308 = dma.hbm_to_vmem [thread:$0]  %s17, 16, %s1306, [#allocation10]
        $region40: #{tpu_custom_call.1} parent=11 // pred_fallthru
          _
        // Predicated region
        $region41: #{tpu_custom_call.1} parent=11 // pred_check
          %p1309 = pneg %p346
        $region42: #{tpu_custom_call.1} parent=11 // pred_check_branch
          %1311 = sbr.rel (%p1309) target = $region44
        $region43: #{tpu_custom_call.1} parent=11 // pred_region
          %s1313 = ssub.s32 16, 16
          %1314 = vsyncadd [#allocation13], %s1313
          %s1316 = sshll.u32 [#allocation12], 4
          %s1317 = int_to_ptr.vmem [resolvable:$true] %s1316
          %1319 = dma.hbm_to_vmem [thread:$0]  %s19, 16, %s1317, [#allocation13]
        $region44: #{tpu_custom_call.1} parent=11 // pred_fallthru
          _
        // Predicated region
        $region45: #{tpu_custom_call.1} parent=11 // pred_check
          %p1320 = pneg %p367
        $region46: #{tpu_custom_call.1} parent=11 // pred_check_branch
          %1322 = sbr.rel (%p1320) target = $region48
        $region47: #{tpu_custom_call.1} parent=11 // pred_region
          %s1324 = ssub.s32 16, 16
          %1325 = vsyncadd [#allocation13], %s1324
          %s1327 = sshll.u32 [#allocation14], 4
          %s1328 = int_to_ptr.vmem [resolvable:$true] %s1327
          %1330 = dma.hbm_to_vmem [thread:$0]  %s21, 16, %s1328, [#allocation13]
        $region48: #{tpu_custom_call.1} parent=11 // pred_fallthru
          _
        // Predicated region
        $region49: #{tpu_custom_call.1} parent=11 // pred_check
          %p1331 = pneg %p388
        $region50: #{tpu_custom_call.1} parent=11 // pred_check_branch
          %1333 = sbr.rel (%p1331) target = $region52
        $region51: #{tpu_custom_call.1} parent=11 // pred_region
          _
        $region52: #{tpu_custom_call.1} parent=11 // pred_fallthru
          _
        // Predicated region
        $region53: #{tpu_custom_call.1} parent=11 // pred_check
          %p1334 = pneg %p409
        $region54: #{tpu_custom_call.1} parent=11 // pred_check_branch
          %1336 = sbr.rel (%p1334) target = $region56
        $region55: #{tpu_custom_call.1} parent=11 // pred_region
          %s1338 = ssub.s32 16, 16
          %1339 = vsyncadd [#allocation16], %s1338
          %s1341 = sshll.u32 [#allocation15], 4
          %s1342 = int_to_ptr.vmem [resolvable:$true] %s1341
          %1344 = dma.hbm_to_vmem [thread:$0]  %s25, 16, %s1342, [#allocation16]
        $region56: #{tpu_custom_call.1} parent=11 // pred_fallthru
          _
        // Predicated region
        $region57: #{tpu_custom_call.1} parent=11 // pred_check
          %p1345 = pneg %p430
        $region58: #{tpu_custom_call.1} parent=11 // pred_check_branch
          %1347 = sbr.rel (%p1345) target = $region60
        $region59: #{tpu_custom_call.1} parent=11 // pred_region
          %s1349 = ssub.s32 16, 16
          %1350 = vsyncadd [#allocation16], %s1349
          %s1352 = sshll.u32 [#allocation17], 4
          %s1353 = int_to_ptr.vmem [resolvable:$true] %s1352
          %1355 = dma.hbm_to_vmem [thread:$0]  %s27, 16, %s1353, [#allocation16]
        $region60: #{tpu_custom_call.1} parent=11 // pred_fallthru
          _
        // Predicated region
        $region61: #{tpu_custom_call.1} parent=11 // pred_check
          %p1356 = pneg %p451
        $region62: #{tpu_custom_call.1} parent=11 // pred_check_branch
          %1358 = sbr.rel (%p1356) target = $region64
        $region63: #{tpu_custom_call.1} parent=11 // pred_region
          %s1360 = ssub.s32 16, 16
          %1361 = vsyncadd [#allocation19], %s1360
          %s1363 = sshll.u32 [#allocation18], 4
          %s1364 = int_to_ptr.vmem [resolvable:$true] %s1363
          %1366 = dma.hbm_to_vmem [thread:$0]  %s29, 16, %s1364, [#allocation19]
        $region64: #{tpu_custom_call.1} parent=11 // pred_fallthru
          _
        // Predicated region
        $region65: #{tpu_custom_call.1} parent=11 // pred_check
          %p1367 = pneg %p472
        $region66: #{tpu_custom_call.1} parent=11 // pred_check_branch
          %1369 = sbr.rel (%p1367) target = $region68
        $region67: #{tpu_custom_call.1} parent=11 // pred_region
          _
        $region68: #{tpu_custom_call.1} parent=11 // pred_fallthru
          _
        // Predicated region
        $region69: #{tpu_custom_call.1} parent=11 // pred_check
          %p1370 = pneg %p493
        $region70: #{tpu_custom_call.1} parent=11 // pred_check_branch
          %1372 = sbr.rel (%p1370) target = $region72
        $region71: #{tpu_custom_call.1} parent=11 // pred_region
          _
        $region72: #{tpu_custom_call.1} parent=11 // pred_fallthru
          _
        // Predicated region
        $region73: #{tpu_custom_call.1} parent=11 // pred_check
          %p1373 = pneg %p514
        $region74: #{tpu_custom_call.1} parent=11 // pred_check_branch
          %1375 = sbr.rel (%p1373) target = $region76
        $region75: #{tpu_custom_call.1} parent=11 // pred_region
          %s1377 = ssub.s32 16, 16
          %1378 = vsyncadd [#allocation19], %s1377
          %s1380 = sshll.u32 [#allocation20], 4
          %s1381 = int_to_ptr.vmem [resolvable:$true] %s1380
          %1383 = dma.hbm_to_vmem [thread:$0]  %s35, 16, %s1381, [#allocation19]
        $region76: #{tpu_custom_call.1} parent=11 // pred_fallthru
          _
        // Predicated region
        $region77: #{tpu_custom_call.1} parent=11 // pred_check
          %p1384 = pneg %p535
        $region78: #{tpu_custom_call.1} parent=11 // pred_check_branch
          %1386 = sbr.rel (%p1384) target = $region80
        $region79: #{tpu_custom_call.1} parent=11 // pred_region
          %s1388 = ssub.s32 16, 16
          %1389 = vsyncadd [#allocation22], %s1388
          %s1391 = sshll.u32 [#allocation21], 4
          %s1392 = int_to_ptr.vmem [resolvable:$true] %s1391
          %1394 = dma.hbm_to_vmem [thread:$0]  %s37, 16, %s1392, [#allocation22]
        $region80: #{tpu_custom_call.1} parent=11 // pred_fallthru
          _
        // Predicated region
        $region81: #{tpu_custom_call.1} parent=11 // pred_check
          %p1395 = pneg %p556
        $region82: #{tpu_custom_call.1} parent=11 // pred_check_branch
          %1397 = sbr.rel (%p1395) target = $region84
        $region83: #{tpu_custom_call.1} parent=11 // pred_region
          _
        $region84: #{tpu_custom_call.1} parent=11 // pred_fallthru
          _
        // Predicated region
        $region85: #{tpu_custom_call.1} parent=11 // pred_check
          %p1398 = pneg %p577
        $region86: #{tpu_custom_call.1} parent=11 // pred_check_branch
          %1400 = sbr.rel (%p1398) target = $region88
        $region87: #{tpu_custom_call.1} parent=11 // pred_region
          _
        $region88: #{tpu_custom_call.1} parent=11 // pred_fallthru
          _
        // Predicated region
        $region89: #{tpu_custom_call.1} parent=11 // pred_check
          %p1401 = pneg %p598
        $region90: #{tpu_custom_call.1} parent=11 // pred_check_branch
          %1403 = sbr.rel (%p1401) target = $region92
        $region91: #{tpu_custom_call.1} parent=11 // pred_region
          %s1405 = ssub.s32 16, 16
          %1406 = vsyncadd [#allocation22], %s1405
          %s1408 = sshll.u32 [#allocation23], 4
          %s1409 = int_to_ptr.vmem [resolvable:$true] %s1408
          %1411 = dma.hbm_to_vmem [thread:$0]  %s43, 16, %s1409, [#allocation22]
        $region92: #{tpu_custom_call.1} parent=11 // pred_fallthru
          _
        // Predicated region
        $region93: #{tpu_custom_call.1} parent=11 // pred_check
          %p1412 = pneg %p619
        $region94: #{tpu_custom_call.1} parent=11 // pred_check_branch
          %1414 = sbr.rel (%p1412) target = $region96
        $region95: #{tpu_custom_call.1} parent=11 // pred_region
          %s1416 = ssub.s32 16, 16
          %1417 = vsyncadd [#allocation25], %s1416
          %s1419 = sshll.u32 [#allocation24], 4
          %s1420 = int_to_ptr.vmem [resolvable:$true] %s1419
          %1422 = dma.hbm_to_vmem [thread:$0]  %s45, 16, %s1420, [#allocation25]
        $region96: #{tpu_custom_call.1} parent=11 // pred_fallthru
          _
        // Predicated region
        $region97: #{tpu_custom_call.1} parent=11 // pred_check
          %p1423 = pneg %p640
        $region98: #{tpu_custom_call.1} parent=11 // pred_check_branch
          %1425 = sbr.rel (%p1423) target = $region100
        $region99: #{tpu_custom_call.1} parent=11 // pred_region
          _
        $region100: #{tpu_custom_call.1} parent=11 // pred_fallthru
          _
        // Predicated region
        $region101: #{tpu_custom_call.1} parent=11 // pred_check
          %p1426 = pneg %p661
        $region102: #{tpu_custom_call.1} parent=11 // pred_check_branch
          %1428 = sbr.rel (%p1426) target = $region104
        $region103: #{tpu_custom_call.1} parent=11 // pred_region
          _
        $region104: #{tpu_custom_call.1} parent=11 // pred_fallthru
          _
        // Predicated region
        $region105: #{tpu_custom_call.1} parent=11 // pred_check
          %p1429 = pneg %p682
        $region106: #{tpu_custom_call.1} parent=11 // pred_check_branch
          %1431 = sbr.rel (%p1429) target = $region108
        $region107: #{tpu_custom_call.1} parent=11 // pred_region
          %s1433 = ssub.s32 16, 16
          %1434 = vsyncadd [#allocation25], %s1433
          %s1436 = sshll.u32 [#allocation26], 4
          %s1437 = int_to_ptr.vmem [resolvable:$true] %s1436
          %1439 = dma.hbm_to_vmem [thread:$0]  %s51, 16, %s1437, [#allocation25]
        $region108: #{tpu_custom_call.1} parent=11 // pred_fallthru
          _
        // Predicated region
        $region109: #{tpu_custom_call.1} parent=11 // pred_check
          %p1440 = pneg %p703
        $region110: #{tpu_custom_call.1} parent=11 // pred_check_branch
          %1442 = sbr.rel (%p1440) target = $region112
        $region111: #{tpu_custom_call.1} parent=11 // pred_region
          %s1444 = ssub.s32 16, 16
          %1445 = vsyncadd [#allocation28], %s1444
          %s1447 = sshll.u32 [#allocation27], 4
          %s1448 = int_to_ptr.vmem [resolvable:$true] %s1447
          %1450 = dma.hbm_to_vmem [thread:$0]  %s53, 16, %s1448, [#allocation28]
        $region112: #{tpu_custom_call.1} parent=11 // pred_fallthru
          _
        // Predicated region
        $region113: #{tpu_custom_call.1} parent=11 // pred_check
          %p1451 = pneg %p724
        $region114: #{tpu_custom_call.1} parent=11 // pred_check_branch
          %1453 = sbr.rel (%p1451) target = $region116
        $region115: #{tpu_custom_call.1} parent=11 // pred_region
          _
        $region116: #{tpu_custom_call.1} parent=11 // pred_fallthru
          _
        // Predicated region
        $region117: #{tpu_custom_call.1} parent=11 // pred_check
          %p1454 = pneg %p745
        $region118: #{tpu_custom_call.1} parent=11 // pred_check_branch
          %1456 = sbr.rel (%p1454) target = $region120
        $region119: #{tpu_custom_call.1} parent=11 // pred_region
          %s1458 = ssub.s32 256, 256
          %1459 = vsyncadd [#allocation28], %s1458
          %s1460 = sshll.u32 [#allocation29], 4
          %s1461 = int_to_ptr.vmem [resolvable:$true] %s1460
          %1466 = dma.hbm_to_vmem [thread:$0]  %s57, 256, %s1461, [#allocation28], 64, 64, 4
        $region120: #{tpu_custom_call.1} parent=11 // pred_fallthru
          _
        // Predicated region
        $region121: #{tpu_custom_call.1} parent=11 // pred_check
          %p1467 = pneg %p766
        $region122: #{tpu_custom_call.1} parent=11 // pred_check_branch
          %1469 = sbr.rel (%p1467) target = $region124
        $region123: #{tpu_custom_call.1} parent=11 // pred_region
          %s1471 = ssub.s32 16, 16
          %1472 = vsyncadd [#allocation31], %s1471
          %s1474 = sshll.u32 [#allocation30], 4
          %s1475 = int_to_ptr.vmem [resolvable:$true] %s1474
          %1477 = dma.hbm_to_vmem [thread:$0]  %s59, 16, %s1475, [#allocation31]
        $region124: #{tpu_custom_call.1} parent=11 // pred_fallthru
          _
        // Predicated region
        $region125: #{tpu_custom_call.1} parent=11 // pred_check
          %p1478 = pneg %p787
        $region126: #{tpu_custom_call.1} parent=11 // pred_check_branch
          %1480 = sbr.rel (%p1478) target = $region128
        $region127: #{tpu_custom_call.1} parent=11 // pred_region
          %s1482 = ssub.s32 16, 16
          %1483 = vsyncadd [#allocation31], %s1482
          %s1485 = sshll.u32 [#allocation32], 4
          %s1486 = int_to_ptr.vmem [resolvable:$true] %s1485
          %1488 = dma.hbm_to_vmem [thread:$0]  %s61, 16, %s1486, [#allocation31]
        $region128: #{tpu_custom_call.1} parent=11 // pred_fallthru
          _
        // Predicated region
        $region129: #{tpu_custom_call.1} parent=11 // pred_check
          %p1489 = pneg %p808
        $region130: #{tpu_custom_call.1} parent=11 // pred_check_branch
          %1491 = sbr.rel (%p1489) target = $region132
        $region131: #{tpu_custom_call.1} parent=11 // pred_region
          _
        $region132: #{tpu_custom_call.1} parent=11 // pred_fallthru
          _
        // Predicated region
        $region133: #{tpu_custom_call.1} parent=11 // pred_check
          %p1492 = pneg %p829
        $region134: #{tpu_custom_call.1} parent=11 // pred_check_branch
          %1494 = sbr.rel (%p1492) target = $region136
        $region135: #{tpu_custom_call.1} parent=11 // pred_region
          %s1496 = ssub.s32 16, 16
          %1497 = vsyncadd [#allocation34], %s1496
          %s1499 = sshll.u32 [#allocation33], 4
          %s1500 = int_to_ptr.vmem [resolvable:$true] %s1499
          %1502 = dma.hbm_to_vmem [thread:$0]  %s65, 16, %s1500, [#allocation34]
        $region136: #{tpu_custom_call.1} parent=11 // pred_fallthru
          _
        // Predicated region
        $region137: #{tpu_custom_call.1} parent=11 // pred_check
          %p1503 = pneg %p850
        $region138: #{tpu_custom_call.1} parent=11 // pred_check_branch
          %1505 = sbr.rel (%p1503) target = $region140
        $region139: #{tpu_custom_call.1} parent=11 // pred_region
          %s1507 = ssub.s32 16, 16
          %1508 = vsyncadd [#allocation34], %s1507
          %s1510 = sshll.u32 [#allocation35], 4
          %s1511 = int_to_ptr.vmem [resolvable:$true] %s1510
          %1513 = dma.hbm_to_vmem [thread:$0]  %s67, 16, %s1511, [#allocation34]
        $region140: #{tpu_custom_call.1} parent=11 // pred_fallthru
          _
        // Predicated region
        $region141: #{tpu_custom_call.1} parent=11 // pred_check
          %p1514 = pneg %p871
        $region142: #{tpu_custom_call.1} parent=11 // pred_check_branch
          %1516 = sbr.rel (%p1514) target = $region144
        $region143: #{tpu_custom_call.1} parent=11 // pred_region
          %s1518 = ssub.s32 16, 16
          %1519 = vsyncadd [#allocation37], %s1518
          %s1521 = sshll.u32 [#allocation36], 4
          %s1522 = int_to_ptr.vmem [resolvable:$true] %s1521
          %1524 = dma.hbm_to_vmem [thread:$0]  %s69, 16, %s1522, [#allocation37]
        $region144: #{tpu_custom_call.1} parent=11 // pred_fallthru
          _
        // Predicated region
        $region145: #{tpu_custom_call.1} parent=11 // pred_check
          %p1525 = pneg %p892
        $region146: #{tpu_custom_call.1} parent=11 // pred_check_branch
          %1527 = sbr.rel (%p1525) target = $region148
        $region147: #{tpu_custom_call.1} parent=11 // pred_region
          %s1529 = ssub.s32 16, 16
          %1530 = vsyncadd [#allocation37], %s1529
          %s1532 = sshll.u32 [#allocation38], 4
          %s1533 = int_to_ptr.vmem [resolvable:$true] %s1532
          %1535 = dma.hbm_to_vmem [thread:$0]  %s71, 16, %s1533, [#allocation37]
        $region148: #{tpu_custom_call.1} parent=11 // pred_fallthru
          _
        // Predicated region
        $region149: #{tpu_custom_call.1} parent=11 // pred_check
          %p1536 = pneg %p913
        $region150: #{tpu_custom_call.1} parent=11 // pred_check_branch
          %1538 = sbr.rel (%p1536) target = $region152
        $region151: #{tpu_custom_call.1} parent=11 // pred_region
          _
        $region152: #{tpu_custom_call.1} parent=11 // pred_fallthru
          _
        // Predicated region
        $region153: #{tpu_custom_call.1} parent=11 // pred_check
          %p1539 = pneg %p934
        $region154: #{tpu_custom_call.1} parent=11 // pred_check_branch
          %1541 = sbr.rel (%p1539) target = $region156
        $region155: #{tpu_custom_call.1} parent=11 // pred_region
          _
        $region156: #{tpu_custom_call.1} parent=11 // pred_fallthru
          _
        // Predicated region
        $region157: #{tpu_custom_call.1} parent=11 // pred_check
          %p1542 = pneg %p955
        $region158: #{tpu_custom_call.1} parent=11 // pred_check_branch
          %1544 = sbr.rel (%p1542) target = $region160
        $region159: #{tpu_custom_call.1} parent=11 // pred_region
          _
        $region160: #{tpu_custom_call.1} parent=11 // pred_fallthru
          _
        // Predicated region
        $region161: #{tpu_custom_call.1} parent=11 // pred_check
          %p1545 = pneg %p976
        $region162: #{tpu_custom_call.1} parent=11 // pred_check_branch
          %1547 = sbr.rel (%p1545) target = $region164
        $region163: #{tpu_custom_call.1} parent=11 // pred_region
          %s1549 = ssub.s32 16, 16
          %1550 = vsyncadd [#allocation40], %s1549
          %s1552 = sshll.u32 [#allocation39], 4
          %s1553 = int_to_ptr.vmem [resolvable:$true] %s1552
          %1555 = dma.hbm_to_vmem [thread:$0]  %s79, 16, %s1553, [#allocation40]
        $region164: #{tpu_custom_call.1} parent=11 // pred_fallthru
          _
        // Predicated region
        $region165: #{tpu_custom_call.1} parent=11 // pred_check
          %p1556 = pneg %p997
        $region166: #{tpu_custom_call.1} parent=11 // pred_check_branch
          %1558 = sbr.rel (%p1556) target = $region168
        $region167: #{tpu_custom_call.1} parent=11 // pred_region
          %s1560 = ssub.s32 16, 16
          %1561 = vsyncadd [#allocation40], %s1560
          %s1563 = sshll.u32 [#allocation41], 4
          %s1564 = int_to_ptr.vmem [resolvable:$true] %s1563
          %1566 = dma.hbm_to_vmem [thread:$0]  %s81, 16, %s1564, [#allocation40]
        $region168: #{tpu_custom_call.1} parent=11 // pred_fallthru
          _
        // Predicated region
        $region169: #{tpu_custom_call.1} parent=11 // pred_check
          %p1567 = pneg %p1018
        $region170: #{tpu_custom_call.1} parent=11 // pred_check_branch
          %1569 = sbr.rel (%p1567) target = $region172
        $region171: #{tpu_custom_call.1} parent=11 // pred_region
          _
        $region172: #{tpu_custom_call.1} parent=11 // pred_fallthru
          _
        // Predicated region
        $region173: #{tpu_custom_call.1} parent=11 // pred_check
          %p1570 = pneg %p1039
        $region174: #{tpu_custom_call.1} parent=11 // pred_check_branch
          %1572 = sbr.rel (%p1570) target = $region176
        $region175: #{tpu_custom_call.1} parent=11 // pred_region
          _
        $region176: #{tpu_custom_call.1} parent=11 // pred_fallthru
          _
        // Predicated region
        $region177: #{tpu_custom_call.1} parent=11 // pred_check
          %p1573 = pneg %p1060
        $region178: #{tpu_custom_call.1} parent=11 // pred_check_branch
          %1575 = sbr.rel (%p1573) target = $region180
        $region179: #{tpu_custom_call.1} parent=11 // pred_region
          _
        $region180: #{tpu_custom_call.1} parent=11 // pred_fallthru
          _
        // Predicated region
        $region181: #{tpu_custom_call.1} parent=11 // pred_check
          %p1576 = pneg %p1081
        $region182: #{tpu_custom_call.1} parent=11 // pred_check_branch
          %1578 = sbr.rel (%p1576) target = $region184
        $region183: #{tpu_custom_call.1} parent=11 // pred_region
          _
        $region184: #{tpu_custom_call.1} parent=11 // pred_fallthru
          _
        // Predicated region
        $region185: #{tpu_custom_call.1} parent=11 // pred_check
          %p1579 = pneg %p1102
        $region186: #{tpu_custom_call.1} parent=11 // pred_check_branch
          %1581 = sbr.rel (%p1579) target = $region188
        $region187: #{tpu_custom_call.1} parent=11 // pred_region
          _
        $region188: #{tpu_custom_call.1} parent=11 // pred_fallthru
          _
        // Predicated region
        $region189: #{tpu_custom_call.1} parent=11 // pred_check
          %p1582 = pneg %p1123
        $region190: #{tpu_custom_call.1} parent=11 // pred_check_branch
          %1584 = sbr.rel (%p1582) target = $region192
        $region191: #{tpu_custom_call.1} parent=11 // pred_region
          _
        $region192: #{tpu_custom_call.1} parent=11 // pred_fallthru
          _
        // Predicated region
        $region193: #{tpu_custom_call.1} parent=11 // pred_check
          %p1585 = pneg %p1144
        $region194: #{tpu_custom_call.1} parent=11 // pred_check_branch
          %1587 = sbr.rel (%p1585) target = $region196
        $region195: #{tpu_custom_call.1} parent=11 // pred_region
          _
        $region196: #{tpu_custom_call.1} parent=11 // pred_fallthru
          _
        // Predicated region
        $region197: #{tpu_custom_call.1} parent=11 // pred_check
          %p1588 = pneg %p1165
        $region198: #{tpu_custom_call.1} parent=11 // pred_check_branch
          %1590 = sbr.rel (%p1588) target = $region200
        $region199: #{tpu_custom_call.1} parent=11 // pred_region
          _
        $region200: #{tpu_custom_call.1} parent=11 // pred_fallthru
          _
        // Predicated region
        $region201: #{tpu_custom_call.1} parent=11 // pred_check
          %p1591 = pneg %p1186
        $region202: #{tpu_custom_call.1} parent=11 // pred_check_branch
          %1593 = sbr.rel (%p1591) target = $region204
        $region203: #{tpu_custom_call.1} parent=11 // pred_region
          _
        $region204: #{tpu_custom_call.1} parent=11 // pred_fallthru
          _
        // Predicated region
        $region205: #{tpu_custom_call.1} parent=11 // pred_check
          %p1594 = pneg %p1207
        $region206: #{tpu_custom_call.1} parent=11 // pred_check_branch
          %1596 = sbr.rel (%p1594) target = $region208
        $region207: #{tpu_custom_call.1} parent=11 // pred_region
          _
        $region208: #{tpu_custom_call.1} parent=11 // pred_fallthru
          _
      $region12: #{tpu_custom_call.1} parent=5 // pred_fallthru
        _
      %p1597 = scmp.lt.s32.totalorder %s126, 2
      // Predicated region
      $region209: #{tpu_custom_call.1} parent=5 // pred_check
        %p1598 = pneg %p1597
      $region210: #{tpu_custom_call.1} parent=5 // pred_check_branch
        %1600 = sbr.rel (%p1598) target = $region212
      $region211: #{tpu_custom_call.1} parent=5 // pred_region
        // Predicated region
        $region213: #{tpu_custom_call.1} parent=211 // pred_check
          %p1601 = pneg %p146
        $region214: #{tpu_custom_call.1} parent=211 // pred_check_branch
          %1603 = sbr.rel (%p1601) target = $region216
        $region215: #{tpu_custom_call.1} parent=211 // pred_region
          %p1604 = scmp.lt.s32.totalorder %s126, 1
          %s1605 = scalar_select %p1604, %s126, 1
          %s1606 = smul.addr %s1605, 8
          %s1607 = scalar_lea.vmem %s1, %s1606
        $region216: #{tpu_custom_call.1} parent=211 // pred_fallthru
          _
        // Predicated region
        $region217: #{tpu_custom_call.1} parent=211 // pred_check
          %p1608 = pneg %p172
        $region218: #{tpu_custom_call.1} parent=211 // pred_check_branch
          %1610 = sbr.rel (%p1608) target = $region220
        $region219: #{tpu_custom_call.1} parent=211 // pred_region
          %p1611 = scmp.lt.s32.totalorder %s126, 1
          %s1612 = scalar_select %p1611, %s126, 1
          %s1613 = smul.addr %s1612, 8
          %s1614 = scalar_lea.vmem %s3, %s1613
        $region220: #{tpu_custom_call.1} parent=211 // pred_fallthru
          _
      $region212: #{tpu_custom_call.1} parent=5 // pred_fallthru
        _
      %p1615 = scmp.le.s32.totalorder 1, %s126
      %p1616 = scmp.lt.s32.totalorder %s126, 3
      %p1617 = pnand %p1615, %p1616
      %p1618 = pneg %p1617
      // Predicated region
      $region221: #{tpu_custom_call.1} parent=5 // pred_check
        _
      $region222: #{tpu_custom_call.1} parent=5 // pred_check_branch
        %1620 = sbr.rel (%p1617) target = $region224
      $region223: #{tpu_custom_call.1} parent=5 // pred_region
        %s1621 = ssub.s32 %s126, 1
        // Predicated region
        $region225: #{tpu_custom_call.1} parent=223 // pred_check
          %p1622 = pneg %p241
        $region226: #{tpu_custom_call.1} parent=223 // pred_check_branch
          %1624 = sbr.rel (%p1622) target = $region228
        $region227: #{tpu_custom_call.1} parent=223 // pred_region
          %1625 = dma.done [#allocation5], 16
        $region228: #{tpu_custom_call.1} parent=223 // pred_fallthru
          _
        // Predicated region
        $region229: #{tpu_custom_call.1} parent=223 // pred_check
          %p1626 = pneg %p262
        $region230: #{tpu_custom_call.1} parent=223 // pred_check_branch
          %1628 = sbr.rel (%p1626) target = $region232
        $region231: #{tpu_custom_call.1} parent=223 // pred_region
          %1629 = dma.done [#allocation7], 16
        $region232: #{tpu_custom_call.1} parent=223 // pred_fallthru
          _
        // Predicated region
        $region233: #{tpu_custom_call.1} parent=223 // pred_check
          %p1630 = pneg %p283
        $region234: #{tpu_custom_call.1} parent=223 // pred_check_branch
          %1632 = sbr.rel (%p1630) target = $region236
        $region235: #{tpu_custom_call.1} parent=223 // pred_region
          %1633 = dma.done [#allocation7], 16
        $region236: #{tpu_custom_call.1} parent=223 // pred_fallthru
          _
        // Predicated region
        $region237: #{tpu_custom_call.1} parent=223 // pred_check
          %p1634 = pneg %p304
        $region238: #{tpu_custom_call.1} parent=223 // pred_check_branch
          %1636 = sbr.rel (%p1634) target = $region240
        $region239: #{tpu_custom_call.1} parent=223 // pred_region
          %1637 = dma.done [#allocation10], 32
        $region240: #{tpu_custom_call.1} parent=223 // pred_fallthru
          _
        // Predicated region
        $region241: #{tpu_custom_call.1} parent=223 // pred_check
          %p1638 = pneg %p325
        $region242: #{tpu_custom_call.1} parent=223 // pred_check_branch
          %1640 = sbr.rel (%p1638) target = $region244
        $region243: #{tpu_custom_call.1} parent=223 // pred_region
          %1641 = dma.done [#allocation10], 16
        $region244: #{tpu_custom_call.1} parent=223 // pred_fallthru
          _
        // Predicated region
        $region245: #{tpu_custom_call.1} parent=223 // pred_check
          %p1642 = pneg %p346
        $region246: #{tpu_custom_call.1} parent=223 // pred_check_branch
          %1644 = sbr.rel (%p1642) target = $region248
        $region247: #{tpu_custom_call.1} parent=223 // pred_region
          %1645 = dma.done [#allocation13], 16
        $region248: #{tpu_custom_call.1} parent=223 // pred_fallthru
          _
        // Predicated region
        $region249: #{tpu_custom_call.1} parent=223 // pred_check
          %p1646 = pneg %p367
        $region250: #{tpu_custom_call.1} parent=223 // pred_check_branch
          %1648 = sbr.rel (%p1646) target = $region252
        $region251: #{tpu_custom_call.1} parent=223 // pred_region
          %1649 = dma.done [#allocation13], 16
        $region252: #{tpu_custom_call.1} parent=223 // pred_fallthru
          _
        // Predicated region
        $region253: #{tpu_custom_call.1} parent=223 // pred_check
          %p1650 = pneg %p409
        $region254: #{tpu_custom_call.1} parent=223 // pred_check_branch
          %1652 = sbr.rel (%p1650) target = $region256
        $region255: #{tpu_custom_call.1} parent=223 // pred_region
          %1653 = dma.done [#allocation16], 16
        $region256: #{tpu_custom_call.1} parent=223 // pred_fallthru
          _
        // Predicated region
        $region257: #{tpu_custom_call.1} parent=223 // pred_check
          %p1654 = pneg %p430
        $region258: #{tpu_custom_call.1} parent=223 // pred_check_branch
          %1656 = sbr.rel (%p1654) target = $region260
        $region259: #{tpu_custom_call.1} parent=223 // pred_region
          %1657 = dma.done [#allocation16], 16
        $region260: #{tpu_custom_call.1} parent=223 // pred_fallthru
          _
        // Predicated region
        $region261: #{tpu_custom_call.1} parent=223 // pred_check
          %p1658 = pneg %p451
        $region262: #{tpu_custom_call.1} parent=223 // pred_check_branch
          %1660 = sbr.rel (%p1658) target = $region264
        $region263: #{tpu_custom_call.1} parent=223 // pred_region
          %1661 = dma.done [#allocation19], 16
        $region264: #{tpu_custom_call.1} parent=223 // pred_fallthru
          _
        // Predicated region
        $region265: #{tpu_custom_call.1} parent=223 // pred_check
          %p1662 = pneg %p514
        $region266: #{tpu_custom_call.1} parent=223 // pred_check_branch
          %1664 = sbr.rel (%p1662) target = $region268
        $region267: #{tpu_custom_call.1} parent=223 // pred_region
          %1665 = dma.done [#allocation19], 16
        $region268: #{tpu_custom_call.1} parent=223 // pred_fallthru
          _
        // Predicated region
        $region269: #{tpu_custom_call.1} parent=223 // pred_check
          %p1666 = pneg %p535
        $region270: #{tpu_custom_call.1} parent=223 // pred_check_branch
          %1668 = sbr.rel (%p1666) target = $region272
        $region271: #{tpu_custom_call.1} parent=223 // pred_region
          %1669 = dma.done [#allocation22], 16
        $region272: #{tpu_custom_call.1} parent=223 // pred_fallthru
          _
        // Predicated region
        $region273: #{tpu_custom_call.1} parent=223 // pred_check
          %p1670 = pneg %p598
        $region274: #{tpu_custom_call.1} parent=223 // pred_check_branch
          %1672 = sbr.rel (%p1670) target = $region276
        $region275: #{tpu_custom_call.1} parent=223 // pred_region
          %1673 = dma.done [#allocation22], 16
        $region276: #{tpu_custom_call.1} parent=223 // pred_fallthru
          _
        // Predicated region
        $region277: #{tpu_custom_call.1} parent=223 // pred_check
          %p1674 = pneg %p619
        $region278: #{tpu_custom_call.1} parent=223 // pred_check_branch
          %1676 = sbr.rel (%p1674) target = $region280
        $region279: #{tpu_custom_call.1} parent=223 // pred_region
          %1677 = dma.done [#allocation25], 16
        $region280: #{tpu_custom_call.1} parent=223 // pred_fallthru
          _
        // Predicated region
        $region281: #{tpu_custom_call.1} parent=223 // pred_check
          %p1678 = pneg %p682
        $region282: #{tpu_custom_call.1} parent=223 // pred_check_branch
          %1680 = sbr.rel (%p1678) target = $region284
        $region283: #{tpu_custom_call.1} parent=223 // pred_region
          %1681 = dma.done [#allocation25], 16
        $region284: #{tpu_custom_call.1} parent=223 // pred_fallthru
          _
        // Predicated region
        $region285: #{tpu_custom_call.1} parent=223 // pred_check
          %p1682 = pneg %p703
        $region286: #{tpu_custom_call.1} parent=223 // pred_check_branch
          %1684 = sbr.rel (%p1682) target = $region288
        $region287: #{tpu_custom_call.1} parent=223 // pred_region
          %1685 = dma.done [#allocation28], 16
        $region288: #{tpu_custom_call.1} parent=223 // pred_fallthru
          _
        // Predicated region
        $region289: #{tpu_custom_call.1} parent=223 // pred_check
          %p1686 = pneg %p745
        $region290: #{tpu_custom_call.1} parent=223 // pred_check_branch
          %1688 = sbr.rel (%p1686) target = $region292
        $region291: #{tpu_custom_call.1} parent=223 // pred_region
          %1689 = dma.done [#allocation28], 256
        $region292: #{tpu_custom_call.1} parent=223 // pred_fallthru
          _
        // Predicated region
        $region293: #{tpu_custom_call.1} parent=223 // pred_check
          %p1690 = pneg %p766
        $region294: #{tpu_custom_call.1} parent=223 // pred_check_branch
          %1692 = sbr.rel (%p1690) target = $region296
        $region295: #{tpu_custom_call.1} parent=223 // pred_region
          %1693 = dma.done [#allocation31], 16
        $region296: #{tpu_custom_call.1} parent=223 // pred_fallthru
          _
        // Predicated region
        $region297: #{tpu_custom_call.1} parent=223 // pred_check
          %p1694 = pneg %p787
        $region298: #{tpu_custom_call.1} parent=223 // pred_check_branch
          %1696 = sbr.rel (%p1694) target = $region300
        $region299: #{tpu_custom_call.1} parent=223 // pred_region
          %1697 = dma.done [#allocation31], 16
        $region300: #{tpu_custom_call.1} parent=223 // pred_fallthru
          _
        // Predicated region
        $region301: #{tpu_custom_call.1} parent=223 // pred_check
          %p1698 = pneg %p829
        $region302: #{tpu_custom_call.1} parent=223 // pred_check_branch
          %1700 = sbr.rel (%p1698) target = $region304
        $region303: #{tpu_custom_call.1} parent=223 // pred_region
          %1701 = dma.done [#allocation34], 16
        $region304: #{tpu_custom_call.1} parent=223 // pred_fallthru
          _
        // Predicated region
        $region305: #{tpu_custom_call.1} parent=223 // pred_check
          %p1702 = pneg %p850
        $region306: #{tpu_custom_call.1} parent=223 // pred_check_branch
          %1704 = sbr.rel (%p1702) target = $region308
        $region307: #{tpu_custom_call.1} parent=223 // pred_region
          %1705 = dma.done [#allocation34], 16
        $region308: #{tpu_custom_call.1} parent=223 // pred_fallthru
          _
        // Predicated region
        $region309: #{tpu_custom_call.1} parent=223 // pred_check
          %p1706 = pneg %p871
        $region310: #{tpu_custom_call.1} parent=223 // pred_check_branch
          %1708 = sbr.rel (%p1706) target = $region312
        $region311: #{tpu_custom_call.1} parent=223 // pred_region
          %1709 = dma.done [#allocation37], 16
        $region312: #{tpu_custom_call.1} parent=223 // pred_fallthru
          _
        // Predicated region
        $region313: #{tpu_custom_call.1} parent=223 // pred_check
          %p1710 = pneg %p892
        $region314: #{tpu_custom_call.1} parent=223 // pred_check_branch
          %1712 = sbr.rel (%p1710) target = $region316
        $region315: #{tpu_custom_call.1} parent=223 // pred_region
          %1713 = dma.done [#allocation37], 16
        $region316: #{tpu_custom_call.1} parent=223 // pred_fallthru
          _
        // Predicated region
        $region317: #{tpu_custom_call.1} parent=223 // pred_check
          %p1714 = pneg %p976
        $region318: #{tpu_custom_call.1} parent=223 // pred_check_branch
          %1716 = sbr.rel (%p1714) target = $region320
        $region319: #{tpu_custom_call.1} parent=223 // pred_region
          %1717 = dma.done [#allocation40], 16
        $region320: #{tpu_custom_call.1} parent=223 // pred_fallthru
          _
        // Predicated region
        $region321: #{tpu_custom_call.1} parent=223 // pred_check
          %p1718 = pneg %p997
        $region322: #{tpu_custom_call.1} parent=223 // pred_check_branch
          %1720 = sbr.rel (%p1718) target = $region324
        $region323: #{tpu_custom_call.1} parent=223 // pred_region
          %1721 = dma.done [#allocation40], 16
        $region324: #{tpu_custom_call.1} parent=223 // pred_fallthru
          _
        %p1722 = scmp.lt.s32.totalorder %s131, 1
        %s1723 = scalar_select %p1722, %s131, 1
        %s1724 = smul.addr %s1723, 8
        %s1725 = scalar_lea.vmem %s1, %s1724
        %p1726 = pneg %p152
        %p1727 = pneg %p149
        %p1728 = scmp.lt.s32.totalorder %s131, 1
        %s1729 = scalar_select %p1728, %s131, 1
        %s1730 = smul.addr %s1729, 8
        %s1731 = scalar_lea.vmem %s3, %s1730
        %p1732 = pneg %p178
        %p1733 = pneg %p175
        %p1734 = pneg %p199
        %p1735 = pneg %p196
        %p1736 = pneg %p220
        %p1737 = pneg %p217
        %p1738 = pneg %p241
        %p1739 = pneg %p238
        %p1740 = pneg %p262
        %p1741 = pneg %p259
        %p1742 = pneg %p283
        %p1743 = pneg %p280
        %p1744 = pneg %p304
        %p1745 = pneg %p301
        %p1746 = pneg %p325
        %p1747 = pneg %p322
        %p1748 = pneg %p346
        %p1749 = pneg %p343
        %p1750 = pneg %p367
        %p1751 = pneg %p364
        %p1752 = pneg %p388
        %p1753 = pneg %p385
        %p1754 = pneg %p409
        %p1755 = pneg %p406
        %p1756 = pneg %p430
        %p1757 = pneg %p427
        %p1758 = pneg %p451
        %p1759 = pneg %p448
        %p1760 = pneg %p472
        %p1761 = pneg %p469
        %p1762 = pneg %p493
        %p1763 = pneg %p490
        %p1764 = pneg %p514
        %p1765 = pneg %p511
        %p1766 = pneg %p535
        %p1767 = pneg %p532
        %p1768 = pneg %p556
        %p1769 = pneg %p553
        %p1770 = pneg %p577
        %p1771 = pneg %p574
        %p1772 = pneg %p598
        %p1773 = pneg %p595
        %p1774 = pneg %p619
        %p1775 = pneg %p616
        %p1776 = pneg %p640
        %p1777 = pneg %p637
        %p1778 = pneg %p661
        %p1779 = pneg %p658
        %p1780 = pneg %p682
        %p1781 = pneg %p679
        %p1782 = pneg %p703
        %p1783 = pneg %p700
        %p1784 = pneg %p724
        %p1785 = pneg %p721
        %p1786 = pneg %p745
        %p1787 = pneg %p742
        %p1788 = pneg %p766
        %p1789 = pneg %p763
        %p1790 = pneg %p787
        %p1791 = pneg %p784
        %p1792 = pneg %p808
        %p1793 = pneg %p805
        %p1794 = pneg %p829
        %p1795 = pneg %p826
        %p1796 = pneg %p850
        %p1797 = pneg %p847
        %p1798 = pneg %p871
        %p1799 = pneg %p868
        %p1800 = pneg %p892
        %p1801 = pneg %p889
        %p1802 = pneg %p913
        %p1803 = pneg %p910
        %p1804 = pneg %p934
        %p1805 = pneg %p931
        %p1806 = pneg %p955
        %p1807 = pneg %p952
        %p1808 = pneg %p976
        %p1809 = pneg %p973
        %p1810 = pneg %p997
        %p1811 = pneg %p994
        %p1812 = pneg %p1018
        %p1813 = pneg %p1015
        %p1814 = pneg %p1039
        %p1815 = pneg %p1036
        %p1816 = pneg %p1060
        %p1817 = pneg %p1057
        %p1818 = pneg %p1081
        %p1819 = pneg %p1078
        %p1820 = pneg %p1102
        %p1821 = pneg %p1099
        %p1822 = pneg %p1123
        %p1823 = pneg %p1120
        %p1824 = pneg %p1144
        %p1825 = pneg %p1141
        %p1826 = pneg %p1165
        %p1827 = pneg %p1162
        %p1828 = pneg %p1186
        %p1829 = pneg %p1183
        %p1830 = pneg %p1207
        %p1831 = pneg %p1204
        %p1832 = pneg %p1233
        %p1833 = pneg %p1230
        %p1834 = scmp.lt.s32.totalorder %s131, 1
        %s1835 = scalar_select %p1834, %s131, 1
        %s1836 = smul.addr %s1835, 8
        %s1837 = scalar_lea.vmem %s103, %s1836
        %p1838 = scmp.lt.s32.totalorder %s131, 1
        %s1839 = scalar_select %p1838, %s131, 1
        %s1840 = smul.addr %s1839, 8
        %s1841 = scalar_lea.vmem %s1, %s1840
        %p1842 = scmp.lt.s32.totalorder %s131, 1
        %s1843 = scalar_select %p1842, %s131, 1
        %s1844 = smul.addr %s1843, 8
        %s1845 = scalar_lea.vmem %s3, %s1844
        %p1846 = scmp.lt.s32.totalorder %s131, 1
        %s1847 = scalar_select %p1846, %s131, 1
        %s1848 = smul.addr %s1847, 8
        %s1849 = scalar_lea.vmem %s103, %s1848
        %v1851 = vld [vmem:[%s1841] sm:$0xff]
        %v1852 = vld [vmem:[%s1845] sm:$0xff]
        %v1853 = vld [vmem:[%s5] sm:$0xf]
        %v1854 = vld [vmem:[%s5 + $0x4] sm:$0xf]
        %v1855 = vlaneseq
        %v1856 = vand.u32 %v1855, 127
        %1857 = vset.pattern.permute.xlu0 0
        %1858 = vperm.xlu0 %1857, %v1851
        %v1859 = vpop.permute.xlu0 %1858
        %vm1860 = vcmp.eq.s32.totalorder %v1856, %v1859
        %v1861 = vsel %vm1860, 1, 0
        %v1862 = vcvt.s32.f32 %v1861
        %v1863 = vpack.c.bf16 %v1862, %v1862
        %v1866 = vunpack.c.l.b16 %v1853
        %v1867 = vunpack.c.l.b16 %v1854
        %v1868 = vpack.c.b16 %v1867, %v1866
        %vm1870 = vcmask 130048
        %v1872 = vsel %vm1870, %v1863, 0
        %1874 = vmatprep.subr.bf16.mxu0 0
        %1875 = vmatpush1.bf16.msra.mxu0 %v1868
        %1876 = vmatprep.subr.bf16.mxu0 0
        %1877 = vmatpush1.bf16.msra.mxu0 0
        %1878 = vmatprep.subr.bf16.mxu0 0
        %1879 = vmatpush1.bf16.msra.mxu0 0
        %1880 = vmatprep.subr.bf16.mxu0 0
        %1881 = vmatpush1.bf16.msra.mxu0 0
        %1882 = vmatprep.subr.bf16.mxu0 0
        %1883 = vmatpush1.bf16.msra.mxu0 0
        %1884 = vmatprep.subr.bf16.mxu0 0
        %1885 = vmatpush1.bf16.msra.mxu0 0
        %1886 = vmatprep.subr.bf16.mxu0 0
        %1887 = vmatpush1.bf16.msra.mxu0 0
        %1888 = vmatprep.subr.bf16.mxu0 0
        %1889 = vmatpush1.bf16.msra.mxu0 0
        %1890 = vmatprep.subr.bf16.mxu0 0
        %1891 = vmatpush1.bf16.msra.mxu0 0
        %1892 = vmatprep.subr.bf16.mxu0 0
        %1893 = vmatpush1.bf16.msra.mxu0 0
        %1894 = vmatprep.subr.bf16.mxu0 0
        %1895 = vmatpush1.bf16.msra.mxu0 0
        %1896 = vmatprep.subr.bf16.mxu0 0
        %1897 = vmatpush1.bf16.msra.mxu0 0
        %1898 = vmatprep.subr.bf16.mxu0 0
        %1899 = vmatpush1.bf16.msra.mxu0 0
        %1900 = vmatprep.subr.bf16.mxu0 0
        %1901 = vmatpush1.bf16.msra.mxu0 0
        %1902 = vmatprep.subr.bf16.mxu0 0
        %1903 = vmatpush1.bf16.msra.mxu0 0
        %1904 = vmatprep.subr.bf16.mxu0 0
        %1905 = vmatpush1.bf16.msra.mxu0 0
        %1906 = vmatprep.mubr.bf16.mxu0 0
        %1907 = vmatmul.mubr.bf16.gmra.mrb[0].mxu0 %v1872
        %v1908 = vpop.f32.mrb[0].mxu0
        %v1909 = vadd.f32 0.0, %v1908
        %v1910 = vpop.f32.mrb[0].mxu0
        %v1911 = vpop.f32.mrb[0].mxu0
        %v1912 = vpop.f32.mrb[0].mxu0
        %1913 = vdwg.mxu0
        %1914 = vset.pattern.permute.xlu0 1
        %1915 = vperm.xlu0 %1914, %v1851
        %v1916 = vpop.permute.xlu0 %1915
        %vm1917 = vcmp.eq.s32.totalorder %v1856, %v1916
        %v1918 = vsel %vm1917, 1, 0
        %v1919 = vcvt.s32.f32 %v1918
        %v1920 = vpack.c.bf16 %v1919, %v1919
        %v1922 = vsel %vm1870, %v1920, 0
        %1924 = vmatprep.subr.bf16.mxu0 0
        %1925 = vmatpush1.bf16.msra.mxu0 %v1868
        %1926 = vmatprep.subr.bf16.mxu0 0
        %1927 = vmatpush1.bf16.msra.mxu0 0
        %1928 = vmatprep.subr.bf16.mxu0 0
        %1929 = vmatpush1.bf16.msra.mxu0 0
        %1930 = vmatprep.subr.bf16.mxu0 0
        %1931 = vmatpush1.bf16.msra.mxu0 0
        %1932 = vmatprep.subr.bf16.mxu0 0
        %1933 = vmatpush1.bf16.msra.mxu0 0
        %1934 = vmatprep.subr.bf16.mxu0 0
        %1935 = vmatpush1.bf16.msra.mxu0 0
        %1936 = vmatprep.subr.bf16.mxu0 0
        %1937 = vmatpush1.bf16.msra.mxu0 0
        %1938 = vmatprep.subr.bf16.mxu0 0
        %1939 = vmatpush1.bf16.msra.mxu0 0
        %1940 = vmatprep.subr.bf16.mxu0 0
        %1941 = vmatpush1.bf16.msra.mxu0 0
        %1942 = vmatprep.subr.bf16.mxu0 0
        %1943 = vmatpush1.bf16.msra.mxu0 0
        %1944 = vmatprep.subr.bf16.mxu0 0
        %1945 = vmatpush1.bf16.msra.mxu0 0
        %1946 = vmatprep.subr.bf16.mxu0 0
        %1947 = vmatpush1.bf16.msra.mxu0 0
        %1948 = vmatprep.subr.bf16.mxu0 0
        %1949 = vmatpush1.bf16.msra.mxu0 0
        %1950 = vmatprep.subr.bf16.mxu0 0
        %1951 = vmatpush1.bf16.msra.mxu0 0
        %1952 = vmatprep.subr.bf16.mxu0 0
        %1953 = vmatpush1.bf16.msra.mxu0 0
        %1954 = vmatprep.subr.bf16.mxu0 0
        %1955 = vmatpush1.bf16.msra.mxu0 0
        %1956 = vmatprep.mubr.bf16.mxu0 0
        %1957 = vmatmul.mubr.bf16.gmra.mrb[0].mxu0 %v1922
        %v1958 = vpop.f32.mrb[0].mxu0
        %v1959 = vadd.f32 0.0, %v1958
        %v1960 = vpop.f32.mrb[0].mxu0
        %v1961 = vpop.f32.mrb[0].mxu0
        %v1962 = vpop.f32.mrb[0].mxu0
        %1963 = vdwg.mxu0
        %1964 = vset.pattern.permute.xlu0 2
        %1965 = vperm.xlu0 %1964, %v1851
        %v1966 = vpop.permute.xlu0 %1965
        %vm1967 = vcmp.eq.s32.totalorder %v1856, %v1966
        %v1968 = vsel %vm1967, 1, 0
        %v1969 = vcvt.s32.f32 %v1968
        %v1970 = vpack.c.bf16 %v1969, %v1969
        %v1972 = vsel %vm1870, %v1970, 0
        %1974 = vmatprep.subr.bf16.mxu0 0
        %1975 = vmatpush1.bf16.msra.mxu0 %v1868
        %1976 = vmatprep.subr.bf16.mxu0 0
        %1977 = vmatpush1.bf16.msra.mxu0 0
        %1978 = vmatprep.subr.bf16.mxu0 0
        %1979 = vmatpush1.bf16.msra.mxu0 0
        %1980 = vmatprep.subr.bf16.mxu0 0
        %1981 = vmatpush1.bf16.msra.mxu0 0
        %1982 = vmatprep.subr.bf16.mxu0 0
        %1983 = vmatpush1.bf16.msra.mxu0 0
        %1984 = vmatprep.subr.bf16.mxu0 0
        %1985 = vmatpush1.bf16.msra.mxu0 0
        %1986 = vmatprep.subr.bf16.mxu0 0
        %1987 = vmatpush1.bf16.msra.mxu0 0
        %1988 = vmatprep.subr.bf16.mxu0 0
        %1989 = vmatpush1.bf16.msra.mxu0 0
        %1990 = vmatprep.subr.bf16.mxu0 0
        %1991 = vmatpush1.bf16.msra.mxu0 0
        %1992 = vmatprep.subr.bf16.mxu0 0
        %1993 = vmatpush1.bf16.msra.mxu0 0
        %1994 = vmatprep.subr.bf16.mxu0 0
        %1995 = vmatpush1.bf16.msra.mxu0 0
        %1996 = vmatprep.subr.bf16.mxu0 0
        %1997 = vmatpush1.bf16.msra.mxu0 0
        %1998 = vmatprep.subr.bf16.mxu0 0
        %1999 = vmatpush1.bf16.msra.mxu0 0
        %2000 = vmatprep.subr.bf16.mxu0 0
        %2001 = vmatpush1.bf16.msra.mxu0 0
        %2002 = vmatprep.subr.bf16.mxu0 0
        %2003 = vmatpush1.bf16.msra.mxu0 0
        %2004 = vmatprep.subr.bf16.mxu0 0
        %2005 = vmatpush1.bf16.msra.mxu0 0
        %2006 = vmatprep.mubr.bf16.mxu0 0
        %2007 = vmatmul.mubr.bf16.gmra.mrb[0].mxu0 %v1972
        %v2008 = vpop.f32.mrb[0].mxu0
        %v2009 = vadd.f32 0.0, %v2008
        %v2010 = vpop.f32.mrb[0].mxu0
        %v2011 = vpop.f32.mrb[0].mxu0
        %v2012 = vpop.f32.mrb[0].mxu0
        %2013 = vdwg.mxu0
        %2015 = vrot.lane.b32.xlu0 %v1959, 8
        %v2016 = vpop.permute.xlu0 %2015
        %2019 = vrot.lane.b32.xlu0 %v2009, 16
        %v2020 = vpop.permute.xlu0 %2019
        %vm2022 = vcmask 64512
        %v2023 = vsel %vm2022, %v1909, %v2016
        %v2024 = vsel %vm1870, %v2023, %v2020
        %v2025 = vld [vmem:[%s7] sm:$0xf]
        %v2026 = vld [vmem:[%s7 + $0x4] sm:$0xf]
        %v2027 = vld [vmem:[%s7 + $0x8] sm:$0xf]
        %v2028 = vld [vmem:[#allocation4] sm:$0x1]
        %v2029 = vld [vmem:[#allocation6] sm:$0x1]
        %v2030 = vld [vmem:[#allocation8] sm:$0x1]
        %v2031 = vpack.c.bf16 %v2024, %v2024
        %v2033 = vlaneseq
        %v2034 = vshrl.u32 %v2033, 7
        %v2035 = vsub.s32 0, %v2034
        %v2036 = vrot.slane %v2028, %v2035
        %v2041 = vunpack.c.l.b16 %v2025
        %v2042 = vunpack.c.l.b16 %v2026
        %v2043 = vunpack.c.l.b16 %v2027
        %v2044 = vpack.c.b16 %v2042, %v2041
        %v2045 = vpack.c.b16 %v2043, %v2043
        %vm2047 = vcmask 195584
        %v2049 = vsel %vm2047, %v2031, 0
        %vm2051 = vcmask 1043456
        %v2053 = vsel %vm2051, %v2045, 0
        %2055 = vmatprep.subr.bf16.mxu0 0
        %2056 = vmatpush1.bf16.msra.mxu0 %v2044
        %2057 = vmatprep.subr.bf16.mxu0 0
        %2058 = vmatpush1.bf16.msra.mxu0 %v2053
        %2059 = vmatprep.subr.bf16.mxu0 0
        %2060 = vmatpush1.bf16.msra.mxu0 0
        %2061 = vmatprep.subr.bf16.mxu0 0
        %2062 = vmatpush1.bf16.msra.mxu0 0
        %2063 = vmatprep.subr.bf16.mxu0 0
        %2064 = vmatpush1.bf16.msra.mxu0 0
        %2065 = vmatprep.subr.bf16.mxu0 0
        %2066 = vmatpush1.bf16.msra.mxu0 0
        %2067 = vmatprep.subr.bf16.mxu0 0
        %2068 = vmatpush1.bf16.msra.mxu0 0
        %2069 = vmatprep.subr.bf16.mxu0 0
        %2070 = vmatpush1.bf16.msra.mxu0 0
        %2071 = vmatprep.subr.bf16.mxu0 0
        %2072 = vmatpush1.bf16.msra.mxu0 0
        %2073 = vmatprep.subr.bf16.mxu0 0
        %2074 = vmatpush1.bf16.msra.mxu0 0
        %2075 = vmatprep.subr.bf16.mxu0 0
        %2076 = vmatpush1.bf16.msra.mxu0 0
        %2077 = vmatprep.subr.bf16.mxu0 0
        %2078 = vmatpush1.bf16.msra.mxu0 0
        %2079 = vmatprep.subr.bf16.mxu0 0
        %2080 = vmatpush1.bf16.msra.mxu0 0
        %2081 = vmatprep.subr.bf16.mxu0 0
        %2082 = vmatpush1.bf16.msra.mxu0 0
        %2083 = vmatprep.subr.bf16.mxu0 0
        %2084 = vmatpush1.bf16.msra.mxu0 0
        %2085 = vmatprep.subr.bf16.mxu0 0
        %2086 = vmatpush1.bf16.msra.mxu0 0
        %2087 = vmatprep.mubr.bf16.mxu0 0
        %2088 = vmatmul.mubr.bf16.gmra.mrb[0].mxu0 %v2049
        %v2089 = vpop.f32.mrb[0].mxu0
        %v2090 = vadd.f32 %v2036, %v2089
        %v2091 = vpop.f32.mrb[0].mxu0
        %v2092 = vpop.f32.mrb[0].mxu0
        %v2093 = vpop.f32.mrb[0].mxu0
        %2094 = vdwg.mxu0
        %v2095 = vsel %vm1870, %v2090, 0.0
        %2096 = vadd.xlane.f32.xlu0 %v2095
        %v2097 = vpop.xlane.xlu0 %2096
        %v2098 = vrcp.pop 16.0
        %v2099 = vmul.f32 %v2097, %v2098
        %v2100 = vmul.f32 %v2090, %v2090
        %v2101 = vsel %vm1870, %v2100, 0.0
        %2102 = vadd.xlane.f32.xlu0 %v2101
        %v2103 = vpop.xlane.xlu0 %2102
        %v2104 = vmul.f32 %v2103, %v2098
        %v2105 = vmul.f32 %v2099, %v2099
        %v2106 = vsub.f32 %v2104, %v2105
        %v2107 = vsub.f32 %v2090, %v2099
        %v2108 = vadd.f32 %v2106, 1e-05
        %v2109 = vrsqrt.pop %v2108
        %v2110 = vmul.f32 %v2107, %v2109
        %v2112 = vlaneseq
        %v2113 = vshrl.u32 %v2112, 7
        %v2114 = vsub.s32 0, %v2113
        %v2115 = vrot.slane %v2029, %v2114
        %v2117 = vmul.f32 %v2110, %v2115
        %v2119 = vlaneseq
        %v2120 = vshrl.u32 %v2119, 7
        %v2121 = vsub.s32 0, %v2120
        %v2122 = vrot.slane %v2030, %v2121
        %v2124 = vadd.f32 %v2117, %v2122
        %v2125 = vld [vmem:[#allocation9] sm:$0x3]
        %v2126 = vld [vmem:[#allocation11] sm:$0x1]
        %v2127 = vld [vmem:[#allocation12] sm:$0x1]
        %v2128 = vld [vmem:[#allocation14] sm:$0x1]
        %v2129 = vpack.c.bf16 %v1852, %v1852
        %v2131 = vlaneseq
        %v2132 = vshrl.u32 %v2131, 7
        %v2133 = vsub.s32 0, %v2132
        %v2134 = vrot.slane %v2126, %v2133
        %vm2136 = vcmask 31744
        %v2138 = vsel %vm2136, %v2129, 0
        %vm2140 = vcmask 1041408
        %v2142 = vsel %vm2140, %v2125, 0
        %2144 = vmatprep.subr.bf16.mxu0 0
        %2145 = vmatpush1.bf16.msra.mxu0 %v2142
        %2146 = vmatprep.subr.bf16.mxu0 0
        %2147 = vmatpush1.bf16.msra.mxu0 0
        %2148 = vmatprep.subr.bf16.mxu0 0
        %2149 = vmatpush1.bf16.msra.mxu0 0
        %2150 = vmatprep.subr.bf16.mxu0 0
        %2151 = vmatpush1.bf16.msra.mxu0 0
        %2152 = vmatprep.subr.bf16.mxu0 0
        %2153 = vmatpush1.bf16.msra.mxu0 0
        %2154 = vmatprep.subr.bf16.mxu0 0
        %2155 = vmatpush1.bf16.msra.mxu0 0
        %2156 = vmatprep.subr.bf16.mxu0 0
        %2157 = vmatpush1.bf16.msra.mxu0 0
        %2158 = vmatprep.subr.bf16.mxu0 0
        %2159 = vmatpush1.bf16.msra.mxu0 0
        %2160 = vmatprep.subr.bf16.mxu0 0
        %2161 = vmatpush1.bf16.msra.mxu0 0
        %2162 = vmatprep.subr.bf16.mxu0 0
        %2163 = vmatpush1.bf16.msra.mxu0 0
        %2164 = vmatprep.subr.bf16.mxu0 0
        %2165 = vmatpush1.bf16.msra.mxu0 0
        %2166 = vmatprep.subr.bf16.mxu0 0
        %2167 = vmatpush1.bf16.msra.mxu0 0
        %2168 = vmatprep.subr.bf16.mxu0 0
        %2169 = vmatpush1.bf16.msra.mxu0 0
        %2170 = vmatprep.subr.bf16.mxu0 0
        %2171 = vmatpush1.bf16.msra.mxu0 0
        %2172 = vmatprep.subr.bf16.mxu0 0
        %2173 = vmatpush1.bf16.msra.mxu0 0
        %2174 = vmatprep.subr.bf16.mxu0 0
        %2175 = vmatpush1.bf16.msra.mxu0 0
        %2176 = vmatprep.mubr.bf16.mxu0 0
        %2177 = vmatmul.mubr.bf16.gmra.mrb[0].mxu0 %v2138
        %v2178 = vpop.f32.mrb[0].mxu0
        %v2179 = vadd.f32 %v2134, %v2178
        %v2180 = vpop.f32.mrb[0].mxu0
        %v2181 = vpop.f32.mrb[0].mxu0
        %v2182 = vpop.f32.mrb[0].mxu0
        %2183 = vdwg.mxu0
        %v2184 = vsel %vm1870, %v2179, 0.0
        %2185 = vadd.xlane.f32.xlu0 %v2184
        %v2186 = vpop.xlane.xlu0 %2185
        %v2187 = vmul.f32 %v2186, %v2098
        %v2188 = vmul.f32 %v2179, %v2179
        %v2189 = vsel %vm1870, %v2188, 0.0
        %2190 = vadd.xlane.f32.xlu0 %v2189
        %v2191 = vpop.xlane.xlu0 %2190
        %v2192 = vmul.f32 %v2191, %v2098
        %v2193 = vmul.f32 %v2187, %v2187
        %v2194 = vsub.f32 %v2192, %v2193
        %v2195 = vsub.f32 %v2179, %v2187
        %v2196 = vadd.f32 %v2194, 1e-05
        %v2197 = vrsqrt.pop %v2196
        %v2198 = vmul.f32 %v2195, %v2197
        %v2200 = vlaneseq
        %v2201 = vshrl.u32 %v2200, 7
        %v2202 = vsub.s32 0, %v2201
        %v2203 = vrot.slane %v2127, %v2202
        %v2205 = vmul.f32 %v2198, %v2203
        %v2207 = vlaneseq
        %v2208 = vshrl.u32 %v2207, 7
        %v2209 = vsub.s32 0, %v2208
        %v2210 = vrot.slane %v2128, %v2209
        %v2212 = vadd.f32 %v2205, %v2210
        %2214 = vrot.lane.b32.xlu0 %v2212, 16
        %v2215 = vpop.permute.xlu0 %2214
        %v2217 = vsel %vm1870, %v2124, %v2215
        %v2218 = vld [vmem:[%s23] sm:$0xf]
        %v2219 = vld [vmem:[%s23 + $0x4] sm:$0xf]
        %v2220 = vld [vmem:[%s23 + $0x8] sm:$0xf]
        %v2221 = vld [vmem:[%s23 + $0xc] sm:$0xf]
        %v2222 = vld [vmem:[#allocation15] sm:$0x1]
        %v2223 = vld [vmem:[#allocation17] sm:$0x1]
        %v2224 = vld [vmem:[#allocation18] sm:$0x1]
        %v2225 = vmax.f32 %v2217, 0.0
        %v2226 = vpack.c.bf16 %v2225, %v2225
        %v2228 = vlaneseq
        %v2229 = vshrl.u32 %v2228, 7
        %v2230 = vsub.s32 0, %v2229
        %v2231 = vrot.slane %v2222, %v2230
        %v2237 = vunpack.c.l.b16 %v2218
        %v2238 = vunpack.c.l.b16 %v2219
        %v2239 = vunpack.c.l.b16 %v2220
        %v2240 = vunpack.c.l.b16 %v2221
        %v2241 = vpack.c.b16 %v2238, %v2237
        %v2242 = vpack.c.b16 %v2240, %v2239
        %vm2245 = vcmask 261120
        %v2247 = vsel %vm2245, %v2226, 0
        %2249 = vmatprep.subr.bf16.mxu0 0
        %2250 = vmatpush1.bf16.msra.mxu0 %v2241
        %2251 = vmatprep.subr.bf16.mxu0 0
        %2252 = vmatpush1.bf16.msra.mxu0 %v2242
        %2253 = vmatprep.subr.bf16.mxu0 0
        %2254 = vmatpush1.bf16.msra.mxu0 0
        %2255 = vmatprep.subr.bf16.mxu0 0
        %2256 = vmatpush1.bf16.msra.mxu0 0
        %2257 = vmatprep.subr.bf16.mxu0 0
        %2258 = vmatpush1.bf16.msra.mxu0 0
        %2259 = vmatprep.subr.bf16.mxu0 0
        %2260 = vmatpush1.bf16.msra.mxu0 0
        %2261 = vmatprep.subr.bf16.mxu0 0
        %2262 = vmatpush1.bf16.msra.mxu0 0
        %2263 = vmatprep.subr.bf16.mxu0 0
        %2264 = vmatpush1.bf16.msra.mxu0 0
        %2265 = vmatprep.subr.bf16.mxu0 0
        %2266 = vmatpush1.bf16.msra.mxu0 0
        %2267 = vmatprep.subr.bf16.mxu0 0
        %2268 = vmatpush1.bf16.msra.mxu0 0
        %2269 = vmatprep.subr.bf16.mxu0 0
        %2270 = vmatpush1.bf16.msra.mxu0 0
        %2271 = vmatprep.subr.bf16.mxu0 0
        %2272 = vmatpush1.bf16.msra.mxu0 0
        %2273 = vmatprep.subr.bf16.mxu0 0
        %2274 = vmatpush1.bf16.msra.mxu0 0
        %2275 = vmatprep.subr.bf16.mxu0 0
        %2276 = vmatpush1.bf16.msra.mxu0 0
        %2277 = vmatprep.subr.bf16.mxu0 0
        %2278 = vmatpush1.bf16.msra.mxu0 0
        %2279 = vmatprep.subr.bf16.mxu0 0
        %2280 = vmatpush1.bf16.msra.mxu0 0
        %2281 = vmatprep.mubr.bf16.mxu0 0
        %2282 = vmatmul.mubr.bf16.gmra.mrb[0].mxu0 %v2247
        %v2283 = vpop.f32.mrb[0].mxu0
        %v2284 = vadd.f32 %v2231, %v2283
        %v2285 = vpop.f32.mrb[0].mxu0
        %v2286 = vpop.f32.mrb[0].mxu0
        %v2287 = vpop.f32.mrb[0].mxu0
        %2288 = vdwg.mxu0
        %v2289 = vsel %vm2245, %v2284, 0.0
        %2290 = vadd.xlane.f32.xlu0 %v2289
        %v2291 = vpop.xlane.xlu0 %2290
        %v2292 = vrcp.pop 32.0
        %v2293 = vmul.f32 %v2291, %v2292
        %v2294 = vmul.f32 %v2284, %v2284
        %v2295 = vsel %vm2245, %v2294, 0.0
        %2296 = vadd.xlane.f32.xlu0 %v2295
        %v2297 = vpop.xlane.xlu0 %2296
        %v2298 = vmul.f32 %v2297, %v2292
        %v2299 = vmul.f32 %v2293, %v2293
        %v2300 = vsub.f32 %v2298, %v2299
        %v2301 = vsub.f32 %v2284, %v2293
        %v2302 = vadd.f32 %v2300, 1e-05
        %v2303 = vrsqrt.pop %v2302
        %v2304 = vmul.f32 %v2301, %v2303
        %v2306 = vlaneseq
        %v2307 = vshrl.u32 %v2306, 7
        %v2308 = vsub.s32 0, %v2307
        %v2309 = vrot.slane %v2223, %v2308
        %v2311 = vmul.f32 %v2304, %v2309
        %v2313 = vlaneseq
        %v2314 = vshrl.u32 %v2313, 7
        %v2315 = vsub.s32 0, %v2314
        %v2316 = vrot.slane %v2224, %v2315
        %v2318 = vadd.f32 %v2311, %v2316
        %v2319 = vld [vmem:[%s31] sm:$0xf]
        %v2320 = vld [vmem:[%s31 + $0x4] sm:$0xf]
        %v2321 = vld [vmem:[%s31 + $0x8] sm:$0xf]
        %v2322 = vld [vmem:[%s31 + $0xc] sm:$0xf]
        %v2323 = vld [vmem:[%s33] sm:$0xf]
        %v2324 = vld [vmem:[%s33 + $0x4] sm:$0xf]
        %v2325 = vld [vmem:[%s33 + $0x8] sm:$0xf]
        %v2326 = vld [vmem:[%s33 + $0xc] sm:$0xf]
        %v2327 = vld [vmem:[#allocation20] sm:$0x1]
        %v2328 = vld [vmem:[#allocation21] sm:$0x1]
        %v2329 = vpack.c.bf16 %v2318, %v2318
        %v2331 = vlaneseq
        %v2332 = vshrl.u32 %v2331, 7
        %v2333 = vsub.s32 0, %v2332
        %v2334 = vrot.slane %v2327, %v2333
        %v2340 = vunpack.c.l.b16 %v2319
        %v2341 = vunpack.c.l.b16 %v2320
        %v2342 = vunpack.c.l.b16 %v2321
        %v2343 = vunpack.c.l.b16 %v2322
        %v2344 = vpack.c.b16 %v2341, %v2340
        %v2345 = vpack.c.b16 %v2343, %v2342
        %v2349 = vsel %vm2245, %v2329, 0
        %2351 = vmatprep.subr.bf16.mxu0 0
        %2352 = vmatpush1.bf16.msra.mxu0 %v2344
        %2353 = vmatprep.subr.bf16.mxu0 0
        %2354 = vmatpush1.bf16.msra.mxu0 %v2345
        %2355 = vmatprep.subr.bf16.mxu0 0
        %2356 = vmatpush1.bf16.msra.mxu0 0
        %2357 = vmatprep.subr.bf16.mxu0 0
        %2358 = vmatpush1.bf16.msra.mxu0 0
        %2359 = vmatprep.subr.bf16.mxu0 0
        %2360 = vmatpush1.bf16.msra.mxu0 0
        %2361 = vmatprep.subr.bf16.mxu0 0
        %2362 = vmatpush1.bf16.msra.mxu0 0
        %2363 = vmatprep.subr.bf16.mxu0 0
        %2364 = vmatpush1.bf16.msra.mxu0 0
        %2365 = vmatprep.subr.bf16.mxu0 0
        %2366 = vmatpush1.bf16.msra.mxu0 0
        %2367 = vmatprep.subr.bf16.mxu0 0
        %2368 = vmatpush1.bf16.msra.mxu0 0
        %2369 = vmatprep.subr.bf16.mxu0 0
        %2370 = vmatpush1.bf16.msra.mxu0 0
        %2371 = vmatprep.subr.bf16.mxu0 0
        %2372 = vmatpush1.bf16.msra.mxu0 0
        %2373 = vmatprep.subr.bf16.mxu0 0
        %2374 = vmatpush1.bf16.msra.mxu0 0
        %2375 = vmatprep.subr.bf16.mxu0 0
        %2376 = vmatpush1.bf16.msra.mxu0 0
        %2377 = vmatprep.subr.bf16.mxu0 0
        %2378 = vmatpush1.bf16.msra.mxu0 0
        %2379 = vmatprep.subr.bf16.mxu0 0
        %2380 = vmatpush1.bf16.msra.mxu0 0
        %2381 = vmatprep.subr.bf16.mxu0 0
        %2382 = vmatpush1.bf16.msra.mxu0 0
        %2383 = vmatprep.mubr.bf16.mxu0 0
        %2384 = vmatmul.mubr.bf16.gmra.mrb[0].mxu0 %v2349
        %v2385 = vpop.f32.mrb[0].mxu0
        %v2386 = vadd.f32 %v2334, %v2385
        %v2387 = vpop.f32.mrb[0].mxu0
        %v2388 = vpop.f32.mrb[0].mxu0
        %v2389 = vpop.f32.mrb[0].mxu0
        %2390 = vdwg.mxu0
        %v2395 = vunpack.c.l.b16 %v2323
        %v2396 = vunpack.c.l.b16 %v2324
        %v2397 = vunpack.c.l.b16 %v2325
        %v2398 = vunpack.c.l.b16 %v2326
        %v2399 = vpack.c.b16 %v2396, %v2395
        %v2400 = vpack.c.b16 %v2398, %v2397
        %v2404 = vsel %vm2245, 0, 0
        %2406 = vmatprep.subr.bf16.mxu0 0
        %2407 = vmatpush1.bf16.msra.mxu0 %v2399
        %2408 = vmatprep.subr.bf16.mxu0 0
        %2409 = vmatpush1.bf16.msra.mxu0 %v2400
        %2410 = vmatprep.subr.bf16.mxu0 0
        %2411 = vmatpush1.bf16.msra.mxu0 0
        %2412 = vmatprep.subr.bf16.mxu0 0
        %2413 = vmatpush1.bf16.msra.mxu0 0
        %2414 = vmatprep.subr.bf16.mxu0 0
        %2415 = vmatpush1.bf16.msra.mxu0 0
        %2416 = vmatprep.subr.bf16.mxu0 0
        %2417 = vmatpush1.bf16.msra.mxu0 0
        %2418 = vmatprep.subr.bf16.mxu0 0
        %2419 = vmatpush1.bf16.msra.mxu0 0
        %2420 = vmatprep.subr.bf16.mxu0 0
        %2421 = vmatpush1.bf16.msra.mxu0 0
        %2422 = vmatprep.subr.bf16.mxu0 0
        %2423 = vmatpush1.bf16.msra.mxu0 0
        %2424 = vmatprep.subr.bf16.mxu0 0
        %2425 = vmatpush1.bf16.msra.mxu0 0
        %2426 = vmatprep.subr.bf16.mxu0 0
        %2427 = vmatpush1.bf16.msra.mxu0 0
        %2428 = vmatprep.subr.bf16.mxu0 0
        %2429 = vmatpush1.bf16.msra.mxu0 0
        %2430 = vmatprep.subr.bf16.mxu0 0
        %2431 = vmatpush1.bf16.msra.mxu0 0
        %2432 = vmatprep.subr.bf16.mxu0 0
        %2433 = vmatpush1.bf16.msra.mxu0 0
        %2434 = vmatprep.subr.bf16.mxu0 0
        %2435 = vmatpush1.bf16.msra.mxu0 0
        %2436 = vmatprep.subr.bf16.mxu0 0
        %2437 = vmatpush1.bf16.msra.mxu0 0
        %2438 = vmatprep.mubr.bf16.mxu0 0
        %2439 = vmatmul.mubr.bf16.gmra.mrb[0].mxu0 %v2404
        %v2440 = vpop.f32.mrb[0].mxu0
        %v2441 = vadd.f32 %v2328, %v2440
        %v2442 = vpop.f32.mrb[0].mxu0
        %v2443 = vpop.f32.mrb[0].mxu0
        %v2444 = vpop.f32.mrb[0].mxu0
        %2445 = vdwg.mxu0
        %v2446 = vadd.f32 %v2386, %v2441
        %v2447 = vxor.u32 %v2446, 2147483648
        %v2448 = vmul.f32 %v2447, 1.442695
        %v2449 = vpow.pop %v2448
        %v2450 = vadd.f32 %v2449, 1.0
        %v2451 = vrcp.pop %v2450
        %v2452 = vmul.f32 1.0, %v2451
        %2454 = vrot.lane.b32.xlu0 %v2441, 64
        %v2455 = vpop.permute.xlu0 %2454
        %v2457 = vmul.f32 %v2452, %v2455
        %2459 = vrot.lane.b32.xlu0 %v2457, 64
        %v2460 = vpop.permute.xlu0 %2459
        %v2462 = vadd.f32 %v2386, %v2460
        %v2463 = vtanh.pop %v2462
        %v2464 = vsub.f32 1.0, %v2452
        %2466 = vrot.lane.b32.xlu0 %v2463, 96
        %v2467 = vpop.permute.xlu0 %2466
        %v2469 = vmul.f32 %v2464, %v2467
        %v2470 = vmul.f32 %v2452, 0.0
        %v2471 = vadd.f32 %v2469, %v2470
        %v2472 = vpack.c.bf16 %v2471, %v2471
        %2474 = vrot.lane.b32.xlu0 %v2472, 96
        %v2475 = vpop.permute.xlu0 %2474
        %v2477 = vsel %vm2245, %v2475, 0
        %2479 = vmatprep.subr.bf16.mxu0 0
        %2480 = vmatpush1.bf16.msra.mxu0 %v2399
        %2481 = vmatprep.subr.bf16.mxu0 0
        %2482 = vmatpush1.bf16.msra.mxu0 %v2400
        %2483 = vmatprep.subr.bf16.mxu0 0
        %2484 = vmatpush1.bf16.msra.mxu0 0
        %2485 = vmatprep.subr.bf16.mxu0 0
        %2486 = vmatpush1.bf16.msra.mxu0 0
        %2487 = vmatprep.subr.bf16.mxu0 0
        %2488 = vmatpush1.bf16.msra.mxu0 0
        %2489 = vmatprep.subr.bf16.mxu0 0
        %2490 = vmatpush1.bf16.msra.mxu0 0
        %2491 = vmatprep.subr.bf16.mxu0 0
        %2492 = vmatpush1.bf16.msra.mxu0 0
        %2493 = vmatprep.subr.bf16.mxu0 0
        %2494 = vmatpush1.bf16.msra.mxu0 0
        %2495 = vmatprep.subr.bf16.mxu0 0
        %2496 = vmatpush1.bf16.msra.mxu0 0
        %2497 = vmatprep.subr.bf16.mxu0 0
        %2498 = vmatpush1.bf16.msra.mxu0 0
        %2499 = vmatprep.subr.bf16.mxu0 0
        %2500 = vmatpush1.bf16.msra.mxu0 0
        %2501 = vmatprep.subr.bf16.mxu0 0
        %2502 = vmatpush1.bf16.msra.mxu0 0
        %2503 = vmatprep.subr.bf16.mxu0 0
        %2504 = vmatpush1.bf16.msra.mxu0 0
        %2505 = vmatprep.subr.bf16.mxu0 0
        %2506 = vmatpush1.bf16.msra.mxu0 0
        %2507 = vmatprep.subr.bf16.mxu0 0
        %2508 = vmatpush1.bf16.msra.mxu0 0
        %2509 = vmatprep.subr.bf16.mxu0 0
        %2510 = vmatpush1.bf16.msra.mxu0 0
        %2511 = vmatprep.mubr.bf16.mxu0 0
        %2512 = vmatmul.mubr.bf16.gmra.mrb[0].mxu0 %v2477
        %v2513 = vpop.f32.mrb[0].mxu0
        %v2514 = vadd.f32 %v2328, %v2513
        %v2515 = vpop.f32.mrb[0].mxu0
        %v2516 = vpop.f32.mrb[0].mxu0
        %v2517 = vpop.f32.mrb[0].mxu0
        %2518 = vdwg.mxu0
        %v2520 = vrot.slane %v2514, 7
        %v2522 = vadd.f32 %v2386, %v2520
        %v2523 = vxor.u32 %v2522, 2147483648
        %v2524 = vmul.f32 %v2523, 1.442695
        %v2525 = vpow.pop %v2524
        %v2526 = vadd.f32 %v2525, 1.0
        %v2527 = vrcp.pop %v2526
        %v2528 = vmul.f32 1.0, %v2527
        %2529 = vrot.lane.b32.xlu0 %v2520, 64
        %v2530 = vpop.permute.xlu0 %2529
        %v2532 = vmul.f32 %v2528, %v2530
        %2534 = vrot.lane.b32.xlu0 %v2532, 64
        %v2535 = vpop.permute.xlu0 %2534
        %v2537 = vadd.f32 %v2386, %v2535
        %v2538 = vtanh.pop %v2537
        %v2539 = vsub.f32 1.0, %v2528
        %2541 = vrot.lane.b32.xlu0 %v2538, 96
        %v2542 = vpop.permute.xlu0 %2541
        %v2544 = vmul.f32 %v2539, %v2542
        %v2546 = vrot.slane %v2471, 7
        %v2548 = vmul.f32 %v2528, %v2546
        %v2549 = vadd.f32 %v2544, %v2548
        %v2550 = vpack.c.bf16 %v2549, %v2549
        %v2552 = vshrl.u32 %v2550, 16
        %2554 = vrot.lane.b32.xlu0 %v2552, 96
        %v2555 = vpop.permute.xlu0 %2554
        %v2557 = vsel %vm2245, %v2555, 0
        %2559 = vmatprep.subr.bf16.mxu0 0
        %2560 = vmatpush1.bf16.msra.mxu0 %v2399
        %2561 = vmatprep.subr.bf16.mxu0 0
        %2562 = vmatpush1.bf16.msra.mxu0 %v2400
        %2563 = vmatprep.subr.bf16.mxu0 0
        %2564 = vmatpush1.bf16.msra.mxu0 0
        %2565 = vmatprep.subr.bf16.mxu0 0
        %2566 = vmatpush1.bf16.msra.mxu0 0
        %2567 = vmatprep.subr.bf16.mxu0 0
        %2568 = vmatpush1.bf16.msra.mxu0 0
        %2569 = vmatprep.subr.bf16.mxu0 0
        %2570 = vmatpush1.bf16.msra.mxu0 0
        %2571 = vmatprep.subr.bf16.mxu0 0
        %2572 = vmatpush1.bf16.msra.mxu0 0
        %2573 = vmatprep.subr.bf16.mxu0 0
        %2574 = vmatpush1.bf16.msra.mxu0 0
        %2575 = vmatprep.subr.bf16.mxu0 0
        %2576 = vmatpush1.bf16.msra.mxu0 0
        %2577 = vmatprep.subr.bf16.mxu0 0
        %2578 = vmatpush1.bf16.msra.mxu0 0
        %2579 = vmatprep.subr.bf16.mxu0 0
        %2580 = vmatpush1.bf16.msra.mxu0 0
        %2581 = vmatprep.subr.bf16.mxu0 0
        %2582 = vmatpush1.bf16.msra.mxu0 0
        %2583 = vmatprep.subr.bf16.mxu0 0
        %2584 = vmatpush1.bf16.msra.mxu0 0
        %2585 = vmatprep.subr.bf16.mxu0 0
        %2586 = vmatpush1.bf16.msra.mxu0 0
        %2587 = vmatprep.subr.bf16.mxu0 0
        %2588 = vmatpush1.bf16.msra.mxu0 0
        %2589 = vmatprep.subr.bf16.mxu0 0
        %2590 = vmatpush1.bf16.msra.mxu0 0
        %2591 = vmatprep.mubr.bf16.mxu0 0
        %2592 = vmatmul.mubr.bf16.gmra.mrb[0].mxu0 %v2557
        %v2593 = vpop.f32.mrb[0].mxu0
        %v2594 = vadd.f32 %v2328, %v2593
        %v2595 = vpop.f32.mrb[0].mxu0
        %v2596 = vpop.f32.mrb[0].mxu0
        %v2597 = vpop.f32.mrb[0].mxu0
        %2598 = vdwg.mxu0
        %v2600 = vrot.slane %v2594, 6
        %v2602 = vadd.f32 %v2386, %v2600
        %v2603 = vxor.u32 %v2602, 2147483648
        %v2604 = vmul.f32 %v2603, 1.442695
        %v2605 = vpow.pop %v2604
        %v2606 = vadd.f32 %v2605, 1.0
        %v2607 = vrcp.pop %v2606
        %v2608 = vmul.f32 1.0, %v2607
        %2609 = vrot.lane.b32.xlu0 %v2600, 64
        %v2610 = vpop.permute.xlu0 %2609
        %v2612 = vmul.f32 %v2608, %v2610
        %2614 = vrot.lane.b32.xlu0 %v2612, 64
        %v2615 = vpop.permute.xlu0 %2614
        %v2617 = vadd.f32 %v2386, %v2615
        %v2618 = vtanh.pop %v2617
        %v2619 = vsub.f32 1.0, %v2608
        %2621 = vrot.lane.b32.xlu0 %v2618, 96
        %v2622 = vpop.permute.xlu0 %2621
        %v2624 = vmul.f32 %v2619, %v2622
        %v2626 = vrot.slane %v2549, 7
        %v2628 = vmul.f32 %v2608, %v2626
        %v2629 = vadd.f32 %v2624, %v2628
        %v2630 = vpack.c.bf16 %v2629, %v2629
        %v2632 = vrot.slane %v2630, 1
        %2633 = vrot.lane.b32.xlu0 %v2632, 96
        %v2634 = vpop.permute.xlu0 %2633
        %v2636 = vsel %vm2245, %v2634, 0
        %2638 = vmatprep.subr.bf16.mxu0 0
        %2639 = vmatpush1.bf16.msra.mxu0 %v2399
        %2640 = vmatprep.subr.bf16.mxu0 0
        %2641 = vmatpush1.bf16.msra.mxu0 %v2400
        %2642 = vmatprep.subr.bf16.mxu0 0
        %2643 = vmatpush1.bf16.msra.mxu0 0
        %2644 = vmatprep.subr.bf16.mxu0 0
        %2645 = vmatpush1.bf16.msra.mxu0 0
        %2646 = vmatprep.subr.bf16.mxu0 0
        %2647 = vmatpush1.bf16.msra.mxu0 0
        %2648 = vmatprep.subr.bf16.mxu0 0
        %2649 = vmatpush1.bf16.msra.mxu0 0
        %2650 = vmatprep.subr.bf16.mxu0 0
        %2651 = vmatpush1.bf16.msra.mxu0 0
        %2652 = vmatprep.subr.bf16.mxu0 0
        %2653 = vmatpush1.bf16.msra.mxu0 0
        %2654 = vmatprep.subr.bf16.mxu0 0
        %2655 = vmatpush1.bf16.msra.mxu0 0
        %2656 = vmatprep.subr.bf16.mxu0 0
        %2657 = vmatpush1.bf16.msra.mxu0 0
        %2658 = vmatprep.subr.bf16.mxu0 0
        %2659 = vmatpush1.bf16.msra.mxu0 0
        %2660 = vmatprep.subr.bf16.mxu0 0
        %2661 = vmatpush1.bf16.msra.mxu0 0
        %2662 = vmatprep.subr.bf16.mxu0 0
        %2663 = vmatpush1.bf16.msra.mxu0 0
        %2664 = vmatprep.subr.bf16.mxu0 0
        %2665 = vmatpush1.bf16.msra.mxu0 0
        %2666 = vmatprep.subr.bf16.mxu0 0
        %2667 = vmatpush1.bf16.msra.mxu0 0
        %2668 = vmatprep.subr.bf16.mxu0 0
        %2669 = vmatpush1.bf16.msra.mxu0 0
        %2670 = vmatprep.mubr.bf16.mxu0 0
        %2671 = vmatmul.mubr.bf16.gmra.mrb[0].mxu0 %v2636
        %v2672 = vpop.f32.mrb[0].mxu0
        %v2673 = vadd.f32 %v2328, %v2672
        %v2674 = vpop.f32.mrb[0].mxu0
        %v2675 = vpop.f32.mrb[0].mxu0
        %v2676 = vpop.f32.mrb[0].mxu0
        %2677 = vdwg.mxu0
        %v2679 = vrot.slane %v2673, 5
        %v2681 = vadd.f32 %v2386, %v2679
        %v2682 = vxor.u32 %v2681, 2147483648
        %v2683 = vmul.f32 %v2682, 1.442695
        %v2684 = vpow.pop %v2683
        %v2685 = vadd.f32 %v2684, 1.0
        %v2686 = vrcp.pop %v2685
        %v2687 = vmul.f32 1.0, %v2686
        %2688 = vrot.lane.b32.xlu0 %v2679, 64
        %v2689 = vpop.permute.xlu0 %2688
        %v2691 = vmul.f32 %v2687, %v2689
        %2693 = vrot.lane.b32.xlu0 %v2691, 64
        %v2694 = vpop.permute.xlu0 %2693
        %v2696 = vadd.f32 %v2386, %v2694
        %v2697 = vtanh.pop %v2696
        %v2698 = vsub.f32 1.0, %v2687
        %2700 = vrot.lane.b32.xlu0 %v2697, 96
        %v2701 = vpop.permute.xlu0 %2700
        %v2703 = vmul.f32 %v2698, %v2701
        %v2705 = vrot.slane %v2629, 7
        %v2707 = vmul.f32 %v2687, %v2705
        %v2708 = vadd.f32 %v2703, %v2707
        %v2709 = vpack.c.bf16 %v2708, %v2708
        %v2711 = vshrl.u32 %v2709, 16
        %v2713 = vrot.slane %v2711, 1
        %2714 = vrot.lane.b32.xlu0 %v2713, 96
        %v2715 = vpop.permute.xlu0 %2714
        %v2717 = vsel %vm2245, %v2715, 0
        %2719 = vmatprep.subr.bf16.mxu0 0
        %2720 = vmatpush1.bf16.msra.mxu0 %v2399
        %2721 = vmatprep.subr.bf16.mxu0 0
        %2722 = vmatpush1.bf16.msra.mxu0 %v2400
        %2723 = vmatprep.subr.bf16.mxu0 0
        %2724 = vmatpush1.bf16.msra.mxu0 0
        %2725 = vmatprep.subr.bf16.mxu0 0
        %2726 = vmatpush1.bf16.msra.mxu0 0
        %2727 = vmatprep.subr.bf16.mxu0 0
        %2728 = vmatpush1.bf16.msra.mxu0 0
        %2729 = vmatprep.subr.bf16.mxu0 0
        %2730 = vmatpush1.bf16.msra.mxu0 0
        %2731 = vmatprep.subr.bf16.mxu0 0
        %2732 = vmatpush1.bf16.msra.mxu0 0
        %2733 = vmatprep.subr.bf16.mxu0 0
        %2734 = vmatpush1.bf16.msra.mxu0 0
        %2735 = vmatprep.subr.bf16.mxu0 0
        %2736 = vmatpush1.bf16.msra.mxu0 0
        %2737 = vmatprep.subr.bf16.mxu0 0
        %2738 = vmatpush1.bf16.msra.mxu0 0
        %2739 = vmatprep.subr.bf16.mxu0 0
        %2740 = vmatpush1.bf16.msra.mxu0 0
        %2741 = vmatprep.subr.bf16.mxu0 0
        %2742 = vmatpush1.bf16.msra.mxu0 0
        %2743 = vmatprep.subr.bf16.mxu0 0
        %2744 = vmatpush1.bf16.msra.mxu0 0
        %2745 = vmatprep.subr.bf16.mxu0 0
        %2746 = vmatpush1.bf16.msra.mxu0 0
        %2747 = vmatprep.subr.bf16.mxu0 0
        %2748 = vmatpush1.bf16.msra.mxu0 0
        %2749 = vmatprep.subr.bf16.mxu0 0
        %2750 = vmatpush1.bf16.msra.mxu0 0
        %2751 = vmatprep.mubr.bf16.mxu0 0
        %2752 = vmatmul.mubr.bf16.gmra.mrb[0].mxu0 %v2717
        %v2753 = vpop.f32.mrb[0].mxu0
        %v2754 = vadd.f32 %v2328, %v2753
        %v2755 = vpop.f32.mrb[0].mxu0
        %v2756 = vpop.f32.mrb[0].mxu0
        %v2757 = vpop.f32.mrb[0].mxu0
        %2758 = vdwg.mxu0
        %v2760 = vrot.slane %v2754, 4
        %v2762 = vadd.f32 %v2386, %v2760
        %v2763 = vxor.u32 %v2762, 2147483648
        %v2764 = vmul.f32 %v2763, 1.442695
        %v2765 = vpow.pop %v2764
        %v2766 = vadd.f32 %v2765, 1.0
        %v2767 = vrcp.pop %v2766
        %v2768 = vmul.f32 1.0, %v2767
        %2769 = vrot.lane.b32.xlu0 %v2760, 64
        %v2770 = vpop.permute.xlu0 %2769
        %v2772 = vmul.f32 %v2768, %v2770
        %2774 = vrot.lane.b32.xlu0 %v2772, 64
        %v2775 = vpop.permute.xlu0 %2774
        %v2777 = vadd.f32 %v2386, %v2775
        %v2778 = vtanh.pop %v2777
        %v2779 = vsub.f32 1.0, %v2768
        %2781 = vrot.lane.b32.xlu0 %v2778, 96
        %v2782 = vpop.permute.xlu0 %2781
        %v2784 = vmul.f32 %v2779, %v2782
        %v2786 = vrot.slane %v2708, 7
        %v2788 = vmul.f32 %v2768, %v2786
        %v2789 = vadd.f32 %v2784, %v2788
        %v2790 = vpack.c.bf16 %v2789, %v2789
        %v2792 = vrot.slane %v2790, 2
        %2793 = vrot.lane.b32.xlu0 %v2792, 96
        %v2794 = vpop.permute.xlu0 %2793
        %v2796 = vsel %vm2245, %v2794, 0
        %2798 = vmatprep.subr.bf16.mxu0 0
        %2799 = vmatpush1.bf16.msra.mxu0 %v2399
        %2800 = vmatprep.subr.bf16.mxu0 0
        %2801 = vmatpush1.bf16.msra.mxu0 %v2400
        %2802 = vmatprep.subr.bf16.mxu0 0
        %2803 = vmatpush1.bf16.msra.mxu0 0
        %2804 = vmatprep.subr.bf16.mxu0 0
        %2805 = vmatpush1.bf16.msra.mxu0 0
        %2806 = vmatprep.subr.bf16.mxu0 0
        %2807 = vmatpush1.bf16.msra.mxu0 0
        %2808 = vmatprep.subr.bf16.mxu0 0
        %2809 = vmatpush1.bf16.msra.mxu0 0
        %2810 = vmatprep.subr.bf16.mxu0 0
        %2811 = vmatpush1.bf16.msra.mxu0 0
        %2812 = vmatprep.subr.bf16.mxu0 0
        %2813 = vmatpush1.bf16.msra.mxu0 0
        %2814 = vmatprep.subr.bf16.mxu0 0
        %2815 = vmatpush1.bf16.msra.mxu0 0
        %2816 = vmatprep.subr.bf16.mxu0 0
        %2817 = vmatpush1.bf16.msra.mxu0 0
        %2818 = vmatprep.subr.bf16.mxu0 0
        %2819 = vmatpush1.bf16.msra.mxu0 0
        %2820 = vmatprep.subr.bf16.mxu0 0
        %2821 = vmatpush1.bf16.msra.mxu0 0
        %2822 = vmatprep.subr.bf16.mxu0 0
        %2823 = vmatpush1.bf16.msra.mxu0 0
        %2824 = vmatprep.subr.bf16.mxu0 0
        %2825 = vmatpush1.bf16.msra.mxu0 0
        %2826 = vmatprep.subr.bf16.mxu0 0
        %2827 = vmatpush1.bf16.msra.mxu0 0
        %2828 = vmatprep.subr.bf16.mxu0 0
        %2829 = vmatpush1.bf16.msra.mxu0 0
        %2830 = vmatprep.mubr.bf16.mxu0 0
        %2831 = vmatmul.mubr.bf16.gmra.mrb[0].mxu0 %v2796
        %v2832 = vpop.f32.mrb[0].mxu0
        %v2833 = vadd.f32 %v2328, %v2832
        %v2834 = vpop.f32.mrb[0].mxu0
        %v2835 = vpop.f32.mrb[0].mxu0
        %v2836 = vpop.f32.mrb[0].mxu0
        %2837 = vdwg.mxu0
        %v2839 = vrot.slane %v2833, 3
        %v2841 = vadd.f32 %v2386, %v2839
        %v2842 = vxor.u32 %v2841, 2147483648
        %v2843 = vmul.f32 %v2842, 1.442695
        %v2844 = vpow.pop %v2843
        %v2845 = vadd.f32 %v2844, 1.0
        %v2846 = vrcp.pop %v2845
        %v2847 = vmul.f32 1.0, %v2846
        %2848 = vrot.lane.b32.xlu0 %v2839, 64
        %v2849 = vpop.permute.xlu0 %2848
        %v2851 = vmul.f32 %v2847, %v2849
        %2853 = vrot.lane.b32.xlu0 %v2851, 64
        %v2854 = vpop.permute.xlu0 %2853
        %v2856 = vadd.f32 %v2386, %v2854
        %v2857 = vtanh.pop %v2856
        %v2858 = vsub.f32 1.0, %v2847
        %2860 = vrot.lane.b32.xlu0 %v2857, 96
        %v2861 = vpop.permute.xlu0 %2860
        %v2863 = vmul.f32 %v2858, %v2861
        %v2865 = vrot.slane %v2789, 7
        %v2867 = vmul.f32 %v2847, %v2865
        %v2868 = vadd.f32 %v2863, %v2867
        %v2869 = vpack.c.bf16 %v2868, %v2868
        %v2871 = vshrl.u32 %v2869, 16
        %v2873 = vrot.slane %v2871, 2
        %2874 = vrot.lane.b32.xlu0 %v2873, 96
        %v2875 = vpop.permute.xlu0 %2874
        %v2877 = vsel %vm2245, %v2875, 0
        %2879 = vmatprep.subr.bf16.mxu0 0
        %2880 = vmatpush1.bf16.msra.mxu0 %v2399
        %2881 = vmatprep.subr.bf16.mxu0 0
        %2882 = vmatpush1.bf16.msra.mxu0 %v2400
        %2883 = vmatprep.subr.bf16.mxu0 0
        %2884 = vmatpush1.bf16.msra.mxu0 0
        %2885 = vmatprep.subr.bf16.mxu0 0
        %2886 = vmatpush1.bf16.msra.mxu0 0
        %2887 = vmatprep.subr.bf16.mxu0 0
        %2888 = vmatpush1.bf16.msra.mxu0 0
        %2889 = vmatprep.subr.bf16.mxu0 0
        %2890 = vmatpush1.bf16.msra.mxu0 0
        %2891 = vmatprep.subr.bf16.mxu0 0
        %2892 = vmatpush1.bf16.msra.mxu0 0
        %2893 = vmatprep.subr.bf16.mxu0 0
        %2894 = vmatpush1.bf16.msra.mxu0 0
        %2895 = vmatprep.subr.bf16.mxu0 0
        %2896 = vmatpush1.bf16.msra.mxu0 0
        %2897 = vmatprep.subr.bf16.mxu0 0
        %2898 = vmatpush1.bf16.msra.mxu0 0
        %2899 = vmatprep.subr.bf16.mxu0 0
        %2900 = vmatpush1.bf16.msra.mxu0 0
        %2901 = vmatprep.subr.bf16.mxu0 0
        %2902 = vmatpush1.bf16.msra.mxu0 0
        %2903 = vmatprep.subr.bf16.mxu0 0
        %2904 = vmatpush1.bf16.msra.mxu0 0
        %2905 = vmatprep.subr.bf16.mxu0 0
        %2906 = vmatpush1.bf16.msra.mxu0 0
        %2907 = vmatprep.subr.bf16.mxu0 0
        %2908 = vmatpush1.bf16.msra.mxu0 0
        %2909 = vmatprep.subr.bf16.mxu0 0
        %2910 = vmatpush1.bf16.msra.mxu0 0
        %2911 = vmatprep.mubr.bf16.mxu0 0
        %2912 = vmatmul.mubr.bf16.gmra.mrb[0].mxu0 %v2877
        %v2913 = vpop.f32.mrb[0].mxu0
        %v2914 = vadd.f32 %v2328, %v2913
        %v2915 = vpop.f32.mrb[0].mxu0
        %v2916 = vpop.f32.mrb[0].mxu0
        %v2917 = vpop.f32.mrb[0].mxu0
        %2918 = vdwg.mxu0
        %v2920 = vrot.slane %v2914, 2
        %v2922 = vadd.f32 %v2386, %v2920
        %v2923 = vxor.u32 %v2922, 2147483648
        %v2924 = vmul.f32 %v2923, 1.442695
        %v2925 = vpow.pop %v2924
        %v2926 = vadd.f32 %v2925, 1.0
        %v2927 = vrcp.pop %v2926
        %v2928 = vmul.f32 1.0, %v2927
        %2929 = vrot.lane.b32.xlu0 %v2920, 64
        %v2930 = vpop.permute.xlu0 %2929
        %v2932 = vmul.f32 %v2928, %v2930
        %2934 = vrot.lane.b32.xlu0 %v2932, 64
        %v2935 = vpop.permute.xlu0 %2934
        %v2937 = vadd.f32 %v2386, %v2935
        %v2938 = vtanh.pop %v2937
        %v2939 = vsub.f32 1.0, %v2928
        %2941 = vrot.lane.b32.xlu0 %v2938, 96
        %v2942 = vpop.permute.xlu0 %2941
        %v2944 = vmul.f32 %v2939, %v2942
        %v2946 = vrot.slane %v2868, 7
        %v2948 = vmul.f32 %v2928, %v2946
        %v2949 = vadd.f32 %v2944, %v2948
        %v2950 = vpack.c.bf16 %v2949, %v2949
        %v2952 = vrot.slane %v2950, 3
        %2953 = vrot.lane.b32.xlu0 %v2952, 96
        %v2954 = vpop.permute.xlu0 %2953
        %v2956 = vsel %vm2245, %v2954, 0
        %2958 = vmatprep.subr.bf16.mxu0 0
        %2959 = vmatpush1.bf16.msra.mxu0 %v2399
        %2960 = vmatprep.subr.bf16.mxu0 0
        %2961 = vmatpush1.bf16.msra.mxu0 %v2400
        %2962 = vmatprep.subr.bf16.mxu0 0
        %2963 = vmatpush1.bf16.msra.mxu0 0
        %2964 = vmatprep.subr.bf16.mxu0 0
        %2965 = vmatpush1.bf16.msra.mxu0 0
        %2966 = vmatprep.subr.bf16.mxu0 0
        %2967 = vmatpush1.bf16.msra.mxu0 0
        %2968 = vmatprep.subr.bf16.mxu0 0
        %2969 = vmatpush1.bf16.msra.mxu0 0
        %2970 = vmatprep.subr.bf16.mxu0 0
        %2971 = vmatpush1.bf16.msra.mxu0 0
        %2972 = vmatprep.subr.bf16.mxu0 0
        %2973 = vmatpush1.bf16.msra.mxu0 0
        %2974 = vmatprep.subr.bf16.mxu0 0
        %2975 = vmatpush1.bf16.msra.mxu0 0
        %2976 = vmatprep.subr.bf16.mxu0 0
        %2977 = vmatpush1.bf16.msra.mxu0 0
        %2978 = vmatprep.subr.bf16.mxu0 0
        %2979 = vmatpush1.bf16.msra.mxu0 0
        %2980 = vmatprep.subr.bf16.mxu0 0
        %2981 = vmatpush1.bf16.msra.mxu0 0
        %2982 = vmatprep.subr.bf16.mxu0 0
        %2983 = vmatpush1.bf16.msra.mxu0 0
        %2984 = vmatprep.subr.bf16.mxu0 0
        %2985 = vmatpush1.bf16.msra.mxu0 0
        %2986 = vmatprep.subr.bf16.mxu0 0
        %2987 = vmatpush1.bf16.msra.mxu0 0
        %2988 = vmatprep.subr.bf16.mxu0 0
        %2989 = vmatpush1.bf16.msra.mxu0 0
        %2990 = vmatprep.mubr.bf16.mxu0 0
        %2991 = vmatmul.mubr.bf16.gmra.mrb[0].mxu0 %v2956
        %v2992 = vpop.f32.mrb[0].mxu0
        %v2993 = vadd.f32 %v2328, %v2992
        %v2994 = vpop.f32.mrb[0].mxu0
        %v2995 = vpop.f32.mrb[0].mxu0
        %v2996 = vpop.f32.mrb[0].mxu0
        %2997 = vdwg.mxu0
        %v2999 = vrot.slane %v2993, 1
        %v3001 = vadd.f32 %v2386, %v2999
        %v3002 = vxor.u32 %v3001, 2147483648
        %v3003 = vmul.f32 %v3002, 1.442695
        %v3004 = vpow.pop %v3003
        %v3005 = vadd.f32 %v3004, 1.0
        %v3006 = vrcp.pop %v3005
        %v3007 = vmul.f32 1.0, %v3006
        %3008 = vrot.lane.b32.xlu0 %v2999, 64
        %v3009 = vpop.permute.xlu0 %3008
        %v3011 = vmul.f32 %v3007, %v3009
        %3013 = vrot.lane.b32.xlu0 %v3011, 64
        %v3014 = vpop.permute.xlu0 %3013
        %v3016 = vadd.f32 %v2386, %v3014
        %v3017 = vtanh.pop %v3016
        %v3018 = vsub.f32 1.0, %v3007
        %3020 = vrot.lane.b32.xlu0 %v3017, 96
        %v3021 = vpop.permute.xlu0 %3020
        %v3023 = vmul.f32 %v3018, %v3021
        %v3025 = vrot.slane %v2949, 7
        %v3027 = vmul.f32 %v3007, %v3025
        %v3028 = vadd.f32 %v3023, %v3027
        %vm3029 = vcmask 1040384
        %v3030 = vsel %vm3029, %v2471, %v2549
        %v3031 = vsel %vm2140, %v3030, %v2629
        %vm3032 = vcmask 1042432
        %v3033 = vsel %vm3032, %v3031, %v2708
        %v3034 = vsel %vm2051, %v3033, %v2789
        %vm3035 = vcmask 1044480
        %v3036 = vsel %vm3035, %v3034, %v2868
        %vm3037 = vcmask 1045504
        %v3038 = vsel %vm3037, %v3036, %v2949
        %vm3039 = vcmask 1046528
        %v3040 = vsel %vm3039, %v3038, %v3028
        %v3041 = vld [vmem:[%s39] sm:$0xf]
        %v3042 = vld [vmem:[%s39 + $0x4] sm:$0xf]
        %v3043 = vld [vmem:[%s39 + $0x8] sm:$0xf]
        %v3044 = vld [vmem:[%s39 + $0xc] sm:$0xf]
        %v3045 = vld [vmem:[%s41] sm:$0xf]
        %v3046 = vld [vmem:[%s41 + $0x4] sm:$0xf]
        %v3047 = vld [vmem:[%s41 + $0x8] sm:$0xf]
        %v3048 = vld [vmem:[%s41 + $0xc] sm:$0xf]
        %v3049 = vld [vmem:[#allocation23] sm:$0x1]
        %v3050 = vld [vmem:[#allocation24] sm:$0x1]
        %v3052 = vlaneseq
        %v3053 = vshrl.u32 %v3052, 7
        %v3054 = vsub.s32 0, %v3053
        %v3055 = vrot.slane %v3049, %v3054
        %v3061 = vunpack.c.l.b16 %v3041
        %v3062 = vunpack.c.l.b16 %v3042
        %v3063 = vunpack.c.l.b16 %v3043
        %v3064 = vunpack.c.l.b16 %v3044
        %v3065 = vpack.c.b16 %v3062, %v3061
        %v3066 = vpack.c.b16 %v3064, %v3063
        %3069 = vmatprep.subr.bf16.mxu0 0
        %3070 = vmatpush1.bf16.msra.mxu0 %v3065
        %3071 = vmatprep.subr.bf16.mxu0 0
        %3072 = vmatpush1.bf16.msra.mxu0 %v3066
        %3073 = vmatprep.subr.bf16.mxu0 0
        %3074 = vmatpush1.bf16.msra.mxu0 0
        %3075 = vmatprep.subr.bf16.mxu0 0
        %3076 = vmatpush1.bf16.msra.mxu0 0
        %3077 = vmatprep.subr.bf16.mxu0 0
        %3078 = vmatpush1.bf16.msra.mxu0 0
        %3079 = vmatprep.subr.bf16.mxu0 0
        %3080 = vmatpush1.bf16.msra.mxu0 0
        %3081 = vmatprep.subr.bf16.mxu0 0
        %3082 = vmatpush1.bf16.msra.mxu0 0
        %3083 = vmatprep.subr.bf16.mxu0 0
        %3084 = vmatpush1.bf16.msra.mxu0 0
        %3085 = vmatprep.subr.bf16.mxu0 0
        %3086 = vmatpush1.bf16.msra.mxu0 0
        %3087 = vmatprep.subr.bf16.mxu0 0
        %3088 = vmatpush1.bf16.msra.mxu0 0
        %3089 = vmatprep.subr.bf16.mxu0 0
        %3090 = vmatpush1.bf16.msra.mxu0 0
        %3091 = vmatprep.subr.bf16.mxu0 0
        %3092 = vmatpush1.bf16.msra.mxu0 0
        %3093 = vmatprep.subr.bf16.mxu0 0
        %3094 = vmatpush1.bf16.msra.mxu0 0
        %3095 = vmatprep.subr.bf16.mxu0 0
        %3096 = vmatpush1.bf16.msra.mxu0 0
        %3097 = vmatprep.subr.bf16.mxu0 0
        %3098 = vmatpush1.bf16.msra.mxu0 0
        %3099 = vmatprep.subr.bf16.mxu0 0
        %3100 = vmatpush1.bf16.msra.mxu0 0
        %3101 = vmatprep.mubr.bf16.mxu0 0
        %3102 = vmatmul.mubr.bf16.gmra.mrb[0].mxu0 %v2349
        %v3103 = vpop.f32.mrb[0].mxu0
        %v3104 = vadd.f32 %v3055, %v3103
        %v3105 = vpop.f32.mrb[0].mxu0
        %v3106 = vpop.f32.mrb[0].mxu0
        %v3107 = vpop.f32.mrb[0].mxu0
        %3108 = vdwg.mxu0
        %v3113 = vunpack.c.l.b16 %v3045
        %v3114 = vunpack.c.l.b16 %v3046
        %v3115 = vunpack.c.l.b16 %v3047
        %v3116 = vunpack.c.l.b16 %v3048
        %v3117 = vpack.c.b16 %v3114, %v3113
        %v3118 = vpack.c.b16 %v3116, %v3115
        %3121 = vmatprep.subr.bf16.mxu0 0
        %3122 = vmatpush1.bf16.msra.mxu0 %v3117
        %3123 = vmatprep.subr.bf16.mxu0 0
        %3124 = vmatpush1.bf16.msra.mxu0 %v3118
        %3125 = vmatprep.subr.bf16.mxu0 0
        %3126 = vmatpush1.bf16.msra.mxu0 0
        %3127 = vmatprep.subr.bf16.mxu0 0
        %3128 = vmatpush1.bf16.msra.mxu0 0
        %3129 = vmatprep.subr.bf16.mxu0 0
        %3130 = vmatpush1.bf16.msra.mxu0 0
        %3131 = vmatprep.subr.bf16.mxu0 0
        %3132 = vmatpush1.bf16.msra.mxu0 0
        %3133 = vmatprep.subr.bf16.mxu0 0
        %3134 = vmatpush1.bf16.msra.mxu0 0
        %3135 = vmatprep.subr.bf16.mxu0 0
        %3136 = vmatpush1.bf16.msra.mxu0 0
        %3137 = vmatprep.subr.bf16.mxu0 0
        %3138 = vmatpush1.bf16.msra.mxu0 0
        %3139 = vmatprep.subr.bf16.mxu0 0
        %3140 = vmatpush1.bf16.msra.mxu0 0
        %3141 = vmatprep.subr.bf16.mxu0 0
        %3142 = vmatpush1.bf16.msra.mxu0 0
        %3143 = vmatprep.subr.bf16.mxu0 0
        %3144 = vmatpush1.bf16.msra.mxu0 0
        %3145 = vmatprep.subr.bf16.mxu0 0
        %3146 = vmatpush1.bf16.msra.mxu0 0
        %3147 = vmatprep.subr.bf16.mxu0 0
        %3148 = vmatpush1.bf16.msra.mxu0 0
        %3149 = vmatprep.subr.bf16.mxu0 0
        %3150 = vmatpush1.bf16.msra.mxu0 0
        %3151 = vmatprep.subr.bf16.mxu0 0
        %3152 = vmatpush1.bf16.msra.mxu0 0
        %3153 = vmatprep.mubr.bf16.mxu0 0
        %3154 = vmatmul.mubr.bf16.gmra.mrb[0].mxu0 %v2404
        %v3155 = vpop.f32.mrb[0].mxu0
        %v3156 = vadd.f32 %v3050, %v3155
        %v3157 = vpop.f32.mrb[0].mxu0
        %v3158 = vpop.f32.mrb[0].mxu0
        %v3159 = vpop.f32.mrb[0].mxu0
        %3160 = vdwg.mxu0
        %v3162 = vrot.slane %v3156, 1
        %v3164 = vadd.f32 %v3104, %v3162
        %v3165 = vxor.u32 %v3164, 2147483648
        %v3166 = vmul.f32 %v3165, 1.442695
        %v3167 = vpow.pop %v3166
        %v3168 = vadd.f32 %v3167, 1.0
        %v3169 = vrcp.pop %v3168
        %v3170 = vmul.f32 1.0, %v3169
        %3171 = vrot.lane.b32.xlu0 %v3162, 64
        %v3172 = vpop.permute.xlu0 %3171
        %v3174 = vmul.f32 %v3170, %v3172
        %3176 = vrot.lane.b32.xlu0 %v3174, 64
        %v3177 = vpop.permute.xlu0 %3176
        %v3179 = vadd.f32 %v3104, %v3177
        %v3180 = vtanh.pop %v3179
        %v3181 = vsub.f32 1.0, %v3170
        %3183 = vrot.lane.b32.xlu0 %v3180, 96
        %v3184 = vpop.permute.xlu0 %3183
        %v3186 = vmul.f32 %v3181, %v3184
        %v3187 = vmul.f32 %v3170, 0.0
        %v3188 = vadd.f32 %v3186, %v3187
        %v3189 = vpack.c.bf16 %v3188, %v3188
        %v3191 = vshrl.u32 %v3189, 16
        %v3193 = vrot.slane %v3191, 3
        %3194 = vrot.lane.b32.xlu0 %v3193, 96
        %v3195 = vpop.permute.xlu0 %3194
        %v3197 = vsel %vm2245, %v3195, 0
        %3199 = vmatprep.subr.bf16.mxu0 0
        %3200 = vmatpush1.bf16.msra.mxu0 %v3117
        %3201 = vmatprep.subr.bf16.mxu0 0
        %3202 = vmatpush1.bf16.msra.mxu0 %v3118
        %3203 = vmatprep.subr.bf16.mxu0 0
        %3204 = vmatpush1.bf16.msra.mxu0 0
        %3205 = vmatprep.subr.bf16.mxu0 0
        %3206 = vmatpush1.bf16.msra.mxu0 0
        %3207 = vmatprep.subr.bf16.mxu0 0
        %3208 = vmatpush1.bf16.msra.mxu0 0
        %3209 = vmatprep.subr.bf16.mxu0 0
        %3210 = vmatpush1.bf16.msra.mxu0 0
        %3211 = vmatprep.subr.bf16.mxu0 0
        %3212 = vmatpush1.bf16.msra.mxu0 0
        %3213 = vmatprep.subr.bf16.mxu0 0
        %3214 = vmatpush1.bf16.msra.mxu0 0
        %3215 = vmatprep.subr.bf16.mxu0 0
        %3216 = vmatpush1.bf16.msra.mxu0 0
        %3217 = vmatprep.subr.bf16.mxu0 0
        %3218 = vmatpush1.bf16.msra.mxu0 0
        %3219 = vmatprep.subr.bf16.mxu0 0
        %3220 = vmatpush1.bf16.msra.mxu0 0
        %3221 = vmatprep.subr.bf16.mxu0 0
        %3222 = vmatpush1.bf16.msra.mxu0 0
        %3223 = vmatprep.subr.bf16.mxu0 0
        %3224 = vmatpush1.bf16.msra.mxu0 0
        %3225 = vmatprep.subr.bf16.mxu0 0
        %3226 = vmatpush1.bf16.msra.mxu0 0
        %3227 = vmatprep.subr.bf16.mxu0 0
        %3228 = vmatpush1.bf16.msra.mxu0 0
        %3229 = vmatprep.subr.bf16.mxu0 0
        %3230 = vmatpush1.bf16.msra.mxu0 0
        %3231 = vmatprep.mubr.bf16.mxu0 0
        %3232 = vmatmul.mubr.bf16.gmra.mrb[0].mxu0 %v3197
        %v3233 = vpop.f32.mrb[0].mxu0
        %v3234 = vadd.f32 %v3050, %v3233
        %v3235 = vpop.f32.mrb[0].mxu0
        %v3236 = vpop.f32.mrb[0].mxu0
        %v3237 = vpop.f32.mrb[0].mxu0
        %3238 = vdwg.mxu0
        %v3240 = vrot.slane %v3234, 2
        %v3242 = vadd.f32 %v3104, %v3240
        %v3243 = vxor.u32 %v3242, 2147483648
        %v3244 = vmul.f32 %v3243, 1.442695
        %v3245 = vpow.pop %v3244
        %v3246 = vadd.f32 %v3245, 1.0
        %v3247 = vrcp.pop %v3246
        %v3248 = vmul.f32 1.0, %v3247
        %3249 = vrot.lane.b32.xlu0 %v3240, 64
        %v3250 = vpop.permute.xlu0 %3249
        %v3252 = vmul.f32 %v3248, %v3250
        %3254 = vrot.lane.b32.xlu0 %v3252, 64
        %v3255 = vpop.permute.xlu0 %3254
        %v3257 = vadd.f32 %v3104, %v3255
        %v3258 = vtanh.pop %v3257
        %v3259 = vsub.f32 1.0, %v3248
        %3261 = vrot.lane.b32.xlu0 %v3258, 96
        %v3262 = vpop.permute.xlu0 %3261
        %v3264 = vmul.f32 %v3259, %v3262
        %v3266 = vrot.slane %v3188, 1
        %v3268 = vmul.f32 %v3248, %v3266
        %v3269 = vadd.f32 %v3264, %v3268
        %v3270 = vpack.c.bf16 %v3269, %v3269
        %v3272 = vrot.slane %v3270, 3
        %3273 = vrot.lane.b32.xlu0 %v3272, 96
        %v3274 = vpop.permute.xlu0 %3273
        %v3276 = vsel %vm2245, %v3274, 0
        %3278 = vmatprep.subr.bf16.mxu0 0
        %3279 = vmatpush1.bf16.msra.mxu0 %v3117
        %3280 = vmatprep.subr.bf16.mxu0 0
        %3281 = vmatpush1.bf16.msra.mxu0 %v3118
        %3282 = vmatprep.subr.bf16.mxu0 0
        %3283 = vmatpush1.bf16.msra.mxu0 0
        %3284 = vmatprep.subr.bf16.mxu0 0
        %3285 = vmatpush1.bf16.msra.mxu0 0
        %3286 = vmatprep.subr.bf16.mxu0 0
        %3287 = vmatpush1.bf16.msra.mxu0 0
        %3288 = vmatprep.subr.bf16.mxu0 0
        %3289 = vmatpush1.bf16.msra.mxu0 0
        %3290 = vmatprep.subr.bf16.mxu0 0
        %3291 = vmatpush1.bf16.msra.mxu0 0
        %3292 = vmatprep.subr.bf16.mxu0 0
        %3293 = vmatpush1.bf16.msra.mxu0 0
        %3294 = vmatprep.subr.bf16.mxu0 0
        %3295 = vmatpush1.bf16.msra.mxu0 0
        %3296 = vmatprep.subr.bf16.mxu0 0
        %3297 = vmatpush1.bf16.msra.mxu0 0
        %3298 = vmatprep.subr.bf16.mxu0 0
        %3299 = vmatpush1.bf16.msra.mxu0 0
        %3300 = vmatprep.subr.bf16.mxu0 0
        %3301 = vmatpush1.bf16.msra.mxu0 0
        %3302 = vmatprep.subr.bf16.mxu0 0
        %3303 = vmatpush1.bf16.msra.mxu0 0
        %3304 = vmatprep.subr.bf16.mxu0 0
        %3305 = vmatpush1.bf16.msra.mxu0 0
        %3306 = vmatprep.subr.bf16.mxu0 0
        %3307 = vmatpush1.bf16.msra.mxu0 0
        %3308 = vmatprep.subr.bf16.mxu0 0
        %3309 = vmatpush1.bf16.msra.mxu0 0
        %3310 = vmatprep.mubr.bf16.mxu0 0
        %3311 = vmatmul.mubr.bf16.gmra.mrb[0].mxu0 %v3276
        %v3312 = vpop.f32.mrb[0].mxu0
        %v3313 = vadd.f32 %v3050, %v3312
        %v3314 = vpop.f32.mrb[0].mxu0
        %v3315 = vpop.f32.mrb[0].mxu0
        %v3316 = vpop.f32.mrb[0].mxu0
        %3317 = vdwg.mxu0
        %v3319 = vrot.slane %v3313, 3
        %v3321 = vadd.f32 %v3104, %v3319
        %v3322 = vxor.u32 %v3321, 2147483648
        %v3323 = vmul.f32 %v3322, 1.442695
        %v3324 = vpow.pop %v3323
        %v3325 = vadd.f32 %v3324, 1.0
        %v3326 = vrcp.pop %v3325
        %v3327 = vmul.f32 1.0, %v3326
        %3328 = vrot.lane.b32.xlu0 %v3319, 64
        %v3329 = vpop.permute.xlu0 %3328
        %v3331 = vmul.f32 %v3327, %v3329
        %3333 = vrot.lane.b32.xlu0 %v3331, 64
        %v3334 = vpop.permute.xlu0 %3333
        %v3336 = vadd.f32 %v3104, %v3334
        %v3337 = vtanh.pop %v3336
        %v3338 = vsub.f32 1.0, %v3327
        %3340 = vrot.lane.b32.xlu0 %v3337, 96
        %v3341 = vpop.permute.xlu0 %3340
        %v3343 = vmul.f32 %v3338, %v3341
        %v3345 = vrot.slane %v3269, 1
        %v3347 = vmul.f32 %v3327, %v3345
        %v3348 = vadd.f32 %v3343, %v3347
        %v3349 = vpack.c.bf16 %v3348, %v3348
        %v3351 = vshrl.u32 %v3349, 16
        %v3353 = vrot.slane %v3351, 2
        %3354 = vrot.lane.b32.xlu0 %v3353, 96
        %v3355 = vpop.permute.xlu0 %3354
        %v3357 = vsel %vm2245, %v3355, 0
        %3359 = vmatprep.subr.bf16.mxu0 0
        %3360 = vmatpush1.bf16.msra.mxu0 %v3117
        %3361 = vmatprep.subr.bf16.mxu0 0
        %3362 = vmatpush1.bf16.msra.mxu0 %v3118
        %3363 = vmatprep.subr.bf16.mxu0 0
        %3364 = vmatpush1.bf16.msra.mxu0 0
        %3365 = vmatprep.subr.bf16.mxu0 0
        %3366 = vmatpush1.bf16.msra.mxu0 0
        %3367 = vmatprep.subr.bf16.mxu0 0
        %3368 = vmatpush1.bf16.msra.mxu0 0
        %3369 = vmatprep.subr.bf16.mxu0 0
        %3370 = vmatpush1.bf16.msra.mxu0 0
        %3371 = vmatprep.subr.bf16.mxu0 0
        %3372 = vmatpush1.bf16.msra.mxu0 0
        %3373 = vmatprep.subr.bf16.mxu0 0
        %3374 = vmatpush1.bf16.msra.mxu0 0
        %3375 = vmatprep.subr.bf16.mxu0 0
        %3376 = vmatpush1.bf16.msra.mxu0 0
        %3377 = vmatprep.subr.bf16.mxu0 0
        %3378 = vmatpush1.bf16.msra.mxu0 0
        %3379 = vmatprep.subr.bf16.mxu0 0
        %3380 = vmatpush1.bf16.msra.mxu0 0
        %3381 = vmatprep.subr.bf16.mxu0 0
        %3382 = vmatpush1.bf16.msra.mxu0 0
        %3383 = vmatprep.subr.bf16.mxu0 0
        %3384 = vmatpush1.bf16.msra.mxu0 0
        %3385 = vmatprep.subr.bf16.mxu0 0
        %3386 = vmatpush1.bf16.msra.mxu0 0
        %3387 = vmatprep.subr.bf16.mxu0 0
        %3388 = vmatpush1.bf16.msra.mxu0 0
        %3389 = vmatprep.subr.bf16.mxu0 0
        %3390 = vmatpush1.bf16.msra.mxu0 0
        %3391 = vmatprep.mubr.bf16.mxu0 0
        %3392 = vmatmul.mubr.bf16.gmra.mrb[0].mxu0 %v3357
        %v3393 = vpop.f32.mrb[0].mxu0
        %v3394 = vadd.f32 %v3050, %v3393
        %v3395 = vpop.f32.mrb[0].mxu0
        %v3396 = vpop.f32.mrb[0].mxu0
        %v3397 = vpop.f32.mrb[0].mxu0
        %3398 = vdwg.mxu0
        %v3400 = vrot.slane %v3394, 4
        %v3402 = vadd.f32 %v3104, %v3400
        %v3403 = vxor.u32 %v3402, 2147483648
        %v3404 = vmul.f32 %v3403, 1.442695
        %v3405 = vpow.pop %v3404
        %v3406 = vadd.f32 %v3405, 1.0
        %v3407 = vrcp.pop %v3406
        %v3408 = vmul.f32 1.0, %v3407
        %3409 = vrot.lane.b32.xlu0 %v3400, 64
        %v3410 = vpop.permute.xlu0 %3409
        %v3412 = vmul.f32 %v3408, %v3410
        %3414 = vrot.lane.b32.xlu0 %v3412, 64
        %v3415 = vpop.permute.xlu0 %3414
        %v3417 = vadd.f32 %v3104, %v3415
        %v3418 = vtanh.pop %v3417
        %v3419 = vsub.f32 1.0, %v3408
        %3421 = vrot.lane.b32.xlu0 %v3418, 96
        %v3422 = vpop.permute.xlu0 %3421
        %v3424 = vmul.f32 %v3419, %v3422
        %v3426 = vrot.slane %v3348, 1
        %v3428 = vmul.f32 %v3408, %v3426
        %v3429 = vadd.f32 %v3424, %v3428
        %v3430 = vpack.c.bf16 %v3429, %v3429
        %v3432 = vrot.slane %v3430, 2
        %3433 = vrot.lane.b32.xlu0 %v3432, 96
        %v3434 = vpop.permute.xlu0 %3433
        %v3436 = vsel %vm2245, %v3434, 0
        %3438 = vmatprep.subr.bf16.mxu0 0
        %3439 = vmatpush1.bf16.msra.mxu0 %v3117
        %3440 = vmatprep.subr.bf16.mxu0 0
        %3441 = vmatpush1.bf16.msra.mxu0 %v3118
        %3442 = vmatprep.subr.bf16.mxu0 0
        %3443 = vmatpush1.bf16.msra.mxu0 0
        %3444 = vmatprep.subr.bf16.mxu0 0
        %3445 = vmatpush1.bf16.msra.mxu0 0
        %3446 = vmatprep.subr.bf16.mxu0 0
        %3447 = vmatpush1.bf16.msra.mxu0 0
        %3448 = vmatprep.subr.bf16.mxu0 0
        %3449 = vmatpush1.bf16.msra.mxu0 0
        %3450 = vmatprep.subr.bf16.mxu0 0
        %3451 = vmatpush1.bf16.msra.mxu0 0
        %3452 = vmatprep.subr.bf16.mxu0 0
        %3453 = vmatpush1.bf16.msra.mxu0 0
        %3454 = vmatprep.subr.bf16.mxu0 0
        %3455 = vmatpush1.bf16.msra.mxu0 0
        %3456 = vmatprep.subr.bf16.mxu0 0
        %3457 = vmatpush1.bf16.msra.mxu0 0
        %3458 = vmatprep.subr.bf16.mxu0 0
        %3459 = vmatpush1.bf16.msra.mxu0 0
        %3460 = vmatprep.subr.bf16.mxu0 0
        %3461 = vmatpush1.bf16.msra.mxu0 0
        %3462 = vmatprep.subr.bf16.mxu0 0
        %3463 = vmatpush1.bf16.msra.mxu0 0
        %3464 = vmatprep.subr.bf16.mxu0 0
        %3465 = vmatpush1.bf16.msra.mxu0 0
        %3466 = vmatprep.subr.bf16.mxu0 0
        %3467 = vmatpush1.bf16.msra.mxu0 0
        %3468 = vmatprep.subr.bf16.mxu0 0
        %3469 = vmatpush1.bf16.msra.mxu0 0
        %3470 = vmatprep.mubr.bf16.mxu0 0
        %3471 = vmatmul.mubr.bf16.gmra.mrb[0].mxu0 %v3436
        %v3472 = vpop.f32.mrb[0].mxu0
        %v3473 = vadd.f32 %v3050, %v3472
        %v3474 = vpop.f32.mrb[0].mxu0
        %v3475 = vpop.f32.mrb[0].mxu0
        %v3476 = vpop.f32.mrb[0].mxu0
        %3477 = vdwg.mxu0
        %v3479 = vrot.slane %v3473, 5
        %v3481 = vadd.f32 %v3104, %v3479
        %v3482 = vxor.u32 %v3481, 2147483648
        %v3483 = vmul.f32 %v3482, 1.442695
        %v3484 = vpow.pop %v3483
        %v3485 = vadd.f32 %v3484, 1.0
        %v3486 = vrcp.pop %v3485
        %v3487 = vmul.f32 1.0, %v3486
        %3488 = vrot.lane.b32.xlu0 %v3479, 64
        %v3489 = vpop.permute.xlu0 %3488
        %v3491 = vmul.f32 %v3487, %v3489
        %3493 = vrot.lane.b32.xlu0 %v3491, 64
        %v3494 = vpop.permute.xlu0 %3493
        %v3496 = vadd.f32 %v3104, %v3494
        %v3497 = vtanh.pop %v3496
        %v3498 = vsub.f32 1.0, %v3487
        %3500 = vrot.lane.b32.xlu0 %v3497, 96
        %v3501 = vpop.permute.xlu0 %3500
        %v3503 = vmul.f32 %v3498, %v3501
        %v3505 = vrot.slane %v3429, 1
        %v3507 = vmul.f32 %v3487, %v3505
        %v3508 = vadd.f32 %v3503, %v3507
        %v3509 = vpack.c.bf16 %v3508, %v3508
        %v3511 = vshrl.u32 %v3509, 16
        %v3513 = vrot.slane %v3511, 1
        %3514 = vrot.lane.b32.xlu0 %v3513, 96
        %v3515 = vpop.permute.xlu0 %3514
        %v3517 = vsel %vm2245, %v3515, 0
        %3519 = vmatprep.subr.bf16.mxu0 0
        %3520 = vmatpush1.bf16.msra.mxu0 %v3117
        %3521 = vmatprep.subr.bf16.mxu0 0
        %3522 = vmatpush1.bf16.msra.mxu0 %v3118
        %3523 = vmatprep.subr.bf16.mxu0 0
        %3524 = vmatpush1.bf16.msra.mxu0 0
        %3525 = vmatprep.subr.bf16.mxu0 0
        %3526 = vmatpush1.bf16.msra.mxu0 0
        %3527 = vmatprep.subr.bf16.mxu0 0
        %3528 = vmatpush1.bf16.msra.mxu0 0
        %3529 = vmatprep.subr.bf16.mxu0 0
        %3530 = vmatpush1.bf16.msra.mxu0 0
        %3531 = vmatprep.subr.bf16.mxu0 0
        %3532 = vmatpush1.bf16.msra.mxu0 0
        %3533 = vmatprep.subr.bf16.mxu0 0
        %3534 = vmatpush1.bf16.msra.mxu0 0
        %3535 = vmatprep.subr.bf16.mxu0 0
        %3536 = vmatpush1.bf16.msra.mxu0 0
        %3537 = vmatprep.subr.bf16.mxu0 0
        %3538 = vmatpush1.bf16.msra.mxu0 0
        %3539 = vmatprep.subr.bf16.mxu0 0
        %3540 = vmatpush1.bf16.msra.mxu0 0
        %3541 = vmatprep.subr.bf16.mxu0 0
        %3542 = vmatpush1.bf16.msra.mxu0 0
        %3543 = vmatprep.subr.bf16.mxu0 0
        %3544 = vmatpush1.bf16.msra.mxu0 0
        %3545 = vmatprep.subr.bf16.mxu0 0
        %3546 = vmatpush1.bf16.msra.mxu0 0
        %3547 = vmatprep.subr.bf16.mxu0 0
        %3548 = vmatpush1.bf16.msra.mxu0 0
        %3549 = vmatprep.subr.bf16.mxu0 0
        %3550 = vmatpush1.bf16.msra.mxu0 0
        %3551 = vmatprep.mubr.bf16.mxu0 0
        %3552 = vmatmul.mubr.bf16.gmra.mrb[0].mxu0 %v3517
        %v3553 = vpop.f32.mrb[0].mxu0
        %v3554 = vadd.f32 %v3050, %v3553
        %v3555 = vpop.f32.mrb[0].mxu0
        %v3556 = vpop.f32.mrb[0].mxu0
        %v3557 = vpop.f32.mrb[0].mxu0
        %3558 = vdwg.mxu0
        %v3560 = vrot.slane %v3554, 6
        %v3562 = vadd.f32 %v3104, %v3560
        %v3563 = vxor.u32 %v3562, 2147483648
        %v3564 = vmul.f32 %v3563, 1.442695
        %v3565 = vpow.pop %v3564
        %v3566 = vadd.f32 %v3565, 1.0
        %v3567 = vrcp.pop %v3566
        %v3568 = vmul.f32 1.0, %v3567
        %3569 = vrot.lane.b32.xlu0 %v3560, 64
        %v3570 = vpop.permute.xlu0 %3569
        %v3572 = vmul.f32 %v3568, %v3570
        %3574 = vrot.lane.b32.xlu0 %v3572, 64
        %v3575 = vpop.permute.xlu0 %3574
        %v3577 = vadd.f32 %v3104, %v3575
        %v3578 = vtanh.pop %v3577
        %v3579 = vsub.f32 1.0, %v3568
        %3581 = vrot.lane.b32.xlu0 %v3578, 96
        %v3582 = vpop.permute.xlu0 %3581
        %v3584 = vmul.f32 %v3579, %v3582
        %v3586 = vrot.slane %v3508, 1
        %v3588 = vmul.f32 %v3568, %v3586
        %v3589 = vadd.f32 %v3584, %v3588
        %v3590 = vpack.c.bf16 %v3589, %v3589
        %v3592 = vrot.slane %v3590, 1
        %3593 = vrot.lane.b32.xlu0 %v3592, 96
        %v3594 = vpop.permute.xlu0 %3593
        %v3596 = vsel %vm2245, %v3594, 0
        %3598 = vmatprep.subr.bf16.mxu0 0
        %3599 = vmatpush1.bf16.msra.mxu0 %v3117
        %3600 = vmatprep.subr.bf16.mxu0 0
        %3601 = vmatpush1.bf16.msra.mxu0 %v3118
        %3602 = vmatprep.subr.bf16.mxu0 0
        %3603 = vmatpush1.bf16.msra.mxu0 0
        %3604 = vmatprep.subr.bf16.mxu0 0
        %3605 = vmatpush1.bf16.msra.mxu0 0
        %3606 = vmatprep.subr.bf16.mxu0 0
        %3607 = vmatpush1.bf16.msra.mxu0 0
        %3608 = vmatprep.subr.bf16.mxu0 0
        %3609 = vmatpush1.bf16.msra.mxu0 0
        %3610 = vmatprep.subr.bf16.mxu0 0
        %3611 = vmatpush1.bf16.msra.mxu0 0
        %3612 = vmatprep.subr.bf16.mxu0 0
        %3613 = vmatpush1.bf16.msra.mxu0 0
        %3614 = vmatprep.subr.bf16.mxu0 0
        %3615 = vmatpush1.bf16.msra.mxu0 0
        %3616 = vmatprep.subr.bf16.mxu0 0
        %3617 = vmatpush1.bf16.msra.mxu0 0
        %3618 = vmatprep.subr.bf16.mxu0 0
        %3619 = vmatpush1.bf16.msra.mxu0 0
        %3620 = vmatprep.subr.bf16.mxu0 0
        %3621 = vmatpush1.bf16.msra.mxu0 0
        %3622 = vmatprep.subr.bf16.mxu0 0
        %3623 = vmatpush1.bf16.msra.mxu0 0
        %3624 = vmatprep.subr.bf16.mxu0 0
        %3625 = vmatpush1.bf16.msra.mxu0 0
        %3626 = vmatprep.subr.bf16.mxu0 0
        %3627 = vmatpush1.bf16.msra.mxu0 0
        %3628 = vmatprep.subr.bf16.mxu0 0
        %3629 = vmatpush1.bf16.msra.mxu0 0
        %3630 = vmatprep.mubr.bf16.mxu0 0
        %3631 = vmatmul.mubr.bf16.gmra.mrb[0].mxu0 %v3596
        %v3632 = vpop.f32.mrb[0].mxu0
        %v3633 = vadd.f32 %v3050, %v3632
        %v3634 = vpop.f32.mrb[0].mxu0
        %v3635 = vpop.f32.mrb[0].mxu0
        %v3636 = vpop.f32.mrb[0].mxu0
        %3637 = vdwg.mxu0
        %v3639 = vrot.slane %v3633, 7
        %v3641 = vadd.f32 %v3104, %v3639
        %v3642 = vxor.u32 %v3641, 2147483648
        %v3643 = vmul.f32 %v3642, 1.442695
        %v3644 = vpow.pop %v3643
        %v3645 = vadd.f32 %v3644, 1.0
        %v3646 = vrcp.pop %v3645
        %v3647 = vmul.f32 1.0, %v3646
        %3648 = vrot.lane.b32.xlu0 %v3639, 64
        %v3649 = vpop.permute.xlu0 %3648
        %v3651 = vmul.f32 %v3647, %v3649
        %3653 = vrot.lane.b32.xlu0 %v3651, 64
        %v3654 = vpop.permute.xlu0 %3653
        %v3656 = vadd.f32 %v3104, %v3654
        %v3657 = vtanh.pop %v3656
        %v3658 = vsub.f32 1.0, %v3647
        %3660 = vrot.lane.b32.xlu0 %v3657, 96
        %v3661 = vpop.permute.xlu0 %3660
        %v3663 = vmul.f32 %v3658, %v3661
        %v3665 = vrot.slane %v3589, 1
        %v3667 = vmul.f32 %v3647, %v3665
        %v3668 = vadd.f32 %v3663, %v3667
        %v3669 = vpack.c.bf16 %v3668, %v3668
        %v3671 = vshrl.u32 %v3669, 16
        %3673 = vrot.lane.b32.xlu0 %v3671, 96
        %v3674 = vpop.permute.xlu0 %3673
        %v3676 = vsel %vm2245, %v3674, 0
        %3678 = vmatprep.subr.bf16.mxu0 0
        %3679 = vmatpush1.bf16.msra.mxu0 %v3117
        %3680 = vmatprep.subr.bf16.mxu0 0
        %3681 = vmatpush1.bf16.msra.mxu0 %v3118
        %3682 = vmatprep.subr.bf16.mxu0 0
        %3683 = vmatpush1.bf16.msra.mxu0 0
        %3684 = vmatprep.subr.bf16.mxu0 0
        %3685 = vmatpush1.bf16.msra.mxu0 0
        %3686 = vmatprep.subr.bf16.mxu0 0
        %3687 = vmatpush1.bf16.msra.mxu0 0
        %3688 = vmatprep.subr.bf16.mxu0 0
        %3689 = vmatpush1.bf16.msra.mxu0 0
        %3690 = vmatprep.subr.bf16.mxu0 0
        %3691 = vmatpush1.bf16.msra.mxu0 0
        %3692 = vmatprep.subr.bf16.mxu0 0
        %3693 = vmatpush1.bf16.msra.mxu0 0
        %3694 = vmatprep.subr.bf16.mxu0 0
        %3695 = vmatpush1.bf16.msra.mxu0 0
        %3696 = vmatprep.subr.bf16.mxu0 0
        %3697 = vmatpush1.bf16.msra.mxu0 0
        %3698 = vmatprep.subr.bf16.mxu0 0
        %3699 = vmatpush1.bf16.msra.mxu0 0
        %3700 = vmatprep.subr.bf16.mxu0 0
        %3701 = vmatpush1.bf16.msra.mxu0 0
        %3702 = vmatprep.subr.bf16.mxu0 0
        %3703 = vmatpush1.bf16.msra.mxu0 0
        %3704 = vmatprep.subr.bf16.mxu0 0
        %3705 = vmatpush1.bf16.msra.mxu0 0
        %3706 = vmatprep.subr.bf16.mxu0 0
        %3707 = vmatpush1.bf16.msra.mxu0 0
        %3708 = vmatprep.subr.bf16.mxu0 0
        %3709 = vmatpush1.bf16.msra.mxu0 0
        %3710 = vmatprep.mubr.bf16.mxu0 0
        %3711 = vmatmul.mubr.bf16.gmra.mrb[0].mxu0 %v3676
        %v3712 = vpop.f32.mrb[0].mxu0
        %v3713 = vadd.f32 %v3050, %v3712
        %v3714 = vpop.f32.mrb[0].mxu0
        %v3715 = vpop.f32.mrb[0].mxu0
        %v3716 = vpop.f32.mrb[0].mxu0
        %3717 = vdwg.mxu0
        %v3718 = vadd.f32 %v3104, %v3713
        %v3719 = vxor.u32 %v3718, 2147483648
        %v3720 = vmul.f32 %v3719, 1.442695
        %v3721 = vpow.pop %v3720
        %v3722 = vadd.f32 %v3721, 1.0
        %v3723 = vrcp.pop %v3722
        %v3724 = vmul.f32 1.0, %v3723
        %3726 = vrot.lane.b32.xlu0 %v3713, 64
        %v3727 = vpop.permute.xlu0 %3726
        %v3729 = vmul.f32 %v3724, %v3727
        %3731 = vrot.lane.b32.xlu0 %v3729, 64
        %v3732 = vpop.permute.xlu0 %3731
        %v3734 = vadd.f32 %v3104, %v3732
        %v3735 = vtanh.pop %v3734
        %v3736 = vsub.f32 1.0, %v3724
        %3738 = vrot.lane.b32.xlu0 %v3735, 96
        %v3739 = vpop.permute.xlu0 %3738
        %v3741 = vmul.f32 %v3736, %v3739
        %v3743 = vrot.slane %v3668, 1
        %v3745 = vmul.f32 %v3724, %v3743
        %v3746 = vadd.f32 %v3741, %v3745
        %v3747 = vsel %vm3029, %v3746, %v3668
        %v3748 = vsel %vm2140, %v3747, %v3589
        %v3749 = vsel %vm3032, %v3748, %v3508
        %v3750 = vsel %vm2051, %v3749, %v3429
        %v3751 = vsel %vm3035, %v3750, %v3348
        %v3752 = vsel %vm3037, %v3751, %v3269
        %v3753 = vsel %vm3039, %v3752, %v3188
        %3755 = vrot.lane.b32.xlu0 %v3040, 96
        %v3756 = vpop.permute.xlu0 %3755
        %v3758 = vsel %vm2245, %v3756, %v3753
        %v3759 = vld [vmem:[%s47] sm:$0xf]
        %v3760 = vld [vmem:[%s47 + $0x4] sm:$0xf]
        %v3761 = vld [vmem:[%s47 + $0x8] sm:$0xf]
        %v3762 = vld [vmem:[%s47 + $0xc] sm:$0xf]
        %v3763 = vld [vmem:[%s47 + $0x10] sm:$0xf]
        %v3764 = vld [vmem:[%s47 + $0x14] sm:$0xf]
        %v3765 = vld [vmem:[%s47 + $0x18] sm:$0xf]
        %v3766 = vld [vmem:[%s47 + $0x1c] sm:$0xf]
        %v3767 = vld [vmem:[%s49] sm:$0xf]
        %v3768 = vld [vmem:[%s49 + $0x4] sm:$0xf]
        %v3769 = vld [vmem:[%s49 + $0x8] sm:$0xf]
        %v3770 = vld [vmem:[%s49 + $0xc] sm:$0xf]
        %v3771 = vld [vmem:[#allocation26] sm:$0x1]
        %v3772 = vld [vmem:[#allocation27] sm:$0x1]
        %v3773 = vpack.c.bf16 %v3758, %v3758
        %v3775 = vlaneseq
        %v3776 = vshrl.u32 %v3775, 7
        %v3777 = vsub.s32 0, %v3776
        %v3778 = vrot.slane %v3771, %v3777
        %v3788 = vunpack.c.l.b16 %v3759
        %v3789 = vunpack.c.l.b16 %v3760
        %v3790 = vunpack.c.l.b16 %v3761
        %v3791 = vunpack.c.l.b16 %v3762
        %v3792 = vunpack.c.l.b16 %v3763
        %v3793 = vunpack.c.l.b16 %v3764
        %v3794 = vunpack.c.l.b16 %v3765
        %v3795 = vunpack.c.l.b16 %v3766
        %v3796 = vpack.c.b16 %v3789, %v3788
        %v3797 = vpack.c.b16 %v3791, %v3790
        %v3798 = vpack.c.b16 %v3793, %v3792
        %v3799 = vpack.c.b16 %v3795, %v3794
        %vm3804 = vcmask 523264
        %v3806 = vsel %vm3804, %v3773, 0
        %3808 = vmatprep.subr.bf16.mxu0 0
        %3809 = vmatpush1.bf16.msra.mxu0 %v3796
        %3810 = vmatprep.subr.bf16.mxu0 0
        %3811 = vmatpush1.bf16.msra.mxu0 %v3797
        %3812 = vmatprep.subr.bf16.mxu0 0
        %3813 = vmatpush1.bf16.msra.mxu0 %v3798
        %3814 = vmatprep.subr.bf16.mxu0 0
        %3815 = vmatpush1.bf16.msra.mxu0 %v3799
        %3816 = vmatprep.subr.bf16.mxu0 0
        %3817 = vmatpush1.bf16.msra.mxu0 0
        %3818 = vmatprep.subr.bf16.mxu0 0
        %3819 = vmatpush1.bf16.msra.mxu0 0
        %3820 = vmatprep.subr.bf16.mxu0 0
        %3821 = vmatpush1.bf16.msra.mxu0 0
        %3822 = vmatprep.subr.bf16.mxu0 0
        %3823 = vmatpush1.bf16.msra.mxu0 0
        %3824 = vmatprep.subr.bf16.mxu0 0
        %3825 = vmatpush1.bf16.msra.mxu0 0
        %3826 = vmatprep.subr.bf16.mxu0 0
        %3827 = vmatpush1.bf16.msra.mxu0 0
        %3828 = vmatprep.subr.bf16.mxu0 0
        %3829 = vmatpush1.bf16.msra.mxu0 0
        %3830 = vmatprep.subr.bf16.mxu0 0
        %3831 = vmatpush1.bf16.msra.mxu0 0
        %3832 = vmatprep.subr.bf16.mxu0 0
        %3833 = vmatpush1.bf16.msra.mxu0 0
        %3834 = vmatprep.subr.bf16.mxu0 0
        %3835 = vmatpush1.bf16.msra.mxu0 0
        %3836 = vmatprep.subr.bf16.mxu0 0
        %3837 = vmatpush1.bf16.msra.mxu0 0
        %3838 = vmatprep.subr.bf16.mxu0 0
        %3839 = vmatpush1.bf16.msra.mxu0 0
        %3840 = vmatprep.mubr.bf16.mxu0 0
        %3841 = vmatmul.mubr.bf16.gmra.mrb[0].mxu0 %v3806
        %v3842 = vpop.f32.mrb[0].mxu0
        %v3843 = vadd.f32 %v3778, %v3842
        %v3844 = vpop.f32.mrb[0].mxu0
        %v3845 = vpop.f32.mrb[0].mxu0
        %v3846 = vpop.f32.mrb[0].mxu0
        %3847 = vdwg.mxu0
        %v3852 = vunpack.c.l.b16 %v3767
        %v3853 = vunpack.c.l.b16 %v3768
        %v3854 = vunpack.c.l.b16 %v3769
        %v3855 = vunpack.c.l.b16 %v3770
        %v3856 = vpack.c.b16 %v3853, %v3852
        %v3857 = vpack.c.b16 %v3855, %v3854
        %3860 = vmatprep.subr.bf16.mxu0 0
        %3861 = vmatpush1.bf16.msra.mxu0 %v3856
        %3862 = vmatprep.subr.bf16.mxu0 0
        %3863 = vmatpush1.bf16.msra.mxu0 %v3857
        %3864 = vmatprep.subr.bf16.mxu0 0
        %3865 = vmatpush1.bf16.msra.mxu0 0
        %3866 = vmatprep.subr.bf16.mxu0 0
        %3867 = vmatpush1.bf16.msra.mxu0 0
        %3868 = vmatprep.subr.bf16.mxu0 0
        %3869 = vmatpush1.bf16.msra.mxu0 0
        %3870 = vmatprep.subr.bf16.mxu0 0
        %3871 = vmatpush1.bf16.msra.mxu0 0
        %3872 = vmatprep.subr.bf16.mxu0 0
        %3873 = vmatpush1.bf16.msra.mxu0 0
        %3874 = vmatprep.subr.bf16.mxu0 0
        %3875 = vmatpush1.bf16.msra.mxu0 0
        %3876 = vmatprep.subr.bf16.mxu0 0
        %3877 = vmatpush1.bf16.msra.mxu0 0
        %3878 = vmatprep.subr.bf16.mxu0 0
        %3879 = vmatpush1.bf16.msra.mxu0 0
        %3880 = vmatprep.subr.bf16.mxu0 0
        %3881 = vmatpush1.bf16.msra.mxu0 0
        %3882 = vmatprep.subr.bf16.mxu0 0
        %3883 = vmatpush1.bf16.msra.mxu0 0
        %3884 = vmatprep.subr.bf16.mxu0 0
        %3885 = vmatpush1.bf16.msra.mxu0 0
        %3886 = vmatprep.subr.bf16.mxu0 0
        %3887 = vmatpush1.bf16.msra.mxu0 0
        %3888 = vmatprep.subr.bf16.mxu0 0
        %3889 = vmatpush1.bf16.msra.mxu0 0
        %3890 = vmatprep.subr.bf16.mxu0 0
        %3891 = vmatpush1.bf16.msra.mxu0 0
        %3892 = vmatprep.mubr.bf16.mxu0 0
        %3893 = vmatmul.mubr.bf16.gmra.mrb[0].mxu0 %v2404
        %v3894 = vpop.f32.mrb[0].mxu0
        %v3895 = vadd.f32 %v3772, %v3894
        %v3896 = vpop.f32.mrb[0].mxu0
        %v3897 = vpop.f32.mrb[0].mxu0
        %v3898 = vpop.f32.mrb[0].mxu0
        %3899 = vdwg.mxu0
        %v3900 = vadd.f32 %v3843, %v3895
        %v3901 = vxor.u32 %v3900, 2147483648
        %v3902 = vmul.f32 %v3901, 1.442695
        %v3903 = vpow.pop %v3902
        %v3904 = vadd.f32 %v3903, 1.0
        %v3905 = vrcp.pop %v3904
        %v3906 = vmul.f32 1.0, %v3905
        %3908 = vrot.lane.b32.xlu0 %v3895, 64
        %v3909 = vpop.permute.xlu0 %3908
        %v3911 = vmul.f32 %v3906, %v3909
        %3913 = vrot.lane.b32.xlu0 %v3911, 64
        %v3914 = vpop.permute.xlu0 %3913
        %v3916 = vadd.f32 %v3843, %v3914
        %v3917 = vtanh.pop %v3916
        %v3918 = vsub.f32 1.0, %v3906
        %3920 = vrot.lane.b32.xlu0 %v3917, 96
        %v3921 = vpop.permute.xlu0 %3920
        %v3923 = vmul.f32 %v3918, %v3921
        %v3924 = vmul.f32 %v3906, 0.0
        %v3925 = vadd.f32 %v3923, %v3924
        %v3926 = vpack.c.bf16 %v3925, %v3925
        %3928 = vrot.lane.b32.xlu0 %v3926, 96
        %v3929 = vpop.permute.xlu0 %3928
        %v3931 = vsel %vm2245, %v3929, 0
        %3933 = vmatprep.subr.bf16.mxu0 0
        %3934 = vmatpush1.bf16.msra.mxu0 %v3856
        %3935 = vmatprep.subr.bf16.mxu0 0
        %3936 = vmatpush1.bf16.msra.mxu0 %v3857
        %3937 = vmatprep.subr.bf16.mxu0 0
        %3938 = vmatpush1.bf16.msra.mxu0 0
        %3939 = vmatprep.subr.bf16.mxu0 0
        %3940 = vmatpush1.bf16.msra.mxu0 0
        %3941 = vmatprep.subr.bf16.mxu0 0
        %3942 = vmatpush1.bf16.msra.mxu0 0
        %3943 = vmatprep.subr.bf16.mxu0 0
        %3944 = vmatpush1.bf16.msra.mxu0 0
        %3945 = vmatprep.subr.bf16.mxu0 0
        %3946 = vmatpush1.bf16.msra.mxu0 0
        %3947 = vmatprep.subr.bf16.mxu0 0
        %3948 = vmatpush1.bf16.msra.mxu0 0
        %3949 = vmatprep.subr.bf16.mxu0 0
        %3950 = vmatpush1.bf16.msra.mxu0 0
        %3951 = vmatprep.subr.bf16.mxu0 0
        %3952 = vmatpush1.bf16.msra.mxu0 0
        %3953 = vmatprep.subr.bf16.mxu0 0
        %3954 = vmatpush1.bf16.msra.mxu0 0
        %3955 = vmatprep.subr.bf16.mxu0 0
        %3956 = vmatpush1.bf16.msra.mxu0 0
        %3957 = vmatprep.subr.bf16.mxu0 0
        %3958 = vmatpush1.bf16.msra.mxu0 0
        %3959 = vmatprep.subr.bf16.mxu0 0
        %3960 = vmatpush1.bf16.msra.mxu0 0
        %3961 = vmatprep.subr.bf16.mxu0 0
        %3962 = vmatpush1.bf16.msra.mxu0 0
        %3963 = vmatprep.subr.bf16.mxu0 0
        %3964 = vmatpush1.bf16.msra.mxu0 0
        %3965 = vmatprep.mubr.bf16.mxu0 0
        %3966 = vmatmul.mubr.bf16.gmra.mrb[0].mxu0 %v3931
        %v3967 = vpop.f32.mrb[0].mxu0
        %v3968 = vadd.f32 %v3772, %v3967
        %v3969 = vpop.f32.mrb[0].mxu0
        %v3970 = vpop.f32.mrb[0].mxu0
        %v3971 = vpop.f32.mrb[0].mxu0
        %3972 = vdwg.mxu0
        %v3974 = vrot.slane %v3968, 7
        %v3976 = vadd.f32 %v3843, %v3974
        %v3977 = vxor.u32 %v3976, 2147483648
        %v3978 = vmul.f32 %v3977, 1.442695
        %v3979 = vpow.pop %v3978
        %v3980 = vadd.f32 %v3979, 1.0
        %v3981 = vrcp.pop %v3980
        %v3982 = vmul.f32 1.0, %v3981
        %3983 = vrot.lane.b32.xlu0 %v3974, 64
        %v3984 = vpop.permute.xlu0 %3983
        %v3986 = vmul.f32 %v3982, %v3984
        %3988 = vrot.lane.b32.xlu0 %v3986, 64
        %v3989 = vpop.permute.xlu0 %3988
        %v3991 = vadd.f32 %v3843, %v3989
        %v3992 = vtanh.pop %v3991
        %v3993 = vsub.f32 1.0, %v3982
        %3995 = vrot.lane.b32.xlu0 %v3992, 96
        %v3996 = vpop.permute.xlu0 %3995
        %v3998 = vmul.f32 %v3993, %v3996
        %v4000 = vrot.slane %v3925, 7
        %v4002 = vmul.f32 %v3982, %v4000
        %v4003 = vadd.f32 %v3998, %v4002
        %v4004 = vpack.c.bf16 %v4003, %v4003
        %v4006 = vshrl.u32 %v4004, 16
        %4008 = vrot.lane.b32.xlu0 %v4006, 96
        %v4009 = vpop.permute.xlu0 %4008
        %v4011 = vsel %vm2245, %v4009, 0
        %4013 = vmatprep.subr.bf16.mxu0 0
        %4014 = vmatpush1.bf16.msra.mxu0 %v3856
        %4015 = vmatprep.subr.bf16.mxu0 0
        %4016 = vmatpush1.bf16.msra.mxu0 %v3857
        %4017 = vmatprep.subr.bf16.mxu0 0
        %4018 = vmatpush1.bf16.msra.mxu0 0
        %4019 = vmatprep.subr.bf16.mxu0 0
        %4020 = vmatpush1.bf16.msra.mxu0 0
        %4021 = vmatprep.subr.bf16.mxu0 0
        %4022 = vmatpush1.bf16.msra.mxu0 0
        %4023 = vmatprep.subr.bf16.mxu0 0
        %4024 = vmatpush1.bf16.msra.mxu0 0
        %4025 = vmatprep.subr.bf16.mxu0 0
        %4026 = vmatpush1.bf16.msra.mxu0 0
        %4027 = vmatprep.subr.bf16.mxu0 0
        %4028 = vmatpush1.bf16.msra.mxu0 0
        %4029 = vmatprep.subr.bf16.mxu0 0
        %4030 = vmatpush1.bf16.msra.mxu0 0
        %4031 = vmatprep.subr.bf16.mxu0 0
        %4032 = vmatpush1.bf16.msra.mxu0 0
        %4033 = vmatprep.subr.bf16.mxu0 0
        %4034 = vmatpush1.bf16.msra.mxu0 0
        %4035 = vmatprep.subr.bf16.mxu0 0
        %4036 = vmatpush1.bf16.msra.mxu0 0
        %4037 = vmatprep.subr.bf16.mxu0 0
        %4038 = vmatpush1.bf16.msra.mxu0 0
        %4039 = vmatprep.subr.bf16.mxu0 0
        %4040 = vmatpush1.bf16.msra.mxu0 0
        %4041 = vmatprep.subr.bf16.mxu0 0
        %4042 = vmatpush1.bf16.msra.mxu0 0
        %4043 = vmatprep.subr.bf16.mxu0 0
        %4044 = vmatpush1.bf16.msra.mxu0 0
        %4045 = vmatprep.mubr.bf16.mxu0 0
        %4046 = vmatmul.mubr.bf16.gmra.mrb[0].mxu0 %v4011
        %v4047 = vpop.f32.mrb[0].mxu0
        %v4048 = vadd.f32 %v3772, %v4047
        %v4049 = vpop.f32.mrb[0].mxu0
        %v4050 = vpop.f32.mrb[0].mxu0
        %v4051 = vpop.f32.mrb[0].mxu0
        %4052 = vdwg.mxu0
        %v4054 = vrot.slane %v4048, 6
        %v4056 = vadd.f32 %v3843, %v4054
        %v4057 = vxor.u32 %v4056, 2147483648
        %v4058 = vmul.f32 %v4057, 1.442695
        %v4059 = vpow.pop %v4058
        %v4060 = vadd.f32 %v4059, 1.0
        %v4061 = vrcp.pop %v4060
        %v4062 = vmul.f32 1.0, %v4061
        %4063 = vrot.lane.b32.xlu0 %v4054, 64
        %v4064 = vpop.permute.xlu0 %4063
        %v4066 = vmul.f32 %v4062, %v4064
        %4068 = vrot.lane.b32.xlu0 %v4066, 64
        %v4069 = vpop.permute.xlu0 %4068
        %v4071 = vadd.f32 %v3843, %v4069
        %v4072 = vtanh.pop %v4071
        %v4073 = vsub.f32 1.0, %v4062
        %4075 = vrot.lane.b32.xlu0 %v4072, 96
        %v4076 = vpop.permute.xlu0 %4075
        %v4078 = vmul.f32 %v4073, %v4076
        %v4080 = vrot.slane %v4003, 7
        %v4082 = vmul.f32 %v4062, %v4080
        %v4083 = vadd.f32 %v4078, %v4082
        %v4084 = vpack.c.bf16 %v4083, %v4083
        %v4086 = vrot.slane %v4084, 1
        %4087 = vrot.lane.b32.xlu0 %v4086, 96
        %v4088 = vpop.permute.xlu0 %4087
        %v4090 = vsel %vm2245, %v4088, 0
        %4092 = vmatprep.subr.bf16.mxu0 0
        %4093 = vmatpush1.bf16.msra.mxu0 %v3856
        %4094 = vmatprep.subr.bf16.mxu0 0
        %4095 = vmatpush1.bf16.msra.mxu0 %v3857
        %4096 = vmatprep.subr.bf16.mxu0 0
        %4097 = vmatpush1.bf16.msra.mxu0 0
        %4098 = vmatprep.subr.bf16.mxu0 0
        %4099 = vmatpush1.bf16.msra.mxu0 0
        %4100 = vmatprep.subr.bf16.mxu0 0
        %4101 = vmatpush1.bf16.msra.mxu0 0
        %4102 = vmatprep.subr.bf16.mxu0 0
        %4103 = vmatpush1.bf16.msra.mxu0 0
        %4104 = vmatprep.subr.bf16.mxu0 0
        %4105 = vmatpush1.bf16.msra.mxu0 0
        %4106 = vmatprep.subr.bf16.mxu0 0
        %4107 = vmatpush1.bf16.msra.mxu0 0
        %4108 = vmatprep.subr.bf16.mxu0 0
        %4109 = vmatpush1.bf16.msra.mxu0 0
        %4110 = vmatprep.subr.bf16.mxu0 0
        %4111 = vmatpush1.bf16.msra.mxu0 0
        %4112 = vmatprep.subr.bf16.mxu0 0
        %4113 = vmatpush1.bf16.msra.mxu0 0
        %4114 = vmatprep.subr.bf16.mxu0 0
        %4115 = vmatpush1.bf16.msra.mxu0 0
        %4116 = vmatprep.subr.bf16.mxu0 0
        %4117 = vmatpush1.bf16.msra.mxu0 0
        %4118 = vmatprep.subr.bf16.mxu0 0
        %4119 = vmatpush1.bf16.msra.mxu0 0
        %4120 = vmatprep.subr.bf16.mxu0 0
        %4121 = vmatpush1.bf16.msra.mxu0 0
        %4122 = vmatprep.subr.bf16.mxu0 0
        %4123 = vmatpush1.bf16.msra.mxu0 0
        %4124 = vmatprep.mubr.bf16.mxu0 0
        %4125 = vmatmul.mubr.bf16.gmra.mrb[0].mxu0 %v4090
        %v4126 = vpop.f32.mrb[0].mxu0
        %v4127 = vadd.f32 %v3772, %v4126
        %v4128 = vpop.f32.mrb[0].mxu0
        %v4129 = vpop.f32.mrb[0].mxu0
        %v4130 = vpop.f32.mrb[0].mxu0
        %4131 = vdwg.mxu0
        %v4133 = vrot.slane %v4127, 5
        %v4135 = vadd.f32 %v3843, %v4133
        %v4136 = vxor.u32 %v4135, 2147483648
        %v4137 = vmul.f32 %v4136, 1.442695
        %v4138 = vpow.pop %v4137
        %v4139 = vadd.f32 %v4138, 1.0
        %v4140 = vrcp.pop %v4139
        %v4141 = vmul.f32 1.0, %v4140
        %4142 = vrot.lane.b32.xlu0 %v4133, 64
        %v4143 = vpop.permute.xlu0 %4142
        %v4145 = vmul.f32 %v4141, %v4143
        %4147 = vrot.lane.b32.xlu0 %v4145, 64
        %v4148 = vpop.permute.xlu0 %4147
        %v4150 = vadd.f32 %v3843, %v4148
        %v4151 = vtanh.pop %v4150
        %v4152 = vsub.f32 1.0, %v4141
        %4154 = vrot.lane.b32.xlu0 %v4151, 96
        %v4155 = vpop.permute.xlu0 %4154
        %v4157 = vmul.f32 %v4152, %v4155
        %v4159 = vrot.slane %v4083, 7
        %v4161 = vmul.f32 %v4141, %v4159
        %v4162 = vadd.f32 %v4157, %v4161
        %v4163 = vpack.c.bf16 %v4162, %v4162
        %v4165 = vshrl.u32 %v4163, 16
        %v4167 = vrot.slane %v4165, 1
        %4168 = vrot.lane.b32.xlu0 %v4167, 96
        %v4169 = vpop.permute.xlu0 %4168
        %v4171 = vsel %vm2245, %v4169, 0
        %4173 = vmatprep.subr.bf16.mxu0 0
        %4174 = vmatpush1.bf16.msra.mxu0 %v3856
        %4175 = vmatprep.subr.bf16.mxu0 0
        %4176 = vmatpush1.bf16.msra.mxu0 %v3857
        %4177 = vmatprep.subr.bf16.mxu0 0
        %4178 = vmatpush1.bf16.msra.mxu0 0
        %4179 = vmatprep.subr.bf16.mxu0 0
        %4180 = vmatpush1.bf16.msra.mxu0 0
        %4181 = vmatprep.subr.bf16.mxu0 0
        %4182 = vmatpush1.bf16.msra.mxu0 0
        %4183 = vmatprep.subr.bf16.mxu0 0
        %4184 = vmatpush1.bf16.msra.mxu0 0
        %4185 = vmatprep.subr.bf16.mxu0 0
        %4186 = vmatpush1.bf16.msra.mxu0 0
        %4187 = vmatprep.subr.bf16.mxu0 0
        %4188 = vmatpush1.bf16.msra.mxu0 0
        %4189 = vmatprep.subr.bf16.mxu0 0
        %4190 = vmatpush1.bf16.msra.mxu0 0
        %4191 = vmatprep.subr.bf16.mxu0 0
        %4192 = vmatpush1.bf16.msra.mxu0 0
        %4193 = vmatprep.subr.bf16.mxu0 0
        %4194 = vmatpush1.bf16.msra.mxu0 0
        %4195 = vmatprep.subr.bf16.mxu0 0
        %4196 = vmatpush1.bf16.msra.mxu0 0
        %4197 = vmatprep.subr.bf16.mxu0 0
        %4198 = vmatpush1.bf16.msra.mxu0 0
        %4199 = vmatprep.subr.bf16.mxu0 0
        %4200 = vmatpush1.bf16.msra.mxu0 0
        %4201 = vmatprep.subr.bf16.mxu0 0
        %4202 = vmatpush1.bf16.msra.mxu0 0
        %4203 = vmatprep.subr.bf16.mxu0 0
        %4204 = vmatpush1.bf16.msra.mxu0 0
        %4205 = vmatprep.mubr.bf16.mxu0 0
        %4206 = vmatmul.mubr.bf16.gmra.mrb[0].mxu0 %v4171
        %v4207 = vpop.f32.mrb[0].mxu0
        %v4208 = vadd.f32 %v3772, %v4207
        %v4209 = vpop.f32.mrb[0].mxu0
        %v4210 = vpop.f32.mrb[0].mxu0
        %v4211 = vpop.f32.mrb[0].mxu0
        %4212 = vdwg.mxu0
        %v4214 = vrot.slane %v4208, 4
        %v4216 = vadd.f32 %v3843, %v4214
        %v4217 = vxor.u32 %v4216, 2147483648
        %v4218 = vmul.f32 %v4217, 1.442695
        %v4219 = vpow.pop %v4218
        %v4220 = vadd.f32 %v4219, 1.0
        %v4221 = vrcp.pop %v4220
        %v4222 = vmul.f32 1.0, %v4221
        %4223 = vrot.lane.b32.xlu0 %v4214, 64
        %v4224 = vpop.permute.xlu0 %4223
        %v4226 = vmul.f32 %v4222, %v4224
        %4228 = vrot.lane.b32.xlu0 %v4226, 64
        %v4229 = vpop.permute.xlu0 %4228
        %v4231 = vadd.f32 %v3843, %v4229
        %v4232 = vtanh.pop %v4231
        %v4233 = vsub.f32 1.0, %v4222
        %4235 = vrot.lane.b32.xlu0 %v4232, 96
        %v4236 = vpop.permute.xlu0 %4235
        %v4238 = vmul.f32 %v4233, %v4236
        %v4240 = vrot.slane %v4162, 7
        %v4242 = vmul.f32 %v4222, %v4240
        %v4243 = vadd.f32 %v4238, %v4242
        %v4244 = vpack.c.bf16 %v4243, %v4243
        %v4246 = vrot.slane %v4244, 2
        %4247 = vrot.lane.b32.xlu0 %v4246, 96
        %v4248 = vpop.permute.xlu0 %4247
        %v4250 = vsel %vm2245, %v4248, 0
        %4252 = vmatprep.subr.bf16.mxu0 0
        %4253 = vmatpush1.bf16.msra.mxu0 %v3856
        %4254 = vmatprep.subr.bf16.mxu0 0
        %4255 = vmatpush1.bf16.msra.mxu0 %v3857
        %4256 = vmatprep.subr.bf16.mxu0 0
        %4257 = vmatpush1.bf16.msra.mxu0 0
        %4258 = vmatprep.subr.bf16.mxu0 0
        %4259 = vmatpush1.bf16.msra.mxu0 0
        %4260 = vmatprep.subr.bf16.mxu0 0
        %4261 = vmatpush1.bf16.msra.mxu0 0
        %4262 = vmatprep.subr.bf16.mxu0 0
        %4263 = vmatpush1.bf16.msra.mxu0 0
        %4264 = vmatprep.subr.bf16.mxu0 0
        %4265 = vmatpush1.bf16.msra.mxu0 0
        %4266 = vmatprep.subr.bf16.mxu0 0
        %4267 = vmatpush1.bf16.msra.mxu0 0
        %4268 = vmatprep.subr.bf16.mxu0 0
        %4269 = vmatpush1.bf16.msra.mxu0 0
        %4270 = vmatprep.subr.bf16.mxu0 0
        %4271 = vmatpush1.bf16.msra.mxu0 0
        %4272 = vmatprep.subr.bf16.mxu0 0
        %4273 = vmatpush1.bf16.msra.mxu0 0
        %4274 = vmatprep.subr.bf16.mxu0 0
        %4275 = vmatpush1.bf16.msra.mxu0 0
        %4276 = vmatprep.subr.bf16.mxu0 0
        %4277 = vmatpush1.bf16.msra.mxu0 0
        %4278 = vmatprep.subr.bf16.mxu0 0
        %4279 = vmatpush1.bf16.msra.mxu0 0
        %4280 = vmatprep.subr.bf16.mxu0 0
        %4281 = vmatpush1.bf16.msra.mxu0 0
        %4282 = vmatprep.subr.bf16.mxu0 0
        %4283 = vmatpush1.bf16.msra.mxu0 0
        %4284 = vmatprep.mubr.bf16.mxu0 0
        %4285 = vmatmul.mubr.bf16.gmra.mrb[0].mxu0 %v4250
        %v4286 = vpop.f32.mrb[0].mxu0
        %v4287 = vadd.f32 %v3772, %v4286
        %v4288 = vpop.f32.mrb[0].mxu0
        %v4289 = vpop.f32.mrb[0].mxu0
        %v4290 = vpop.f32.mrb[0].mxu0
        %4291 = vdwg.mxu0
        %v4293 = vrot.slane %v4287, 3
        %v4295 = vadd.f32 %v3843, %v4293
        %v4296 = vxor.u32 %v4295, 2147483648
        %v4297 = vmul.f32 %v4296, 1.442695
        %v4298 = vpow.pop %v4297
        %v4299 = vadd.f32 %v4298, 1.0
        %v4300 = vrcp.pop %v4299
        %v4301 = vmul.f32 1.0, %v4300
        %4302 = vrot.lane.b32.xlu0 %v4293, 64
        %v4303 = vpop.permute.xlu0 %4302
        %v4305 = vmul.f32 %v4301, %v4303
        %4307 = vrot.lane.b32.xlu0 %v4305, 64
        %v4308 = vpop.permute.xlu0 %4307
        %v4310 = vadd.f32 %v3843, %v4308
        %v4311 = vtanh.pop %v4310
        %v4312 = vsub.f32 1.0, %v4301
        %4314 = vrot.lane.b32.xlu0 %v4311, 96
        %v4315 = vpop.permute.xlu0 %4314
        %v4317 = vmul.f32 %v4312, %v4315
        %v4319 = vrot.slane %v4243, 7
        %v4321 = vmul.f32 %v4301, %v4319
        %v4322 = vadd.f32 %v4317, %v4321
        %v4323 = vpack.c.bf16 %v4322, %v4322
        %v4325 = vshrl.u32 %v4323, 16
        %v4327 = vrot.slane %v4325, 2
        %4328 = vrot.lane.b32.xlu0 %v4327, 96
        %v4329 = vpop.permute.xlu0 %4328
        %v4331 = vsel %vm2245, %v4329, 0
        %4333 = vmatprep.subr.bf16.mxu0 0
        %4334 = vmatpush1.bf16.msra.mxu0 %v3856
        %4335 = vmatprep.subr.bf16.mxu0 0
        %4336 = vmatpush1.bf16.msra.mxu0 %v3857
        %4337 = vmatprep.subr.bf16.mxu0 0
        %4338 = vmatpush1.bf16.msra.mxu0 0
        %4339 = vmatprep.subr.bf16.mxu0 0
        %4340 = vmatpush1.bf16.msra.mxu0 0
        %4341 = vmatprep.subr.bf16.mxu0 0
        %4342 = vmatpush1.bf16.msra.mxu0 0
        %4343 = vmatprep.subr.bf16.mxu0 0
        %4344 = vmatpush1.bf16.msra.mxu0 0
        %4345 = vmatprep.subr.bf16.mxu0 0
        %4346 = vmatpush1.bf16.msra.mxu0 0
        %4347 = vmatprep.subr.bf16.mxu0 0
        %4348 = vmatpush1.bf16.msra.mxu0 0
        %4349 = vmatprep.subr.bf16.mxu0 0
        %4350 = vmatpush1.bf16.msra.mxu0 0
        %4351 = vmatprep.subr.bf16.mxu0 0
        %4352 = vmatpush1.bf16.msra.mxu0 0
        %4353 = vmatprep.subr.bf16.mxu0 0
        %4354 = vmatpush1.bf16.msra.mxu0 0
        %4355 = vmatprep.subr.bf16.mxu0 0
        %4356 = vmatpush1.bf16.msra.mxu0 0
        %4357 = vmatprep.subr.bf16.mxu0 0
        %4358 = vmatpush1.bf16.msra.mxu0 0
        %4359 = vmatprep.subr.bf16.mxu0 0
        %4360 = vmatpush1.bf16.msra.mxu0 0
        %4361 = vmatprep.subr.bf16.mxu0 0
        %4362 = vmatpush1.bf16.msra.mxu0 0
        %4363 = vmatprep.subr.bf16.mxu0 0
        %4364 = vmatpush1.bf16.msra.mxu0 0
        %4365 = vmatprep.mubr.bf16.mxu0 0
        %4366 = vmatmul.mubr.bf16.gmra.mrb[0].mxu0 %v4331
        %v4367 = vpop.f32.mrb[0].mxu0
        %v4368 = vadd.f32 %v3772, %v4367
        %v4369 = vpop.f32.mrb[0].mxu0
        %v4370 = vpop.f32.mrb[0].mxu0
        %v4371 = vpop.f32.mrb[0].mxu0
        %4372 = vdwg.mxu0
        %v4374 = vrot.slane %v4368, 2
        %v4376 = vadd.f32 %v3843, %v4374
        %v4377 = vxor.u32 %v4376, 2147483648
        %v4378 = vmul.f32 %v4377, 1.442695
        %v4379 = vpow.pop %v4378
        %v4380 = vadd.f32 %v4379, 1.0
        %v4381 = vrcp.pop %v4380
        %v4382 = vmul.f32 1.0, %v4381
        %4383 = vrot.lane.b32.xlu0 %v4374, 64
        %v4384 = vpop.permute.xlu0 %4383
        %v4386 = vmul.f32 %v4382, %v4384
        %4388 = vrot.lane.b32.xlu0 %v4386, 64
        %v4389 = vpop.permute.xlu0 %4388
        %v4391 = vadd.f32 %v3843, %v4389
        %v4392 = vtanh.pop %v4391
        %v4393 = vsub.f32 1.0, %v4382
        %4395 = vrot.lane.b32.xlu0 %v4392, 96
        %v4396 = vpop.permute.xlu0 %4395
        %v4398 = vmul.f32 %v4393, %v4396
        %v4400 = vrot.slane %v4322, 7
        %v4402 = vmul.f32 %v4382, %v4400
        %v4403 = vadd.f32 %v4398, %v4402
        %v4404 = vpack.c.bf16 %v4403, %v4403
        %v4406 = vrot.slane %v4404, 3
        %4407 = vrot.lane.b32.xlu0 %v4406, 96
        %v4408 = vpop.permute.xlu0 %4407
        %v4410 = vsel %vm2245, %v4408, 0
        %4412 = vmatprep.subr.bf16.mxu0 0
        %4413 = vmatpush1.bf16.msra.mxu0 %v3856
        %4414 = vmatprep.subr.bf16.mxu0 0
        %4415 = vmatpush1.bf16.msra.mxu0 %v3857
        %4416 = vmatprep.subr.bf16.mxu0 0
        %4417 = vmatpush1.bf16.msra.mxu0 0
        %4418 = vmatprep.subr.bf16.mxu0 0
        %4419 = vmatpush1.bf16.msra.mxu0 0
        %4420 = vmatprep.subr.bf16.mxu0 0
        %4421 = vmatpush1.bf16.msra.mxu0 0
        %4422 = vmatprep.subr.bf16.mxu0 0
        %4423 = vmatpush1.bf16.msra.mxu0 0
        %4424 = vmatprep.subr.bf16.mxu0 0
        %4425 = vmatpush1.bf16.msra.mxu0 0
        %4426 = vmatprep.subr.bf16.mxu0 0
        %4427 = vmatpush1.bf16.msra.mxu0 0
        %4428 = vmatprep.subr.bf16.mxu0 0
        %4429 = vmatpush1.bf16.msra.mxu0 0
        %4430 = vmatprep.subr.bf16.mxu0 0
        %4431 = vmatpush1.bf16.msra.mxu0 0
        %4432 = vmatprep.subr.bf16.mxu0 0
        %4433 = vmatpush1.bf16.msra.mxu0 0
        %4434 = vmatprep.subr.bf16.mxu0 0
        %4435 = vmatpush1.bf16.msra.mxu0 0
        %4436 = vmatprep.subr.bf16.mxu0 0
        %4437 = vmatpush1.bf16.msra.mxu0 0
        %4438 = vmatprep.subr.bf16.mxu0 0
        %4439 = vmatpush1.bf16.msra.mxu0 0
        %4440 = vmatprep.subr.bf16.mxu0 0
        %4441 = vmatpush1.bf16.msra.mxu0 0
        %4442 = vmatprep.subr.bf16.mxu0 0
        %4443 = vmatpush1.bf16.msra.mxu0 0
        %4444 = vmatprep.mubr.bf16.mxu0 0
        %4445 = vmatmul.mubr.bf16.gmra.mrb[0].mxu0 %v4410
        %v4446 = vpop.f32.mrb[0].mxu0
        %v4447 = vadd.f32 %v3772, %v4446
        %v4448 = vpop.f32.mrb[0].mxu0
        %v4449 = vpop.f32.mrb[0].mxu0
        %v4450 = vpop.f32.mrb[0].mxu0
        %4451 = vdwg.mxu0
        %v4453 = vrot.slane %v4447, 1
        %v4455 = vadd.f32 %v3843, %v4453
        %v4456 = vxor.u32 %v4455, 2147483648
        %v4457 = vmul.f32 %v4456, 1.442695
        %v4458 = vpow.pop %v4457
        %v4459 = vadd.f32 %v4458, 1.0
        %v4460 = vrcp.pop %v4459
        %v4461 = vmul.f32 1.0, %v4460
        %4462 = vrot.lane.b32.xlu0 %v4453, 64
        %v4463 = vpop.permute.xlu0 %4462
        %v4465 = vmul.f32 %v4461, %v4463
        %4467 = vrot.lane.b32.xlu0 %v4465, 64
        %v4468 = vpop.permute.xlu0 %4467
        %v4470 = vadd.f32 %v3843, %v4468
        %v4471 = vtanh.pop %v4470
        %v4472 = vsub.f32 1.0, %v4461
        %4474 = vrot.lane.b32.xlu0 %v4471, 96
        %v4475 = vpop.permute.xlu0 %4474
        %v4477 = vmul.f32 %v4472, %v4475
        %v4479 = vrot.slane %v4403, 7
        %v4481 = vmul.f32 %v4461, %v4479
        %v4482 = vadd.f32 %v4477, %v4481
        %v4483 = vsel %vm3029, %v3925, %v4003
        %v4484 = vsel %vm2140, %v4483, %v4083
        %v4485 = vsel %vm3032, %v4484, %v4162
        %v4486 = vsel %vm2051, %v4485, %v4243
        %v4487 = vsel %vm3035, %v4486, %v4322
        %v4488 = vsel %vm3037, %v4487, %v4403
        %v4489 = vsel %vm3039, %v4488, %v4482
        %v4490 = vld [vmem:[%s55] sm:$0xf]
        %v4491 = vld [vmem:[%s55 + $0x4] sm:$0xf]
        %v4492 = vld [vmem:[%s55 + $0x8] sm:$0xf]
        %v4493 = vld [vmem:[%s55 + $0xc] sm:$0xf]
        %v4494 = vld [vmem:[%s55 + $0x10] sm:$0xf]
        %v4495 = vld [vmem:[%s55 + $0x14] sm:$0xf]
        %v4496 = vld [vmem:[%s55 + $0x18] sm:$0xf]
        %v4497 = vld [vmem:[%s55 + $0x1c] sm:$0xf]
        %v4498 = vld [vmem:[#allocation29] sm:$0xf]
        %v4499 = vld [vmem:[#allocation29 + $0x4] sm:$0xf]
        %v4500 = vld [vmem:[#allocation29 + $0x8] sm:$0xf]
        %v4501 = vld [vmem:[#allocation29 + $0xc] sm:$0xf]
        %v4502 = vld [vmem:[#allocation30] sm:$0x1]
        %v4503 = vld [vmem:[#allocation32] sm:$0x1]
        %v4505 = vlaneseq
        %v4506 = vshrl.u32 %v4505, 7
        %v4507 = vsub.s32 0, %v4506
        %v4508 = vrot.slane %v4502, %v4507
        %v4518 = vunpack.c.l.b16 %v4490
        %v4519 = vunpack.c.l.b16 %v4491
        %v4520 = vunpack.c.l.b16 %v4492
        %v4521 = vunpack.c.l.b16 %v4493
        %v4522 = vunpack.c.l.b16 %v4494
        %v4523 = vunpack.c.l.b16 %v4495
        %v4524 = vunpack.c.l.b16 %v4496
        %v4525 = vunpack.c.l.b16 %v4497
        %v4526 = vpack.c.b16 %v4519, %v4518
        %v4527 = vpack.c.b16 %v4521, %v4520
        %v4528 = vpack.c.b16 %v4523, %v4522
        %v4529 = vpack.c.b16 %v4525, %v4524
        %4534 = vmatprep.subr.bf16.mxu0 0
        %4535 = vmatpush1.bf16.msra.mxu0 %v4526
        %4536 = vmatprep.subr.bf16.mxu0 0
        %4537 = vmatpush1.bf16.msra.mxu0 %v4527
        %4538 = vmatprep.subr.bf16.mxu0 0
        %4539 = vmatpush1.bf16.msra.mxu0 %v4528
        %4540 = vmatprep.subr.bf16.mxu0 0
        %4541 = vmatpush1.bf16.msra.mxu0 %v4529
        %4542 = vmatprep.subr.bf16.mxu0 0
        %4543 = vmatpush1.bf16.msra.mxu0 0
        %4544 = vmatprep.subr.bf16.mxu0 0
        %4545 = vmatpush1.bf16.msra.mxu0 0
        %4546 = vmatprep.subr.bf16.mxu0 0
        %4547 = vmatpush1.bf16.msra.mxu0 0
        %4548 = vmatprep.subr.bf16.mxu0 0
        %4549 = vmatpush1.bf16.msra.mxu0 0
        %4550 = vmatprep.subr.bf16.mxu0 0
        %4551 = vmatpush1.bf16.msra.mxu0 0
        %4552 = vmatprep.subr.bf16.mxu0 0
        %4553 = vmatpush1.bf16.msra.mxu0 0
        %4554 = vmatprep.subr.bf16.mxu0 0
        %4555 = vmatpush1.bf16.msra.mxu0 0
        %4556 = vmatprep.subr.bf16.mxu0 0
        %4557 = vmatpush1.bf16.msra.mxu0 0
        %4558 = vmatprep.subr.bf16.mxu0 0
        %4559 = vmatpush1.bf16.msra.mxu0 0
        %4560 = vmatprep.subr.bf16.mxu0 0
        %4561 = vmatpush1.bf16.msra.mxu0 0
        %4562 = vmatprep.subr.bf16.mxu0 0
        %4563 = vmatpush1.bf16.msra.mxu0 0
        %4564 = vmatprep.subr.bf16.mxu0 0
        %4565 = vmatpush1.bf16.msra.mxu0 0
        %4566 = vmatprep.mubr.bf16.mxu0 0
        %4567 = vmatmul.mubr.bf16.gmra.mrb[0].mxu0 %v3806
        %v4568 = vpop.f32.mrb[0].mxu0
        %v4569 = vadd.f32 %v4508, %v4568
        %v4570 = vpop.f32.mrb[0].mxu0
        %v4571 = vpop.f32.mrb[0].mxu0
        %v4572 = vpop.f32.mrb[0].mxu0
        %4573 = vdwg.mxu0
        %v4578 = vunpack.c.l.b16 %v4498
        %v4579 = vunpack.c.l.b16 %v4499
        %v4580 = vunpack.c.l.b16 %v4500
        %v4581 = vunpack.c.l.b16 %v4501
        %v4582 = vpack.c.b16 %v4579, %v4578
        %v4583 = vpack.c.b16 %v4581, %v4580
        %4586 = vmatprep.subr.bf16.mxu0 0
        %4587 = vmatpush1.bf16.msra.mxu0 %v4582
        %4588 = vmatprep.subr.bf16.mxu0 0
        %4589 = vmatpush1.bf16.msra.mxu0 %v4583
        %4590 = vmatprep.subr.bf16.mxu0 0
        %4591 = vmatpush1.bf16.msra.mxu0 0
        %4592 = vmatprep.subr.bf16.mxu0 0
        %4593 = vmatpush1.bf16.msra.mxu0 0
        %4594 = vmatprep.subr.bf16.mxu0 0
        %4595 = vmatpush1.bf16.msra.mxu0 0
        %4596 = vmatprep.subr.bf16.mxu0 0
        %4597 = vmatpush1.bf16.msra.mxu0 0
        %4598 = vmatprep.subr.bf16.mxu0 0
        %4599 = vmatpush1.bf16.msra.mxu0 0
        %4600 = vmatprep.subr.bf16.mxu0 0
        %4601 = vmatpush1.bf16.msra.mxu0 0
        %4602 = vmatprep.subr.bf16.mxu0 0
        %4603 = vmatpush1.bf16.msra.mxu0 0
        %4604 = vmatprep.subr.bf16.mxu0 0
        %4605 = vmatpush1.bf16.msra.mxu0 0
        %4606 = vmatprep.subr.bf16.mxu0 0
        %4607 = vmatpush1.bf16.msra.mxu0 0
        %4608 = vmatprep.subr.bf16.mxu0 0
        %4609 = vmatpush1.bf16.msra.mxu0 0
        %4610 = vmatprep.subr.bf16.mxu0 0
        %4611 = vmatpush1.bf16.msra.mxu0 0
        %4612 = vmatprep.subr.bf16.mxu0 0
        %4613 = vmatpush1.bf16.msra.mxu0 0
        %4614 = vmatprep.subr.bf16.mxu0 0
        %4615 = vmatpush1.bf16.msra.mxu0 0
        %4616 = vmatprep.subr.bf16.mxu0 0
        %4617 = vmatpush1.bf16.msra.mxu0 0
        %4618 = vmatprep.mubr.bf16.mxu0 0
        %4619 = vmatmul.mubr.bf16.gmra.mrb[0].mxu0 %v2404
        %v4620 = vpop.f32.mrb[0].mxu0
        %v4621 = vadd.f32 %v4503, %v4620
        %v4622 = vpop.f32.mrb[0].mxu0
        %v4623 = vpop.f32.mrb[0].mxu0
        %v4624 = vpop.f32.mrb[0].mxu0
        %4625 = vdwg.mxu0
        %v4627 = vrot.slane %v4621, 1
        %v4629 = vadd.f32 %v4569, %v4627
        %v4630 = vxor.u32 %v4629, 2147483648
        %v4631 = vmul.f32 %v4630, 1.442695
        %v4632 = vpow.pop %v4631
        %v4633 = vadd.f32 %v4632, 1.0
        %v4634 = vrcp.pop %v4633
        %v4635 = vmul.f32 1.0, %v4634
        %4636 = vrot.lane.b32.xlu0 %v4627, 64
        %v4637 = vpop.permute.xlu0 %4636
        %v4639 = vmul.f32 %v4635, %v4637
        %4641 = vrot.lane.b32.xlu0 %v4639, 64
        %v4642 = vpop.permute.xlu0 %4641
        %v4644 = vadd.f32 %v4569, %v4642
        %v4645 = vtanh.pop %v4644
        %v4646 = vsub.f32 1.0, %v4635
        %4648 = vrot.lane.b32.xlu0 %v4645, 96
        %v4649 = vpop.permute.xlu0 %4648
        %v4651 = vmul.f32 %v4646, %v4649
        %v4652 = vmul.f32 %v4635, 0.0
        %v4653 = vadd.f32 %v4651, %v4652
        %v4654 = vpack.c.bf16 %v4653, %v4653
        %v4656 = vshrl.u32 %v4654, 16
        %v4658 = vrot.slane %v4656, 3
        %4659 = vrot.lane.b32.xlu0 %v4658, 96
        %v4660 = vpop.permute.xlu0 %4659
        %v4662 = vsel %vm2245, %v4660, 0
        %4664 = vmatprep.subr.bf16.mxu0 0
        %4665 = vmatpush1.bf16.msra.mxu0 %v4582
        %4666 = vmatprep.subr.bf16.mxu0 0
        %4667 = vmatpush1.bf16.msra.mxu0 %v4583
        %4668 = vmatprep.subr.bf16.mxu0 0
        %4669 = vmatpush1.bf16.msra.mxu0 0
        %4670 = vmatprep.subr.bf16.mxu0 0
        %4671 = vmatpush1.bf16.msra.mxu0 0
        %4672 = vmatprep.subr.bf16.mxu0 0
        %4673 = vmatpush1.bf16.msra.mxu0 0
        %4674 = vmatprep.subr.bf16.mxu0 0
        %4675 = vmatpush1.bf16.msra.mxu0 0
        %4676 = vmatprep.subr.bf16.mxu0 0
        %4677 = vmatpush1.bf16.msra.mxu0 0
        %4678 = vmatprep.subr.bf16.mxu0 0
        %4679 = vmatpush1.bf16.msra.mxu0 0
        %4680 = vmatprep.subr.bf16.mxu0 0
        %4681 = vmatpush1.bf16.msra.mxu0 0
        %4682 = vmatprep.subr.bf16.mxu0 0
        %4683 = vmatpush1.bf16.msra.mxu0 0
        %4684 = vmatprep.subr.bf16.mxu0 0
        %4685 = vmatpush1.bf16.msra.mxu0 0
        %4686 = vmatprep.subr.bf16.mxu0 0
        %4687 = vmatpush1.bf16.msra.mxu0 0
        %4688 = vmatprep.subr.bf16.mxu0 0
        %4689 = vmatpush1.bf16.msra.mxu0 0
        %4690 = vmatprep.subr.bf16.mxu0 0
        %4691 = vmatpush1.bf16.msra.mxu0 0
        %4692 = vmatprep.subr.bf16.mxu0 0
        %4693 = vmatpush1.bf16.msra.mxu0 0
        %4694 = vmatprep.subr.bf16.mxu0 0
        %4695 = vmatpush1.bf16.msra.mxu0 0
        %4696 = vmatprep.mubr.bf16.mxu0 0
        %4697 = vmatmul.mubr.bf16.gmra.mrb[0].mxu0 %v4662
        %v4698 = vpop.f32.mrb[0].mxu0
        %v4699 = vadd.f32 %v4503, %v4698
        %v4700 = vpop.f32.mrb[0].mxu0
        %v4701 = vpop.f32.mrb[0].mxu0
        %v4702 = vpop.f32.mrb[0].mxu0
        %4703 = vdwg.mxu0
        %v4705 = vrot.slane %v4699, 2
        %v4707 = vadd.f32 %v4569, %v4705
        %v4708 = vxor.u32 %v4707, 2147483648
        %v4709 = vmul.f32 %v4708, 1.442695
        %v4710 = vpow.pop %v4709
        %v4711 = vadd.f32 %v4710, 1.0
        %v4712 = vrcp.pop %v4711
        %v4713 = vmul.f32 1.0, %v4712
        %4714 = vrot.lane.b32.xlu0 %v4705, 64
        %v4715 = vpop.permute.xlu0 %4714
        %v4717 = vmul.f32 %v4713, %v4715
        %4719 = vrot.lane.b32.xlu0 %v4717, 64
        %v4720 = vpop.permute.xlu0 %4719
        %v4722 = vadd.f32 %v4569, %v4720
        %v4723 = vtanh.pop %v4722
        %v4724 = vsub.f32 1.0, %v4713
        %4726 = vrot.lane.b32.xlu0 %v4723, 96
        %v4727 = vpop.permute.xlu0 %4726
        %v4729 = vmul.f32 %v4724, %v4727
        %v4731 = vrot.slane %v4653, 1
        %v4733 = vmul.f32 %v4713, %v4731
        %v4734 = vadd.f32 %v4729, %v4733
        %v4735 = vpack.c.bf16 %v4734, %v4734
        %v4737 = vrot.slane %v4735, 3
        %4738 = vrot.lane.b32.xlu0 %v4737, 96
        %v4739 = vpop.permute.xlu0 %4738
        %v4741 = vsel %vm2245, %v4739, 0
        %4743 = vmatprep.subr.bf16.mxu0 0
        %4744 = vmatpush1.bf16.msra.mxu0 %v4582
        %4745 = vmatprep.subr.bf16.mxu0 0
        %4746 = vmatpush1.bf16.msra.mxu0 %v4583
        %4747 = vmatprep.subr.bf16.mxu0 0
        %4748 = vmatpush1.bf16.msra.mxu0 0
        %4749 = vmatprep.subr.bf16.mxu0 0
        %4750 = vmatpush1.bf16.msra.mxu0 0
        %4751 = vmatprep.subr.bf16.mxu0 0
        %4752 = vmatpush1.bf16.msra.mxu0 0
        %4753 = vmatprep.subr.bf16.mxu0 0
        %4754 = vmatpush1.bf16.msra.mxu0 0
        %4755 = vmatprep.subr.bf16.mxu0 0
        %4756 = vmatpush1.bf16.msra.mxu0 0
        %4757 = vmatprep.subr.bf16.mxu0 0
        %4758 = vmatpush1.bf16.msra.mxu0 0
        %4759 = vmatprep.subr.bf16.mxu0 0
        %4760 = vmatpush1.bf16.msra.mxu0 0
        %4761 = vmatprep.subr.bf16.mxu0 0
        %4762 = vmatpush1.bf16.msra.mxu0 0
        %4763 = vmatprep.subr.bf16.mxu0 0
        %4764 = vmatpush1.bf16.msra.mxu0 0
        %4765 = vmatprep.subr.bf16.mxu0 0
        %4766 = vmatpush1.bf16.msra.mxu0 0
        %4767 = vmatprep.subr.bf16.mxu0 0
        %4768 = vmatpush1.bf16.msra.mxu0 0
        %4769 = vmatprep.subr.bf16.mxu0 0
        %4770 = vmatpush1.bf16.msra.mxu0 0
        %4771 = vmatprep.subr.bf16.mxu0 0
        %4772 = vmatpush1.bf16.msra.mxu0 0
        %4773 = vmatprep.subr.bf16.mxu0 0
        %4774 = vmatpush1.bf16.msra.mxu0 0
        %4775 = vmatprep.mubr.bf16.mxu0 0
        %4776 = vmatmul.mubr.bf16.gmra.mrb[0].mxu0 %v4741
        %v4777 = vpop.f32.mrb[0].mxu0
        %v4778 = vadd.f32 %v4503, %v4777
        %v4779 = vpop.f32.mrb[0].mxu0
        %v4780 = vpop.f32.mrb[0].mxu0
        %v4781 = vpop.f32.mrb[0].mxu0
        %4782 = vdwg.mxu0
        %v4784 = vrot.slane %v4778, 3
        %v4786 = vadd.f32 %v4569, %v4784
        %v4787 = vxor.u32 %v4786, 2147483648
        %v4788 = vmul.f32 %v4787, 1.442695
        %v4789 = vpow.pop %v4788
        %v4790 = vadd.f32 %v4789, 1.0
        %v4791 = vrcp.pop %v4790
        %v4792 = vmul.f32 1.0, %v4791
        %4793 = vrot.lane.b32.xlu0 %v4784, 64
        %v4794 = vpop.permute.xlu0 %4793
        %v4796 = vmul.f32 %v4792, %v4794
        %4798 = vrot.lane.b32.xlu0 %v4796, 64
        %v4799 = vpop.permute.xlu0 %4798
        %v4801 = vadd.f32 %v4569, %v4799
        %v4802 = vtanh.pop %v4801
        %v4803 = vsub.f32 1.0, %v4792
        %4805 = vrot.lane.b32.xlu0 %v4802, 96
        %v4806 = vpop.permute.xlu0 %4805
        %v4808 = vmul.f32 %v4803, %v4806
        %v4810 = vrot.slane %v4734, 1
        %v4812 = vmul.f32 %v4792, %v4810
        %v4813 = vadd.f32 %v4808, %v4812
        %v4814 = vpack.c.bf16 %v4813, %v4813
        %v4816 = vshrl.u32 %v4814, 16
        %v4818 = vrot.slane %v4816, 2
        %4819 = vrot.lane.b32.xlu0 %v4818, 96
        %v4820 = vpop.permute.xlu0 %4819
        %v4822 = vsel %vm2245, %v4820, 0
        %4824 = vmatprep.subr.bf16.mxu0 0
        %4825 = vmatpush1.bf16.msra.mxu0 %v4582
        %4826 = vmatprep.subr.bf16.mxu0 0
        %4827 = vmatpush1.bf16.msra.mxu0 %v4583
        %4828 = vmatprep.subr.bf16.mxu0 0
        %4829 = vmatpush1.bf16.msra.mxu0 0
        %4830 = vmatprep.subr.bf16.mxu0 0
        %4831 = vmatpush1.bf16.msra.mxu0 0
        %4832 = vmatprep.subr.bf16.mxu0 0
        %4833 = vmatpush1.bf16.msra.mxu0 0
        %4834 = vmatprep.subr.bf16.mxu0 0
        %4835 = vmatpush1.bf16.msra.mxu0 0
        %4836 = vmatprep.subr.bf16.mxu0 0
        %4837 = vmatpush1.bf16.msra.mxu0 0
        %4838 = vmatprep.subr.bf16.mxu0 0
        %4839 = vmatpush1.bf16.msra.mxu0 0
        %4840 = vmatprep.subr.bf16.mxu0 0
        %4841 = vmatpush1.bf16.msra.mxu0 0
        %4842 = vmatprep.subr.bf16.mxu0 0
        %4843 = vmatpush1.bf16.msra.mxu0 0
        %4844 = vmatprep.subr.bf16.mxu0 0
        %4845 = vmatpush1.bf16.msra.mxu0 0
        %4846 = vmatprep.subr.bf16.mxu0 0
        %4847 = vmatpush1.bf16.msra.mxu0 0
        %4848 = vmatprep.subr.bf16.mxu0 0
        %4849 = vmatpush1.bf16.msra.mxu0 0
        %4850 = vmatprep.subr.bf16.mxu0 0
        %4851 = vmatpush1.bf16.msra.mxu0 0
        %4852 = vmatprep.subr.bf16.mxu0 0
        %4853 = vmatpush1.bf16.msra.mxu0 0
        %4854 = vmatprep.subr.bf16.mxu0 0
        %4855 = vmatpush1.bf16.msra.mxu0 0
        %4856 = vmatprep.mubr.bf16.mxu0 0
        %4857 = vmatmul.mubr.bf16.gmra.mrb[0].mxu0 %v4822
        %v4858 = vpop.f32.mrb[0].mxu0
        %v4859 = vadd.f32 %v4503, %v4858
        %v4860 = vpop.f32.mrb[0].mxu0
        %v4861 = vpop.f32.mrb[0].mxu0
        %v4862 = vpop.f32.mrb[0].mxu0
        %4863 = vdwg.mxu0
        %v4865 = vrot.slane %v4859, 4
        %v4867 = vadd.f32 %v4569, %v4865
        %v4868 = vxor.u32 %v4867, 2147483648
        %v4869 = vmul.f32 %v4868, 1.442695
        %v4870 = vpow.pop %v4869
        %v4871 = vadd.f32 %v4870, 1.0
        %v4872 = vrcp.pop %v4871
        %v4873 = vmul.f32 1.0, %v4872
        %4874 = vrot.lane.b32.xlu0 %v4865, 64
        %v4875 = vpop.permute.xlu0 %4874
        %v4877 = vmul.f32 %v4873, %v4875
        %4879 = vrot.lane.b32.xlu0 %v4877, 64
        %v4880 = vpop.permute.xlu0 %4879
        %v4882 = vadd.f32 %v4569, %v4880
        %v4883 = vtanh.pop %v4882
        %v4884 = vsub.f32 1.0, %v4873
        %4886 = vrot.lane.b32.xlu0 %v4883, 96
        %v4887 = vpop.permute.xlu0 %4886
        %v4889 = vmul.f32 %v4884, %v4887
        %v4891 = vrot.slane %v4813, 1
        %v4893 = vmul.f32 %v4873, %v4891
        %v4894 = vadd.f32 %v4889, %v4893
        %v4895 = vpack.c.bf16 %v4894, %v4894
        %v4897 = vrot.slane %v4895, 2
        %4898 = vrot.lane.b32.xlu0 %v4897, 96
        %v4899 = vpop.permute.xlu0 %4898
        %v4901 = vsel %vm2245, %v4899, 0
        %4903 = vmatprep.subr.bf16.mxu0 0
        %4904 = vmatpush1.bf16.msra.mxu0 %v4582
        %4905 = vmatprep.subr.bf16.mxu0 0
        %4906 = vmatpush1.bf16.msra.mxu0 %v4583
        %4907 = vmatprep.subr.bf16.mxu0 0
        %4908 = vmatpush1.bf16.msra.mxu0 0
        %4909 = vmatprep.subr.bf16.mxu0 0
        %4910 = vmatpush1.bf16.msra.mxu0 0
        %4911 = vmatprep.subr.bf16.mxu0 0
        %4912 = vmatpush1.bf16.msra.mxu0 0
        %4913 = vmatprep.subr.bf16.mxu0 0
        %4914 = vmatpush1.bf16.msra.mxu0 0
        %4915 = vmatprep.subr.bf16.mxu0 0
        %4916 = vmatpush1.bf16.msra.mxu0 0
        %4917 = vmatprep.subr.bf16.mxu0 0
        %4918 = vmatpush1.bf16.msra.mxu0 0
        %4919 = vmatprep.subr.bf16.mxu0 0
        %4920 = vmatpush1.bf16.msra.mxu0 0
        %4921 = vmatprep.subr.bf16.mxu0 0
        %4922 = vmatpush1.bf16.msra.mxu0 0
        %4923 = vmatprep.subr.bf16.mxu0 0
        %4924 = vmatpush1.bf16.msra.mxu0 0
        %4925 = vmatprep.subr.bf16.mxu0 0
        %4926 = vmatpush1.bf16.msra.mxu0 0
        %4927 = vmatprep.subr.bf16.mxu0 0
        %4928 = vmatpush1.bf16.msra.mxu0 0
        %4929 = vmatprep.subr.bf16.mxu0 0
        %4930 = vmatpush1.bf16.msra.mxu0 0
        %4931 = vmatprep.subr.bf16.mxu0 0
        %4932 = vmatpush1.bf16.msra.mxu0 0
        %4933 = vmatprep.subr.bf16.mxu0 0
        %4934 = vmatpush1.bf16.msra.mxu0 0
        %4935 = vmatprep.mubr.bf16.mxu0 0
        %4936 = vmatmul.mubr.bf16.gmra.mrb[0].mxu0 %v4901
        %v4937 = vpop.f32.mrb[0].mxu0
        %v4938 = vadd.f32 %v4503, %v4937
        %v4939 = vpop.f32.mrb[0].mxu0
        %v4940 = vpop.f32.mrb[0].mxu0
        %v4941 = vpop.f32.mrb[0].mxu0
        %4942 = vdwg.mxu0
        %v4944 = vrot.slane %v4938, 5
        %v4946 = vadd.f32 %v4569, %v4944
        %v4947 = vxor.u32 %v4946, 2147483648
        %v4948 = vmul.f32 %v4947, 1.442695
        %v4949 = vpow.pop %v4948
        %v4950 = vadd.f32 %v4949, 1.0
        %v4951 = vrcp.pop %v4950
        %v4952 = vmul.f32 1.0, %v4951
        %4953 = vrot.lane.b32.xlu0 %v4944, 64
        %v4954 = vpop.permute.xlu0 %4953
        %v4956 = vmul.f32 %v4952, %v4954
        %4958 = vrot.lane.b32.xlu0 %v4956, 64
        %v4959 = vpop.permute.xlu0 %4958
        %v4961 = vadd.f32 %v4569, %v4959
        %v4962 = vtanh.pop %v4961
        %v4963 = vsub.f32 1.0, %v4952
        %4965 = vrot.lane.b32.xlu0 %v4962, 96
        %v4966 = vpop.permute.xlu0 %4965
        %v4968 = vmul.f32 %v4963, %v4966
        %v4970 = vrot.slane %v4894, 1
        %v4972 = vmul.f32 %v4952, %v4970
        %v4973 = vadd.f32 %v4968, %v4972
        %v4974 = vpack.c.bf16 %v4973, %v4973
        %v4976 = vshrl.u32 %v4974, 16
        %v4978 = vrot.slane %v4976, 1
        %4979 = vrot.lane.b32.xlu0 %v4978, 96
        %v4980 = vpop.permute.xlu0 %4979
        %v4982 = vsel %vm2245, %v4980, 0
        %4984 = vmatprep.subr.bf16.mxu0 0
        %4985 = vmatpush1.bf16.msra.mxu0 %v4582
        %4986 = vmatprep.subr.bf16.mxu0 0
        %4987 = vmatpush1.bf16.msra.mxu0 %v4583
        %4988 = vmatprep.subr.bf16.mxu0 0
        %4989 = vmatpush1.bf16.msra.mxu0 0
        %4990 = vmatprep.subr.bf16.mxu0 0
        %4991 = vmatpush1.bf16.msra.mxu0 0
        %4992 = vmatprep.subr.bf16.mxu0 0
        %4993 = vmatpush1.bf16.msra.mxu0 0
        %4994 = vmatprep.subr.bf16.mxu0 0
        %4995 = vmatpush1.bf16.msra.mxu0 0
        %4996 = vmatprep.subr.bf16.mxu0 0
        %4997 = vmatpush1.bf16.msra.mxu0 0
        %4998 = vmatprep.subr.bf16.mxu0 0
        %4999 = vmatpush1.bf16.msra.mxu0 0
        %5000 = vmatprep.subr.bf16.mxu0 0
        %5001 = vmatpush1.bf16.msra.mxu0 0
        %5002 = vmatprep.subr.bf16.mxu0 0
        %5003 = vmatpush1.bf16.msra.mxu0 0
        %5004 = vmatprep.subr.bf16.mxu0 0
        %5005 = vmatpush1.bf16.msra.mxu0 0
        %5006 = vmatprep.subr.bf16.mxu0 0
        %5007 = vmatpush1.bf16.msra.mxu0 0
        %5008 = vmatprep.subr.bf16.mxu0 0
        %5009 = vmatpush1.bf16.msra.mxu0 0
        %5010 = vmatprep.subr.bf16.mxu0 0
        %5011 = vmatpush1.bf16.msra.mxu0 0
        %5012 = vmatprep.subr.bf16.mxu0 0
        %5013 = vmatpush1.bf16.msra.mxu0 0
        %5014 = vmatprep.subr.bf16.mxu0 0
        %5015 = vmatpush1.bf16.msra.mxu0 0
        %5016 = vmatprep.mubr.bf16.mxu0 0
        %5017 = vmatmul.mubr.bf16.gmra.mrb[0].mxu0 %v4982
        %v5018 = vpop.f32.mrb[0].mxu0
        %v5019 = vadd.f32 %v4503, %v5018
        %v5020 = vpop.f32.mrb[0].mxu0
        %v5021 = vpop.f32.mrb[0].mxu0
        %v5022 = vpop.f32.mrb[0].mxu0
        %5023 = vdwg.mxu0
        %v5025 = vrot.slane %v5019, 6
        %v5027 = vadd.f32 %v4569, %v5025
        %v5028 = vxor.u32 %v5027, 2147483648
        %v5029 = vmul.f32 %v5028, 1.442695
        %v5030 = vpow.pop %v5029
        %v5031 = vadd.f32 %v5030, 1.0
        %v5032 = vrcp.pop %v5031
        %v5033 = vmul.f32 1.0, %v5032
        %5034 = vrot.lane.b32.xlu0 %v5025, 64
        %v5035 = vpop.permute.xlu0 %5034
        %v5037 = vmul.f32 %v5033, %v5035
        %5039 = vrot.lane.b32.xlu0 %v5037, 64
        %v5040 = vpop.permute.xlu0 %5039
        %v5042 = vadd.f32 %v4569, %v5040
        %v5043 = vtanh.pop %v5042
        %v5044 = vsub.f32 1.0, %v5033
        %5046 = vrot.lane.b32.xlu0 %v5043, 96
        %v5047 = vpop.permute.xlu0 %5046
        %v5049 = vmul.f32 %v5044, %v5047
        %v5051 = vrot.slane %v4973, 1
        %v5053 = vmul.f32 %v5033, %v5051
        %v5054 = vadd.f32 %v5049, %v5053
        %v5055 = vpack.c.bf16 %v5054, %v5054
        %v5057 = vrot.slane %v5055, 1
        %5058 = vrot.lane.b32.xlu0 %v5057, 96
        %v5059 = vpop.permute.xlu0 %5058
        %v5061 = vsel %vm2245, %v5059, 0
        %5063 = vmatprep.subr.bf16.mxu0 0
        %5064 = vmatpush1.bf16.msra.mxu0 %v4582
        %5065 = vmatprep.subr.bf16.mxu0 0
        %5066 = vmatpush1.bf16.msra.mxu0 %v4583
        %5067 = vmatprep.subr.bf16.mxu0 0
        %5068 = vmatpush1.bf16.msra.mxu0 0
        %5069 = vmatprep.subr.bf16.mxu0 0
        %5070 = vmatpush1.bf16.msra.mxu0 0
        %5071 = vmatprep.subr.bf16.mxu0 0
        %5072 = vmatpush1.bf16.msra.mxu0 0
        %5073 = vmatprep.subr.bf16.mxu0 0
        %5074 = vmatpush1.bf16.msra.mxu0 0
        %5075 = vmatprep.subr.bf16.mxu0 0
        %5076 = vmatpush1.bf16.msra.mxu0 0
        %5077 = vmatprep.subr.bf16.mxu0 0
        %5078 = vmatpush1.bf16.msra.mxu0 0
        %5079 = vmatprep.subr.bf16.mxu0 0
        %5080 = vmatpush1.bf16.msra.mxu0 0
        %5081 = vmatprep.subr.bf16.mxu0 0
        %5082 = vmatpush1.bf16.msra.mxu0 0
        %5083 = vmatprep.subr.bf16.mxu0 0
        %5084 = vmatpush1.bf16.msra.mxu0 0
        %5085 = vmatprep.subr.bf16.mxu0 0
        %5086 = vmatpush1.bf16.msra.mxu0 0
        %5087 = vmatprep.subr.bf16.mxu0 0
        %5088 = vmatpush1.bf16.msra.mxu0 0
        %5089 = vmatprep.subr.bf16.mxu0 0
        %5090 = vmatpush1.bf16.msra.mxu0 0
        %5091 = vmatprep.subr.bf16.mxu0 0
        %5092 = vmatpush1.bf16.msra.mxu0 0
        %5093 = vmatprep.subr.bf16.mxu0 0
        %5094 = vmatpush1.bf16.msra.mxu0 0
        %5095 = vmatprep.mubr.bf16.mxu0 0
        %5096 = vmatmul.mubr.bf16.gmra.mrb[0].mxu0 %v5061
        %v5097 = vpop.f32.mrb[0].mxu0
        %v5098 = vadd.f32 %v4503, %v5097
        %v5099 = vpop.f32.mrb[0].mxu0
        %v5100 = vpop.f32.mrb[0].mxu0
        %v5101 = vpop.f32.mrb[0].mxu0
        %5102 = vdwg.mxu0
        %v5104 = vrot.slane %v5098, 7
        %v5106 = vadd.f32 %v4569, %v5104
        %v5107 = vxor.u32 %v5106, 2147483648
        %v5108 = vmul.f32 %v5107, 1.442695
        %v5109 = vpow.pop %v5108
        %v5110 = vadd.f32 %v5109, 1.0
        %v5111 = vrcp.pop %v5110
        %v5112 = vmul.f32 1.0, %v5111
        %5113 = vrot.lane.b32.xlu0 %v5104, 64
        %v5114 = vpop.permute.xlu0 %5113
        %v5116 = vmul.f32 %v5112, %v5114
        %5118 = vrot.lane.b32.xlu0 %v5116, 64
        %v5119 = vpop.permute.xlu0 %5118
        %v5121 = vadd.f32 %v4569, %v5119
        %v5122 = vtanh.pop %v5121
        %v5123 = vsub.f32 1.0, %v5112
        %5125 = vrot.lane.b32.xlu0 %v5122, 96
        %v5126 = vpop.permute.xlu0 %5125
        %v5128 = vmul.f32 %v5123, %v5126
        %v5130 = vrot.slane %v5054, 1
        %v5132 = vmul.f32 %v5112, %v5130
        %v5133 = vadd.f32 %v5128, %v5132
        %v5134 = vpack.c.bf16 %v5133, %v5133
        %v5136 = vshrl.u32 %v5134, 16
        %5138 = vrot.lane.b32.xlu0 %v5136, 96
        %v5139 = vpop.permute.xlu0 %5138
        %v5141 = vsel %vm2245, %v5139, 0
        %5143 = vmatprep.subr.bf16.mxu0 0
        %5144 = vmatpush1.bf16.msra.mxu0 %v4582
        %5145 = vmatprep.subr.bf16.mxu0 0
        %5146 = vmatpush1.bf16.msra.mxu0 %v4583
        %5147 = vmatprep.subr.bf16.mxu0 0
        %5148 = vmatpush1.bf16.msra.mxu0 0
        %5149 = vmatprep.subr.bf16.mxu0 0
        %5150 = vmatpush1.bf16.msra.mxu0 0
        %5151 = vmatprep.subr.bf16.mxu0 0
        %5152 = vmatpush1.bf16.msra.mxu0 0
        %5153 = vmatprep.subr.bf16.mxu0 0
        %5154 = vmatpush1.bf16.msra.mxu0 0
        %5155 = vmatprep.subr.bf16.mxu0 0
        %5156 = vmatpush1.bf16.msra.mxu0 0
        %5157 = vmatprep.subr.bf16.mxu0 0
        %5158 = vmatpush1.bf16.msra.mxu0 0
        %5159 = vmatprep.subr.bf16.mxu0 0
        %5160 = vmatpush1.bf16.msra.mxu0 0
        %5161 = vmatprep.subr.bf16.mxu0 0
        %5162 = vmatpush1.bf16.msra.mxu0 0
        %5163 = vmatprep.subr.bf16.mxu0 0
        %5164 = vmatpush1.bf16.msra.mxu0 0
        %5165 = vmatprep.subr.bf16.mxu0 0
        %5166 = vmatpush1.bf16.msra.mxu0 0
        %5167 = vmatprep.subr.bf16.mxu0 0
        %5168 = vmatpush1.bf16.msra.mxu0 0
        %5169 = vmatprep.subr.bf16.mxu0 0
        %5170 = vmatpush1.bf16.msra.mxu0 0
        %5171 = vmatprep.subr.bf16.mxu0 0
        %5172 = vmatpush1.bf16.msra.mxu0 0
        %5173 = vmatprep.subr.bf16.mxu0 0
        %5174 = vmatpush1.bf16.msra.mxu0 0
        %5175 = vmatprep.mubr.bf16.mxu0 0
        %5176 = vmatmul.mubr.bf16.gmra.mrb[0].mxu0 %v5141
        %v5177 = vpop.f32.mrb[0].mxu0
        %v5178 = vadd.f32 %v4503, %v5177
        %v5179 = vpop.f32.mrb[0].mxu0
        %v5180 = vpop.f32.mrb[0].mxu0
        %v5181 = vpop.f32.mrb[0].mxu0
        %5182 = vdwg.mxu0
        %v5183 = vadd.f32 %v4569, %v5178
        %v5184 = vxor.u32 %v5183, 2147483648
        %v5185 = vmul.f32 %v5184, 1.442695
        %v5186 = vpow.pop %v5185
        %v5187 = vadd.f32 %v5186, 1.0
        %v5188 = vrcp.pop %v5187
        %v5189 = vmul.f32 1.0, %v5188
        %5191 = vrot.lane.b32.xlu0 %v5178, 64
        %v5192 = vpop.permute.xlu0 %5191
        %v5194 = vmul.f32 %v5189, %v5192
        %5196 = vrot.lane.b32.xlu0 %v5194, 64
        %v5197 = vpop.permute.xlu0 %5196
        %v5199 = vadd.f32 %v4569, %v5197
        %v5200 = vtanh.pop %v5199
        %v5201 = vsub.f32 1.0, %v5189
        %5203 = vrot.lane.b32.xlu0 %v5200, 96
        %v5204 = vpop.permute.xlu0 %5203
        %v5206 = vmul.f32 %v5201, %v5204
        %v5208 = vrot.slane %v5133, 1
        %v5210 = vmul.f32 %v5189, %v5208
        %v5211 = vadd.f32 %v5206, %v5210
        %v5212 = vsel %vm3029, %v5211, %v5133
        %v5213 = vsel %vm2140, %v5212, %v5054
        %v5214 = vsel %vm3032, %v5213, %v4973
        %v5215 = vsel %vm2051, %v5214, %v4894
        %v5216 = vsel %vm3035, %v5215, %v4813
        %v5217 = vsel %vm3037, %v5216, %v4734
        %v5218 = vsel %vm3039, %v5217, %v4653
        %5220 = vrot.lane.b32.xlu0 %v4489, 96
        %v5221 = vpop.permute.xlu0 %5220
        %v5223 = vsel %vm2245, %v5221, %v5218
        %v5224 = vld [vmem:[%s63] sm:$0xf]
        %v5225 = vld [vmem:[%s63 + $0x4] sm:$0xf]
        %v5226 = vld [vmem:[%s63 + $0x8] sm:$0xf]
        %v5227 = vld [vmem:[%s63 + $0xc] sm:$0xf]
        %v5228 = vld [vmem:[%s63 + $0x10] sm:$0xf]
        %v5229 = vld [vmem:[%s63 + $0x14] sm:$0xf]
        %v5230 = vld [vmem:[%s63 + $0x18] sm:$0xf]
        %v5231 = vld [vmem:[%s63 + $0x1c] sm:$0xf]
        %v5232 = vld [vmem:[#allocation33] sm:$0x1]
        %v5233 = vld [vmem:[#allocation35] sm:$0x1]
        %v5234 = vld [vmem:[#allocation36] sm:$0x1]
        %5236 = vrot.lane.b32.xlu0 %v3028, 96
        %v5237 = vpop.permute.xlu0 %5236
        %v5239 = vsel %vm2245, %v5237, %v4482
        %v5240 = vpack.c.bf16 %v5239, %v5239
        %v5242 = vshrl.u32 %v5240, 16
        %v5244 = vrot.slane %v5242, 3
        %v5253 = vunpack.c.l.b16 %v5224
        %v5254 = vunpack.c.l.b16 %v5225
        %v5255 = vunpack.c.l.b16 %v5226
        %v5256 = vunpack.c.l.b16 %v5227
        %v5257 = vunpack.c.l.b16 %v5228
        %v5258 = vunpack.c.l.b16 %v5229
        %v5259 = vunpack.c.l.b16 %v5230
        %v5260 = vunpack.c.l.b16 %v5231
        %v5261 = vpack.c.b16 %v5254, %v5253
        %v5262 = vpack.c.b16 %v5256, %v5255
        %v5263 = vpack.c.b16 %v5258, %v5257
        %v5264 = vpack.c.b16 %v5260, %v5259
        %v5270 = vsel %vm3804, %v5244, 0
        %5272 = vmatprep.subr.bf16.mxu0 0
        %5273 = vmatpush1.bf16.msra.mxu0 %v5261
        %5274 = vmatprep.subr.bf16.mxu0 0
        %5275 = vmatpush1.bf16.msra.mxu0 %v5262
        %5276 = vmatprep.subr.bf16.mxu0 0
        %5277 = vmatpush1.bf16.msra.mxu0 %v5263
        %5278 = vmatprep.subr.bf16.mxu0 0
        %5279 = vmatpush1.bf16.msra.mxu0 %v5264
        %5280 = vmatprep.subr.bf16.mxu0 0
        %5281 = vmatpush1.bf16.msra.mxu0 0
        %5282 = vmatprep.subr.bf16.mxu0 0
        %5283 = vmatpush1.bf16.msra.mxu0 0
        %5284 = vmatprep.subr.bf16.mxu0 0
        %5285 = vmatpush1.bf16.msra.mxu0 0
        %5286 = vmatprep.subr.bf16.mxu0 0
        %5287 = vmatpush1.bf16.msra.mxu0 0
        %5288 = vmatprep.subr.bf16.mxu0 0
        %5289 = vmatpush1.bf16.msra.mxu0 0
        %5290 = vmatprep.subr.bf16.mxu0 0
        %5291 = vmatpush1.bf16.msra.mxu0 0
        %5292 = vmatprep.subr.bf16.mxu0 0
        %5293 = vmatpush1.bf16.msra.mxu0 0
        %5294 = vmatprep.subr.bf16.mxu0 0
        %5295 = vmatpush1.bf16.msra.mxu0 0
        %5296 = vmatprep.subr.bf16.mxu0 0
        %5297 = vmatpush1.bf16.msra.mxu0 0
        %5298 = vmatprep.subr.bf16.mxu0 0
        %5299 = vmatpush1.bf16.msra.mxu0 0
        %5300 = vmatprep.subr.bf16.mxu0 0
        %5301 = vmatpush1.bf16.msra.mxu0 0
        %5302 = vmatprep.subr.bf16.mxu0 0
        %5303 = vmatpush1.bf16.msra.mxu0 0
        %5304 = vmatprep.mubr.bf16.mxu0 0
        %5305 = vmatmul.mubr.bf16.gmra.mrb[0].mxu0 %v5270
        %v5306 = vpop.f32.mrb[0].mxu0
        %v5307 = vadd.f32 %v5232, %v5306
        %v5308 = vpop.f32.mrb[0].mxu0
        %v5309 = vpop.f32.mrb[0].mxu0
        %v5310 = vpop.f32.mrb[0].mxu0
        %5311 = vdwg.mxu0
        %vm5312 = vcmask 253952
        %v5313 = vsel %vm5312, %v5307, 0.0
        %5314 = vadd.xlane.f32.xlu0 %v5313
        %v5315 = vpop.xlane.xlu0 %5314
        %v5316 = vmul.f32 %v5315, %v2292
        %v5317 = vmul.f32 %v5307, %v5307
        %v5318 = vsel %vm5312, %v5317, 0.0
        %5319 = vadd.xlane.f32.xlu0 %v5318
        %v5320 = vpop.xlane.xlu0 %5319
        %v5321 = vmul.f32 %v5320, %v2292
        %v5322 = vmul.f32 %v5316, %v5316
        %v5323 = vsub.f32 %v5321, %v5322
        %v5324 = vsub.f32 %v5307, %v5316
        %v5325 = vadd.f32 %v5323, 1e-05
        %v5326 = vrsqrt.pop %v5325
        %v5327 = vmul.f32 %v5324, %v5326
        %v5328 = vmul.f32 %v5327, %v5233
        %v5329 = vadd.f32 %v5328, %v5234
        %5331 = vrot.lane.b32.xlu0 %v3746, 96
        %v5332 = vpop.permute.xlu0 %5331
        %v5334 = vsel %vm2245, %v5332, %v5211
        %v5335 = vpack.c.bf16 %v5334, %v5334
        %v5337 = vsel %vm3804, %v5335, 0
        %5339 = vmatprep.subr.bf16.mxu0 0
        %5340 = vmatpush1.bf16.msra.mxu0 %v5261
        %5341 = vmatprep.subr.bf16.mxu0 0
        %5342 = vmatpush1.bf16.msra.mxu0 %v5262
        %5343 = vmatprep.subr.bf16.mxu0 0
        %5344 = vmatpush1.bf16.msra.mxu0 %v5263
        %5345 = vmatprep.subr.bf16.mxu0 0
        %5346 = vmatpush1.bf16.msra.mxu0 %v5264
        %5347 = vmatprep.subr.bf16.mxu0 0
        %5348 = vmatpush1.bf16.msra.mxu0 0
        %5349 = vmatprep.subr.bf16.mxu0 0
        %5350 = vmatpush1.bf16.msra.mxu0 0
        %5351 = vmatprep.subr.bf16.mxu0 0
        %5352 = vmatpush1.bf16.msra.mxu0 0
        %5353 = vmatprep.subr.bf16.mxu0 0
        %5354 = vmatpush1.bf16.msra.mxu0 0
        %5355 = vmatprep.subr.bf16.mxu0 0
        %5356 = vmatpush1.bf16.msra.mxu0 0
        %5357 = vmatprep.subr.bf16.mxu0 0
        %5358 = vmatpush1.bf16.msra.mxu0 0
        %5359 = vmatprep.subr.bf16.mxu0 0
        %5360 = vmatpush1.bf16.msra.mxu0 0
        %5361 = vmatprep.subr.bf16.mxu0 0
        %5362 = vmatpush1.bf16.msra.mxu0 0
        %5363 = vmatprep.subr.bf16.mxu0 0
        %5364 = vmatpush1.bf16.msra.mxu0 0
        %5365 = vmatprep.subr.bf16.mxu0 0
        %5366 = vmatpush1.bf16.msra.mxu0 0
        %5367 = vmatprep.subr.bf16.mxu0 0
        %5368 = vmatpush1.bf16.msra.mxu0 0
        %5369 = vmatprep.subr.bf16.mxu0 0
        %5370 = vmatpush1.bf16.msra.mxu0 0
        %5371 = vmatprep.mubr.bf16.mxu0 0
        %5372 = vmatmul.mubr.bf16.gmra.mrb[0].mxu0 %v5337
        %v5373 = vpop.f32.mrb[0].mxu0
        %v5374 = vadd.f32 %v5232, %v5373
        %v5375 = vpop.f32.mrb[0].mxu0
        %v5376 = vpop.f32.mrb[0].mxu0
        %v5377 = vpop.f32.mrb[0].mxu0
        %5378 = vdwg.mxu0
        %v5379 = vsel %vm5312, %v5374, 0.0
        %5380 = vadd.xlane.f32.xlu0 %v5379
        %v5381 = vpop.xlane.xlu0 %5380
        %v5382 = vmul.f32 %v5381, %v2292
        %v5383 = vmul.f32 %v5374, %v5374
        %v5384 = vsel %vm5312, %v5383, 0.0
        %5385 = vadd.xlane.f32.xlu0 %v5384
        %v5386 = vpop.xlane.xlu0 %5385
        %v5387 = vmul.f32 %v5386, %v2292
        %v5388 = vmul.f32 %v5382, %v5382
        %v5389 = vsub.f32 %v5387, %v5388
        %v5390 = vsub.f32 %v5374, %v5382
        %v5391 = vadd.f32 %v5389, 1e-05
        %v5392 = vrsqrt.pop %v5391
        %v5393 = vmul.f32 %v5390, %v5392
        %v5394 = vmul.f32 %v5393, %v5233
        %v5395 = vadd.f32 %v5394, %v5234
        %v5396 = vld [vmem:[#allocation38] sm:$0x1]
        %v5397 = vld [vmem:[#allocation2] sm:$0x1]
        %v5399 = vrot.slane %v5395, 7
        %v5401 = vsel %vm3029, %v5329, %v5399
        %v5403 = vrot.slane %v5401, 6
        %v5405 = vrot.slane %v5401, 4
        %v5407 = vrot.slane %v5401, 2
        %v5409 = vsel %vm2140, %v5401, %v5403
        %v5410 = vsel %vm2051, %v5409, %v5405
        %v5411 = vsel %vm3037, %v5410, %v5407
        %5413 = vrot.lane.b32.xlu0 %v5223, 32
        %v5414 = vpop.permute.xlu0 %5413
        %v5416 = vsel %vm2245, %v5411, %v5414
        %v5418 = vlaneseq
        %v5419 = vshrl.u32 %v5418, 7
        %v5420 = vsub.s32 0, %v5419
        %v5421 = vrot.slane %v5396, %v5420
        %v5423 = vmul.f32 %v5416, %v5421
        %vm5424 = vcmask 785408
        %v5425 = vsel %vm5424, %v5423, 0.0
        %5426 = vadd.xlane.f32.xlu0 %v5425
        %v5427 = vpop.xlane.xlu0 %5426
        %v5429 = vlaneseq
        %v5430 = vshrl.u32 %v5429, 7
        %v5431 = vsub.s32 0, %v5430
        %v5432 = vrot.slane %v5397, %v5431
        %v5434 = vadd.f32 %v5427, %v5432
        %v5435 = vmax.f32 %v5434, 0.0
        %vm5436 = vcmask 7168
        %v5437 = vsel %vm5436, %v5435, -inf
        %v5438 = vrot.slane %v5437, 4
        %v5439 = vmax.f32 %v5437, %v5438
        %v5440 = vrot.slane %v5439, 2
        %v5441 = vmax.f32 %v5439, %v5440
        %v5442 = vrot.slane %v5441, 1
        %v5443 = vmax.f32 %v5441, %v5442
        %v5444 = vsub.f32 %v5435, %v5443
        %v5445 = vmul.f32 %v5444, 1.442695
        %v5446 = vpow.pop %v5445
        %v5447 = vsel %vm5436, %v5446, 0.0
        %v5448 = vrot.slane %v5447, 4
        %v5449 = vadd.f32 %v5447, %v5448
        %v5450 = vrot.slane %v5449, 2
        %v5451 = vadd.f32 %v5449, %v5450
        %v5452 = vrot.slane %v5451, 1
        %v5453 = vadd.f32 %v5451, %v5452
        %v5454 = vrcp.pop %v5453
        %v5455 = vmul.f32 %v5446, %v5454
        %5457 = vset.pattern.permute.xlu0 0
        %5458 = vperm.xlu0 %5457, %v5455
        %v5459 = vpop.permute.xlu0 %5458
        %v5461 = vmul.f32 %v5459, %v5223
        %v5462 = vsel %vm3804, %v5461, 0.0
        %v5463 = vrot.slane %v5462, 4
        %v5464 = vadd.f32 %v5462, %v5463
        %v5465 = vrot.slane %v5464, 2
        %v5466 = vadd.f32 %v5464, %v5465
        %v5467 = vrot.slane %v5466, 1
        %v5468 = vadd.f32 %v5466, %v5467
        %5470 = vrot.lane.b32.xlu0 %v2318, 64
        %v5471 = vpop.permute.xlu0 %5470
        %v5473 = vsel %vm3804, %v5468, %v5471
        %v5474 = vld [vmem:[%s75] sm:$0xf]
        %v5475 = vld [vmem:[%s75 + $0x4] sm:$0xf]
        %v5476 = vld [vmem:[%s75 + $0x8] sm:$0xf]
        %v5477 = vld [vmem:[%s75 + $0xc] sm:$0xf]
        %v5478 = vld [vmem:[%s75 + $0x10] sm:$0xf]
        %v5479 = vld [vmem:[%s75 + $0x14] sm:$0xf]
        %v5480 = vld [vmem:[%s75 + $0x18] sm:$0xf]
        %v5481 = vld [vmem:[%s75 + $0x1c] sm:$0xf]
        %v5482 = vld [vmem:[%s75 + $0x20] sm:$0xf]
        %v5483 = vld [vmem:[%s75 + $0x24] sm:$0xf]
        %v5484 = vld [vmem:[%s75 + $0x28] sm:$0xf]
        %v5485 = vld [vmem:[%s75 + $0x2c] sm:$0xf]
        %v5486 = vld [vmem:[%s77] sm:$0xf]
        %v5487 = vld [vmem:[%s77 + $0x4] sm:$0xf]
        %v5488 = vld [vmem:[%s77 + $0x8] sm:$0xf]
        %v5489 = vld [vmem:[%s77 + $0xc] sm:$0xf]
        %v5490 = vld [vmem:[#allocation39] sm:$0x1]
        %v5491 = vld [vmem:[#allocation41] sm:$0x1]
        %v5492 = vpack.c.bf16 %v5473, %v5473
        %v5494 = vlaneseq
        %v5495 = vshrl.u32 %v5494, 7
        %v5496 = vsub.s32 0, %v5495
        %v5497 = vrot.slane %v5490, %v5496
        %v5511 = vunpack.c.l.b16 %v5474
        %v5512 = vunpack.c.l.b16 %v5475
        %v5513 = vunpack.c.l.b16 %v5476
        %v5514 = vunpack.c.l.b16 %v5477
        %v5515 = vunpack.c.l.b16 %v5478
        %v5516 = vunpack.c.l.b16 %v5479
        %v5517 = vunpack.c.l.b16 %v5480
        %v5518 = vunpack.c.l.b16 %v5481
        %v5519 = vunpack.c.l.b16 %v5482
        %v5520 = vunpack.c.l.b16 %v5483
        %v5521 = vunpack.c.l.b16 %v5484
        %v5522 = vunpack.c.l.b16 %v5485
        %v5523 = vpack.c.b16 %v5512, %v5511
        %v5524 = vpack.c.b16 %v5514, %v5513
        %v5525 = vpack.c.b16 %v5516, %v5515
        %v5526 = vpack.c.b16 %v5518, %v5517
        %v5527 = vpack.c.b16 %v5520, %v5519
        %v5528 = vpack.c.b16 %v5522, %v5521
        %v5536 = vsel %vm5424, %v5492, 0
        %5538 = vmatprep.subr.bf16.mxu0 0
        %5539 = vmatpush1.bf16.msra.mxu0 %v5523
        %5540 = vmatprep.subr.bf16.mxu0 0
        %5541 = vmatpush1.bf16.msra.mxu0 %v5524
        %5542 = vmatprep.subr.bf16.mxu0 0
        %5543 = vmatpush1.bf16.msra.mxu0 %v5525
        %5544 = vmatprep.subr.bf16.mxu0 0
        %5545 = vmatpush1.bf16.msra.mxu0 %v5526
        %5546 = vmatprep.subr.bf16.mxu0 0
        %5547 = vmatpush1.bf16.msra.mxu0 %v5527
        %5548 = vmatprep.subr.bf16.mxu0 0
        %5549 = vmatpush1.bf16.msra.mxu0 %v5528
        %5550 = vmatprep.subr.bf16.mxu0 0
        %5551 = vmatpush1.bf16.msra.mxu0 0
        %5552 = vmatprep.subr.bf16.mxu0 0
        %5553 = vmatpush1.bf16.msra.mxu0 0
        %5554 = vmatprep.subr.bf16.mxu0 0
        %5555 = vmatpush1.bf16.msra.mxu0 0
        %5556 = vmatprep.subr.bf16.mxu0 0
        %5557 = vmatpush1.bf16.msra.mxu0 0
        %5558 = vmatprep.subr.bf16.mxu0 0
        %5559 = vmatpush1.bf16.msra.mxu0 0
        %5560 = vmatprep.subr.bf16.mxu0 0
        %5561 = vmatpush1.bf16.msra.mxu0 0
        %5562 = vmatprep.subr.bf16.mxu0 0
        %5563 = vmatpush1.bf16.msra.mxu0 0
        %5564 = vmatprep.subr.bf16.mxu0 0
        %5565 = vmatpush1.bf16.msra.mxu0 0
        %5566 = vmatprep.subr.bf16.mxu0 0
        %5567 = vmatpush1.bf16.msra.mxu0 0
        %5568 = vmatprep.subr.bf16.mxu0 0
        %5569 = vmatpush1.bf16.msra.mxu0 0
        %5570 = vmatprep.mubr.bf16.mxu0 0
        %5571 = vmatmul.mubr.bf16.gmra.mrb[0].mxu0 %v5536
        %v5572 = vpop.f32.mrb[0].mxu0
        %v5573 = vadd.f32 %v5497, %v5572
        %v5574 = vpop.f32.mrb[0].mxu0
        %v5575 = vpop.f32.mrb[0].mxu0
        %v5576 = vpop.f32.mrb[0].mxu0
        %5577 = vdwg.mxu0
        %v5578 = vpack.c.bf16 %v5329, %v5329
        %v5583 = vunpack.c.l.b16 %v5486
        %v5584 = vunpack.c.l.b16 %v5487
        %v5585 = vunpack.c.l.b16 %v5488
        %v5586 = vunpack.c.l.b16 %v5489
        %v5587 = vpack.c.b16 %v5584, %v5583
        %v5588 = vpack.c.b16 %v5586, %v5585
        %v5592 = vsel %vm2245, %v5578, 0
        %5594 = vmatprep.subr.bf16.mxu0 0
        %5595 = vmatpush1.bf16.msra.mxu0 %v5587
        %5596 = vmatprep.subr.bf16.mxu0 0
        %5597 = vmatpush1.bf16.msra.mxu0 %v5588
        %5598 = vmatprep.subr.bf16.mxu0 0
        %5599 = vmatpush1.bf16.msra.mxu0 0
        %5600 = vmatprep.subr.bf16.mxu0 0
        %5601 = vmatpush1.bf16.msra.mxu0 0
        %5602 = vmatprep.subr.bf16.mxu0 0
        %5603 = vmatpush1.bf16.msra.mxu0 0
        %5604 = vmatprep.subr.bf16.mxu0 0
        %5605 = vmatpush1.bf16.msra.mxu0 0
        %5606 = vmatprep.subr.bf16.mxu0 0
        %5607 = vmatpush1.bf16.msra.mxu0 0
        %5608 = vmatprep.subr.bf16.mxu0 0
        %5609 = vmatpush1.bf16.msra.mxu0 0
        %5610 = vmatprep.subr.bf16.mxu0 0
        %5611 = vmatpush1.bf16.msra.mxu0 0
        %5612 = vmatprep.subr.bf16.mxu0 0
        %5613 = vmatpush1.bf16.msra.mxu0 0
        %5614 = vmatprep.subr.bf16.mxu0 0
        %5615 = vmatpush1.bf16.msra.mxu0 0
        %5616 = vmatprep.subr.bf16.mxu0 0
        %5617 = vmatpush1.bf16.msra.mxu0 0
        %5618 = vmatprep.subr.bf16.mxu0 0
        %5619 = vmatpush1.bf16.msra.mxu0 0
        %5620 = vmatprep.subr.bf16.mxu0 0
        %5621 = vmatpush1.bf16.msra.mxu0 0
        %5622 = vmatprep.subr.bf16.mxu0 0
        %5623 = vmatpush1.bf16.msra.mxu0 0
        %5624 = vmatprep.subr.bf16.mxu0 0
        %5625 = vmatpush1.bf16.msra.mxu0 0
        %5626 = vmatprep.mubr.bf16.mxu0 0
        %5627 = vmatmul.mubr.bf16.gmra.mrb[0].mxu0 %v5592
        %v5628 = vpop.f32.mrb[0].mxu0
        %v5629 = vadd.f32 %v5491, %v5628
        %v5630 = vpop.f32.mrb[0].mxu0
        %v5631 = vpop.f32.mrb[0].mxu0
        %v5632 = vpop.f32.mrb[0].mxu0
        %5633 = vdwg.mxu0
        %v5634 = vadd.f32 %v5573, %v5629
        %v5635 = vxor.u32 %v5634, 2147483648
        %v5636 = vmul.f32 %v5635, 1.442695
        %v5637 = vpow.pop %v5636
        %v5638 = vadd.f32 %v5637, 1.0
        %v5639 = vrcp.pop %v5638
        %v5640 = vmul.f32 1.0, %v5639
        %5642 = vrot.lane.b32.xlu0 %v5629, 64
        %v5643 = vpop.permute.xlu0 %5642
        %v5645 = vmul.f32 %v5640, %v5643
        %5647 = vrot.lane.b32.xlu0 %v5645, 64
        %v5648 = vpop.permute.xlu0 %5647
        %v5650 = vadd.f32 %v5573, %v5648
        %v5651 = vtanh.pop %v5650
        %v5652 = vsub.f32 1.0, %v5640
        %5654 = vrot.lane.b32.xlu0 %v5651, 96
        %v5655 = vpop.permute.xlu0 %5654
        %v5657 = vmul.f32 %v5652, %v5655
        %5659 = vrot.lane.b32.xlu0 %v5329, 32
        %v5660 = vpop.permute.xlu0 %5659
        %v5662 = vmul.f32 %v5640, %v5660
        %v5663 = vadd.f32 %v5657, %v5662
        %v5664 = vpack.c.bf16 %v5663, %v5663
        %5666 = vrot.lane.b32.xlu0 %v5664, 96
        %v5667 = vpop.permute.xlu0 %5666
        %v5669 = vsel %vm2245, %v5667, 0
        %5671 = vmatprep.subr.bf16.mxu0 0
        %5672 = vmatpush1.bf16.msra.mxu0 %v5587
        %5673 = vmatprep.subr.bf16.mxu0 0
        %5674 = vmatpush1.bf16.msra.mxu0 %v5588
        %5675 = vmatprep.subr.bf16.mxu0 0
        %5676 = vmatpush1.bf16.msra.mxu0 0
        %5677 = vmatprep.subr.bf16.mxu0 0
        %5678 = vmatpush1.bf16.msra.mxu0 0
        %5679 = vmatprep.subr.bf16.mxu0 0
        %5680 = vmatpush1.bf16.msra.mxu0 0
        %5681 = vmatprep.subr.bf16.mxu0 0
        %5682 = vmatpush1.bf16.msra.mxu0 0
        %5683 = vmatprep.subr.bf16.mxu0 0
        %5684 = vmatpush1.bf16.msra.mxu0 0
        %5685 = vmatprep.subr.bf16.mxu0 0
        %5686 = vmatpush1.bf16.msra.mxu0 0
        %5687 = vmatprep.subr.bf16.mxu0 0
        %5688 = vmatpush1.bf16.msra.mxu0 0
        %5689 = vmatprep.subr.bf16.mxu0 0
        %5690 = vmatpush1.bf16.msra.mxu0 0
        %5691 = vmatprep.subr.bf16.mxu0 0
        %5692 = vmatpush1.bf16.msra.mxu0 0
        %5693 = vmatprep.subr.bf16.mxu0 0
        %5694 = vmatpush1.bf16.msra.mxu0 0
        %5695 = vmatprep.subr.bf16.mxu0 0
        %5696 = vmatpush1.bf16.msra.mxu0 0
        %5697 = vmatprep.subr.bf16.mxu0 0
        %5698 = vmatpush1.bf16.msra.mxu0 0
        %5699 = vmatprep.subr.bf16.mxu0 0
        %5700 = vmatpush1.bf16.msra.mxu0 0
        %5701 = vmatprep.subr.bf16.mxu0 0
        %5702 = vmatpush1.bf16.msra.mxu0 0
        %5703 = vmatprep.mubr.bf16.mxu0 0
        %5704 = vmatmul.mubr.bf16.gmra.mrb[0].mxu0 %v5669
        %v5705 = vpop.f32.mrb[0].mxu0
        %v5706 = vadd.f32 %v5491, %v5705
        %v5707 = vpop.f32.mrb[0].mxu0
        %v5708 = vpop.f32.mrb[0].mxu0
        %v5709 = vpop.f32.mrb[0].mxu0
        %5710 = vdwg.mxu0
        %v5712 = vrot.slane %v5706, 7
        %v5714 = vadd.f32 %v5573, %v5712
        %v5715 = vxor.u32 %v5714, 2147483648
        %v5716 = vmul.f32 %v5715, 1.442695
        %v5717 = vpow.pop %v5716
        %v5718 = vadd.f32 %v5717, 1.0
        %v5719 = vrcp.pop %v5718
        %v5720 = vmul.f32 1.0, %v5719
        %5721 = vrot.lane.b32.xlu0 %v5712, 64
        %v5722 = vpop.permute.xlu0 %5721
        %v5724 = vmul.f32 %v5720, %v5722
        %5726 = vrot.lane.b32.xlu0 %v5724, 64
        %v5727 = vpop.permute.xlu0 %5726
        %v5729 = vadd.f32 %v5573, %v5727
        %v5730 = vtanh.pop %v5729
        %v5731 = vsub.f32 1.0, %v5720
        %5733 = vrot.lane.b32.xlu0 %v5730, 96
        %v5734 = vpop.permute.xlu0 %5733
        %v5736 = vmul.f32 %v5731, %v5734
        %v5738 = vrot.slane %v5663, 7
        %v5740 = vmul.f32 %v5720, %v5738
        %v5741 = vadd.f32 %v5736, %v5740
        %v5742 = vpack.c.bf16 %v5741, %v5741
        %v5744 = vshrl.u32 %v5742, 16
        %5746 = vrot.lane.b32.xlu0 %v5744, 96
        %v5747 = vpop.permute.xlu0 %5746
        %v5749 = vsel %vm2245, %v5747, 0
        %5751 = vmatprep.subr.bf16.mxu0 0
        %5752 = vmatpush1.bf16.msra.mxu0 %v5587
        %5753 = vmatprep.subr.bf16.mxu0 0
        %5754 = vmatpush1.bf16.msra.mxu0 %v5588
        %5755 = vmatprep.subr.bf16.mxu0 0
        %5756 = vmatpush1.bf16.msra.mxu0 0
        %5757 = vmatprep.subr.bf16.mxu0 0
        %5758 = vmatpush1.bf16.msra.mxu0 0
        %5759 = vmatprep.subr.bf16.mxu0 0
        %5760 = vmatpush1.bf16.msra.mxu0 0
        %5761 = vmatprep.subr.bf16.mxu0 0
        %5762 = vmatpush1.bf16.msra.mxu0 0
        %5763 = vmatprep.subr.bf16.mxu0 0
        %5764 = vmatpush1.bf16.msra.mxu0 0
        %5765 = vmatprep.subr.bf16.mxu0 0
        %5766 = vmatpush1.bf16.msra.mxu0 0
        %5767 = vmatprep.subr.bf16.mxu0 0
        %5768 = vmatpush1.bf16.msra.mxu0 0
        %5769 = vmatprep.subr.bf16.mxu0 0
        %5770 = vmatpush1.bf16.msra.mxu0 0
        %5771 = vmatprep.subr.bf16.mxu0 0
        %5772 = vmatpush1.bf16.msra.mxu0 0
        %5773 = vmatprep.subr.bf16.mxu0 0
        %5774 = vmatpush1.bf16.msra.mxu0 0
        %5775 = vmatprep.subr.bf16.mxu0 0
        %5776 = vmatpush1.bf16.msra.mxu0 0
        %5777 = vmatprep.subr.bf16.mxu0 0
        %5778 = vmatpush1.bf16.msra.mxu0 0
        %5779 = vmatprep.subr.bf16.mxu0 0
        %5780 = vmatpush1.bf16.msra.mxu0 0
        %5781 = vmatprep.subr.bf16.mxu0 0
        %5782 = vmatpush1.bf16.msra.mxu0 0
        %5783 = vmatprep.mubr.bf16.mxu0 0
        %5784 = vmatmul.mubr.bf16.gmra.mrb[0].mxu0 %v5749
        %v5785 = vpop.f32.mrb[0].mxu0
        %v5786 = vadd.f32 %v5491, %v5785
        %v5787 = vpop.f32.mrb[0].mxu0
        %v5788 = vpop.f32.mrb[0].mxu0
        %v5789 = vpop.f32.mrb[0].mxu0
        %5790 = vdwg.mxu0
        %v5792 = vrot.slane %v5786, 6
        %v5794 = vadd.f32 %v5573, %v5792
        %v5795 = vxor.u32 %v5794, 2147483648
        %v5796 = vmul.f32 %v5795, 1.442695
        %v5797 = vpow.pop %v5796
        %v5798 = vadd.f32 %v5797, 1.0
        %v5799 = vrcp.pop %v5798
        %v5800 = vmul.f32 1.0, %v5799
        %5801 = vrot.lane.b32.xlu0 %v5792, 64
        %v5802 = vpop.permute.xlu0 %5801
        %v5804 = vmul.f32 %v5800, %v5802
        %5806 = vrot.lane.b32.xlu0 %v5804, 64
        %v5807 = vpop.permute.xlu0 %5806
        %v5809 = vadd.f32 %v5573, %v5807
        %v5810 = vtanh.pop %v5809
        %v5811 = vsub.f32 1.0, %v5800
        %5813 = vrot.lane.b32.xlu0 %v5810, 96
        %v5814 = vpop.permute.xlu0 %5813
        %v5816 = vmul.f32 %v5811, %v5814
        %v5818 = vrot.slane %v5741, 7
        %v5820 = vmul.f32 %v5800, %v5818
        %v5821 = vadd.f32 %v5816, %v5820
        %v5822 = vpack.c.bf16 %v5821, %v5821
        %v5824 = vrot.slane %v5822, 1
        %5825 = vrot.lane.b32.xlu0 %v5824, 96
        %v5826 = vpop.permute.xlu0 %5825
        %v5828 = vsel %vm2245, %v5826, 0
        %5830 = vmatprep.subr.bf16.mxu0 0
        %5831 = vmatpush1.bf16.msra.mxu0 %v5587
        %5832 = vmatprep.subr.bf16.mxu0 0
        %5833 = vmatpush1.bf16.msra.mxu0 %v5588
        %5834 = vmatprep.subr.bf16.mxu0 0
        %5835 = vmatpush1.bf16.msra.mxu0 0
        %5836 = vmatprep.subr.bf16.mxu0 0
        %5837 = vmatpush1.bf16.msra.mxu0 0
        %5838 = vmatprep.subr.bf16.mxu0 0
        %5839 = vmatpush1.bf16.msra.mxu0 0
        %5840 = vmatprep.subr.bf16.mxu0 0
        %5841 = vmatpush1.bf16.msra.mxu0 0
        %5842 = vmatprep.subr.bf16.mxu0 0
        %5843 = vmatpush1.bf16.msra.mxu0 0
        %5844 = vmatprep.subr.bf16.mxu0 0
        %5845 = vmatpush1.bf16.msra.mxu0 0
        %5846 = vmatprep.subr.bf16.mxu0 0
        %5847 = vmatpush1.bf16.msra.mxu0 0
        %5848 = vmatprep.subr.bf16.mxu0 0
        %5849 = vmatpush1.bf16.msra.mxu0 0
        %5850 = vmatprep.subr.bf16.mxu0 0
        %5851 = vmatpush1.bf16.msra.mxu0 0
        %5852 = vmatprep.subr.bf16.mxu0 0
        %5853 = vmatpush1.bf16.msra.mxu0 0
        %5854 = vmatprep.subr.bf16.mxu0 0
        %5855 = vmatpush1.bf16.msra.mxu0 0
        %5856 = vmatprep.subr.bf16.mxu0 0
        %5857 = vmatpush1.bf16.msra.mxu0 0
        %5858 = vmatprep.subr.bf16.mxu0 0
        %5859 = vmatpush1.bf16.msra.mxu0 0
        %5860 = vmatprep.subr.bf16.mxu0 0
        %5861 = vmatpush1.bf16.msra.mxu0 0
        %5862 = vmatprep.mubr.bf16.mxu0 0
        %5863 = vmatmul.mubr.bf16.gmra.mrb[0].mxu0 %v5828
        %v5864 = vpop.f32.mrb[0].mxu0
        %v5865 = vadd.f32 %v5491, %v5864
        %v5866 = vpop.f32.mrb[0].mxu0
        %v5867 = vpop.f32.mrb[0].mxu0
        %v5868 = vpop.f32.mrb[0].mxu0
        %5869 = vdwg.mxu0
        %v5871 = vrot.slane %v5865, 5
        %v5873 = vadd.f32 %v5573, %v5871
        %v5874 = vxor.u32 %v5873, 2147483648
        %v5875 = vmul.f32 %v5874, 1.442695
        %v5876 = vpow.pop %v5875
        %v5877 = vadd.f32 %v5876, 1.0
        %v5878 = vrcp.pop %v5877
        %v5879 = vmul.f32 1.0, %v5878
        %5880 = vrot.lane.b32.xlu0 %v5871, 64
        %v5881 = vpop.permute.xlu0 %5880
        %v5883 = vmul.f32 %v5879, %v5881
        %5885 = vrot.lane.b32.xlu0 %v5883, 64
        %v5886 = vpop.permute.xlu0 %5885
        %v5888 = vadd.f32 %v5573, %v5886
        %v5889 = vtanh.pop %v5888
        %v5890 = vsub.f32 1.0, %v5879
        %5892 = vrot.lane.b32.xlu0 %v5889, 96
        %v5893 = vpop.permute.xlu0 %5892
        %v5895 = vmul.f32 %v5890, %v5893
        %v5897 = vrot.slane %v5821, 7
        %v5899 = vmul.f32 %v5879, %v5897
        %v5900 = vadd.f32 %v5895, %v5899
        %v5901 = vpack.c.bf16 %v5900, %v5900
        %v5903 = vshrl.u32 %v5901, 16
        %v5905 = vrot.slane %v5903, 1
        %5906 = vrot.lane.b32.xlu0 %v5905, 96
        %v5907 = vpop.permute.xlu0 %5906
        %v5909 = vsel %vm2245, %v5907, 0
        %5911 = vmatprep.subr.bf16.mxu0 0
        %5912 = vmatpush1.bf16.msra.mxu0 %v5587
        %5913 = vmatprep.subr.bf16.mxu0 0
        %5914 = vmatpush1.bf16.msra.mxu0 %v5588
        %5915 = vmatprep.subr.bf16.mxu0 0
        %5916 = vmatpush1.bf16.msra.mxu0 0
        %5917 = vmatprep.subr.bf16.mxu0 0
        %5918 = vmatpush1.bf16.msra.mxu0 0
        %5919 = vmatprep.subr.bf16.mxu0 0
        %5920 = vmatpush1.bf16.msra.mxu0 0
        %5921 = vmatprep.subr.bf16.mxu0 0
        %5922 = vmatpush1.bf16.msra.mxu0 0
        %5923 = vmatprep.subr.bf16.mxu0 0
        %5924 = vmatpush1.bf16.msra.mxu0 0
        %5925 = vmatprep.subr.bf16.mxu0 0
        %5926 = vmatpush1.bf16.msra.mxu0 0
        %5927 = vmatprep.subr.bf16.mxu0 0
        %5928 = vmatpush1.bf16.msra.mxu0 0
        %5929 = vmatprep.subr.bf16.mxu0 0
        %5930 = vmatpush1.bf16.msra.mxu0 0
        %5931 = vmatprep.subr.bf16.mxu0 0
        %5932 = vmatpush1.bf16.msra.mxu0 0
        %5933 = vmatprep.subr.bf16.mxu0 0
        %5934 = vmatpush1.bf16.msra.mxu0 0
        %5935 = vmatprep.subr.bf16.mxu0 0
        %5936 = vmatpush1.bf16.msra.mxu0 0
        %5937 = vmatprep.subr.bf16.mxu0 0
        %5938 = vmatpush1.bf16.msra.mxu0 0
        %5939 = vmatprep.subr.bf16.mxu0 0
        %5940 = vmatpush1.bf16.msra.mxu0 0
        %5941 = vmatprep.subr.bf16.mxu0 0
        %5942 = vmatpush1.bf16.msra.mxu0 0
        %5943 = vmatprep.mubr.bf16.mxu0 0
        %5944 = vmatmul.mubr.bf16.gmra.mrb[0].mxu0 %v5909
        %v5945 = vpop.f32.mrb[0].mxu0
        %v5946 = vadd.f32 %v5491, %v5945
        %v5947 = vpop.f32.mrb[0].mxu0
        %v5948 = vpop.f32.mrb[0].mxu0
        %v5949 = vpop.f32.mrb[0].mxu0
        %5950 = vdwg.mxu0
        %v5952 = vrot.slane %v5946, 4
        %v5954 = vadd.f32 %v5573, %v5952
        %v5955 = vxor.u32 %v5954, 2147483648
        %v5956 = vmul.f32 %v5955, 1.442695
        %v5957 = vpow.pop %v5956
        %v5958 = vadd.f32 %v5957, 1.0
        %v5959 = vrcp.pop %v5958
        %v5960 = vmul.f32 1.0, %v5959
        %5961 = vrot.lane.b32.xlu0 %v5952, 64
        %v5962 = vpop.permute.xlu0 %5961
        %v5964 = vmul.f32 %v5960, %v5962
        %5966 = vrot.lane.b32.xlu0 %v5964, 64
        %v5967 = vpop.permute.xlu0 %5966
        %v5969 = vadd.f32 %v5573, %v5967
        %v5970 = vtanh.pop %v5969
        %v5971 = vsub.f32 1.0, %v5960
        %5973 = vrot.lane.b32.xlu0 %v5970, 96
        %v5974 = vpop.permute.xlu0 %5973
        %v5976 = vmul.f32 %v5971, %v5974
        %v5978 = vrot.slane %v5900, 7
        %v5980 = vmul.f32 %v5960, %v5978
        %v5981 = vadd.f32 %v5976, %v5980
        %v5982 = vpack.c.bf16 %v5981, %v5981
        %v5984 = vrot.slane %v5982, 2
        %5985 = vrot.lane.b32.xlu0 %v5984, 96
        %v5986 = vpop.permute.xlu0 %5985
        %v5988 = vsel %vm2245, %v5986, 0
        %5990 = vmatprep.subr.bf16.mxu0 0
        %5991 = vmatpush1.bf16.msra.mxu0 %v5587
        %5992 = vmatprep.subr.bf16.mxu0 0
        %5993 = vmatpush1.bf16.msra.mxu0 %v5588
        %5994 = vmatprep.subr.bf16.mxu0 0
        %5995 = vmatpush1.bf16.msra.mxu0 0
        %5996 = vmatprep.subr.bf16.mxu0 0
        %5997 = vmatpush1.bf16.msra.mxu0 0
        %5998 = vmatprep.subr.bf16.mxu0 0
        %5999 = vmatpush1.bf16.msra.mxu0 0
        %6000 = vmatprep.subr.bf16.mxu0 0
        %6001 = vmatpush1.bf16.msra.mxu0 0
        %6002 = vmatprep.subr.bf16.mxu0 0
        %6003 = vmatpush1.bf16.msra.mxu0 0
        %6004 = vmatprep.subr.bf16.mxu0 0
        %6005 = vmatpush1.bf16.msra.mxu0 0
        %6006 = vmatprep.subr.bf16.mxu0 0
        %6007 = vmatpush1.bf16.msra.mxu0 0
        %6008 = vmatprep.subr.bf16.mxu0 0
        %6009 = vmatpush1.bf16.msra.mxu0 0
        %6010 = vmatprep.subr.bf16.mxu0 0
        %6011 = vmatpush1.bf16.msra.mxu0 0
        %6012 = vmatprep.subr.bf16.mxu0 0
        %6013 = vmatpush1.bf16.msra.mxu0 0
        %6014 = vmatprep.subr.bf16.mxu0 0
        %6015 = vmatpush1.bf16.msra.mxu0 0
        %6016 = vmatprep.subr.bf16.mxu0 0
        %6017 = vmatpush1.bf16.msra.mxu0 0
        %6018 = vmatprep.subr.bf16.mxu0 0
        %6019 = vmatpush1.bf16.msra.mxu0 0
        %6020 = vmatprep.subr.bf16.mxu0 0
        %6021 = vmatpush1.bf16.msra.mxu0 0
        %6022 = vmatprep.mubr.bf16.mxu0 0
        %6023 = vmatmul.mubr.bf16.gmra.mrb[0].mxu0 %v5988
        %v6024 = vpop.f32.mrb[0].mxu0
        %v6025 = vadd.f32 %v5491, %v6024
        %v6026 = vpop.f32.mrb[0].mxu0
        %v6027 = vpop.f32.mrb[0].mxu0
        %v6028 = vpop.f32.mrb[0].mxu0
        %6029 = vdwg.mxu0
        %v6031 = vrot.slane %v6025, 3
        %v6033 = vadd.f32 %v5573, %v6031
        %v6034 = vxor.u32 %v6033, 2147483648
        %v6035 = vmul.f32 %v6034, 1.442695
        %v6036 = vpow.pop %v6035
        %v6037 = vadd.f32 %v6036, 1.0
        %v6038 = vrcp.pop %v6037
        %v6039 = vmul.f32 1.0, %v6038
        %6040 = vrot.lane.b32.xlu0 %v6031, 64
        %v6041 = vpop.permute.xlu0 %6040
        %v6043 = vmul.f32 %v6039, %v6041
        %6045 = vrot.lane.b32.xlu0 %v6043, 64
        %v6046 = vpop.permute.xlu0 %6045
        %v6048 = vadd.f32 %v5573, %v6046
        %v6049 = vtanh.pop %v6048
        %v6050 = vsub.f32 1.0, %v6039
        %6052 = vrot.lane.b32.xlu0 %v6049, 96
        %v6053 = vpop.permute.xlu0 %6052
        %v6055 = vmul.f32 %v6050, %v6053
        %v6057 = vrot.slane %v5981, 7
        %v6059 = vmul.f32 %v6039, %v6057
        %v6060 = vadd.f32 %v6055, %v6059
        %v6061 = vpack.c.bf16 %v6060, %v6060
        %v6063 = vshrl.u32 %v6061, 16
        %v6065 = vrot.slane %v6063, 2
        %6066 = vrot.lane.b32.xlu0 %v6065, 96
        %v6067 = vpop.permute.xlu0 %6066
        %v6069 = vsel %vm2245, %v6067, 0
        %6071 = vmatprep.subr.bf16.mxu0 0
        %6072 = vmatpush1.bf16.msra.mxu0 %v5587
        %6073 = vmatprep.subr.bf16.mxu0 0
        %6074 = vmatpush1.bf16.msra.mxu0 %v5588
        %6075 = vmatprep.subr.bf16.mxu0 0
        %6076 = vmatpush1.bf16.msra.mxu0 0
        %6077 = vmatprep.subr.bf16.mxu0 0
        %6078 = vmatpush1.bf16.msra.mxu0 0
        %6079 = vmatprep.subr.bf16.mxu0 0
        %6080 = vmatpush1.bf16.msra.mxu0 0
        %6081 = vmatprep.subr.bf16.mxu0 0
        %6082 = vmatpush1.bf16.msra.mxu0 0
        %6083 = vmatprep.subr.bf16.mxu0 0
        %6084 = vmatpush1.bf16.msra.mxu0 0
        %6085 = vmatprep.subr.bf16.mxu0 0
        %6086 = vmatpush1.bf16.msra.mxu0 0
        %6087 = vmatprep.subr.bf16.mxu0 0
        %6088 = vmatpush1.bf16.msra.mxu0 0
        %6089 = vmatprep.subr.bf16.mxu0 0
        %6090 = vmatpush1.bf16.msra.mxu0 0
        %6091 = vmatprep.subr.bf16.mxu0 0
        %6092 = vmatpush1.bf16.msra.mxu0 0
        %6093 = vmatprep.subr.bf16.mxu0 0
        %6094 = vmatpush1.bf16.msra.mxu0 0
        %6095 = vmatprep.subr.bf16.mxu0 0
        %6096 = vmatpush1.bf16.msra.mxu0 0
        %6097 = vmatprep.subr.bf16.mxu0 0
        %6098 = vmatpush1.bf16.msra.mxu0 0
        %6099 = vmatprep.subr.bf16.mxu0 0
        %6100 = vmatpush1.bf16.msra.mxu0 0
        %6101 = vmatprep.subr.bf16.mxu0 0
        %6102 = vmatpush1.bf16.msra.mxu0 0
        %6103 = vmatprep.mubr.bf16.mxu0 0
        %6104 = vmatmul.mubr.bf16.gmra.mrb[0].mxu0 %v6069
        %v6105 = vpop.f32.mrb[0].mxu0
        %v6106 = vadd.f32 %v5491, %v6105
        %v6107 = vpop.f32.mrb[0].mxu0
        %v6108 = vpop.f32.mrb[0].mxu0
        %v6109 = vpop.f32.mrb[0].mxu0
        %6110 = vdwg.mxu0
        %v6112 = vrot.slane %v6106, 2
        %v6114 = vadd.f32 %v5573, %v6112
        %v6115 = vxor.u32 %v6114, 2147483648
        %v6116 = vmul.f32 %v6115, 1.442695
        %v6117 = vpow.pop %v6116
        %v6118 = vadd.f32 %v6117, 1.0
        %v6119 = vrcp.pop %v6118
        %v6120 = vmul.f32 1.0, %v6119
        %6121 = vrot.lane.b32.xlu0 %v6112, 64
        %v6122 = vpop.permute.xlu0 %6121
        %v6124 = vmul.f32 %v6120, %v6122
        %6126 = vrot.lane.b32.xlu0 %v6124, 64
        %v6127 = vpop.permute.xlu0 %6126
        %v6129 = vadd.f32 %v5573, %v6127
        %v6130 = vtanh.pop %v6129
        %v6131 = vsub.f32 1.0, %v6120
        %6133 = vrot.lane.b32.xlu0 %v6130, 96
        %v6134 = vpop.permute.xlu0 %6133
        %v6136 = vmul.f32 %v6131, %v6134
        %v6138 = vrot.slane %v6060, 7
        %v6140 = vmul.f32 %v6120, %v6138
        %v6141 = vadd.f32 %v6136, %v6140
        %v6142 = vpack.c.bf16 %v6141, %v6141
        %v6144 = vrot.slane %v6142, 3
        %6145 = vrot.lane.b32.xlu0 %v6144, 96
        %v6146 = vpop.permute.xlu0 %6145
        %v6148 = vsel %vm2245, %v6146, 0
        %6150 = vmatprep.subr.bf16.mxu0 0
        %6151 = vmatpush1.bf16.msra.mxu0 %v5587
        %6152 = vmatprep.subr.bf16.mxu0 0
        %6153 = vmatpush1.bf16.msra.mxu0 %v5588
        %6154 = vmatprep.subr.bf16.mxu0 0
        %6155 = vmatpush1.bf16.msra.mxu0 0
        %6156 = vmatprep.subr.bf16.mxu0 0
        %6157 = vmatpush1.bf16.msra.mxu0 0
        %6158 = vmatprep.subr.bf16.mxu0 0
        %6159 = vmatpush1.bf16.msra.mxu0 0
        %6160 = vmatprep.subr.bf16.mxu0 0
        %6161 = vmatpush1.bf16.msra.mxu0 0
        %6162 = vmatprep.subr.bf16.mxu0 0
        %6163 = vmatpush1.bf16.msra.mxu0 0
        %6164 = vmatprep.subr.bf16.mxu0 0
        %6165 = vmatpush1.bf16.msra.mxu0 0
        %6166 = vmatprep.subr.bf16.mxu0 0
        %6167 = vmatpush1.bf16.msra.mxu0 0
        %6168 = vmatprep.subr.bf16.mxu0 0
        %6169 = vmatpush1.bf16.msra.mxu0 0
        %6170 = vmatprep.subr.bf16.mxu0 0
        %6171 = vmatpush1.bf16.msra.mxu0 0
        %6172 = vmatprep.subr.bf16.mxu0 0
        %6173 = vmatpush1.bf16.msra.mxu0 0
        %6174 = vmatprep.subr.bf16.mxu0 0
        %6175 = vmatpush1.bf16.msra.mxu0 0
        %6176 = vmatprep.subr.bf16.mxu0 0
        %6177 = vmatpush1.bf16.msra.mxu0 0
        %6178 = vmatprep.subr.bf16.mxu0 0
        %6179 = vmatpush1.bf16.msra.mxu0 0
        %6180 = vmatprep.subr.bf16.mxu0 0
        %6181 = vmatpush1.bf16.msra.mxu0 0
        %6182 = vmatprep.mubr.bf16.mxu0 0
        %6183 = vmatmul.mubr.bf16.gmra.mrb[0].mxu0 %v6148
        %v6184 = vpop.f32.mrb[0].mxu0
        %v6185 = vadd.f32 %v5491, %v6184
        %v6186 = vpop.f32.mrb[0].mxu0
        %v6187 = vpop.f32.mrb[0].mxu0
        %v6188 = vpop.f32.mrb[0].mxu0
        %6189 = vdwg.mxu0
        %v6191 = vrot.slane %v6185, 1
        %v6193 = vadd.f32 %v5573, %v6191
        %v6194 = vxor.u32 %v6193, 2147483648
        %v6195 = vmul.f32 %v6194, 1.442695
        %v6196 = vpow.pop %v6195
        %v6197 = vadd.f32 %v6196, 1.0
        %v6198 = vrcp.pop %v6197
        %v6199 = vmul.f32 1.0, %v6198
        %6200 = vrot.lane.b32.xlu0 %v6191, 64
        %v6201 = vpop.permute.xlu0 %6200
        %v6203 = vmul.f32 %v6199, %v6201
        %6205 = vrot.lane.b32.xlu0 %v6203, 64
        %v6206 = vpop.permute.xlu0 %6205
        %v6208 = vadd.f32 %v5573, %v6206
        %v6209 = vtanh.pop %v6208
        %v6210 = vsub.f32 1.0, %v6199
        %6212 = vrot.lane.b32.xlu0 %v6209, 96
        %v6213 = vpop.permute.xlu0 %6212
        %v6215 = vmul.f32 %v6210, %v6213
        %v6217 = vrot.slane %v6141, 7
        %v6219 = vmul.f32 %v6199, %v6217
        %v6220 = vadd.f32 %v6215, %v6219
        %v6221 = vsel %vm3029, %v5663, %v5741
        %v6222 = vsel %vm2140, %v6221, %v5821
        %v6223 = vsel %vm3032, %v6222, %v5900
        %v6224 = vsel %vm2051, %v6223, %v5981
        %v6225 = vsel %vm3035, %v6224, %v6060
        %v6226 = vsel %vm3037, %v6225, %v6141
        %v6227 = vsel %vm3039, %v6226, %v6220
        %v6228 = vld [vmem:[%s83] sm:$0xf]
        %v6229 = vld [vmem:[%s83 + $0x4] sm:$0xf]
        %v6230 = vld [vmem:[%s83 + $0x8] sm:$0xf]
        %v6231 = vld [vmem:[%s83 + $0xc] sm:$0xf]
        %v6232 = vld [vmem:[%s85] sm:$0xf]
        %v6233 = vld [vmem:[%s85 + $0x4] sm:$0xf]
        %v6234 = vld [vmem:[%s85 + $0x8] sm:$0xf]
        %v6235 = vld [vmem:[%s85 + $0xc] sm:$0xf]
        %v6236 = vld [vmem:[%s87] sm:$0x1]
        %v6237 = vld [vmem:[%s89] sm:$0x1]
        %v6238 = vpack.c.bf16 %v6227, %v6227
        %v6240 = vlaneseq
        %v6241 = vshrl.u32 %v6240, 7
        %v6242 = vsub.s32 0, %v6241
        %v6243 = vrot.slane %v6236, %v6242
        %6246 = vrot.lane.b32.xlu0 %v6238, 96
        %v6247 = vpop.permute.xlu0 %6246
        %v6252 = vunpack.c.l.b16 %v6228
        %v6253 = vunpack.c.l.b16 %v6229
        %v6254 = vunpack.c.l.b16 %v6230
        %v6255 = vunpack.c.l.b16 %v6231
        %v6256 = vpack.c.b16 %v6253, %v6252
        %v6257 = vpack.c.b16 %v6255, %v6254
        %v6261 = vsel %vm2245, %v6247, 0
        %6263 = vmatprep.subr.bf16.mxu0 0
        %6264 = vmatpush1.bf16.msra.mxu0 %v6256
        %6265 = vmatprep.subr.bf16.mxu0 0
        %6266 = vmatpush1.bf16.msra.mxu0 %v6257
        %6267 = vmatprep.subr.bf16.mxu0 0
        %6268 = vmatpush1.bf16.msra.mxu0 0
        %6269 = vmatprep.subr.bf16.mxu0 0
        %6270 = vmatpush1.bf16.msra.mxu0 0
        %6271 = vmatprep.subr.bf16.mxu0 0
        %6272 = vmatpush1.bf16.msra.mxu0 0
        %6273 = vmatprep.subr.bf16.mxu0 0
        %6274 = vmatpush1.bf16.msra.mxu0 0
        %6275 = vmatprep.subr.bf16.mxu0 0
        %6276 = vmatpush1.bf16.msra.mxu0 0
        %6277 = vmatprep.subr.bf16.mxu0 0
        %6278 = vmatpush1.bf16.msra.mxu0 0
        %6279 = vmatprep.subr.bf16.mxu0 0
        %6280 = vmatpush1.bf16.msra.mxu0 0
        %6281 = vmatprep.subr.bf16.mxu0 0
        %6282 = vmatpush1.bf16.msra.mxu0 0
        %6283 = vmatprep.subr.bf16.mxu0 0
        %6284 = vmatpush1.bf16.msra.mxu0 0
        %6285 = vmatprep.subr.bf16.mxu0 0
        %6286 = vmatpush1.bf16.msra.mxu0 0
        %6287 = vmatprep.subr.bf16.mxu0 0
        %6288 = vmatpush1.bf16.msra.mxu0 0
        %6289 = vmatprep.subr.bf16.mxu0 0
        %6290 = vmatpush1.bf16.msra.mxu0 0
        %6291 = vmatprep.subr.bf16.mxu0 0
        %6292 = vmatpush1.bf16.msra.mxu0 0
        %6293 = vmatprep.subr.bf16.mxu0 0
        %6294 = vmatpush1.bf16.msra.mxu0 0
        %6295 = vmatprep.mubr.bf16.mxu0 0
        %6296 = vmatmul.mubr.bf16.gmra.mrb[0].mxu0 %v6261
        %v6297 = vpop.f32.mrb[0].mxu0
        %v6298 = vadd.f32 %v6243, %v6297
        %v6299 = vpop.f32.mrb[0].mxu0
        %v6300 = vpop.f32.mrb[0].mxu0
        %v6301 = vpop.f32.mrb[0].mxu0
        %6302 = vdwg.mxu0
        %v6303 = vpack.c.bf16 %v5395, %v5395
        %v6308 = vunpack.c.l.b16 %v6232
        %v6309 = vunpack.c.l.b16 %v6233
        %v6310 = vunpack.c.l.b16 %v6234
        %v6311 = vunpack.c.l.b16 %v6235
        %v6312 = vpack.c.b16 %v6309, %v6308
        %v6313 = vpack.c.b16 %v6311, %v6310
        %v6317 = vsel %vm2245, %v6303, 0
        %6319 = vmatprep.subr.bf16.mxu0 0
        %6320 = vmatpush1.bf16.msra.mxu0 %v6312
        %6321 = vmatprep.subr.bf16.mxu0 0
        %6322 = vmatpush1.bf16.msra.mxu0 %v6313
        %6323 = vmatprep.subr.bf16.mxu0 0
        %6324 = vmatpush1.bf16.msra.mxu0 0
        %6325 = vmatprep.subr.bf16.mxu0 0
        %6326 = vmatpush1.bf16.msra.mxu0 0
        %6327 = vmatprep.subr.bf16.mxu0 0
        %6328 = vmatpush1.bf16.msra.mxu0 0
        %6329 = vmatprep.subr.bf16.mxu0 0
        %6330 = vmatpush1.bf16.msra.mxu0 0
        %6331 = vmatprep.subr.bf16.mxu0 0
        %6332 = vmatpush1.bf16.msra.mxu0 0
        %6333 = vmatprep.subr.bf16.mxu0 0
        %6334 = vmatpush1.bf16.msra.mxu0 0
        %6335 = vmatprep.subr.bf16.mxu0 0
        %6336 = vmatpush1.bf16.msra.mxu0 0
        %6337 = vmatprep.subr.bf16.mxu0 0
        %6338 = vmatpush1.bf16.msra.mxu0 0
        %6339 = vmatprep.subr.bf16.mxu0 0
        %6340 = vmatpush1.bf16.msra.mxu0 0
        %6341 = vmatprep.subr.bf16.mxu0 0
        %6342 = vmatpush1.bf16.msra.mxu0 0
        %6343 = vmatprep.subr.bf16.mxu0 0
        %6344 = vmatpush1.bf16.msra.mxu0 0
        %6345 = vmatprep.subr.bf16.mxu0 0
        %6346 = vmatpush1.bf16.msra.mxu0 0
        %6347 = vmatprep.subr.bf16.mxu0 0
        %6348 = vmatpush1.bf16.msra.mxu0 0
        %6349 = vmatprep.subr.bf16.mxu0 0
        %6350 = vmatpush1.bf16.msra.mxu0 0
        %6351 = vmatprep.mubr.bf16.mxu0 0
        %6352 = vmatmul.mubr.bf16.gmra.mrb[0].mxu0 %v6317
        %v6353 = vpop.f32.mrb[0].mxu0
        %v6354 = vadd.f32 %v6237, %v6353
        %v6355 = vpop.f32.mrb[0].mxu0
        %v6356 = vpop.f32.mrb[0].mxu0
        %v6357 = vpop.f32.mrb[0].mxu0
        %6358 = vdwg.mxu0
        %v6359 = vadd.f32 %v6298, %v6354
        %v6360 = vxor.u32 %v6359, 2147483648
        %v6361 = vmul.f32 %v6360, 1.442695
        %v6362 = vpow.pop %v6361
        %v6363 = vadd.f32 %v6362, 1.0
        %v6364 = vrcp.pop %v6363
        %v6365 = vmul.f32 1.0, %v6364
        %6367 = vrot.lane.b32.xlu0 %v6354, 64
        %v6368 = vpop.permute.xlu0 %6367
        %v6370 = vmul.f32 %v6365, %v6368
        %6372 = vrot.lane.b32.xlu0 %v6370, 64
        %v6373 = vpop.permute.xlu0 %6372
        %v6375 = vadd.f32 %v6298, %v6373
        %v6376 = vtanh.pop %v6375
        %v6377 = vsub.f32 1.0, %v6365
        %6379 = vrot.lane.b32.xlu0 %v6376, 96
        %v6380 = vpop.permute.xlu0 %6379
        %v6382 = vmul.f32 %v6377, %v6380
        %6383 = vrot.lane.b32.xlu0 %v5395, 32
        %v6384 = vpop.permute.xlu0 %6383
        %v6386 = vmul.f32 %v6365, %v6384
        %v6387 = vadd.f32 %v6382, %v6386
        %v6388 = vpack.c.bf16 %v6387, %v6387
        %6390 = vrot.lane.b32.xlu0 %v6388, 96
        %v6391 = vpop.permute.xlu0 %6390
        %v6393 = vsel %vm2245, %v6391, 0
        %6395 = vmatprep.subr.bf16.mxu0 0
        %6396 = vmatpush1.bf16.msra.mxu0 %v6312
        %6397 = vmatprep.subr.bf16.mxu0 0
        %6398 = vmatpush1.bf16.msra.mxu0 %v6313
        %6399 = vmatprep.subr.bf16.mxu0 0
        %6400 = vmatpush1.bf16.msra.mxu0 0
        %6401 = vmatprep.subr.bf16.mxu0 0
        %6402 = vmatpush1.bf16.msra.mxu0 0
        %6403 = vmatprep.subr.bf16.mxu0 0
        %6404 = vmatpush1.bf16.msra.mxu0 0
        %6405 = vmatprep.subr.bf16.mxu0 0
        %6406 = vmatpush1.bf16.msra.mxu0 0
        %6407 = vmatprep.subr.bf16.mxu0 0
        %6408 = vmatpush1.bf16.msra.mxu0 0
        %6409 = vmatprep.subr.bf16.mxu0 0
        %6410 = vmatpush1.bf16.msra.mxu0 0
        %6411 = vmatprep.subr.bf16.mxu0 0
        %6412 = vmatpush1.bf16.msra.mxu0 0
        %6413 = vmatprep.subr.bf16.mxu0 0
        %6414 = vmatpush1.bf16.msra.mxu0 0
        %6415 = vmatprep.subr.bf16.mxu0 0
        %6416 = vmatpush1.bf16.msra.mxu0 0
        %6417 = vmatprep.subr.bf16.mxu0 0
        %6418 = vmatpush1.bf16.msra.mxu0 0
        %6419 = vmatprep.subr.bf16.mxu0 0
        %6420 = vmatpush1.bf16.msra.mxu0 0
        %6421 = vmatprep.subr.bf16.mxu0 0
        %6422 = vmatpush1.bf16.msra.mxu0 0
        %6423 = vmatprep.subr.bf16.mxu0 0
        %6424 = vmatpush1.bf16.msra.mxu0 0
        %6425 = vmatprep.subr.bf16.mxu0 0
        %6426 = vmatpush1.bf16.msra.mxu0 0
        %6427 = vmatprep.mubr.bf16.mxu0 0
        %6428 = vmatmul.mubr.bf16.gmra.mrb[0].mxu0 %v6393
        %v6429 = vpop.f32.mrb[0].mxu0
        %v6430 = vadd.f32 %v6237, %v6429
        %v6431 = vpop.f32.mrb[0].mxu0
        %v6432 = vpop.f32.mrb[0].mxu0
        %v6433 = vpop.f32.mrb[0].mxu0
        %6434 = vdwg.mxu0
        %v6436 = vrot.slane %v6430, 7
        %v6438 = vadd.f32 %v6298, %v6436
        %v6439 = vxor.u32 %v6438, 2147483648
        %v6440 = vmul.f32 %v6439, 1.442695
        %v6441 = vpow.pop %v6440
        %v6442 = vadd.f32 %v6441, 1.0
        %v6443 = vrcp.pop %v6442
        %v6444 = vmul.f32 1.0, %v6443
        %6445 = vrot.lane.b32.xlu0 %v6436, 64
        %v6446 = vpop.permute.xlu0 %6445
        %v6448 = vmul.f32 %v6444, %v6446
        %6450 = vrot.lane.b32.xlu0 %v6448, 64
        %v6451 = vpop.permute.xlu0 %6450
        %v6453 = vadd.f32 %v6298, %v6451
        %v6454 = vtanh.pop %v6453
        %v6455 = vsub.f32 1.0, %v6444
        %6457 = vrot.lane.b32.xlu0 %v6454, 96
        %v6458 = vpop.permute.xlu0 %6457
        %v6460 = vmul.f32 %v6455, %v6458
        %v6462 = vrot.slane %v6387, 7
        %v6464 = vmul.f32 %v6444, %v6462
        %v6465 = vadd.f32 %v6460, %v6464
        %v6466 = vpack.c.bf16 %v6465, %v6465
        %v6468 = vshrl.u32 %v6466, 16
        %6470 = vrot.lane.b32.xlu0 %v6468, 96
        %v6471 = vpop.permute.xlu0 %6470
        %v6473 = vsel %vm2245, %v6471, 0
        %6475 = vmatprep.subr.bf16.mxu0 0
        %6476 = vmatpush1.bf16.msra.mxu0 %v6312
        %6477 = vmatprep.subr.bf16.mxu0 0
        %6478 = vmatpush1.bf16.msra.mxu0 %v6313
        %6479 = vmatprep.subr.bf16.mxu0 0
        %6480 = vmatpush1.bf16.msra.mxu0 0
        %6481 = vmatprep.subr.bf16.mxu0 0
        %6482 = vmatpush1.bf16.msra.mxu0 0
        %6483 = vmatprep.subr.bf16.mxu0 0
        %6484 = vmatpush1.bf16.msra.mxu0 0
        %6485 = vmatprep.subr.bf16.mxu0 0
        %6486 = vmatpush1.bf16.msra.mxu0 0
        %6487 = vmatprep.subr.bf16.mxu0 0
        %6488 = vmatpush1.bf16.msra.mxu0 0
        %6489 = vmatprep.subr.bf16.mxu0 0
        %6490 = vmatpush1.bf16.msra.mxu0 0
        %6491 = vmatprep.subr.bf16.mxu0 0
        %6492 = vmatpush1.bf16.msra.mxu0 0
        %6493 = vmatprep.subr.bf16.mxu0 0
        %6494 = vmatpush1.bf16.msra.mxu0 0
        %6495 = vmatprep.subr.bf16.mxu0 0
        %6496 = vmatpush1.bf16.msra.mxu0 0
        %6497 = vmatprep.subr.bf16.mxu0 0
        %6498 = vmatpush1.bf16.msra.mxu0 0
        %6499 = vmatprep.subr.bf16.mxu0 0
        %6500 = vmatpush1.bf16.msra.mxu0 0
        %6501 = vmatprep.subr.bf16.mxu0 0
        %6502 = vmatpush1.bf16.msra.mxu0 0
        %6503 = vmatprep.subr.bf16.mxu0 0
        %6504 = vmatpush1.bf16.msra.mxu0 0
        %6505 = vmatprep.subr.bf16.mxu0 0
        %6506 = vmatpush1.bf16.msra.mxu0 0
        %6507 = vmatprep.mubr.bf16.mxu0 0
        %6508 = vmatmul.mubr.bf16.gmra.mrb[0].mxu0 %v6473
        %v6509 = vpop.f32.mrb[0].mxu0
        %v6510 = vadd.f32 %v6237, %v6509
        %v6511 = vpop.f32.mrb[0].mxu0
        %v6512 = vpop.f32.mrb[0].mxu0
        %v6513 = vpop.f32.mrb[0].mxu0
        %6514 = vdwg.mxu0
        %v6516 = vrot.slane %v6510, 6
        %v6518 = vadd.f32 %v6298, %v6516
        %v6519 = vxor.u32 %v6518, 2147483648
        %v6520 = vmul.f32 %v6519, 1.442695
        %v6521 = vpow.pop %v6520
        %v6522 = vadd.f32 %v6521, 1.0
        %v6523 = vrcp.pop %v6522
        %v6524 = vmul.f32 1.0, %v6523
        %6525 = vrot.lane.b32.xlu0 %v6516, 64
        %v6526 = vpop.permute.xlu0 %6525
        %v6528 = vmul.f32 %v6524, %v6526
        %6530 = vrot.lane.b32.xlu0 %v6528, 64
        %v6531 = vpop.permute.xlu0 %6530
        %v6533 = vadd.f32 %v6298, %v6531
        %v6534 = vtanh.pop %v6533
        %v6535 = vsub.f32 1.0, %v6524
        %6537 = vrot.lane.b32.xlu0 %v6534, 96
        %v6538 = vpop.permute.xlu0 %6537
        %v6540 = vmul.f32 %v6535, %v6538
        %v6542 = vrot.slane %v6465, 7
        %v6544 = vmul.f32 %v6524, %v6542
        %v6545 = vadd.f32 %v6540, %v6544
        %v6546 = vpack.c.bf16 %v6545, %v6545
        %v6548 = vrot.slane %v6546, 1
        %6549 = vrot.lane.b32.xlu0 %v6548, 96
        %v6550 = vpop.permute.xlu0 %6549
        %v6552 = vsel %vm2245, %v6550, 0
        %6554 = vmatprep.subr.bf16.mxu0 0
        %6555 = vmatpush1.bf16.msra.mxu0 %v6312
        %6556 = vmatprep.subr.bf16.mxu0 0
        %6557 = vmatpush1.bf16.msra.mxu0 %v6313
        %6558 = vmatprep.subr.bf16.mxu0 0
        %6559 = vmatpush1.bf16.msra.mxu0 0
        %6560 = vmatprep.subr.bf16.mxu0 0
        %6561 = vmatpush1.bf16.msra.mxu0 0
        %6562 = vmatprep.subr.bf16.mxu0 0
        %6563 = vmatpush1.bf16.msra.mxu0 0
        %6564 = vmatprep.subr.bf16.mxu0 0
        %6565 = vmatpush1.bf16.msra.mxu0 0
        %6566 = vmatprep.subr.bf16.mxu0 0
        %6567 = vmatpush1.bf16.msra.mxu0 0
        %6568 = vmatprep.subr.bf16.mxu0 0
        %6569 = vmatpush1.bf16.msra.mxu0 0
        %6570 = vmatprep.subr.bf16.mxu0 0
        %6571 = vmatpush1.bf16.msra.mxu0 0
        %6572 = vmatprep.subr.bf16.mxu0 0
        %6573 = vmatpush1.bf16.msra.mxu0 0
        %6574 = vmatprep.subr.bf16.mxu0 0
        %6575 = vmatpush1.bf16.msra.mxu0 0
        %6576 = vmatprep.subr.bf16.mxu0 0
        %6577 = vmatpush1.bf16.msra.mxu0 0
        %6578 = vmatprep.subr.bf16.mxu0 0
        %6579 = vmatpush1.bf16.msra.mxu0 0
        %6580 = vmatprep.subr.bf16.mxu0 0
        %6581 = vmatpush1.bf16.msra.mxu0 0
        %6582 = vmatprep.subr.bf16.mxu0 0
        %6583 = vmatpush1.bf16.msra.mxu0 0
        %6584 = vmatprep.subr.bf16.mxu0 0
        %6585 = vmatpush1.bf16.msra.mxu0 0
        %6586 = vmatprep.mubr.bf16.mxu0 0
        %6587 = vmatmul.mubr.bf16.gmra.mrb[0].mxu0 %v6552
        %v6588 = vpop.f32.mrb[0].mxu0
        %v6589 = vadd.f32 %v6237, %v6588
        %v6590 = vpop.f32.mrb[0].mxu0
        %v6591 = vpop.f32.mrb[0].mxu0
        %v6592 = vpop.f32.mrb[0].mxu0
        %6593 = vdwg.mxu0
        %v6595 = vrot.slane %v6589, 5
        %v6597 = vadd.f32 %v6298, %v6595
        %v6598 = vxor.u32 %v6597, 2147483648
        %v6599 = vmul.f32 %v6598, 1.442695
        %v6600 = vpow.pop %v6599
        %v6601 = vadd.f32 %v6600, 1.0
        %v6602 = vrcp.pop %v6601
        %v6603 = vmul.f32 1.0, %v6602
        %6604 = vrot.lane.b32.xlu0 %v6595, 64
        %v6605 = vpop.permute.xlu0 %6604
        %v6607 = vmul.f32 %v6603, %v6605
        %6609 = vrot.lane.b32.xlu0 %v6607, 64
        %v6610 = vpop.permute.xlu0 %6609
        %v6612 = vadd.f32 %v6298, %v6610
        %v6613 = vtanh.pop %v6612
        %v6614 = vsub.f32 1.0, %v6603
        %6616 = vrot.lane.b32.xlu0 %v6613, 96
        %v6617 = vpop.permute.xlu0 %6616
        %v6619 = vmul.f32 %v6614, %v6617
        %v6621 = vrot.slane %v6545, 7
        %v6623 = vmul.f32 %v6603, %v6621
        %v6624 = vadd.f32 %v6619, %v6623
        %v6625 = vpack.c.bf16 %v6624, %v6624
        %v6627 = vshrl.u32 %v6625, 16
        %v6629 = vrot.slane %v6627, 1
        %6630 = vrot.lane.b32.xlu0 %v6629, 96
        %v6631 = vpop.permute.xlu0 %6630
        %v6633 = vsel %vm2245, %v6631, 0
        %6635 = vmatprep.subr.bf16.mxu0 0
        %6636 = vmatpush1.bf16.msra.mxu0 %v6312
        %6637 = vmatprep.subr.bf16.mxu0 0
        %6638 = vmatpush1.bf16.msra.mxu0 %v6313
        %6639 = vmatprep.subr.bf16.mxu0 0
        %6640 = vmatpush1.bf16.msra.mxu0 0
        %6641 = vmatprep.subr.bf16.mxu0 0
        %6642 = vmatpush1.bf16.msra.mxu0 0
        %6643 = vmatprep.subr.bf16.mxu0 0
        %6644 = vmatpush1.bf16.msra.mxu0 0
        %6645 = vmatprep.subr.bf16.mxu0 0
        %6646 = vmatpush1.bf16.msra.mxu0 0
        %6647 = vmatprep.subr.bf16.mxu0 0
        %6648 = vmatpush1.bf16.msra.mxu0 0
        %6649 = vmatprep.subr.bf16.mxu0 0
        %6650 = vmatpush1.bf16.msra.mxu0 0
        %6651 = vmatprep.subr.bf16.mxu0 0
        %6652 = vmatpush1.bf16.msra.mxu0 0
        %6653 = vmatprep.subr.bf16.mxu0 0
        %6654 = vmatpush1.bf16.msra.mxu0 0
        %6655 = vmatprep.subr.bf16.mxu0 0
        %6656 = vmatpush1.bf16.msra.mxu0 0
        %6657 = vmatprep.subr.bf16.mxu0 0
        %6658 = vmatpush1.bf16.msra.mxu0 0
        %6659 = vmatprep.subr.bf16.mxu0 0
        %6660 = vmatpush1.bf16.msra.mxu0 0
        %6661 = vmatprep.subr.bf16.mxu0 0
        %6662 = vmatpush1.bf16.msra.mxu0 0
        %6663 = vmatprep.subr.bf16.mxu0 0
        %6664 = vmatpush1.bf16.msra.mxu0 0
        %6665 = vmatprep.subr.bf16.mxu0 0
        %6666 = vmatpush1.bf16.msra.mxu0 0
        %6667 = vmatprep.mubr.bf16.mxu0 0
        %6668 = vmatmul.mubr.bf16.gmra.mrb[0].mxu0 %v6633
        %v6669 = vpop.f32.mrb[0].mxu0
        %v6670 = vadd.f32 %v6237, %v6669
        %v6671 = vpop.f32.mrb[0].mxu0
        %v6672 = vpop.f32.mrb[0].mxu0
        %v6673 = vpop.f32.mrb[0].mxu0
        %6674 = vdwg.mxu0
        %v6676 = vrot.slane %v6670, 4
        %v6678 = vadd.f32 %v6298, %v6676
        %v6679 = vxor.u32 %v6678, 2147483648
        %v6680 = vmul.f32 %v6679, 1.442695
        %v6681 = vpow.pop %v6680
        %v6682 = vadd.f32 %v6681, 1.0
        %v6683 = vrcp.pop %v6682
        %v6684 = vmul.f32 1.0, %v6683
        %6685 = vrot.lane.b32.xlu0 %v6676, 64
        %v6686 = vpop.permute.xlu0 %6685
        %v6688 = vmul.f32 %v6684, %v6686
        %6690 = vrot.lane.b32.xlu0 %v6688, 64
        %v6691 = vpop.permute.xlu0 %6690
        %v6693 = vadd.f32 %v6298, %v6691
        %v6694 = vtanh.pop %v6693
        %v6695 = vsub.f32 1.0, %v6684
        %6697 = vrot.lane.b32.xlu0 %v6694, 96
        %v6698 = vpop.permute.xlu0 %6697
        %v6700 = vmul.f32 %v6695, %v6698
        %v6702 = vrot.slane %v6624, 7
        %v6704 = vmul.f32 %v6684, %v6702
        %v6705 = vadd.f32 %v6700, %v6704
        %v6706 = vpack.c.bf16 %v6705, %v6705
        %v6708 = vrot.slane %v6706, 2
        %6709 = vrot.lane.b32.xlu0 %v6708, 96
        %v6710 = vpop.permute.xlu0 %6709
        %v6712 = vsel %vm2245, %v6710, 0
        %6714 = vmatprep.subr.bf16.mxu0 0
        %6715 = vmatpush1.bf16.msra.mxu0 %v6312
        %6716 = vmatprep.subr.bf16.mxu0 0
        %6717 = vmatpush1.bf16.msra.mxu0 %v6313
        %6718 = vmatprep.subr.bf16.mxu0 0
        %6719 = vmatpush1.bf16.msra.mxu0 0
        %6720 = vmatprep.subr.bf16.mxu0 0
        %6721 = vmatpush1.bf16.msra.mxu0 0
        %6722 = vmatprep.subr.bf16.mxu0 0
        %6723 = vmatpush1.bf16.msra.mxu0 0
        %6724 = vmatprep.subr.bf16.mxu0 0
        %6725 = vmatpush1.bf16.msra.mxu0 0
        %6726 = vmatprep.subr.bf16.mxu0 0
        %6727 = vmatpush1.bf16.msra.mxu0 0
        %6728 = vmatprep.subr.bf16.mxu0 0
        %6729 = vmatpush1.bf16.msra.mxu0 0
        %6730 = vmatprep.subr.bf16.mxu0 0
        %6731 = vmatpush1.bf16.msra.mxu0 0
        %6732 = vmatprep.subr.bf16.mxu0 0
        %6733 = vmatpush1.bf16.msra.mxu0 0
        %6734 = vmatprep.subr.bf16.mxu0 0
        %6735 = vmatpush1.bf16.msra.mxu0 0
        %6736 = vmatprep.subr.bf16.mxu0 0
        %6737 = vmatpush1.bf16.msra.mxu0 0
        %6738 = vmatprep.subr.bf16.mxu0 0
        %6739 = vmatpush1.bf16.msra.mxu0 0
        %6740 = vmatprep.subr.bf16.mxu0 0
        %6741 = vmatpush1.bf16.msra.mxu0 0
        %6742 = vmatprep.subr.bf16.mxu0 0
        %6743 = vmatpush1.bf16.msra.mxu0 0
        %6744 = vmatprep.subr.bf16.mxu0 0
        %6745 = vmatpush1.bf16.msra.mxu0 0
        %6746 = vmatprep.mubr.bf16.mxu0 0
        %6747 = vmatmul.mubr.bf16.gmra.mrb[0].mxu0 %v6712
        %v6748 = vpop.f32.mrb[0].mxu0
        %v6749 = vadd.f32 %v6237, %v6748
        %v6750 = vpop.f32.mrb[0].mxu0
        %v6751 = vpop.f32.mrb[0].mxu0
        %v6752 = vpop.f32.mrb[0].mxu0
        %6753 = vdwg.mxu0
        %v6755 = vrot.slane %v6749, 3
        %v6757 = vadd.f32 %v6298, %v6755
        %v6758 = vxor.u32 %v6757, 2147483648
        %v6759 = vmul.f32 %v6758, 1.442695
        %v6760 = vpow.pop %v6759
        %v6761 = vadd.f32 %v6760, 1.0
        %v6762 = vrcp.pop %v6761
        %v6763 = vmul.f32 1.0, %v6762
        %6764 = vrot.lane.b32.xlu0 %v6755, 64
        %v6765 = vpop.permute.xlu0 %6764
        %v6767 = vmul.f32 %v6763, %v6765
        %6769 = vrot.lane.b32.xlu0 %v6767, 64
        %v6770 = vpop.permute.xlu0 %6769
        %v6772 = vadd.f32 %v6298, %v6770
        %v6773 = vtanh.pop %v6772
        %v6774 = vsub.f32 1.0, %v6763
        %6776 = vrot.lane.b32.xlu0 %v6773, 96
        %v6777 = vpop.permute.xlu0 %6776
        %v6779 = vmul.f32 %v6774, %v6777
        %v6781 = vrot.slane %v6705, 7
        %v6783 = vmul.f32 %v6763, %v6781
        %v6784 = vadd.f32 %v6779, %v6783
        %v6785 = vpack.c.bf16 %v6784, %v6784
        %v6787 = vshrl.u32 %v6785, 16
        %v6789 = vrot.slane %v6787, 2
        %6790 = vrot.lane.b32.xlu0 %v6789, 96
        %v6791 = vpop.permute.xlu0 %6790
        %v6793 = vsel %vm2245, %v6791, 0
        %6795 = vmatprep.subr.bf16.mxu0 0
        %6796 = vmatpush1.bf16.msra.mxu0 %v6312
        %6797 = vmatprep.subr.bf16.mxu0 0
        %6798 = vmatpush1.bf16.msra.mxu0 %v6313
        %6799 = vmatprep.subr.bf16.mxu0 0
        %6800 = vmatpush1.bf16.msra.mxu0 0
        %6801 = vmatprep.subr.bf16.mxu0 0
        %6802 = vmatpush1.bf16.msra.mxu0 0
        %6803 = vmatprep.subr.bf16.mxu0 0
        %6804 = vmatpush1.bf16.msra.mxu0 0
        %6805 = vmatprep.subr.bf16.mxu0 0
        %6806 = vmatpush1.bf16.msra.mxu0 0
        %6807 = vmatprep.subr.bf16.mxu0 0
        %6808 = vmatpush1.bf16.msra.mxu0 0
        %6809 = vmatprep.subr.bf16.mxu0 0
        %6810 = vmatpush1.bf16.msra.mxu0 0
        %6811 = vmatprep.subr.bf16.mxu0 0
        %6812 = vmatpush1.bf16.msra.mxu0 0
        %6813 = vmatprep.subr.bf16.mxu0 0
        %6814 = vmatpush1.bf16.msra.mxu0 0
        %6815 = vmatprep.subr.bf16.mxu0 0
        %6816 = vmatpush1.bf16.msra.mxu0 0
        %6817 = vmatprep.subr.bf16.mxu0 0
        %6818 = vmatpush1.bf16.msra.mxu0 0
        %6819 = vmatprep.subr.bf16.mxu0 0
        %6820 = vmatpush1.bf16.msra.mxu0 0
        %6821 = vmatprep.subr.bf16.mxu0 0
        %6822 = vmatpush1.bf16.msra.mxu0 0
        %6823 = vmatprep.subr.bf16.mxu0 0
        %6824 = vmatpush1.bf16.msra.mxu0 0
        %6825 = vmatprep.subr.bf16.mxu0 0
        %6826 = vmatpush1.bf16.msra.mxu0 0
        %6827 = vmatprep.mubr.bf16.mxu0 0
        %6828 = vmatmul.mubr.bf16.gmra.mrb[0].mxu0 %v6793
        %v6829 = vpop.f32.mrb[0].mxu0
        %v6830 = vadd.f32 %v6237, %v6829
        %v6831 = vpop.f32.mrb[0].mxu0
        %v6832 = vpop.f32.mrb[0].mxu0
        %v6833 = vpop.f32.mrb[0].mxu0
        %6834 = vdwg.mxu0
        %v6836 = vrot.slane %v6830, 2
        %v6838 = vadd.f32 %v6298, %v6836
        %v6839 = vxor.u32 %v6838, 2147483648
        %v6840 = vmul.f32 %v6839, 1.442695
        %v6841 = vpow.pop %v6840
        %v6842 = vadd.f32 %v6841, 1.0
        %v6843 = vrcp.pop %v6842
        %v6844 = vmul.f32 1.0, %v6843
        %6845 = vrot.lane.b32.xlu0 %v6836, 64
        %v6846 = vpop.permute.xlu0 %6845
        %v6848 = vmul.f32 %v6844, %v6846
        %6850 = vrot.lane.b32.xlu0 %v6848, 64
        %v6851 = vpop.permute.xlu0 %6850
        %v6853 = vadd.f32 %v6298, %v6851
        %v6854 = vtanh.pop %v6853
        %v6855 = vsub.f32 1.0, %v6844
        %6857 = vrot.lane.b32.xlu0 %v6854, 96
        %v6858 = vpop.permute.xlu0 %6857
        %v6860 = vmul.f32 %v6855, %v6858
        %v6862 = vrot.slane %v6784, 7
        %v6864 = vmul.f32 %v6844, %v6862
        %v6865 = vadd.f32 %v6860, %v6864
        %v6866 = vpack.c.bf16 %v6865, %v6865
        %v6868 = vrot.slane %v6866, 3
        %6869 = vrot.lane.b32.xlu0 %v6868, 96
        %v6870 = vpop.permute.xlu0 %6869
        %v6872 = vsel %vm2245, %v6870, 0
        %6874 = vmatprep.subr.bf16.mxu0 0
        %6875 = vmatpush1.bf16.msra.mxu0 %v6312
        %6876 = vmatprep.subr.bf16.mxu0 0
        %6877 = vmatpush1.bf16.msra.mxu0 %v6313
        %6878 = vmatprep.subr.bf16.mxu0 0
        %6879 = vmatpush1.bf16.msra.mxu0 0
        %6880 = vmatprep.subr.bf16.mxu0 0
        %6881 = vmatpush1.bf16.msra.mxu0 0
        %6882 = vmatprep.subr.bf16.mxu0 0
        %6883 = vmatpush1.bf16.msra.mxu0 0
        %6884 = vmatprep.subr.bf16.mxu0 0
        %6885 = vmatpush1.bf16.msra.mxu0 0
        %6886 = vmatprep.subr.bf16.mxu0 0
        %6887 = vmatpush1.bf16.msra.mxu0 0
        %6888 = vmatprep.subr.bf16.mxu0 0
        %6889 = vmatpush1.bf16.msra.mxu0 0
        %6890 = vmatprep.subr.bf16.mxu0 0
        %6891 = vmatpush1.bf16.msra.mxu0 0
        %6892 = vmatprep.subr.bf16.mxu0 0
        %6893 = vmatpush1.bf16.msra.mxu0 0
        %6894 = vmatprep.subr.bf16.mxu0 0
        %6895 = vmatpush1.bf16.msra.mxu0 0
        %6896 = vmatprep.subr.bf16.mxu0 0
        %6897 = vmatpush1.bf16.msra.mxu0 0
        %6898 = vmatprep.subr.bf16.mxu0 0
        %6899 = vmatpush1.bf16.msra.mxu0 0
        %6900 = vmatprep.subr.bf16.mxu0 0
        %6901 = vmatpush1.bf16.msra.mxu0 0
        %6902 = vmatprep.subr.bf16.mxu0 0
        %6903 = vmatpush1.bf16.msra.mxu0 0
        %6904 = vmatprep.subr.bf16.mxu0 0
        %6905 = vmatpush1.bf16.msra.mxu0 0
        %6906 = vmatprep.mubr.bf16.mxu0 0
        %6907 = vmatmul.mubr.bf16.gmra.mrb[0].mxu0 %v6872
        %v6908 = vpop.f32.mrb[0].mxu0
        %v6909 = vadd.f32 %v6237, %v6908
        %v6910 = vpop.f32.mrb[0].mxu0
        %v6911 = vpop.f32.mrb[0].mxu0
        %v6912 = vpop.f32.mrb[0].mxu0
        %6913 = vdwg.mxu0
        %v6915 = vrot.slane %v6909, 1
        %v6917 = vadd.f32 %v6298, %v6915
        %v6918 = vxor.u32 %v6917, 2147483648
        %v6919 = vmul.f32 %v6918, 1.442695
        %v6920 = vpow.pop %v6919
        %v6921 = vadd.f32 %v6920, 1.0
        %v6922 = vrcp.pop %v6921
        %v6923 = vmul.f32 1.0, %v6922
        %6924 = vrot.lane.b32.xlu0 %v6915, 64
        %v6925 = vpop.permute.xlu0 %6924
        %v6927 = vmul.f32 %v6923, %v6925
        %6929 = vrot.lane.b32.xlu0 %v6927, 64
        %v6930 = vpop.permute.xlu0 %6929
        %v6932 = vadd.f32 %v6298, %v6930
        %v6933 = vtanh.pop %v6932
        %v6934 = vsub.f32 1.0, %v6923
        %6936 = vrot.lane.b32.xlu0 %v6933, 96
        %v6937 = vpop.permute.xlu0 %6936
        %v6939 = vmul.f32 %v6934, %v6937
        %v6941 = vrot.slane %v6865, 7
        %v6943 = vmul.f32 %v6923, %v6941
        %v6944 = vadd.f32 %v6939, %v6943
        %v6945 = vsel %vm3029, %v6387, %v6465
        %v6946 = vsel %vm2140, %v6945, %v6545
        %v6947 = vsel %vm3032, %v6946, %v6624
        %v6948 = vsel %vm2051, %v6947, %v6705
        %v6949 = vsel %vm3035, %v6948, %v6784
        %v6950 = vsel %vm3037, %v6949, %v6865
        %v6951 = vsel %vm3039, %v6950, %v6944
        %v6952 = vld [vmem:[%s91] sm:$0xf]
        %v6953 = vld [vmem:[%s91 + $0x4] sm:$0xf]
        %v6954 = vld [vmem:[%s91 + $0x8] sm:$0xf]
        %v6955 = vld [vmem:[%s91 + $0xc] sm:$0xf]
        %v6956 = vld [vmem:[%s93] sm:$0x1]
        %v6957 = vld [vmem:[%s95] sm:$0x1]
        %v6958 = vld [vmem:[%s97] sm:$0x1]
        %v6959 = vld [vmem:[%s99] sm:$0x1]
        %v6960 = vld [vmem:[#allocation3] sm:$0x1]
        %v6961 = vpack.c.bf16 %v6951, %v6951
        %v6963 = vlaneseq
        %v6964 = vshrl.u32 %v6963, 7
        %v6965 = vsub.s32 0, %v6964
        %v6966 = vrot.slane %v6956, %v6965
        %6969 = vrot.lane.b32.xlu0 %v6961, 96
        %v6970 = vpop.permute.xlu0 %6969
        %v6975 = vunpack.c.l.b16 %v6952
        %v6976 = vunpack.c.l.b16 %v6953
        %v6977 = vunpack.c.l.b16 %v6954
        %v6978 = vunpack.c.l.b16 %v6955
        %v6979 = vpack.c.b16 %v6976, %v6975
        %v6980 = vpack.c.b16 %v6978, %v6977
        %v6984 = vsel %vm2245, %v6970, 0
        %6986 = vmatprep.subr.bf16.mxu0 0
        %6987 = vmatpush1.bf16.msra.mxu0 %v6979
        %6988 = vmatprep.subr.bf16.mxu0 0
        %6989 = vmatpush1.bf16.msra.mxu0 %v6980
        %6990 = vmatprep.subr.bf16.mxu0 0
        %6991 = vmatpush1.bf16.msra.mxu0 0
        %6992 = vmatprep.subr.bf16.mxu0 0
        %6993 = vmatpush1.bf16.msra.mxu0 0
        %6994 = vmatprep.subr.bf16.mxu0 0
        %6995 = vmatpush1.bf16.msra.mxu0 0
        %6996 = vmatprep.subr.bf16.mxu0 0
        %6997 = vmatpush1.bf16.msra.mxu0 0
        %6998 = vmatprep.subr.bf16.mxu0 0
        %6999 = vmatpush1.bf16.msra.mxu0 0
        %7000 = vmatprep.subr.bf16.mxu0 0
        %7001 = vmatpush1.bf16.msra.mxu0 0
        %7002 = vmatprep.subr.bf16.mxu0 0
        %7003 = vmatpush1.bf16.msra.mxu0 0
        %7004 = vmatprep.subr.bf16.mxu0 0
        %7005 = vmatpush1.bf16.msra.mxu0 0
        %7006 = vmatprep.subr.bf16.mxu0 0
        %7007 = vmatpush1.bf16.msra.mxu0 0
        %7008 = vmatprep.subr.bf16.mxu0 0
        %7009 = vmatpush1.bf16.msra.mxu0 0
        %7010 = vmatprep.subr.bf16.mxu0 0
        %7011 = vmatpush1.bf16.msra.mxu0 0
        %7012 = vmatprep.subr.bf16.mxu0 0
        %7013 = vmatpush1.bf16.msra.mxu0 0
        %7014 = vmatprep.subr.bf16.mxu0 0
        %7015 = vmatpush1.bf16.msra.mxu0 0
        %7016 = vmatprep.subr.bf16.mxu0 0
        %7017 = vmatpush1.bf16.msra.mxu0 0
        %7018 = vmatprep.mubr.bf16.mxu0 0
        %7019 = vmatmul.mubr.bf16.gmra.mrb[0].mxu0 %v6984
        %v7020 = vpop.f32.mrb[0].mxu0
        %v7021 = vadd.f32 %v6966, %v7020
        %v7022 = vpop.f32.mrb[0].mxu0
        %v7023 = vpop.f32.mrb[0].mxu0
        %v7024 = vpop.f32.mrb[0].mxu0
        %7025 = vdwg.mxu0
        %v7026 = vsel %vm2245, %v7021, 0.0
        %7027 = vadd.xlane.f32.xlu0 %v7026
        %v7028 = vpop.xlane.xlu0 %7027
        %v7029 = vmul.f32 %v7028, %v2292
        %v7030 = vmul.f32 %v7021, %v7021
        %v7031 = vsel %vm2245, %v7030, 0.0
        %7032 = vadd.xlane.f32.xlu0 %v7031
        %v7033 = vpop.xlane.xlu0 %7032
        %v7034 = vmul.f32 %v7033, %v2292
        %v7035 = vmul.f32 %v7029, %v7029
        %v7036 = vsub.f32 %v7034, %v7035
        %v7037 = vsub.f32 %v7021, %v7029
        %v7038 = vadd.f32 %v7036, 1e-05
        %v7039 = vrsqrt.pop %v7038
        %v7040 = vmul.f32 %v7037, %v7039
        %v7042 = vlaneseq
        %v7043 = vshrl.u32 %v7042, 7
        %v7044 = vsub.s32 0, %v7043
        %v7045 = vrot.slane %v6957, %v7044
        %v7047 = vmul.f32 %v7040, %v7045
        %v7049 = vlaneseq
        %v7050 = vshrl.u32 %v7049, 7
        %v7051 = vsub.s32 0, %v7050
        %v7052 = vrot.slane %v6958, %v7051
        %v7054 = vadd.f32 %v7047, %v7052
        %v7055 = vmax.f32 %v7054, 0.0
        %v7057 = vlaneseq
        %v7058 = vshrl.u32 %v7057, 7
        %v7059 = vsub.s32 0, %v7058
        %v7060 = vrot.slane %v6959, %v7059
        %v7062 = vmul.f32 %v7055, %v7060
        %v7063 = vsel %vm2245, %v7062, 0.0
        %7064 = vadd.xlane.f32.xlu0 %v7063
        %v7065 = vpop.xlane.xlu0 %7064
        %v7067 = vlaneseq
        %v7068 = vshrl.u32 %v7067, 7
        %v7069 = vsub.s32 0, %v7068
        %v7070 = vrot.slane %v6960, %v7069
        %v7072 = vadd.f32 %v7065, %v7070
        %7073 = vst.msk [vmem:[%s1849] sm:$0xff] %vm5436, %v7072
        %p7074 = scmp.lt.s32.totalorder %s131, 1
        %s7075 = scalar_select %p7074, %s131, 1
        %s7076 = smul.addr %s7075, 8
        %s7077 = scalar_lea.vmem %s103, %s7076
        // Predicated region
        $region325: #{tpu_custom_call.1} parent=223 // pred_check
          %p7078 = pneg %p1230
        $region326: #{tpu_custom_call.1} parent=223 // pred_check_branch
          %7080 = sbr.rel (%p7078) target = $region328
        $region327: #{tpu_custom_call.1} parent=223 // pred_region
          _
        $region328: #{tpu_custom_call.1} parent=223 // pred_fallthru
          _
      $region224: #{tpu_custom_call.1} parent=5 // pred_fallthru
        _
      %p7081 = scmp.le.s32.totalorder 2, %s126
      // Predicated region
      $region329: #{tpu_custom_call.1} parent=5 // pred_check
        %p7082 = pneg %p7081
      $region330: #{tpu_custom_call.1} parent=5 // pred_check_branch
        %7084 = sbr.rel (%p7082) target = $region332
      $region331: #{tpu_custom_call.1} parent=5 // pred_region
        %s7085 = ssub.s32 %s126, 2
        // Predicated region
        $region333: #{tpu_custom_call.1} parent=331 // pred_check
          %p7086 = pneg %p1236
        $region334: #{tpu_custom_call.1} parent=331 // pred_check_branch
          %7088 = sbr.rel (%p7086) target = $region336
        $region335: #{tpu_custom_call.1} parent=331 // pred_region
          %p7089 = scmp.lt.s32.totalorder %s132, 1
          %s7090 = scalar_select %p7089, %s132, 1
          %s7091 = smul.addr %s7090, 8
          %s7092 = scalar_lea.vmem %s103, %s7091
        $region336: #{tpu_custom_call.1} parent=331 // pred_fallthru
          _
      $region332: #{tpu_custom_call.1} parent=5 // pred_fallthru
        _
    $region6: #{tpu_custom_call.1} parent=1 // loop_footer
      %s130 = sadd.s32 1, %s126
    $region7: #{tpu_custom_call.1} parent=1 // loop_footer_branch
      %125 = sbr.rel target = $region3
    $region8: #{tpu_custom_call.1} parent=1 // loop_exit
      _
    %7093 = vsyncpa [#allocation5], 1
    %s7094 = scalar_lea.sflag [#allocation5], 1
    %7095 = vsyncpa %s7094, 1
    %7096 = vsyncpa [#allocation7], 1
    %7097 = vsyncpa [#allocation10], 1
    %7098 = vsyncpa [#allocation13], 1
    %7099 = vsyncpa [#allocation16], 1
    %7100 = vsyncpa [#allocation19], 1
    %7101 = vsyncpa [#allocation22], 1
    %7102 = vsyncpa [#allocation25], 1
    %7103 = vsyncpa [#allocation28], 1
    %7104 = vsyncpa [#allocation31], 1
    %7105 = vsyncpa [#allocation34], 1
    %7106 = vsyncpa [#allocation37], 1
    %7107 = vsyncpa [#allocation40], 1

</llo_original>
